<compile_context>
chip_gen: v7x
topology: tpu7x:2x2x1
jax: 0.10.0
libtpu: 0.0.40
codegen_flags: <defaults>
</compile_context>

<pallas_src>
import functools

import jax
import jax.numpy as jnp
from jax.experimental import pallas as pl
from jax.experimental.pallas import tpu as pltpu

IN_FEATURES = 28 * 28
HIDDEN = 512
NUM_CLASSES = 10
OUT_PAD = 128      # lane-dense padded output width
BATCH_GRANULE = 16  # bf16 sublane tile height


def _round_up(n, m):
    return ((n + m - 1) // m) * m


def _act_dtype():
    """bf16 element-wise epilogue only on chips with a bf16 VPU/EUP (v6e/v7x)."""
    try:
        kind = jax.devices()[0].device_kind.lower()
    except Exception:
        return jnp.float32
    return jnp.bfloat16 if ("v6" in kind or "v7" in kind) else jnp.float32


def _mlp_kernel(x_ref, w1_ref, b14_ref, wh_ref, w5_ref, b5_ref, out_ref, *, act_dtype):
    b14 = b14_ref[...]                 # (4, 512) f32 biases for layers 1..4

    def sigmoid(z):
        # Logistic via tanh: one EUP push instead of exp + divide.
        z = z.astype(act_dtype)
        return 0.5 * jnp.tanh(0.5 * z) + 0.5

    def dense(h, w, b_row):
        # bf16 x bf16 MXU matmul, f32 accumulation; bias add in f32.
        return jnp.dot(h.astype(jnp.bfloat16), w,
                       preferred_element_type=jnp.float32) + b_row

    h = sigmoid(dense(x_ref[...], w1_ref[...], b14[0:1, :]))
    for i in range(3):                 # three resident 512x512 hidden layers
        h = sigmoid(dense(h, wh_ref[i], b14[i + 1:i + 2, :]))

    logits = dense(h, w5_ref[...], b5_ref[...])      # (TB, 128) f32; lanes >= 10 are pad

    # Masked, numerically stable softmax over the first NUM_CLASSES lanes.
    col = jax.lax.broadcasted_iota(jnp.int32, logits.shape, 1)
    logits = jnp.where(col < NUM_CLASSES, logits, jnp.float32(-1e30))
    m = jnp.max(logits, axis=-1, keepdims=True)
    e = jnp.exp(logits - m)
    inv = pl.reciprocal(jnp.sum(e, axis=-1, keepdims=True), approx=True)
    out_ref[...] = (e * inv).astype(out_ref.dtype)


def mlp_forward(x_nchw, packed):
    """x_nchw: (B, 1, 28, 28) f32.  packed: (w1_bf16, b14_f32, wh_bf16, w5p_bf16, b5p_f32)."""
    w1, b14, wh, w5p, b5p = packed
    B = x_nchw.shape[0]
    x = x_nchw.reshape(B, IN_FEATURES).astype(jnp.bfloat16)   # bf16 activation stream

    # Batch tiling: granularity 16 (bf16 sublane tile), cap 1024 rows.
    Bg = _round_up(max(B, 1), BATCH_GRANULE)
    TB = min(1024, Bg)
    # v7x megacore: once there is enough batch, split into >= 2 grid steps so the
    # "parallel" axis can shard across both TensorCores.
    if Bg >= 512:
        TB = min(TB, _round_up(-(-Bg // 2), BATCH_GRANULE))
    B_pad = _round_up(Bg, TB)
    if B_pad != B:
        x = jnp.pad(x, ((0, B_pad - B), (0, 0)))
    num_tiles = B_pad // TB

    act_dtype = _act_dtype()
    kernel = functools.partial(_mlp_kernel, act_dtype=act_dtype)

    flops = 2 * B_pad * (IN_FEATURES * HIDDEN + 3 * HIDDEN * HIDDEN + HIDDEN * OUT_PAD)
    transcendentals = B_pad * (4 * HIDDEN + OUT_PAD)
    bytes_accessed = (x.size * 2                                  # bf16 activations in
                      + (w1.size + wh.size + w5p.size) * 2        # bf16 weights
                      + (b14.size + b5p.size) * 4                 # f32 biases
                      + B_pad * OUT_PAD * 2)                      # bf16 probs out

    def build(single_buffer):
        def resident(shape):
            index_map = lambda i, _n=len(shape): (0,) * _n
            if single_buffer and hasattr(pl, "Buffered"):
                try:
                    # Constant block index across the grid -> one buffer is enough.
                    return pl.BlockSpec(shape, index_map, pipeline_mode=pl.Buffered(1))
                except TypeError:
                    pass
            return pl.BlockSpec(shape, index_map)

        return pl.pallas_call(
            kernel,
            out_shape=jax.ShapeDtypeStruct((B_pad, OUT_PAD), jnp.bfloat16),
            grid_spec=pltpu.PrefetchScalarGridSpec(
                num_scalar_prefetch=0,
                grid=(num_tiles,),
                in_specs=[
                    pl.BlockSpec((TB, IN_FEATURES), lambda i: (i, 0)),  # activations: streamed
                    resident(w1.shape),     # (784, 512)    bf16
                    resident(b14.shape),    # (4, 512)      f32
                    resident(wh.shape),     # (3, 512, 512) bf16
                    resident(w5p.shape),    # (512, 128)    bf16
                    resident(b5p.shape),    # (1, 128)      f32
                ],
                out_specs=pl.BlockSpec((TB, OUT_PAD), lambda i: (i, 0)),
            ),
            compiler_params=pltpu.CompilerParams(
                dimension_semantics=("parallel",),
                vmem_limit_bytes=48 * 1024 * 1024),
            cost_estimate=pl.CostEstimate(
                flops=flops,
                transcendentals=transcendentals,
                bytes_accessed=bytes_accessed),
        )

    try:
        out = build(single_buffer=True)(x, w1, b14, wh, w5p, b5p)
        out = jax.block_until_ready(out)
    except Exception:
        # This jax/Mosaic version rejects single-buffered resident operands;
        # fall back to default double-buffering (costs ~2.4 MiB extra VMEM).
        out = build(single_buffer=False)(x, w1, b14, wh, w5p, b5p)

    return out[:B, :NUM_CLASSES].astype(jnp.float32)


def init_params(key):
    """Deterministic init matching nn.Linear fan-in bounds (weights stored transposed (in,out))."""
    dims = [(IN_FEATURES, HIDDEN), (HIDDEN, HIDDEN), (HIDDEN, HIDDEN),
            (HIDDEN, HIDDEN), (HIDDEN, NUM_CLASSES)]
    params = []
    for i, (fan_in, fan_out) in enumerate(dims):
        kw, kb = jax.random.split(jax.random.fold_in(key, i))
        bound = 1.0 / jnp.sqrt(jnp.float32(fan_in))
        w_t = jax.random.uniform(kw, (fan_in, fan_out), jnp.float32, -bound, bound)
        b = jax.random.uniform(kb, (1, fan_out), jnp.float32, -bound, bound)
        params.append((w_t, b))
    return params


def pack_params(params):
    """Pack f32 (in,out) weights/biases into the kernel's fused bf16/f32 layout."""
    (w1, b1), (w2, b2), (w3, b3), (w4, b4), (w5, b5) = params
    w1p = w1.astype(jnp.bfloat16)                                      # (784, 512)
    whp = jnp.stack([w2, w3, w4], axis=0).astype(jnp.bfloat16)         # (3, 512, 512)
    b14 = jnp.concatenate([b1, b2, b3, b4], axis=0)                    # (4, 512) f32
    w5p = jnp.zeros((HIDDEN, OUT_PAD), jnp.float32)
    w5p = w5p.at[:, :NUM_CLASSES].set(w5).astype(jnp.bfloat16)         # (512, 128)
    b5p = jnp.zeros((1, OUT_PAD), jnp.float32).at[:, :NUM_CLASSES].set(b5)
    return w1p, b14, whp, w5p, b5p


def mlp_reference(x_nchw, params):
    """Pure-JAX reference with the same bf16 weight casts / f32 accumulation."""
    h = x_nchw.reshape(x_nchw.shape[0], IN_FEATURES).astype(jnp.float32)
    for idx, (w, b) in enumerate(params):
        h = jnp.dot(h.astype(jnp.bfloat16), w.astype(jnp.bfloat16),
                    preferred_element_type=jnp.float32) + b
        if idx < len(params) - 1:
            h = jax.nn.sigmoid(h)
    return jax.nn.softmax(h, axis=-1)


if __name__ == "__main__":
    key = jax.random.PRNGKey(0)
    kx, kp = jax.random.split(key)

    B = 8
    x = jax.random.normal(kx, (B, 1, 28, 28), jnp.float32)  # NCHW input
    params = init_params(kp)
    packed = pack_params(params)

    probs = mlp_forward(x, packed)
    probs = jax.block_until_ready(probs)

    # Sanity: shape, softmax rows sum to ~1 (bf16 store + approx reciprocal),
    # and matches the pure-JAX reference forward pass.
    assert probs.shape == (B, NUM_CLASSES)
    row_sums = jnp.sum(probs, axis=1)
    assert bool(jnp.all(jnp.abs(row_sums - 1.0) < 2e-2)), row_sums

    ref = mlp_reference(x, params)
    assert bool(jnp.allclose(probs, ref, atol=1e-2, rtol=1e-2)), float(jnp.max(jnp.abs(probs - ref)))

    print("KERNEL_OK")
</pallas_src>

<mosaic_0001>
module attributes {stable_mosaic.version = 11 : i64} {
  func.func @_mlp_kernel(%arg0: i32, %arg1: memref<16x784xbf16, #tpu.memory_space<vmem>>, %arg2: memref<784x512xbf16, #tpu.memory_space<vmem>>, %arg3: memref<4x512xf32, #tpu.memory_space<vmem>>, %arg4: memref<3x512x512xbf16, #tpu.memory_space<vmem>>, %arg5: memref<512x128xbf16, #tpu.memory_space<vmem>>, %arg6: memref<1x128xf32, #tpu.memory_space<vmem>>, %arg7: memref<16x128xbf16, #tpu.memory_space<vmem>>) attributes {dimension_semantics = [#tpu.dimension_semantics<parallel>], iteration_bounds = array<i64: 1>, scalar_prefetch = 0 : i64, scratch_operands = 0 : i64, tpu.core_type = #tpu.core_type<tc>, window_params = [{transform_indices = @transform_0, window_bounds = array<i64: 16, 784>}, {pipeline_mode = #tpu.pipeline_mode<synchronous>, transform_indices = @transform_1, window_bounds = array<i64: 784, 512>}, {pipeline_mode = #tpu.pipeline_mode<synchronous>, transform_indices = @transform_2, window_bounds = array<i64: 4, 512>}, {pipeline_mode = #tpu.pipeline_mode<synchronous>, transform_indices = @transform_3, window_bounds = array<i64: 3, 512, 512>}, {pipeline_mode = #tpu.pipeline_mode<synchronous>, transform_indices = @transform_4, window_bounds = array<i64: 512, 128>}, {pipeline_mode = #tpu.pipeline_mode<synchronous>, transform_indices = @transform_5, window_bounds = array<i64: 1, 128>}, {transform_indices = @transform_6, window_bounds = array<i64: 16, 128>}]} {
    %c0 = arith.constant 0 : index
    %c0_0 = arith.constant 0 : index
    %0 = vector.load %arg3[%c0, %c0_0] : memref<4x512xf32, #tpu.memory_space<vmem>>, vector<4x512xf32>
    %c0_1 = arith.constant 0 : index
    %c0_2 = arith.constant 0 : index
    %1 = vector.load %arg1[%c0_1, %c0_2] : memref<16x784xbf16, #tpu.memory_space<vmem>>, vector<16x784xbf16>
    %c0_3 = arith.constant 0 : index
    %c0_4 = arith.constant 0 : index
    %2 = vector.load %arg2[%c0_3, %c0_4] : memref<784x512xbf16, #tpu.memory_space<vmem>>, vector<784x512xbf16>
    %3 = vector.extract_strided_slice %0 {offsets = [0, 0], sizes = [1, 512], strides = [1, 1]} : vector<4x512xf32> to vector<1x512xf32>
    %cst = arith.constant dense<0.000000e+00> : vector<16x512xf32>
    %4 = tpu.matmul %1, %2, %cst {dimension_numbers = #tpu.dot_dimension_numbers<[1], [0], [0], [1], [0, 0, 1, 1], [], []>} : vector<16x784xbf16>, vector<784x512xbf16>, vector<16x512xf32> -> vector<16x512xf32>
    %5 = vector.broadcast %3 : vector<1x512xf32> to vector<16x512xf32>
    %6 = arith.addf %4, %5 : vector<16x512xf32>
    %cst_5 = arith.constant 5.000000e-01 : f32
    %7 = vector.broadcast %cst_5 : f32 to vector<16x512xf32>
    %8 = arith.mulf %7, %6 : vector<16x512xf32>
    %9 = math.tanh %8 : vector<16x512xf32>
    %cst_6 = arith.constant 5.000000e-01 : f32
    %10 = vector.broadcast %cst_6 : f32 to vector<16x512xf32>
    %11 = arith.mulf %10, %9 : vector<16x512xf32>
    %cst_7 = arith.constant 5.000000e-01 : f32
    %12 = vector.broadcast %cst_7 : f32 to vector<16x512xf32>
    %13 = arith.addf %11, %12 : vector<16x512xf32>
    %c0_8 = arith.constant 0 : index
    %c0_9 = arith.constant 0 : index
    %c0_10 = arith.constant 0 : index
    %14 = vector.load %arg4[%c0_8, %c0_9, %c0_10] : memref<3x512x512xbf16, #tpu.memory_space<vmem>>, vector<1x512x512xbf16>
    %15 = vector.shape_cast %14 : vector<1x512x512xbf16> to vector<512x512xbf16>
    %16 = vector.extract_strided_slice %0 {offsets = [1, 0], sizes = [1, 512], strides = [1, 1]} : vector<4x512xf32> to vector<1x512xf32>
    %17 = arith.truncf %13 : vector<16x512xf32> to vector<16x512xbf16>
    %cst_11 = arith.constant dense<0.000000e+00> : vector<16x512xf32>
    %18 = tpu.matmul %17, %15, %cst_11 {dimension_numbers = #tpu.dot_dimension_numbers<[1], [0], [0], [1], [0, 0, 1, 1], [], []>} : vector<16x512xbf16>, vector<512x512xbf16>, vector<16x512xf32> -> vector<16x512xf32>
    %19 = vector.broadcast %16 : vector<1x512xf32> to vector<16x512xf32>
    %20 = arith.addf %18, %19 : vector<16x512xf32>
    %cst_12 = arith.constant 5.000000e-01 : f32
    %21 = vector.broadcast %cst_12 : f32 to vector<16x512xf32>
    %22 = arith.mulf %21, %20 : vector<16x512xf32>
    %23 = math.tanh %22 : vector<16x512xf32>
    %cst_13 = arith.constant 5.000000e-01 : f32
    %24 = vector.broadcast %cst_13 : f32 to vector<16x512xf32>
    %25 = arith.mulf %24, %23 : vector<16x512xf32>
    %cst_14 = arith.constant 5.000000e-01 : f32
    %26 = vector.broadcast %cst_14 : f32 to vector<16x512xf32>
    %27 = arith.addf %25, %26 : vector<16x512xf32>
    %c1 = arith.constant 1 : index
    %c0_15 = arith.constant 0 : index
    %c0_16 = arith.constant 0 : index
    %28 = vector.load %arg4[%c1, %c0_15, %c0_16] : memref<3x512x512xbf16, #tpu.memory_space<vmem>>, vector<1x512x512xbf16>
    %29 = vector.shape_cast %28 : vector<1x512x512xbf16> to vector<512x512xbf16>
    %30 = vector.extract_strided_slice %0 {offsets = [2, 0], sizes = [1, 512], strides = [1, 1]} : vector<4x512xf32> to vector<1x512xf32>
    %31 = arith.truncf %27 : vector<16x512xf32> to vector<16x512xbf16>
    %cst_17 = arith.constant dense<0.000000e+00> : vector<16x512xf32>
    %32 = tpu.matmul %31, %29, %cst_17 {dimension_numbers = #tpu.dot_dimension_numbers<[1], [0], [0], [1], [0, 0, 1, 1], [], []>} : vector<16x512xbf16>, vector<512x512xbf16>, vector<16x512xf32> -> vector<16x512xf32>
    %33 = vector.broadcast %30 : vector<1x512xf32> to vector<16x512xf32>
    %34 = arith.addf %32, %33 : vector<16x512xf32>
    %cst_18 = arith.constant 5.000000e-01 : f32
    %35 = vector.broadcast %cst_18 : f32 to vector<16x512xf32>
    %36 = arith.mulf %35, %34 : vector<16x512xf32>
    %37 = math.tanh %36 : vector<16x512xf32>
    %cst_19 = arith.constant 5.000000e-01 : f32
    %38 = vector.broadcast %cst_19 : f32 to vector<16x512xf32>
    %39 = arith.mulf %38, %37 : vector<16x512xf32>
    %cst_20 = arith.constant 5.000000e-01 : f32
    %40 = vector.broadcast %cst_20 : f32 to vector<16x512xf32>
    %41 = arith.addf %39, %40 : vector<16x512xf32>
    %c2 = arith.constant 2 : index
    %c0_21 = arith.constant 0 : index
    %c0_22 = arith.constant 0 : index
    %42 = vector.load %arg4[%c2, %c0_21, %c0_22] : memref<3x512x512xbf16, #tpu.memory_space<vmem>>, vector<1x512x512xbf16>
    %43 = vector.shape_cast %42 : vector<1x512x512xbf16> to vector<512x512xbf16>
    %44 = vector.extract_strided_slice %0 {offsets = [3, 0], sizes = [1, 512], strides = [1, 1]} : vector<4x512xf32> to vector<1x512xf32>
    %45 = arith.truncf %41 : vector<16x512xf32> to vector<16x512xbf16>
    %cst_23 = arith.constant dense<0.000000e+00> : vector<16x512xf32>
    %46 = tpu.matmul %45, %43, %cst_23 {dimension_numbers = #tpu.dot_dimension_numbers<[1], [0], [0], [1], [0, 0, 1, 1], [], []>} : vector<16x512xbf16>, vector<512x512xbf16>, vector<16x512xf32> -> vector<16x512xf32>
    %47 = vector.broadcast %44 : vector<1x512xf32> to vector<16x512xf32>
    %48 = arith.addf %46, %47 : vector<16x512xf32>
    %cst_24 = arith.constant 5.000000e-01 : f32
    %49 = vector.broadcast %cst_24 : f32 to vector<16x512xf32>
    %50 = arith.mulf %49, %48 : vector<16x512xf32>
    %51 = math.tanh %50 : vector<16x512xf32>
    %cst_25 = arith.constant 5.000000e-01 : f32
    %52 = vector.broadcast %cst_25 : f32 to vector<16x512xf32>
    %53 = arith.mulf %52, %51 : vector<16x512xf32>
    %cst_26 = arith.constant 5.000000e-01 : f32
    %54 = vector.broadcast %cst_26 : f32 to vector<16x512xf32>
    %55 = arith.addf %53, %54 : vector<16x512xf32>
    %c0_27 = arith.constant 0 : index
    %c0_28 = arith.constant 0 : index
    %56 = vector.load %arg5[%c0_27, %c0_28] : memref<512x128xbf16, #tpu.memory_space<vmem>>, vector<512x128xbf16>
    %c0_29 = arith.constant 0 : index
    %c0_30 = arith.constant 0 : index
    %57 = vector.load %arg6[%c0_29, %c0_30] : memref<1x128xf32, #tpu.memory_space<vmem>>, vector<1x128xf32>
    %58 = arith.truncf %55 : vector<16x512xf32> to vector<16x512xbf16>
    %cst_31 = arith.constant dense<0.000000e+00> : vector<16x128xf32>
    %59 = tpu.matmul %58, %56, %cst_31 {dimension_numbers = #tpu.dot_dimension_numbers<[1], [0], [0], [1], [0, 0, 1, 1], [], []>} : vector<16x512xbf16>, vector<512x128xbf16>, vector<16x128xf32> -> vector<16x128xf32>
    %60 = vector.broadcast %57 : vector<1x128xf32> to vector<16x128xf32>
    %61 = arith.addf %59, %60 : vector<16x128xf32>
    %62 = tpu.iota {dimensions = array<i32: 1>} : vector<16x128xi32>
    %c10_i32 = arith.constant 10 : i32
    %63 = vector.broadcast %c10_i32 : i32 to vector<16x128xi32>
    %64 = arith.cmpi slt, %62, %63 : vector<16x128xi32>
    %cst_32 = arith.constant -1.000000e+30 : f32
    %65 = vector.broadcast %cst_32 : f32 to vector<16x128xf32>
    %66 = arith.select %64, %61, %65 : vector<16x128xi1>, vector<16x128xf32>
    %cst_33 = arith.constant dense<0xFF800000> : vector<16xf32>
    %67 = vector.multi_reduction <maximumf>, %66, %cst_33 [1] : vector<16x128xf32> to vector<16xf32>
    %68 = vector.shape_cast %67 : vector<16xf32> to vector<16x1xf32>
    %69 = vector.broadcast %68 : vector<16x1xf32> to vector<16x128xf32>
    %70 = arith.subf %66, %69 : vector<16x128xf32>
    %71 = math.exp %70 : vector<16x128xf32>
    %cst_34 = arith.constant dense<0.000000e+00> : vector<16xf32>
    %72 = vector.multi_reduction <add>, %71, %cst_34 [1] : vector<16x128xf32> to vector<16xf32>
    %73 = vector.shape_cast %72 : vector<16xf32> to vector<16x1xf32>
    %74 = tpu.reciprocal %73 {approx = true} : vector<16x1xf32> -> vector<16x1xf32>
    %75 = vector.broadcast %74 : vector<16x1xf32> to vector<16x128xf32>
    %76 = arith.mulf %71, %75 : vector<16x128xf32>
    %77 = arith.truncf %76 : vector<16x128xf32> to vector<16x128xbf16>
    %c0_35 = arith.constant 0 : index
    %c0_36 = arith.constant 0 : index
    %78 = vector.load %arg7[%c0_35, %c0_36] : memref<16x128xbf16, #tpu.memory_space<vmem>>, vector<16x128xbf16>
    tpu.vector_store %arg7[%c0_35, %c0_36], %77 {strides = array<i32>} : memref<16x128xbf16, #tpu.memory_space<vmem>>, vector<16x128xbf16>,
    return
  }
  func.func @transform_0(%arg0: i32) -> (i32, i32) {
    %c0_i32 = arith.constant 0 : i32
    %c0_i32_0 = arith.constant 0 : i32
    return %arg0, %c0_i32 : i32, i32
  }
  func.func @transform_1(%arg0: i32) -> (i32, i32) {
    %c0_i32 = arith.constant 0 : i32
    %c0_i32_0 = arith.constant 0 : i32
    %c0_i32_1 = arith.constant 0 : i32
    return %c0_i32, %c0_i32_0 : i32, i32
  }
  func.func @transform_2(%arg0: i32) -> (i32, i32) {
    %c0_i32 = arith.constant 0 : i32
    %c0_i32_0 = arith.constant 0 : i32
    %c0_i32_1 = arith.constant 0 : i32
    return %c0_i32, %c0_i32_0 : i32, i32
  }
  func.func @transform_3(%arg0: i32) -> (i32, i32, i32) {
    %c0_i32 = arith.constant 0 : i32
    %c0_i32_0 = arith.constant 0 : i32
    %c0_i32_1 = arith.constant 0 : i32
    %c0_i32_2 = arith.constant 0 : i32
    return %c0_i32, %c0_i32_0, %c0_i32_1 : i32, i32, i32
  }
  func.func @transform_4(%arg0: i32) -> (i32, i32) {
    %c0_i32 = arith.constant 0 : i32
    %c0_i32_0 = arith.constant 0 : i32
    %c0_i32_1 = arith.constant 0 : i32
    return %c0_i32, %c0_i32_0 : i32, i32
  }
  func.func @transform_5(%arg0: i32) -> (i32, i32) {
    %c0_i32 = arith.constant 0 : i32
    %c0_i32_0 = arith.constant 0 : i32
    %c0_i32_1 = arith.constant 0 : i32
    return %c0_i32, %c0_i32_0 : i32, i32
  }
  func.func @transform_6(%arg0: i32) -> (i32, i32) {
    %c0_i32 = arith.constant 0 : i32
    %c0_i32_0 = arith.constant 0 : i32
    return %arg0, %c0_i32 : i32, i32
  }
}

module attributes {stable_mosaic.version = 11 : i64} {
  func.func @_mlp_kernel(%arg0: i32, %arg1: memref<16x784xbf16, #tpu.memory_space<vmem>>, %arg2: memref<784x512xbf16, #tpu.memory_space<vmem>>, %arg3: memref<4x512xf32, #tpu.memory_space<vmem>>, %arg4: memref<3x512x512xbf16, #tpu.memory_space<vmem>>, %arg5: memref<512x128xbf16, #tpu.memory_space<vmem>>, %arg6: memref<1x128xf32, #tpu.memory_space<vmem>>, %arg7: memref<16x128xbf16, #tpu.memory_space<vmem>>) attributes {dimension_semantics = [#tpu.dimension_semantics<parallel>], iteration_bounds = array<i64: 1>, scalar_prefetch = 0 : i64, scratch_operands = 0 : i64, tpu.core_type = #tpu.core_type<tc>, window_params = [{transform_indices = @transform_0, window_bounds = array<i64: 16, 784>}, {pipeline_mode = #tpu.pipeline_mode<synchronous>, transform_indices = @transform_1, window_bounds = array<i64: 784, 512>}, {pipeline_mode = #tpu.pipeline_mode<synchronous>, transform_indices = @transform_2, window_bounds = array<i64: 4, 512>}, {pipeline_mode = #tpu.pipeline_mode<synchronous>, transform_indices = @transform_3, window_bounds = array<i64: 3, 512, 512>}, {pipeline_mode = #tpu.pipeline_mode<synchronous>, transform_indices = @transform_4, window_bounds = array<i64: 512, 128>}, {pipeline_mode = #tpu.pipeline_mode<synchronous>, transform_indices = @transform_5, window_bounds = array<i64: 1, 128>}, {transform_indices = @transform_6, window_bounds = array<i64: 16, 128>}]} {
    %c0 = arith.constant 0 : index
    %c0_0 = arith.constant 0 : index
    %0 = vector.load %arg3[%c0, %c0_0] : memref<4x512xf32, #tpu.memory_space<vmem>>, vector<4x512xf32>
    %c0_1 = arith.constant 0 : index
    %c0_2 = arith.constant 0 : index
    %1 = vector.load %arg1[%c0_1, %c0_2] : memref<16x784xbf16, #tpu.memory_space<vmem>>, vector<16x784xbf16>
    %c0_3 = arith.constant 0 : index
    %c0_4 = arith.constant 0 : index
    %2 = vector.load %arg2[%c0_3, %c0_4] : memref<784x512xbf16, #tpu.memory_space<vmem>>, vector<784x512xbf16>
    %3 = vector.extract_strided_slice %0 {offsets = [0, 0], sizes = [1, 512], strides = [1, 1]} : vector<4x512xf32> to vector<1x512xf32>
    %cst = arith.constant dense<0.000000e+00> : vector<16x512xf32>
    %4 = tpu.matmul %1, %2, %cst {dimension_numbers = #tpu.dot_dimension_numbers<[1], [0], [0], [1], [0, 0, 1, 1], [], []>} : vector<16x784xbf16>, vector<784x512xbf16>, vector<16x512xf32> -> vector<16x512xf32>
    %5 = vector.broadcast %3 : vector<1x512xf32> to vector<16x512xf32>
    %6 = arith.addf %4, %5 : vector<16x512xf32>
    %cst_5 = arith.constant 5.000000e-01 : f32
    %7 = vector.broadcast %cst_5 : f32 to vector<16x512xf32>
    %8 = arith.mulf %7, %6 : vector<16x512xf32>
    %9 = math.tanh %8 : vector<16x512xf32>
    %cst_6 = arith.constant 5.000000e-01 : f32
    %10 = vector.broadcast %cst_6 : f32 to vector<16x512xf32>
    %11 = arith.mulf %10, %9 : vector<16x512xf32>
    %cst_7 = arith.constant 5.000000e-01 : f32
    %12 = vector.broadcast %cst_7 : f32 to vector<16x512xf32>
    %13 = arith.addf %11, %12 : vector<16x512xf32>
    %c0_8 = arith.constant 0 : index
    %c0_9 = arith.constant 0 : index
    %c0_10 = arith.constant 0 : index
    %14 = vector.load %arg4[%c0_8, %c0_9, %c0_10] : memref<3x512x512xbf16, #tpu.memory_space<vmem>>, vector<1x512x512xbf16>
    %15 = vector.shape_cast %14 : vector<1x512x512xbf16> to vector<512x512xbf16>
    %16 = vector.extract_strided_slice %0 {offsets = [1, 0], sizes = [1, 512], strides = [1, 1]} : vector<4x512xf32> to vector<1x512xf32>
    %17 = arith.truncf %13 : vector<16x512xf32> to vector<16x512xbf16>
    %cst_11 = arith.constant dense<0.000000e+00> : vector<16x512xf32>
    %18 = tpu.matmul %17, %15, %cst_11 {dimension_numbers = #tpu.dot_dimension_numbers<[1], [0], [0], [1], [0, 0, 1, 1], [], []>} : vector<16x512xbf16>, vector<512x512xbf16>, vector<16x512xf32> -> vector<16x512xf32>
    %19 = vector.broadcast %16 : vector<1x512xf32> to vector<16x512xf32>
    %20 = arith.addf %18, %19 : vector<16x512xf32>
    %cst_12 = arith.constant 5.000000e-01 : f32
    %21 = vector.broadcast %cst_12 : f32 to vector<16x512xf32>
    %22 = arith.mulf %21, %20 : vector<16x512xf32>
    %23 = math.tanh %22 : vector<16x512xf32>
    %cst_13 = arith.constant 5.000000e-01 : f32
    %24 = vector.broadcast %cst_13 : f32 to vector<16x512xf32>
    %25 = arith.mulf %24, %23 : vector<16x512xf32>
    %cst_14 = arith.constant 5.000000e-01 : f32
    %26 = vector.broadcast %cst_14 : f32 to vector<16x512xf32>
    %27 = arith.addf %25, %26 : vector<16x512xf32>
    %c1 = arith.constant 1 : index
    %c0_15 = arith.constant 0 : index
    %c0_16 = arith.constant 0 : index
    %28 = vector.load %arg4[%c1, %c0_15, %c0_16] : memref<3x512x512xbf16, #tpu.memory_space<vmem>>, vector<1x512x512xbf16>
    %29 = vector.shape_cast %28 : vector<1x512x512xbf16> to vector<512x512xbf16>
    %30 = vector.extract_strided_slice %0 {offsets = [2, 0], sizes = [1, 512], strides = [1, 1]} : vector<4x512xf32> to vector<1x512xf32>
    %31 = arith.truncf %27 : vector<16x512xf32> to vector<16x512xbf16>
    %cst_17 = arith.constant dense<0.000000e+00> : vector<16x512xf32>
    %32 = tpu.matmul %31, %29, %cst_17 {dimension_numbers = #tpu.dot_dimension_numbers<[1], [0], [0], [1], [0, 0, 1, 1], [], []>} : vector<16x512xbf16>, vector<512x512xbf16>, vector<16x512xf32> -> vector<16x512xf32>
    %33 = vector.broadcast %30 : vector<1x512xf32> to vector<16x512xf32>
    %34 = arith.addf %32, %33 : vector<16x512xf32>
    %cst_18 = arith.constant 5.000000e-01 : f32
    %35 = vector.broadcast %cst_18 : f32 to vector<16x512xf32>
    %36 = arith.mulf %35, %34 : vector<16x512xf32>
    %37 = math.tanh %36 : vector<16x512xf32>
    %cst_19 = arith.constant 5.000000e-01 : f32
    %38 = vector.broadcast %cst_19 : f32 to vector<16x512xf32>
    %39 = arith.mulf %38, %37 : vector<16x512xf32>
    %cst_20 = arith.constant 5.000000e-01 : f32
    %40 = vector.broadcast %cst_20 : f32 to vector<16x512xf32>
    %41 = arith.addf %39, %40 : vector<16x512xf32>
    %c2 = arith.constant 2 : index
    %c0_21 = arith.constant 0 : index
    %c0_22 = arith.constant 0 : index
    %42 = vector.load %arg4[%c2, %c0_21, %c0_22] : memref<3x512x512xbf16, #tpu.memory_space<vmem>>, vector<1x512x512xbf16>
    %43 = vector.shape_cast %42 : vector<1x512x512xbf16> to vector<512x512xbf16>
    %44 = vector.extract_strided_slice %0 {offsets = [3, 0], sizes = [1, 512], strides = [1, 1]} : vector<4x512xf32> to vector<1x512xf32>
    %45 = arith.truncf %41 : vector<16x512xf32> to vector<16x512xbf16>
    %cst_23 = arith.constant dense<0.000000e+00> : vector<16x512xf32>
    %46 = tpu.matmul %45, %43, %cst_23 {dimension_numbers = #tpu.dot_dimension_numbers<[1], [0], [0], [1], [0, 0, 1, 1], [], []>} : vector<16x512xbf16>, vector<512x512xbf16>, vector<16x512xf32> -> vector<16x512xf32>
    %47 = vector.broadcast %44 : vector<1x512xf32> to vector<16x512xf32>
    %48 = arith.addf %46, %47 : vector<16x512xf32>
    %cst_24 = arith.constant 5.000000e-01 : f32
    %49 = vector.broadcast %cst_24 : f32 to vector<16x512xf32>
    %50 = arith.mulf %49, %48 : vector<16x512xf32>
    %51 = math.tanh %50 : vector<16x512xf32>
    %cst_25 = arith.constant 5.000000e-01 : f32
    %52 = vector.broadcast %cst_25 : f32 to vector<16x512xf32>
    %53 = arith.mulf %52, %51 : vector<16x512xf32>
    %cst_26 = arith.constant 5.000000e-01 : f32
    %54 = vector.broadcast %cst_26 : f32 to vector<16x512xf32>
    %55 = arith.addf %53, %54 : vector<16x512xf32>
    %c0_27 = arith.constant 0 : index
    %c0_28 = arith.constant 0 : index
    %56 = vector.load %arg5[%c0_27, %c0_28] : memref<512x128xbf16, #tpu.memory_space<vmem>>, vector<512x128xbf16>
    %c0_29 = arith.constant 0 : index
    %c0_30 = arith.constant 0 : index
    %57 = vector.load %arg6[%c0_29, %c0_30] : memref<1x128xf32, #tpu.memory_space<vmem>>, vector<1x128xf32>
    %58 = arith.truncf %55 : vector<16x512xf32> to vector<16x512xbf16>
    %cst_31 = arith.constant dense<0.000000e+00> : vector<16x128xf32>
    %59 = tpu.matmul %58, %56, %cst_31 {dimension_numbers = #tpu.dot_dimension_numbers<[1], [0], [0], [1], [0, 0, 1, 1], [], []>} : vector<16x512xbf16>, vector<512x128xbf16>, vector<16x128xf32> -> vector<16x128xf32>
    %60 = vector.broadcast %57 : vector<1x128xf32> to vector<16x128xf32>
    %61 = arith.addf %59, %60 : vector<16x128xf32>
    %62 = tpu.iota {dimensions = array<i32: 1>} : vector<16x128xi32>
    %c10_i32 = arith.constant 10 : i32
    %63 = vector.broadcast %c10_i32 : i32 to vector<16x128xi32>
    %64 = arith.cmpi slt, %62, %63 : vector<16x128xi32>
    %cst_32 = arith.constant -1.000000e+30 : f32
    %65 = vector.broadcast %cst_32 : f32 to vector<16x128xf32>
    %66 = arith.select %64, %61, %65 : vector<16x128xi1>, vector<16x128xf32>
    %cst_33 = arith.constant dense<0xFF800000> : vector<16xf32>
    %67 = vector.multi_reduction <maximumf>, %66, %cst_33 [1] : vector<16x128xf32> to vector<16xf32>
    %68 = vector.shape_cast %67 : vector<16xf32> to vector<16x1xf32>
    %69 = vector.broadcast %68 : vector<16x1xf32> to vector<16x128xf32>
    %70 = arith.subf %66, %69 : vector<16x128xf32>
    %71 = math.exp %70 : vector<16x128xf32>
    %cst_34 = arith.constant dense<0.000000e+00> : vector<16xf32>
    %72 = vector.multi_reduction <add>, %71, %cst_34 [1] : vector<16x128xf32> to vector<16xf32>
    %73 = vector.shape_cast %72 : vector<16xf32> to vector<16x1xf32>
    %74 = tpu.reciprocal %73 {approx = true} : vector<16x1xf32> -> vector<16x1xf32>
    %75 = vector.broadcast %74 : vector<16x1xf32> to vector<16x128xf32>
    %76 = arith.mulf %71, %75 : vector<16x128xf32>
    %77 = arith.truncf %76 : vector<16x128xf32> to vector<16x128xbf16>
    %c0_35 = arith.constant 0 : index
    %c0_36 = arith.constant 0 : index
    %78 = vector.load %arg7[%c0_35, %c0_36] : memref<16x128xbf16, #tpu.memory_space<vmem>>, vector<16x128xbf16>
    tpu.vector_store %arg7[%c0_35, %c0_36], %77 {strides = array<i32>} : memref<16x128xbf16, #tpu.memory_space<vmem>>, vector<16x128xbf16>,
    return
  }
  func.func @transform_0(%arg0: i32) -> (i32, i32) {
    %c0_i32 = arith.constant 0 : i32
    %c0_i32_0 = arith.constant 0 : i32
    return %arg0, %c0_i32 : i32, i32
  }
  func.func @transform_1(%arg0: i32) -> (i32, i32) {
    %c0_i32 = arith.constant 0 : i32
    %c0_i32_0 = arith.constant 0 : i32
    %c0_i32_1 = arith.constant 0 : i32
    return %c0_i32, %c0_i32_0 : i32, i32
  }
  func.func @transform_2(%arg0: i32) -> (i32, i32) {
    %c0_i32 = arith.constant 0 : i32
    %c0_i32_0 = arith.constant 0 : i32
    %c0_i32_1 = arith.constant 0 : i32
    return %c0_i32, %c0_i32_0 : i32, i32
  }
  func.func @transform_3(%arg0: i32) -> (i32, i32, i32) {
    %c0_i32 = arith.constant 0 : i32
    %c0_i32_0 = arith.constant 0 : i32
    %c0_i32_1 = arith.constant 0 : i32
    %c0_i32_2 = arith.constant 0 : i32
    return %c0_i32, %c0_i32_0, %c0_i32_1 : i32, i32, i32
  }
  func.func @transform_4(%arg0: i32) -> (i32, i32) {
    %c0_i32 = arith.constant 0 : i32
    %c0_i32_0 = arith.constant 0 : i32
    %c0_i32_1 = arith.constant 0 : i32
    return %c0_i32, %c0_i32_0 : i32, i32
  }
  func.func @transform_5(%arg0: i32) -> (i32, i32) {
    %c0_i32 = arith.constant 0 : i32
    %c0_i32_0 = arith.constant 0 : i32
    %c0_i32_1 = arith.constant 0 : i32
    return %c0_i32, %c0_i32_0 : i32, i32
  }
  func.func @transform_6(%arg0: i32) -> (i32, i32) {
    %c0_i32 = arith.constant 0 : i32
    %c0_i32_0 = arith.constant 0 : i32
    return %arg0, %c0_i32 : i32, i32
  }
}

</mosaic_0001>

<llo_original>
// kernel: tpu_custom_call.1
$region0: #{tpu_custom_call.1}
  #allocation0 [shape = 'u32[]', space=smem, size = 0x4, offset = 0x4, fixed_abs, tag = 'smem constant byte address 0x4 - core index']
  #allocation1 [shape = 'u32[144,128]{1,0:T(1,128)}', space=vmem, size = 0x12000, scoped, tag = 'internal scratch']
  %s0 = inlined_call_operand.hbm [shape: bf16[16,784], index: 0, kind: input, shape index: {}]
  %s1 = inlined_call_operand.hbm [shape: bf16[784,512], index: 1, kind: input, shape index: {}]
  %s2 = inlined_call_operand.hbm [shape: f32[4,512], index: 2, kind: input, shape index: {}]
  %s3 = inlined_call_operand.hbm [shape: bf16[3,512,512], index: 3, kind: input, shape index: {}]
  %s4 = inlined_call_operand.hbm [shape: bf16[512,128], index: 4, kind: input, shape index: {}]
  %s5 = inlined_call_operand.hbm [shape: f32[1,128], index: 5, kind: input, shape index: {}]
  %s6 = inlined_call_operand.hbm [shape: bf16[16,128], index: 6, kind: output, shape index: {}]
  %s7 = sld [smem:[#allocation0]]
  $region58: #{tpu_custom_call.1} parent=0
    _
  %s9 = ssub.s32 1, %s7
  %s10 = scalar_select 0, %s9, %s7
  $region1: #{tpu_custom_call.1} parent=0
    #allocation2 [shape = 'u8[28672]{0}', space=vmem, size = 0x7000, scoped, tag = 'input window, operand 0, single buffered']
    #allocation3 [shape = 's32[1]{0}', space=sflag, size = 0x4, scoped, tag = 'scoped memory for tpu_custom_call.1']
    #allocation4 [shape = 's32[1]{0}', space=sflag, size = 0x4, scoped, tag = 'scoped memory for tpu_custom_call.1']
    #allocation5 [shape = 'u8[802816]{0}', space=vmem, size = 0xc4000, scoped, tag = 'input window, operand 1, single buffered']
    #allocation6 [shape = 's32[1]{0}', space=sflag, size = 0x4, scoped, tag = 'scoped memory for tpu_custom_call.1']
    #allocation7 [shape = 'u8[8192]{0}', space=vmem, size = 0x2000, scoped, tag = 'input window, operand 2, single buffered']
    #allocation8 [shape = 'u8[1572864]{0}', space=vmem, size = 0x180000, scoped, tag = 'input window, operand 3, single buffered']
    #allocation9 [shape = 's32[1]{0}', space=sflag, size = 0x4, scoped, tag = 'scoped memory for tpu_custom_call.1']
    #allocation10 [shape = 'u8[131072]{0}', space=vmem, size = 0x20000, scoped, tag = 'input window, operand 4, single buffered']
    #allocation11 [shape = 'u8[512]{0}', space=vmem, size = 0x400, scoped, tag = 'input window, operand 5, single buffered']
    #allocation12 [shape = 's32[1]{0}', space=sflag, size = 0x4, scoped, tag = 'scoped memory for tpu_custom_call.1']
    #allocation13 [shape = 'u8[4096]{0}', space=vmem, size = 0x1000, scoped, tag = 'output window, operand 0, single buffered']
    %11 = vsyncpa [#allocation3], 0
    %12 = vsyncpa [#allocation6], 0
    %13 = vsyncpa [#allocation9], 0
    %14 = vsyncpa [#allocation12], 0
    %15 = vsyncpa [#allocation4], 0
    // Predicated region
    $region2: #{tpu_custom_call.1} parent=1 // pred_check
      _
    $region3: #{tpu_custom_call.1} parent=1 // pred_check_branch
      %17 = sbr.rel (0) target = $region5
    $region4: #{tpu_custom_call.1} parent=1 // pred_region
      %s19 = ssub.s32 896, 896
      %20 = vsyncadd [#allocation3], %s19
      %s21 = sshll.u32 [#allocation2], 4
      %s22 = int_to_ptr.vmem [resolvable:$true] %s21
      %27 = dma.hbm_to_vmem [thread:$0]  %s0, 896, %s22, [#allocation3], 448, 448, 28
    $region5: #{tpu_custom_call.1} parent=1 // pred_fallthru
      _
    // Predicated region
    $region6: #{tpu_custom_call.1} parent=1 // pred_check
      _
    $region7: #{tpu_custom_call.1} parent=1 // pred_check_branch
      %29 = sbr.rel (0) target = $region9
    $region8: #{tpu_custom_call.1} parent=1 // pred_region
      %s31 = ssub.s32 25088, 25088
      %32 = vsyncadd [#allocation6], %s31
      %s33 = sshll.u32 [#allocation5], 4
      %s34 = int_to_ptr.vmem [resolvable:$true] %s33
      %39 = dma.hbm_to_vmem [thread:$0]  %s1, 25088, %s34, [#allocation6], 256, 256, 16
    $region9: #{tpu_custom_call.1} parent=1 // pred_fallthru
      _
    // Predicated region
    $region10: #{tpu_custom_call.1} parent=1 // pred_check
      _
    $region11: #{tpu_custom_call.1} parent=1 // pred_check_branch
      %41 = sbr.rel (0) target = $region13
    $region12: #{tpu_custom_call.1} parent=1 // pred_region
      %s43 = ssub.s32 256, 256
      %44 = vsyncadd [#allocation6], %s43
      %s46 = sshll.u32 [#allocation7], 4
      %s47 = int_to_ptr.vmem [resolvable:$true] %s46
      %49 = dma.hbm_to_vmem [thread:$0]  %s2, 256, %s47, [#allocation6]
    $region13: #{tpu_custom_call.1} parent=1 // pred_fallthru
      _
    // Predicated region
    $region14: #{tpu_custom_call.1} parent=1 // pred_check
      _
    $region15: #{tpu_custom_call.1} parent=1 // pred_check_branch
      %51 = sbr.rel (0) target = $region17
    $region16: #{tpu_custom_call.1} parent=1 // pred_region
      %s53 = ssub.s32 49152, 49152
      %54 = vsyncadd [#allocation9], %s53
      %s55 = sshll.u32 [#allocation8], 4
      %s56 = int_to_ptr.vmem [resolvable:$true] %s55
      %61 = dma.hbm_to_vmem [thread:$0]  %s3, 49152, %s56, [#allocation9], 256, 256, 16
    $region17: #{tpu_custom_call.1} parent=1 // pred_fallthru
      _
    // Predicated region
    $region18: #{tpu_custom_call.1} parent=1 // pred_check
      _
    $region19: #{tpu_custom_call.1} parent=1 // pred_check_branch
      %63 = sbr.rel (0) target = $region21
    $region20: #{tpu_custom_call.1} parent=1 // pred_region
      %s65 = ssub.s32 4096, 4096
      %66 = vsyncadd [#allocation9], %s65
      %s67 = sshll.u32 [#allocation10], 4
      %s68 = int_to_ptr.vmem [resolvable:$true] %s67
      %73 = dma.hbm_to_vmem [thread:$0]  %s4, 4096, %s68, [#allocation9], 64, 64, 4
    $region21: #{tpu_custom_call.1} parent=1 // pred_fallthru
      _
    // Predicated region
    $region22: #{tpu_custom_call.1} parent=1 // pred_check
      _
    $region23: #{tpu_custom_call.1} parent=1 // pred_check_branch
      %75 = sbr.rel (0) target = $region25
    $region24: #{tpu_custom_call.1} parent=1 // pred_region
      %s77 = ssub.s32 16, 16
      %78 = vsyncadd [#allocation12], %s77
      %s80 = sshll.u32 [#allocation11], 4
      %s81 = int_to_ptr.vmem [resolvable:$true] %s80
      %83 = dma.hbm_to_vmem [thread:$0]  %s5, 16, %s81, [#allocation12]
    $region25: #{tpu_custom_call.1} parent=1 // pred_fallthru
      _
    // Predicated region
    $region26: #{tpu_custom_call.1} parent=1 // pred_check
      _
    $region27: #{tpu_custom_call.1} parent=1 // pred_check_branch
      %85 = sbr.rel (0) target = $region29
    $region28: #{tpu_custom_call.1} parent=1 // pred_region
      %86 = dma.done [#allocation3], 896
    $region29: #{tpu_custom_call.1} parent=1 // pred_fallthru
      _
    // Predicated region
    $region30: #{tpu_custom_call.1} parent=1 // pred_check
      _
    $region31: #{tpu_custom_call.1} parent=1 // pred_check_branch
      %88 = sbr.rel (0) target = $region33
    $region32: #{tpu_custom_call.1} parent=1 // pred_region
      %89 = dma.done [#allocation6], 25088
    $region33: #{tpu_custom_call.1} parent=1 // pred_fallthru
      _
    // Predicated region
    $region34: #{tpu_custom_call.1} parent=1 // pred_check
      _
    $region35: #{tpu_custom_call.1} parent=1 // pred_check_branch
      %91 = sbr.rel (0) target = $region37
    $region36: #{tpu_custom_call.1} parent=1 // pred_region
      %92 = dma.done [#allocation6], 256
    $region37: #{tpu_custom_call.1} parent=1 // pred_fallthru
      _
    // Predicated region
    $region38: #{tpu_custom_call.1} parent=1 // pred_check
      _
    $region39: #{tpu_custom_call.1} parent=1 // pred_check_branch
      %94 = sbr.rel (0) target = $region41
    $region40: #{tpu_custom_call.1} parent=1 // pred_region
      %95 = dma.done [#allocation9], 49152
    $region41: #{tpu_custom_call.1} parent=1 // pred_fallthru
      _
    // Predicated region
    $region42: #{tpu_custom_call.1} parent=1 // pred_check
      _
    $region43: #{tpu_custom_call.1} parent=1 // pred_check_branch
      %97 = sbr.rel (0) target = $region45
    $region44: #{tpu_custom_call.1} parent=1 // pred_region
      %98 = dma.done [#allocation9], 4096
    $region45: #{tpu_custom_call.1} parent=1 // pred_fallthru
      _
    // Predicated region
    $region46: #{tpu_custom_call.1} parent=1 // pred_check
      _
    $region47: #{tpu_custom_call.1} parent=1 // pred_check_branch
      %100 = sbr.rel (0) target = $region49
    $region48: #{tpu_custom_call.1} parent=1 // pred_region
      %101 = dma.done [#allocation12], 16
    $region49: #{tpu_custom_call.1} parent=1 // pred_fallthru
      _
    %v103 = vld [vmem:[#allocation7] sm:$0xff]
    %v104 = vld [vmem:[#allocation7 + $0x8] sm:$0xff]
    %v105 = vld [vmem:[#allocation2] sm:$0xff]
    %v106 = vld [vmem:[#allocation2 + $0x8] sm:$0xff]
    %v107 = vld [vmem:[#allocation2 + $0x10] sm:$0xff]
    %v108 = vld [vmem:[#allocation2 + $0x18] sm:$0xf]
    %v109 = vld [vmem:[#allocation2 + $0x1c] sm:$0xff]
    %v110 = vld [vmem:[#allocation2 + $0x24] sm:$0xff]
    %v111 = vld [vmem:[#allocation2 + $0x2c] sm:$0xff]
    %v112 = vld [vmem:[#allocation2 + $0x34] sm:$0xf]
    %v113 = vld [vmem:[#allocation5] sm:$0xff]
    %v114 = vld [vmem:[#allocation5 + $0x8] sm:$0xff]
    %v115 = vld [vmem:[#allocation5 + $0x10] sm:$0xff]
    %v116 = vld [vmem:[#allocation5 + $0x18] sm:$0xff]
    %v117 = vld [vmem:[#allocation5 + $0x20] sm:$0xff]
    %v118 = vld [vmem:[#allocation5 + $0x28] sm:$0xff]
    %v119 = vld [vmem:[#allocation5 + $0x30] sm:$0xff]
    %v120 = vld [vmem:[#allocation5 + $0x38] sm:$0xff]
    %v121 = vld [vmem:[#allocation5 + $0x40] sm:$0xff]
    %v122 = vld [vmem:[#allocation5 + $0x48] sm:$0xff]
    %v123 = vld [vmem:[#allocation5 + $0x50] sm:$0xff]
    %v124 = vld [vmem:[#allocation5 + $0x58] sm:$0xff]
    %v125 = vld [vmem:[#allocation5 + $0x60] sm:$0xff]
    %v126 = vld [vmem:[#allocation5 + $0x68] sm:$0xff]
    %v127 = vld [vmem:[#allocation5 + $0x70] sm:$0xff]
    %v128 = vld [vmem:[#allocation5 + $0x78] sm:$0xff]
    %v129 = vld [vmem:[#allocation5 + $0x80] sm:$0xff]
    %v130 = vld [vmem:[#allocation5 + $0x88] sm:$0xff]
    %v131 = vld [vmem:[#allocation5 + $0x90] sm:$0xff]
    %v132 = vld [vmem:[#allocation5 + $0x98] sm:$0xff]
    %v133 = vld [vmem:[#allocation5 + $0xa0] sm:$0xff]
    %v134 = vld [vmem:[#allocation5 + $0xa8] sm:$0xff]
    %v135 = vld [vmem:[#allocation5 + $0xb0] sm:$0xff]
    %v136 = vld [vmem:[#allocation5 + $0xb8] sm:$0xff]
    %v137 = vld [vmem:[#allocation5 + $0xc0] sm:$0xff]
    %v138 = vld [vmem:[#allocation5 + $0xc8] sm:$0xff]
    %v139 = vld [vmem:[#allocation5 + $0xd0] sm:$0xff]
    %v140 = vld [vmem:[#allocation5 + $0xd8] sm:$0xff]
    %v141 = vld [vmem:[#allocation5 + $0xe0] sm:$0xff]
    %v142 = vld [vmem:[#allocation5 + $0xe8] sm:$0xff]
    %v143 = vld [vmem:[#allocation5 + $0xf0] sm:$0xff]
    %v144 = vld [vmem:[#allocation5 + $0xf8] sm:$0xff]
    %v145 = vld [vmem:[#allocation5 + $0x100] sm:$0xff]
    %v146 = vld [vmem:[#allocation5 + $0x108] sm:$0xff]
    %v147 = vld [vmem:[#allocation5 + $0x110] sm:$0xff]
    %v148 = vld [vmem:[#allocation5 + $0x118] sm:$0xff]
    %v149 = vld [vmem:[#allocation5 + $0x120] sm:$0xff]
    %v150 = vld [vmem:[#allocation5 + $0x128] sm:$0xff]
    %v151 = vld [vmem:[#allocation5 + $0x130] sm:$0xff]
    %v152 = vld [vmem:[#allocation5 + $0x138] sm:$0xff]
    %v153 = vld [vmem:[#allocation5 + $0x140] sm:$0xff]
    %v154 = vld [vmem:[#allocation5 + $0x148] sm:$0xff]
    %v155 = vld [vmem:[#allocation5 + $0x150] sm:$0xff]
    %v156 = vld [vmem:[#allocation5 + $0x158] sm:$0xff]
    %v157 = vld [vmem:[#allocation5 + $0x160] sm:$0xff]
    %v158 = vld [vmem:[#allocation5 + $0x168] sm:$0xff]
    %v159 = vld [vmem:[#allocation5 + $0x170] sm:$0xff]
    %v160 = vld [vmem:[#allocation5 + $0x178] sm:$0xff]
    %v161 = vld [vmem:[#allocation5 + $0x180] sm:$0xff]
    %v162 = vld [vmem:[#allocation5 + $0x188] sm:$0xff]
    %v163 = vld [vmem:[#allocation5 + $0x190] sm:$0xff]
    %v164 = vld [vmem:[#allocation5 + $0x198] sm:$0xff]
    %v165 = vld [vmem:[#allocation5 + $0x1a0] sm:$0xff]
    %v166 = vld [vmem:[#allocation5 + $0x1a8] sm:$0xff]
    %v167 = vld [vmem:[#allocation5 + $0x1b0] sm:$0xff]
    %v168 = vld [vmem:[#allocation5 + $0x1b8] sm:$0xff]
    %v169 = vld [vmem:[#allocation5 + $0x1c0] sm:$0xff]
    %v170 = vld [vmem:[#allocation5 + $0x1c8] sm:$0xff]
    %v171 = vld [vmem:[#allocation5 + $0x1d0] sm:$0xff]
    %v172 = vld [vmem:[#allocation5 + $0x1d8] sm:$0xff]
    %v173 = vld [vmem:[#allocation5 + $0x1e0] sm:$0xff]
    %v174 = vld [vmem:[#allocation5 + $0x1e8] sm:$0xff]
    %v175 = vld [vmem:[#allocation5 + $0x1f0] sm:$0xff]
    %v176 = vld [vmem:[#allocation5 + $0x1f8] sm:$0xff]
    %v177 = vld [vmem:[#allocation5 + $0x200] sm:$0xff]
    %v178 = vld [vmem:[#allocation5 + $0x208] sm:$0xff]
    %v179 = vld [vmem:[#allocation5 + $0x210] sm:$0xff]
    %v180 = vld [vmem:[#allocation5 + $0x218] sm:$0xff]
    %v181 = vld [vmem:[#allocation5 + $0x220] sm:$0xff]
    %v182 = vld [vmem:[#allocation5 + $0x228] sm:$0xff]
    %v183 = vld [vmem:[#allocation5 + $0x230] sm:$0xff]
    %v184 = vld [vmem:[#allocation5 + $0x238] sm:$0xff]
    %v185 = vld [vmem:[#allocation5 + $0x240] sm:$0xff]
    %v186 = vld [vmem:[#allocation5 + $0x248] sm:$0xff]
    %v187 = vld [vmem:[#allocation5 + $0x250] sm:$0xff]
    %v188 = vld [vmem:[#allocation5 + $0x258] sm:$0xff]
    %v189 = vld [vmem:[#allocation5 + $0x260] sm:$0xff]
    %v190 = vld [vmem:[#allocation5 + $0x268] sm:$0xff]
    %v191 = vld [vmem:[#allocation5 + $0x270] sm:$0xff]
    %v192 = vld [vmem:[#allocation5 + $0x278] sm:$0xff]
    %v193 = vld [vmem:[#allocation5 + $0x280] sm:$0xff]
    %v194 = vld [vmem:[#allocation5 + $0x288] sm:$0xff]
    %v195 = vld [vmem:[#allocation5 + $0x290] sm:$0xff]
    %v196 = vld [vmem:[#allocation5 + $0x298] sm:$0xff]
    %v197 = vld [vmem:[#allocation5 + $0x2a0] sm:$0xff]
    %v198 = vld [vmem:[#allocation5 + $0x2a8] sm:$0xff]
    %v199 = vld [vmem:[#allocation5 + $0x2b0] sm:$0xff]
    %v200 = vld [vmem:[#allocation5 + $0x2b8] sm:$0xff]
    %v201 = vld [vmem:[#allocation5 + $0x2c0] sm:$0xff]
    %v202 = vld [vmem:[#allocation5 + $0x2c8] sm:$0xff]
    %v203 = vld [vmem:[#allocation5 + $0x2d0] sm:$0xff]
    %v204 = vld [vmem:[#allocation5 + $0x2d8] sm:$0xff]
    %v205 = vld [vmem:[#allocation5 + $0x2e0] sm:$0xff]
    %v206 = vld [vmem:[#allocation5 + $0x2e8] sm:$0xff]
    %v207 = vld [vmem:[#allocation5 + $0x2f0] sm:$0xff]
    %v208 = vld [vmem:[#allocation5 + $0x2f8] sm:$0xff]
    %v209 = vld [vmem:[#allocation5 + $0x300] sm:$0xff]
    %v210 = vld [vmem:[#allocation5 + $0x308] sm:$0xff]
    %v211 = vld [vmem:[#allocation5 + $0x310] sm:$0xff]
    %v212 = vld [vmem:[#allocation5 + $0x318] sm:$0xff]
    %v213 = vld [vmem:[#allocation5 + $0x320] sm:$0xff]
    %v214 = vld [vmem:[#allocation5 + $0x328] sm:$0xff]
    %v215 = vld [vmem:[#allocation5 + $0x330] sm:$0xff]
    %v216 = vld [vmem:[#allocation5 + $0x338] sm:$0xff]
    %v217 = vld [vmem:[#allocation5 + $0x340] sm:$0xff]
    %v218 = vld [vmem:[#allocation5 + $0x348] sm:$0xff]
    %v219 = vld [vmem:[#allocation5 + $0x350] sm:$0xff]
    %v220 = vld [vmem:[#allocation5 + $0x358] sm:$0xff]
    %v221 = vld [vmem:[#allocation5 + $0x360] sm:$0xff]
    %v222 = vld [vmem:[#allocation5 + $0x368] sm:$0xff]
    %v223 = vld [vmem:[#allocation5 + $0x370] sm:$0xff]
    %v224 = vld [vmem:[#allocation5 + $0x378] sm:$0xff]
    %v225 = vld [vmem:[#allocation5 + $0x380] sm:$0xff]
    %v226 = vld [vmem:[#allocation5 + $0x388] sm:$0xff]
    %v227 = vld [vmem:[#allocation5 + $0x390] sm:$0xff]
    %v228 = vld [vmem:[#allocation5 + $0x398] sm:$0xff]
    %v229 = vld [vmem:[#allocation5 + $0x3a0] sm:$0xff]
    %v230 = vld [vmem:[#allocation5 + $0x3a8] sm:$0xff]
    %v231 = vld [vmem:[#allocation5 + $0x3b0] sm:$0xff]
    %v232 = vld [vmem:[#allocation5 + $0x3b8] sm:$0xff]
    %v233 = vld [vmem:[#allocation5 + $0x3c0] sm:$0xff]
    %v234 = vld [vmem:[#allocation5 + $0x3c8] sm:$0xff]
    %v235 = vld [vmem:[#allocation5 + $0x3d0] sm:$0xff]
    %v236 = vld [vmem:[#allocation5 + $0x3d8] sm:$0xff]
    %v237 = vld [vmem:[#allocation5 + $0x3e0] sm:$0xff]
    %v238 = vld [vmem:[#allocation5 + $0x3e8] sm:$0xff]
    %v239 = vld [vmem:[#allocation5 + $0x3f0] sm:$0xff]
    %v240 = vld [vmem:[#allocation5 + $0x3f8] sm:$0xff]
    %v241 = vld [vmem:[#allocation5 + $0x400] sm:$0xff]
    %v242 = vld [vmem:[#allocation5 + $0x408] sm:$0xff]
    %v243 = vld [vmem:[#allocation5 + $0x410] sm:$0xff]
    %v244 = vld [vmem:[#allocation5 + $0x418] sm:$0xff]
    %v245 = vld [vmem:[#allocation5 + $0x420] sm:$0xff]
    %v246 = vld [vmem:[#allocation5 + $0x428] sm:$0xff]
    %v247 = vld [vmem:[#allocation5 + $0x430] sm:$0xff]
    %v248 = vld [vmem:[#allocation5 + $0x438] sm:$0xff]
    %v249 = vld [vmem:[#allocation5 + $0x440] sm:$0xff]
    %v250 = vld [vmem:[#allocation5 + $0x448] sm:$0xff]
    %v251 = vld [vmem:[#allocation5 + $0x450] sm:$0xff]
    %v252 = vld [vmem:[#allocation5 + $0x458] sm:$0xff]
    %v253 = vld [vmem:[#allocation5 + $0x460] sm:$0xff]
    %v254 = vld [vmem:[#allocation5 + $0x468] sm:$0xff]
    %v255 = vld [vmem:[#allocation5 + $0x470] sm:$0xff]
    %v256 = vld [vmem:[#allocation5 + $0x478] sm:$0xff]
    %v257 = vld [vmem:[#allocation5 + $0x480] sm:$0xff]
    %v258 = vld [vmem:[#allocation5 + $0x488] sm:$0xff]
    %v259 = vld [vmem:[#allocation5 + $0x490] sm:$0xff]
    %v260 = vld [vmem:[#allocation5 + $0x498] sm:$0xff]
    %v261 = vld [vmem:[#allocation5 + $0x4a0] sm:$0xff]
    %v262 = vld [vmem:[#allocation5 + $0x4a8] sm:$0xff]
    %v263 = vld [vmem:[#allocation5 + $0x4b0] sm:$0xff]
    %v264 = vld [vmem:[#allocation5 + $0x4b8] sm:$0xff]
    %v265 = vld [vmem:[#allocation5 + $0x4c0] sm:$0xff]
    %v266 = vld [vmem:[#allocation5 + $0x4c8] sm:$0xff]
    %v267 = vld [vmem:[#allocation5 + $0x4d0] sm:$0xff]
    %v268 = vld [vmem:[#allocation5 + $0x4d8] sm:$0xff]
    %v269 = vld [vmem:[#allocation5 + $0x4e0] sm:$0xff]
    %v270 = vld [vmem:[#allocation5 + $0x4e8] sm:$0xff]
    %v271 = vld [vmem:[#allocation5 + $0x4f0] sm:$0xff]
    %v272 = vld [vmem:[#allocation5 + $0x4f8] sm:$0xff]
    %v273 = vld [vmem:[#allocation5 + $0x500] sm:$0xff]
    %v274 = vld [vmem:[#allocation5 + $0x508] sm:$0xff]
    %v275 = vld [vmem:[#allocation5 + $0x510] sm:$0xff]
    %v276 = vld [vmem:[#allocation5 + $0x518] sm:$0xff]
    %v277 = vld [vmem:[#allocation5 + $0x520] sm:$0xff]
    %v278 = vld [vmem:[#allocation5 + $0x528] sm:$0xff]
    %v279 = vld [vmem:[#allocation5 + $0x530] sm:$0xff]
    %v280 = vld [vmem:[#allocation5 + $0x538] sm:$0xff]
    %v281 = vld [vmem:[#allocation5 + $0x540] sm:$0xff]
    %v282 = vld [vmem:[#allocation5 + $0x548] sm:$0xff]
    %v283 = vld [vmem:[#allocation5 + $0x550] sm:$0xff]
    %v284 = vld [vmem:[#allocation5 + $0x558] sm:$0xff]
    %v285 = vld [vmem:[#allocation5 + $0x560] sm:$0xff]
    %v286 = vld [vmem:[#allocation5 + $0x568] sm:$0xff]
    %v287 = vld [vmem:[#allocation5 + $0x570] sm:$0xff]
    %v288 = vld [vmem:[#allocation5 + $0x578] sm:$0xff]
    %v289 = vld [vmem:[#allocation5 + $0x580] sm:$0xff]
    %v290 = vld [vmem:[#allocation5 + $0x588] sm:$0xff]
    %v291 = vld [vmem:[#allocation5 + $0x590] sm:$0xff]
    %v292 = vld [vmem:[#allocation5 + $0x598] sm:$0xff]
    %v293 = vld [vmem:[#allocation5 + $0x5a0] sm:$0xff]
    %v294 = vld [vmem:[#allocation5 + $0x5a8] sm:$0xff]
    %v295 = vld [vmem:[#allocation5 + $0x5b0] sm:$0xff]
    %v296 = vld [vmem:[#allocation5 + $0x5b8] sm:$0xff]
    %v297 = vld [vmem:[#allocation5 + $0x5c0] sm:$0xff]
    %v298 = vld [vmem:[#allocation5 + $0x5c8] sm:$0xff]
    %v299 = vld [vmem:[#allocation5 + $0x5d0] sm:$0xff]
    %v300 = vld [vmem:[#allocation5 + $0x5d8] sm:$0xff]
    %v301 = vld [vmem:[#allocation5 + $0x5e0] sm:$0xff]
    %v302 = vld [vmem:[#allocation5 + $0x5e8] sm:$0xff]
    %v303 = vld [vmem:[#allocation5 + $0x5f0] sm:$0xff]
    %v304 = vld [vmem:[#allocation5 + $0x5f8] sm:$0xff]
    %v305 = vld [vmem:[#allocation5 + $0x600] sm:$0xff]
    %v306 = vld [vmem:[#allocation5 + $0x608] sm:$0xff]
    %v307 = vld [vmem:[#allocation5 + $0x610] sm:$0xff]
    %v308 = vld [vmem:[#allocation5 + $0x618] sm:$0xff]
    %v311 = vlaneseq
    %v312 = vshrl.u32 %v311, 7
    %v313 = vsub.s32 0, %v312
    %v314 = vrot.slane %v103, %v313
    %v315 = vlaneseq
    %v316 = vshrl.u32 %v315, 7
    %v317 = vsub.s32 4, %v316
    %v318 = vrot.slane %v103, %v317
    %v319 = vlaneseq
    %v320 = vshrl.u32 %v319, 7
    %v321 = vsub.s32 0, %v320
    %v322 = vrot.slane %v104, %v321
    %v323 = vlaneseq
    %v324 = vshrl.u32 %v323, 7
    %v325 = vsub.s32 4, %v324
    %v326 = vrot.slane %v104, %v325
    %v331 = vlaneseq
    %v332 = vshrl.u32 %v331, 7
    %v333 = vsub.s32 0, %v332
    %v334 = vrot.slane %v314, %v333
    %v335 = vlaneseq
    %v336 = vshrl.u32 %v335, 7
    %v337 = vsub.s32 0, %v336
    %v338 = vrot.slane %v318, %v337
    %v339 = vlaneseq
    %v340 = vshrl.u32 %v339, 7
    %v341 = vsub.s32 0, %v340
    %v342 = vrot.slane %v322, %v341
    %v343 = vlaneseq
    %v344 = vshrl.u32 %v343, 7
    %v345 = vsub.s32 0, %v344
    %v346 = vrot.slane %v326, %v345
    %v355 = vunpack.c.l.b16 %v105
    %v356 = vunpack.c.h.b16 %v105
    %v357 = vunpack.c.l.b16 %v106
    %v358 = vunpack.c.h.b16 %v106
    %v359 = vunpack.c.l.b16 %v107
    %v360 = vunpack.c.h.b16 %v107
    %v361 = vunpack.c.l.b16 %v108
    %v362 = vunpack.c.l.b16 %v109
    %v363 = vunpack.c.h.b16 %v109
    %v364 = vunpack.c.l.b16 %v110
    %v365 = vunpack.c.h.b16 %v110
    %v366 = vunpack.c.l.b16 %v111
    %v367 = vunpack.c.h.b16 %v111
    %v368 = vunpack.c.l.b16 %v112
    %v369 = vpack.c.b16 %v362, %v355
    %v370 = vpack.c.b16 %v363, %v356
    %v371 = vpack.c.b16 %v364, %v357
    %v372 = vpack.c.b16 %v365, %v358
    %v373 = vpack.c.b16 %v366, %v359
    %v374 = vpack.c.b16 %v367, %v360
    %v375 = vpack.c.b16 %v368, %v361
    %v578 = vunpack.c.l.b16 %v113
    %v579 = vunpack.c.h.b16 %v113
    %v580 = vunpack.c.l.b16 %v114
    %v581 = vunpack.c.h.b16 %v114
    %v582 = vunpack.c.l.b16 %v115
    %v583 = vunpack.c.h.b16 %v115
    %v584 = vunpack.c.l.b16 %v116
    %v585 = vunpack.c.h.b16 %v116
    %v586 = vunpack.c.l.b16 %v117
    %v587 = vunpack.c.h.b16 %v117
    %v588 = vunpack.c.l.b16 %v118
    %v589 = vunpack.c.h.b16 %v118
    %v590 = vunpack.c.l.b16 %v119
    %v591 = vunpack.c.h.b16 %v119
    %v592 = vunpack.c.l.b16 %v120
    %v593 = vunpack.c.h.b16 %v120
    %v594 = vunpack.c.l.b16 %v121
    %v595 = vunpack.c.h.b16 %v121
    %v596 = vunpack.c.l.b16 %v122
    %v597 = vunpack.c.h.b16 %v122
    %v598 = vunpack.c.l.b16 %v123
    %v599 = vunpack.c.h.b16 %v123
    %v600 = vunpack.c.l.b16 %v124
    %v601 = vunpack.c.h.b16 %v124
    %v602 = vunpack.c.l.b16 %v125
    %v603 = vunpack.c.h.b16 %v125
    %v604 = vunpack.c.l.b16 %v126
    %v605 = vunpack.c.h.b16 %v126
    %v606 = vunpack.c.l.b16 %v127
    %v607 = vunpack.c.h.b16 %v127
    %v608 = vunpack.c.l.b16 %v128
    %v609 = vunpack.c.h.b16 %v128
    %v610 = vunpack.c.l.b16 %v129
    %v611 = vunpack.c.h.b16 %v129
    %v612 = vunpack.c.l.b16 %v130
    %v613 = vunpack.c.h.b16 %v130
    %v614 = vunpack.c.l.b16 %v131
    %v615 = vunpack.c.h.b16 %v131
    %v616 = vunpack.c.l.b16 %v132
    %v617 = vunpack.c.h.b16 %v132
    %v618 = vunpack.c.l.b16 %v133
    %v619 = vunpack.c.h.b16 %v133
    %v620 = vunpack.c.l.b16 %v134
    %v621 = vunpack.c.h.b16 %v134
    %v622 = vunpack.c.l.b16 %v135
    %v623 = vunpack.c.h.b16 %v135
    %v624 = vunpack.c.l.b16 %v136
    %v625 = vunpack.c.h.b16 %v136
    %v626 = vunpack.c.l.b16 %v137
    %v627 = vunpack.c.h.b16 %v137
    %v628 = vunpack.c.l.b16 %v138
    %v629 = vunpack.c.h.b16 %v138
    %v630 = vunpack.c.l.b16 %v139
    %v631 = vunpack.c.h.b16 %v139
    %v632 = vunpack.c.l.b16 %v140
    %v633 = vunpack.c.h.b16 %v140
    %v634 = vunpack.c.l.b16 %v141
    %v635 = vunpack.c.h.b16 %v141
    %v636 = vunpack.c.l.b16 %v142
    %v637 = vunpack.c.h.b16 %v142
    %v638 = vunpack.c.l.b16 %v143
    %v639 = vunpack.c.h.b16 %v143
    %v640 = vunpack.c.l.b16 %v144
    %v641 = vunpack.c.h.b16 %v144
    %v642 = vunpack.c.l.b16 %v145
    %v643 = vunpack.c.h.b16 %v145
    %v644 = vunpack.c.l.b16 %v146
    %v645 = vunpack.c.h.b16 %v146
    %v646 = vunpack.c.l.b16 %v147
    %v647 = vunpack.c.h.b16 %v147
    %v648 = vunpack.c.l.b16 %v148
    %v649 = vunpack.c.h.b16 %v148
    %v650 = vunpack.c.l.b16 %v149
    %v651 = vunpack.c.h.b16 %v149
    %v652 = vunpack.c.l.b16 %v150
    %v653 = vunpack.c.h.b16 %v150
    %v654 = vunpack.c.l.b16 %v151
    %v655 = vunpack.c.h.b16 %v151
    %v656 = vunpack.c.l.b16 %v152
    %v657 = vunpack.c.h.b16 %v152
    %v658 = vunpack.c.l.b16 %v153
    %v659 = vunpack.c.h.b16 %v153
    %v660 = vunpack.c.l.b16 %v154
    %v661 = vunpack.c.h.b16 %v154
    %v662 = vunpack.c.l.b16 %v155
    %v663 = vunpack.c.h.b16 %v155
    %v664 = vunpack.c.l.b16 %v156
    %v665 = vunpack.c.h.b16 %v156
    %v666 = vunpack.c.l.b16 %v157
    %v667 = vunpack.c.h.b16 %v157
    %v668 = vunpack.c.l.b16 %v158
    %v669 = vunpack.c.h.b16 %v158
    %v670 = vunpack.c.l.b16 %v159
    %v671 = vunpack.c.h.b16 %v159
    %v672 = vunpack.c.l.b16 %v160
    %v673 = vunpack.c.h.b16 %v160
    %v674 = vunpack.c.l.b16 %v161
    %v675 = vunpack.c.h.b16 %v161
    %v676 = vunpack.c.l.b16 %v162
    %v677 = vunpack.c.h.b16 %v162
    %v678 = vunpack.c.l.b16 %v163
    %v679 = vunpack.c.h.b16 %v163
    %v680 = vunpack.c.l.b16 %v164
    %v681 = vunpack.c.h.b16 %v164
    %v682 = vunpack.c.l.b16 %v165
    %v683 = vunpack.c.h.b16 %v165
    %v684 = vunpack.c.l.b16 %v166
    %v685 = vunpack.c.h.b16 %v166
    %v686 = vunpack.c.l.b16 %v167
    %v687 = vunpack.c.h.b16 %v167
    %v688 = vunpack.c.l.b16 %v168
    %v689 = vunpack.c.h.b16 %v168
    %v690 = vunpack.c.l.b16 %v169
    %v691 = vunpack.c.h.b16 %v169
    %v692 = vunpack.c.l.b16 %v170
    %v693 = vunpack.c.h.b16 %v170
    %v694 = vunpack.c.l.b16 %v171
    %v695 = vunpack.c.h.b16 %v171
    %v696 = vunpack.c.l.b16 %v172
    %v697 = vunpack.c.h.b16 %v172
    %v698 = vunpack.c.l.b16 %v173
    %v699 = vunpack.c.h.b16 %v173
    %v700 = vunpack.c.l.b16 %v174
    %v701 = vunpack.c.h.b16 %v174
    %v702 = vunpack.c.l.b16 %v175
    %v703 = vunpack.c.h.b16 %v175
    %v704 = vunpack.c.l.b16 %v176
    %v705 = vunpack.c.h.b16 %v176
    %v706 = vunpack.c.l.b16 %v177
    %v707 = vunpack.c.h.b16 %v177
    %v708 = vunpack.c.l.b16 %v178
    %v709 = vunpack.c.h.b16 %v178
    %v710 = vunpack.c.l.b16 %v179
    %v711 = vunpack.c.h.b16 %v179
    %v712 = vunpack.c.l.b16 %v180
    %v713 = vunpack.c.h.b16 %v180
    %v714 = vunpack.c.l.b16 %v181
    %v715 = vunpack.c.h.b16 %v181
    %v716 = vunpack.c.l.b16 %v182
    %v717 = vunpack.c.h.b16 %v182
    %v718 = vunpack.c.l.b16 %v183
    %v719 = vunpack.c.h.b16 %v183
    %v720 = vunpack.c.l.b16 %v184
    %v721 = vunpack.c.h.b16 %v184
    %v722 = vunpack.c.l.b16 %v185
    %v723 = vunpack.c.h.b16 %v185
    %v724 = vunpack.c.l.b16 %v186
    %v725 = vunpack.c.h.b16 %v186
    %v726 = vunpack.c.l.b16 %v187
    %v727 = vunpack.c.h.b16 %v187
    %v728 = vunpack.c.l.b16 %v188
    %v729 = vunpack.c.h.b16 %v188
    %v730 = vunpack.c.l.b16 %v189
    %v731 = vunpack.c.h.b16 %v189
    %v732 = vunpack.c.l.b16 %v190
    %v733 = vunpack.c.h.b16 %v190
    %v734 = vunpack.c.l.b16 %v191
    %v735 = vunpack.c.h.b16 %v191
    %v736 = vunpack.c.l.b16 %v192
    %v737 = vunpack.c.h.b16 %v192
    %v738 = vunpack.c.l.b16 %v193
    %v739 = vunpack.c.h.b16 %v193
    %v740 = vunpack.c.l.b16 %v194
    %v741 = vunpack.c.h.b16 %v194
    %v742 = vunpack.c.l.b16 %v195
    %v743 = vunpack.c.h.b16 %v195
    %v744 = vunpack.c.l.b16 %v196
    %v745 = vunpack.c.h.b16 %v196
    %v746 = vunpack.c.l.b16 %v197
    %v747 = vunpack.c.h.b16 %v197
    %v748 = vunpack.c.l.b16 %v198
    %v749 = vunpack.c.h.b16 %v198
    %v750 = vunpack.c.l.b16 %v199
    %v751 = vunpack.c.h.b16 %v199
    %v752 = vunpack.c.l.b16 %v200
    %v753 = vunpack.c.h.b16 %v200
    %v754 = vunpack.c.l.b16 %v201
    %v755 = vunpack.c.h.b16 %v201
    %v756 = vunpack.c.l.b16 %v202
    %v757 = vunpack.c.h.b16 %v202
    %v758 = vunpack.c.l.b16 %v203
    %v759 = vunpack.c.h.b16 %v203
    %v760 = vunpack.c.l.b16 %v204
    %v761 = vunpack.c.h.b16 %v204
    %v762 = vunpack.c.l.b16 %v205
    %v763 = vunpack.c.h.b16 %v205
    %v764 = vunpack.c.l.b16 %v206
    %v765 = vunpack.c.h.b16 %v206
    %v766 = vunpack.c.l.b16 %v207
    %v767 = vunpack.c.h.b16 %v207
    %v768 = vunpack.c.l.b16 %v208
    %v769 = vunpack.c.h.b16 %v208
    %v770 = vunpack.c.l.b16 %v209
    %v771 = vunpack.c.h.b16 %v209
    %v772 = vunpack.c.l.b16 %v210
    %v773 = vunpack.c.h.b16 %v210
    %v774 = vunpack.c.l.b16 %v211
    %v775 = vunpack.c.h.b16 %v211
    %v776 = vunpack.c.l.b16 %v212
    %v777 = vunpack.c.h.b16 %v212
    %v778 = vunpack.c.l.b16 %v213
    %v779 = vunpack.c.h.b16 %v213
    %v780 = vunpack.c.l.b16 %v214
    %v781 = vunpack.c.h.b16 %v214
    %v782 = vunpack.c.l.b16 %v215
    %v783 = vunpack.c.h.b16 %v215
    %v784 = vunpack.c.l.b16 %v216
    %v785 = vunpack.c.h.b16 %v216
    %v786 = vunpack.c.l.b16 %v217
    %v787 = vunpack.c.h.b16 %v217
    %v788 = vunpack.c.l.b16 %v218
    %v789 = vunpack.c.h.b16 %v218
    %v790 = vunpack.c.l.b16 %v219
    %v791 = vunpack.c.h.b16 %v219
    %v792 = vunpack.c.l.b16 %v220
    %v793 = vunpack.c.h.b16 %v220
    %v794 = vunpack.c.l.b16 %v221
    %v795 = vunpack.c.h.b16 %v221
    %v796 = vunpack.c.l.b16 %v222
    %v797 = vunpack.c.h.b16 %v222
    %v798 = vunpack.c.l.b16 %v223
    %v799 = vunpack.c.h.b16 %v223
    %v800 = vunpack.c.l.b16 %v224
    %v801 = vunpack.c.h.b16 %v224
    %v802 = vunpack.c.l.b16 %v225
    %v803 = vunpack.c.h.b16 %v225
    %v804 = vunpack.c.l.b16 %v226
    %v805 = vunpack.c.h.b16 %v226
    %v806 = vunpack.c.l.b16 %v227
    %v807 = vunpack.c.h.b16 %v227
    %v808 = vunpack.c.l.b16 %v228
    %v809 = vunpack.c.h.b16 %v228
    %v810 = vunpack.c.l.b16 %v229
    %v811 = vunpack.c.h.b16 %v229
    %v812 = vunpack.c.l.b16 %v230
    %v813 = vunpack.c.h.b16 %v230
    %v814 = vunpack.c.l.b16 %v231
    %v815 = vunpack.c.h.b16 %v231
    %v816 = vunpack.c.l.b16 %v232
    %v817 = vunpack.c.h.b16 %v232
    %v818 = vunpack.c.l.b16 %v233
    %v819 = vunpack.c.h.b16 %v233
    %v820 = vunpack.c.l.b16 %v234
    %v821 = vunpack.c.h.b16 %v234
    %v822 = vunpack.c.l.b16 %v235
    %v823 = vunpack.c.h.b16 %v235
    %v824 = vunpack.c.l.b16 %v236
    %v825 = vunpack.c.h.b16 %v236
    %v826 = vunpack.c.l.b16 %v237
    %v827 = vunpack.c.h.b16 %v237
    %v828 = vunpack.c.l.b16 %v238
    %v829 = vunpack.c.h.b16 %v238
    %v830 = vunpack.c.l.b16 %v239
    %v831 = vunpack.c.h.b16 %v239
    %v832 = vunpack.c.l.b16 %v240
    %v833 = vunpack.c.h.b16 %v240
    %v834 = vunpack.c.l.b16 %v241
    %v835 = vunpack.c.h.b16 %v241
    %v836 = vunpack.c.l.b16 %v242
    %v837 = vunpack.c.h.b16 %v242
    %v838 = vunpack.c.l.b16 %v243
    %v839 = vunpack.c.h.b16 %v243
    %v840 = vunpack.c.l.b16 %v244
    %v841 = vunpack.c.h.b16 %v244
    %v842 = vunpack.c.l.b16 %v245
    %v843 = vunpack.c.h.b16 %v245
    %v844 = vunpack.c.l.b16 %v246
    %v845 = vunpack.c.h.b16 %v246
    %v846 = vunpack.c.l.b16 %v247
    %v847 = vunpack.c.h.b16 %v247
    %v848 = vunpack.c.l.b16 %v248
    %v849 = vunpack.c.h.b16 %v248
    %v850 = vunpack.c.l.b16 %v249
    %v851 = vunpack.c.h.b16 %v249
    %v852 = vunpack.c.l.b16 %v250
    %v853 = vunpack.c.h.b16 %v250
    %v854 = vunpack.c.l.b16 %v251
    %v855 = vunpack.c.h.b16 %v251
    %v856 = vunpack.c.l.b16 %v252
    %v857 = vunpack.c.h.b16 %v252
    %v858 = vunpack.c.l.b16 %v253
    %v859 = vunpack.c.h.b16 %v253
    %v860 = vunpack.c.l.b16 %v254
    %v861 = vunpack.c.h.b16 %v254
    %v862 = vunpack.c.l.b16 %v255
    %v863 = vunpack.c.h.b16 %v255
    %v864 = vunpack.c.l.b16 %v256
    %v865 = vunpack.c.h.b16 %v256
    %v866 = vunpack.c.l.b16 %v257
    %v867 = vunpack.c.h.b16 %v257
    %v868 = vunpack.c.l.b16 %v258
    %v869 = vunpack.c.h.b16 %v258
    %v870 = vunpack.c.l.b16 %v259
    %v871 = vunpack.c.h.b16 %v259
    %v872 = vunpack.c.l.b16 %v260
    %v873 = vunpack.c.h.b16 %v260
    %v874 = vunpack.c.l.b16 %v261
    %v875 = vunpack.c.h.b16 %v261
    %v876 = vunpack.c.l.b16 %v262
    %v877 = vunpack.c.h.b16 %v262
    %v878 = vunpack.c.l.b16 %v263
    %v879 = vunpack.c.h.b16 %v263
    %v880 = vunpack.c.l.b16 %v264
    %v881 = vunpack.c.h.b16 %v264
    %v882 = vunpack.c.l.b16 %v265
    %v883 = vunpack.c.h.b16 %v265
    %v884 = vunpack.c.l.b16 %v266
    %v885 = vunpack.c.h.b16 %v266
    %v886 = vunpack.c.l.b16 %v267
    %v887 = vunpack.c.h.b16 %v267
    %v888 = vunpack.c.l.b16 %v268
    %v889 = vunpack.c.h.b16 %v268
    %v890 = vunpack.c.l.b16 %v269
    %v891 = vunpack.c.h.b16 %v269
    %v892 = vunpack.c.l.b16 %v270
    %v893 = vunpack.c.h.b16 %v270
    %v894 = vunpack.c.l.b16 %v271
    %v895 = vunpack.c.h.b16 %v271
    %v896 = vunpack.c.l.b16 %v272
    %v897 = vunpack.c.h.b16 %v272
    %v898 = vunpack.c.l.b16 %v273
    %v899 = vunpack.c.h.b16 %v273
    %v900 = vunpack.c.l.b16 %v274
    %v901 = vunpack.c.h.b16 %v274
    %v902 = vunpack.c.l.b16 %v275
    %v903 = vunpack.c.h.b16 %v275
    %v904 = vunpack.c.l.b16 %v276
    %v905 = vunpack.c.h.b16 %v276
    %v906 = vunpack.c.l.b16 %v277
    %v907 = vunpack.c.h.b16 %v277
    %v908 = vunpack.c.l.b16 %v278
    %v909 = vunpack.c.h.b16 %v278
    %v910 = vunpack.c.l.b16 %v279
    %v911 = vunpack.c.h.b16 %v279
    %v912 = vunpack.c.l.b16 %v280
    %v913 = vunpack.c.h.b16 %v280
    %v914 = vunpack.c.l.b16 %v281
    %v915 = vunpack.c.h.b16 %v281
    %v916 = vunpack.c.l.b16 %v282
    %v917 = vunpack.c.h.b16 %v282
    %v918 = vunpack.c.l.b16 %v283
    %v919 = vunpack.c.h.b16 %v283
    %v920 = vunpack.c.l.b16 %v284
    %v921 = vunpack.c.h.b16 %v284
    %v922 = vunpack.c.l.b16 %v285
    %v923 = vunpack.c.h.b16 %v285
    %v924 = vunpack.c.l.b16 %v286
    %v925 = vunpack.c.h.b16 %v286
    %v926 = vunpack.c.l.b16 %v287
    %v927 = vunpack.c.h.b16 %v287
    %v928 = vunpack.c.l.b16 %v288
    %v929 = vunpack.c.h.b16 %v288
    %v930 = vunpack.c.l.b16 %v289
    %v931 = vunpack.c.h.b16 %v289
    %v932 = vunpack.c.l.b16 %v290
    %v933 = vunpack.c.h.b16 %v290
    %v934 = vunpack.c.l.b16 %v291
    %v935 = vunpack.c.h.b16 %v291
    %v936 = vunpack.c.l.b16 %v292
    %v937 = vunpack.c.h.b16 %v292
    %v938 = vunpack.c.l.b16 %v293
    %v939 = vunpack.c.h.b16 %v293
    %v940 = vunpack.c.l.b16 %v294
    %v941 = vunpack.c.h.b16 %v294
    %v942 = vunpack.c.l.b16 %v295
    %v943 = vunpack.c.h.b16 %v295
    %v944 = vunpack.c.l.b16 %v296
    %v945 = vunpack.c.h.b16 %v296
    %v946 = vunpack.c.l.b16 %v297
    %v947 = vunpack.c.h.b16 %v297
    %v948 = vunpack.c.l.b16 %v298
    %v949 = vunpack.c.h.b16 %v298
    %v950 = vunpack.c.l.b16 %v299
    %v951 = vunpack.c.h.b16 %v299
    %v952 = vunpack.c.l.b16 %v300
    %v953 = vunpack.c.h.b16 %v300
    %v954 = vunpack.c.l.b16 %v301
    %v955 = vunpack.c.h.b16 %v301
    %v956 = vunpack.c.l.b16 %v302
    %v957 = vunpack.c.h.b16 %v302
    %v958 = vunpack.c.l.b16 %v303
    %v959 = vunpack.c.h.b16 %v303
    %v960 = vunpack.c.l.b16 %v304
    %v961 = vunpack.c.h.b16 %v304
    %v962 = vunpack.c.l.b16 %v305
    %v963 = vunpack.c.h.b16 %v305
    %v964 = vunpack.c.l.b16 %v306
    %v965 = vunpack.c.h.b16 %v306
    %v966 = vunpack.c.l.b16 %v307
    %v967 = vunpack.c.h.b16 %v307
    %v968 = vunpack.c.l.b16 %v308
    %v969 = vunpack.c.h.b16 %v308
    %v970 = vpack.c.b16 %v582, %v578
    %v971 = vpack.c.b16 %v583, %v579
    %v972 = vpack.c.b16 %v584, %v580
    %v973 = vpack.c.b16 %v585, %v581
    %v974 = vpack.c.b16 %v590, %v586
    %v975 = vpack.c.b16 %v591, %v587
    %v976 = vpack.c.b16 %v592, %v588
    %v977 = vpack.c.b16 %v593, %v589
    %v978 = vpack.c.b16 %v598, %v594
    %v979 = vpack.c.b16 %v599, %v595
    %v980 = vpack.c.b16 %v600, %v596
    %v981 = vpack.c.b16 %v601, %v597
    %v982 = vpack.c.b16 %v606, %v602
    %v983 = vpack.c.b16 %v607, %v603
    %v984 = vpack.c.b16 %v608, %v604
    %v985 = vpack.c.b16 %v609, %v605
    %v986 = vpack.c.b16 %v614, %v610
    %v987 = vpack.c.b16 %v615, %v611
    %v988 = vpack.c.b16 %v616, %v612
    %v989 = vpack.c.b16 %v617, %v613
    %v990 = vpack.c.b16 %v622, %v618
    %v991 = vpack.c.b16 %v623, %v619
    %v992 = vpack.c.b16 %v624, %v620
    %v993 = vpack.c.b16 %v625, %v621
    %v994 = vpack.c.b16 %v630, %v626
    %v995 = vpack.c.b16 %v631, %v627
    %v996 = vpack.c.b16 %v632, %v628
    %v997 = vpack.c.b16 %v633, %v629
    %v998 = vpack.c.b16 %v638, %v634
    %v999 = vpack.c.b16 %v639, %v635
    %v1000 = vpack.c.b16 %v640, %v636
    %v1001 = vpack.c.b16 %v641, %v637
    %v1002 = vpack.c.b16 %v646, %v642
    %v1003 = vpack.c.b16 %v647, %v643
    %v1004 = vpack.c.b16 %v648, %v644
    %v1005 = vpack.c.b16 %v649, %v645
    %v1006 = vpack.c.b16 %v654, %v650
    %v1007 = vpack.c.b16 %v655, %v651
    %v1008 = vpack.c.b16 %v656, %v652
    %v1009 = vpack.c.b16 %v657, %v653
    %v1010 = vpack.c.b16 %v662, %v658
    %v1011 = vpack.c.b16 %v663, %v659
    %v1012 = vpack.c.b16 %v664, %v660
    %v1013 = vpack.c.b16 %v665, %v661
    %v1014 = vpack.c.b16 %v670, %v666
    %v1015 = vpack.c.b16 %v671, %v667
    %v1016 = vpack.c.b16 %v672, %v668
    %v1017 = vpack.c.b16 %v673, %v669
    %v1018 = vpack.c.b16 %v678, %v674
    %v1019 = vpack.c.b16 %v679, %v675
    %v1020 = vpack.c.b16 %v680, %v676
    %v1021 = vpack.c.b16 %v681, %v677
    %v1022 = vpack.c.b16 %v686, %v682
    %v1023 = vpack.c.b16 %v687, %v683
    %v1024 = vpack.c.b16 %v688, %v684
    %v1025 = vpack.c.b16 %v689, %v685
    %v1026 = vpack.c.b16 %v694, %v690
    %v1027 = vpack.c.b16 %v695, %v691
    %v1028 = vpack.c.b16 %v696, %v692
    %v1029 = vpack.c.b16 %v697, %v693
    %v1030 = vpack.c.b16 %v702, %v698
    %v1031 = vpack.c.b16 %v703, %v699
    %v1032 = vpack.c.b16 %v704, %v700
    %v1033 = vpack.c.b16 %v705, %v701
    %v1034 = vpack.c.b16 %v710, %v706
    %v1035 = vpack.c.b16 %v711, %v707
    %v1036 = vpack.c.b16 %v712, %v708
    %v1037 = vpack.c.b16 %v713, %v709
    %v1038 = vpack.c.b16 %v718, %v714
    %v1039 = vpack.c.b16 %v719, %v715
    %v1040 = vpack.c.b16 %v720, %v716
    %v1041 = vpack.c.b16 %v721, %v717
    %v1042 = vpack.c.b16 %v726, %v722
    %v1043 = vpack.c.b16 %v727, %v723
    %v1044 = vpack.c.b16 %v728, %v724
    %v1045 = vpack.c.b16 %v729, %v725
    %v1046 = vpack.c.b16 %v734, %v730
    %v1047 = vpack.c.b16 %v735, %v731
    %v1048 = vpack.c.b16 %v736, %v732
    %v1049 = vpack.c.b16 %v737, %v733
    %v1050 = vpack.c.b16 %v742, %v738
    %v1051 = vpack.c.b16 %v743, %v739
    %v1052 = vpack.c.b16 %v744, %v740
    %v1053 = vpack.c.b16 %v745, %v741
    %v1054 = vpack.c.b16 %v750, %v746
    %v1055 = vpack.c.b16 %v751, %v747
    %v1056 = vpack.c.b16 %v752, %v748
    %v1057 = vpack.c.b16 %v753, %v749
    %v1058 = vpack.c.b16 %v758, %v754
    %v1059 = vpack.c.b16 %v759, %v755
    %v1060 = vpack.c.b16 %v760, %v756
    %v1061 = vpack.c.b16 %v761, %v757
    %v1062 = vpack.c.b16 %v766, %v762
    %v1063 = vpack.c.b16 %v767, %v763
    %v1064 = vpack.c.b16 %v768, %v764
    %v1065 = vpack.c.b16 %v769, %v765
    %v1066 = vpack.c.b16 %v774, %v770
    %v1067 = vpack.c.b16 %v775, %v771
    %v1068 = vpack.c.b16 %v776, %v772
    %v1069 = vpack.c.b16 %v777, %v773
    %v1070 = vpack.c.b16 %v782, %v778
    %v1071 = vpack.c.b16 %v783, %v779
    %v1072 = vpack.c.b16 %v784, %v780
    %v1073 = vpack.c.b16 %v785, %v781
    %v1074 = vpack.c.b16 %v790, %v786
    %v1075 = vpack.c.b16 %v791, %v787
    %v1076 = vpack.c.b16 %v792, %v788
    %v1077 = vpack.c.b16 %v793, %v789
    %v1078 = vpack.c.b16 %v798, %v794
    %v1079 = vpack.c.b16 %v799, %v795
    %v1080 = vpack.c.b16 %v800, %v796
    %v1081 = vpack.c.b16 %v801, %v797
    %v1082 = vpack.c.b16 %v806, %v802
    %v1083 = vpack.c.b16 %v807, %v803
    %v1084 = vpack.c.b16 %v808, %v804
    %v1085 = vpack.c.b16 %v809, %v805
    %v1086 = vpack.c.b16 %v814, %v810
    %v1087 = vpack.c.b16 %v815, %v811
    %v1088 = vpack.c.b16 %v816, %v812
    %v1089 = vpack.c.b16 %v817, %v813
    %v1090 = vpack.c.b16 %v822, %v818
    %v1091 = vpack.c.b16 %v823, %v819
    %v1092 = vpack.c.b16 %v824, %v820
    %v1093 = vpack.c.b16 %v825, %v821
    %v1094 = vpack.c.b16 %v830, %v826
    %v1095 = vpack.c.b16 %v831, %v827
    %v1096 = vpack.c.b16 %v832, %v828
    %v1097 = vpack.c.b16 %v833, %v829
    %v1098 = vpack.c.b16 %v838, %v834
    %v1099 = vpack.c.b16 %v839, %v835
    %v1100 = vpack.c.b16 %v840, %v836
    %v1101 = vpack.c.b16 %v841, %v837
    %v1102 = vpack.c.b16 %v846, %v842
    %v1103 = vpack.c.b16 %v847, %v843
    %v1104 = vpack.c.b16 %v848, %v844
    %v1105 = vpack.c.b16 %v849, %v845
    %v1106 = vpack.c.b16 %v854, %v850
    %v1107 = vpack.c.b16 %v855, %v851
    %v1108 = vpack.c.b16 %v856, %v852
    %v1109 = vpack.c.b16 %v857, %v853
    %v1110 = vpack.c.b16 %v862, %v858
    %v1111 = vpack.c.b16 %v863, %v859
    %v1112 = vpack.c.b16 %v864, %v860
    %v1113 = vpack.c.b16 %v865, %v861
    %v1114 = vpack.c.b16 %v870, %v866
    %v1115 = vpack.c.b16 %v871, %v867
    %v1116 = vpack.c.b16 %v872, %v868
    %v1117 = vpack.c.b16 %v873, %v869
    %v1118 = vpack.c.b16 %v878, %v874
    %v1119 = vpack.c.b16 %v879, %v875
    %v1120 = vpack.c.b16 %v880, %v876
    %v1121 = vpack.c.b16 %v881, %v877
    %v1122 = vpack.c.b16 %v886, %v882
    %v1123 = vpack.c.b16 %v887, %v883
    %v1124 = vpack.c.b16 %v888, %v884
    %v1125 = vpack.c.b16 %v889, %v885
    %v1126 = vpack.c.b16 %v894, %v890
    %v1127 = vpack.c.b16 %v895, %v891
    %v1128 = vpack.c.b16 %v896, %v892
    %v1129 = vpack.c.b16 %v897, %v893
    %v1130 = vpack.c.b16 %v902, %v898
    %v1131 = vpack.c.b16 %v903, %v899
    %v1132 = vpack.c.b16 %v904, %v900
    %v1133 = vpack.c.b16 %v905, %v901
    %v1134 = vpack.c.b16 %v910, %v906
    %v1135 = vpack.c.b16 %v911, %v907
    %v1136 = vpack.c.b16 %v912, %v908
    %v1137 = vpack.c.b16 %v913, %v909
    %v1138 = vpack.c.b16 %v918, %v914
    %v1139 = vpack.c.b16 %v919, %v915
    %v1140 = vpack.c.b16 %v920, %v916
    %v1141 = vpack.c.b16 %v921, %v917
    %v1142 = vpack.c.b16 %v926, %v922
    %v1143 = vpack.c.b16 %v927, %v923
    %v1144 = vpack.c.b16 %v928, %v924
    %v1145 = vpack.c.b16 %v929, %v925
    %v1146 = vpack.c.b16 %v934, %v930
    %v1147 = vpack.c.b16 %v935, %v931
    %v1148 = vpack.c.b16 %v936, %v932
    %v1149 = vpack.c.b16 %v937, %v933
    %v1150 = vpack.c.b16 %v942, %v938
    %v1151 = vpack.c.b16 %v943, %v939
    %v1152 = vpack.c.b16 %v944, %v940
    %v1153 = vpack.c.b16 %v945, %v941
    %v1154 = vpack.c.b16 %v950, %v946
    %v1155 = vpack.c.b16 %v951, %v947
    %v1156 = vpack.c.b16 %v952, %v948
    %v1157 = vpack.c.b16 %v953, %v949
    %v1158 = vpack.c.b16 %v958, %v954
    %v1159 = vpack.c.b16 %v959, %v955
    %v1160 = vpack.c.b16 %v960, %v956
    %v1161 = vpack.c.b16 %v961, %v957
    %v1162 = vpack.c.b16 %v966, %v962
    %v1163 = vpack.c.b16 %v967, %v963
    %v1164 = vpack.c.b16 %v968, %v964
    %v1165 = vpack.c.b16 %v969, %v965
    %vm1362 = vcmask 130048
    %v1364 = vsel %vm1362, %v375, 0
    %1366 = vmatprep.subr.bf16.mxu0 %v971
    %1367 = vmatpush1.bf16.msra.mxu0 %v970
    %1368 = vmatprep.subr.bf16.mxu0 %v975
    %1369 = vmatpush1.bf16.msra.mxu0 %v974
    %1370 = vmatprep.subr.bf16.mxu0 %v979
    %1371 = vmatpush1.bf16.msra.mxu0 %v978
    %1372 = vmatprep.subr.bf16.mxu0 %v983
    %1373 = vmatpush1.bf16.msra.mxu0 %v982
    %1374 = vmatprep.subr.bf16.mxu0 %v987
    %1375 = vmatpush1.bf16.msra.mxu0 %v986
    %1376 = vmatprep.subr.bf16.mxu0 %v991
    %1377 = vmatpush1.bf16.msra.mxu0 %v990
    %1378 = vmatprep.subr.bf16.mxu0 %v995
    %1379 = vmatpush1.bf16.msra.mxu0 %v994
    %1380 = vmatprep.subr.bf16.mxu0 %v999
    %1381 = vmatpush1.bf16.msra.mxu0 %v998
    %1382 = vmatprep.subr.bf16.mxu0 %v1003
    %1383 = vmatpush1.bf16.msra.mxu0 %v1002
    %1384 = vmatprep.subr.bf16.mxu0 %v1007
    %1385 = vmatpush1.bf16.msra.mxu0 %v1006
    %1386 = vmatprep.subr.bf16.mxu0 %v1011
    %1387 = vmatpush1.bf16.msra.mxu0 %v1010
    %1388 = vmatprep.subr.bf16.mxu0 %v1015
    %1389 = vmatpush1.bf16.msra.mxu0 %v1014
    %1390 = vmatprep.subr.bf16.mxu0 %v1019
    %1391 = vmatpush1.bf16.msra.mxu0 %v1018
    %1392 = vmatprep.subr.bf16.mxu0 %v1023
    %1393 = vmatpush1.bf16.msra.mxu0 %v1022
    %1394 = vmatprep.subr.bf16.mxu0 %v1027
    %1395 = vmatpush1.bf16.msra.mxu0 %v1026
    %1396 = vmatprep.subr.bf16.mxu0 %v1031
    %1397 = vmatpush1.bf16.msra.mxu0 %v1030
    %1398 = vmatprep.mubr.bf16.mxu0 %v370
    %1399 = vmatmul.mubr.bf16.gmra.mrb[0].mxu0 %v369
    %v1400 = vpop.f32.mrb[0].mxu0
    %v1401 = vadd.f32 %v334, %v1400
    %v1402 = vpop.f32.mrb[0].mxu0
    %v1403 = vadd.f32 %v338, %v1402
    %v1404 = vpop.f32.mrb[0].mxu0
    %v1405 = vadd.f32 %v334, %v1404
    %v1406 = vpop.f32.mrb[0].mxu0
    %v1407 = vadd.f32 %v338, %v1406
    %1408 = vdwg.mxu0
    %1409 = vmatprep.subr.bf16.mxu0 %v1035
    %1410 = vmatpush1.bf16.msra.mxu0 %v1034
    %1411 = vmatprep.subr.bf16.mxu0 %v1039
    %1412 = vmatpush1.bf16.msra.mxu0 %v1038
    %1413 = vmatprep.subr.bf16.mxu0 %v1043
    %1414 = vmatpush1.bf16.msra.mxu0 %v1042
    %1415 = vmatprep.subr.bf16.mxu0 %v1047
    %1416 = vmatpush1.bf16.msra.mxu0 %v1046
    %1417 = vmatprep.subr.bf16.mxu0 %v1051
    %1418 = vmatpush1.bf16.msra.mxu0 %v1050
    %1419 = vmatprep.subr.bf16.mxu0 %v1055
    %1420 = vmatpush1.bf16.msra.mxu0 %v1054
    %1421 = vmatprep.subr.bf16.mxu0 %v1059
    %1422 = vmatpush1.bf16.msra.mxu0 %v1058
    %1423 = vmatprep.subr.bf16.mxu0 %v1063
    %1424 = vmatpush1.bf16.msra.mxu0 %v1062
    %1425 = vmatprep.subr.bf16.mxu0 %v1067
    %1426 = vmatpush1.bf16.msra.mxu0 %v1066
    %1427 = vmatprep.subr.bf16.mxu0 %v1071
    %1428 = vmatpush1.bf16.msra.mxu0 %v1070
    %1429 = vmatprep.subr.bf16.mxu0 %v1075
    %1430 = vmatpush1.bf16.msra.mxu0 %v1074
    %1431 = vmatprep.subr.bf16.mxu0 %v1079
    %1432 = vmatpush1.bf16.msra.mxu0 %v1078
    %1433 = vmatprep.subr.bf16.mxu0 %v1083
    %1434 = vmatpush1.bf16.msra.mxu0 %v1082
    %1435 = vmatprep.subr.bf16.mxu0 %v1087
    %1436 = vmatpush1.bf16.msra.mxu0 %v1086
    %1437 = vmatprep.subr.bf16.mxu0 %v1091
    %1438 = vmatpush1.bf16.msra.mxu0 %v1090
    %1439 = vmatprep.subr.bf16.mxu0 %v1095
    %1440 = vmatpush1.bf16.msra.mxu0 %v1094
    %1441 = vmatprep.mubr.bf16.mxu0 %v372
    %1442 = vmatmul.mubr.bf16.gmra.mrb[0].mxu0 %v371
    %v1443 = vpop.f32.mrb[0].mxu0
    %v1444 = vadd.f32 %v1401, %v1443
    %v1445 = vpop.f32.mrb[0].mxu0
    %v1446 = vadd.f32 %v1403, %v1445
    %v1447 = vpop.f32.mrb[0].mxu0
    %v1448 = vadd.f32 %v1405, %v1447
    %v1449 = vpop.f32.mrb[0].mxu0
    %v1450 = vadd.f32 %v1407, %v1449
    %1451 = vdwg.mxu0
    %1452 = vmatprep.subr.bf16.mxu0 %v1099
    %1453 = vmatpush1.bf16.msra.mxu0 %v1098
    %1454 = vmatprep.subr.bf16.mxu0 %v1103
    %1455 = vmatpush1.bf16.msra.mxu0 %v1102
    %1456 = vmatprep.subr.bf16.mxu0 %v1107
    %1457 = vmatpush1.bf16.msra.mxu0 %v1106
    %1458 = vmatprep.subr.bf16.mxu0 %v1111
    %1459 = vmatpush1.bf16.msra.mxu0 %v1110
    %1460 = vmatprep.subr.bf16.mxu0 %v1115
    %1461 = vmatpush1.bf16.msra.mxu0 %v1114
    %1462 = vmatprep.subr.bf16.mxu0 %v1119
    %1463 = vmatpush1.bf16.msra.mxu0 %v1118
    %1464 = vmatprep.subr.bf16.mxu0 %v1123
    %1465 = vmatpush1.bf16.msra.mxu0 %v1122
    %1466 = vmatprep.subr.bf16.mxu0 %v1127
    %1467 = vmatpush1.bf16.msra.mxu0 %v1126
    %1468 = vmatprep.subr.bf16.mxu0 %v1131
    %1469 = vmatpush1.bf16.msra.mxu0 %v1130
    %1470 = vmatprep.subr.bf16.mxu0 %v1135
    %1471 = vmatpush1.bf16.msra.mxu0 %v1134
    %1472 = vmatprep.subr.bf16.mxu0 %v1139
    %1473 = vmatpush1.bf16.msra.mxu0 %v1138
    %1474 = vmatprep.subr.bf16.mxu0 %v1143
    %1475 = vmatpush1.bf16.msra.mxu0 %v1142
    %1476 = vmatprep.subr.bf16.mxu0 %v1147
    %1477 = vmatpush1.bf16.msra.mxu0 %v1146
    %1478 = vmatprep.subr.bf16.mxu0 %v1151
    %1479 = vmatpush1.bf16.msra.mxu0 %v1150
    %1480 = vmatprep.subr.bf16.mxu0 %v1155
    %1481 = vmatpush1.bf16.msra.mxu0 %v1154
    %1482 = vmatprep.subr.bf16.mxu0 %v1159
    %1483 = vmatpush1.bf16.msra.mxu0 %v1158
    %1484 = vmatprep.mubr.bf16.mxu0 %v374
    %1485 = vmatmul.mubr.bf16.gmra.mrb[0].mxu0 %v373
    %v1486 = vpop.f32.mrb[0].mxu0
    %v1487 = vadd.f32 %v1444, %v1486
    %v1488 = vpop.f32.mrb[0].mxu0
    %v1489 = vadd.f32 %v1446, %v1488
    %v1490 = vpop.f32.mrb[0].mxu0
    %v1491 = vadd.f32 %v1448, %v1490
    %v1492 = vpop.f32.mrb[0].mxu0
    %v1493 = vadd.f32 %v1450, %v1492
    %1494 = vdwg.mxu0
    %1495 = vmatprep.subr.bf16.mxu0 %v1163
    %1496 = vmatpush1.bf16.msra.mxu0 %v1162
    %1497 = vmatprep.subr.bf16.mxu0 0
    %1498 = vmatpush1.bf16.msra.mxu0 0
    %1499 = vmatprep.subr.bf16.mxu0 0
    %1500 = vmatpush1.bf16.msra.mxu0 0
    %1501 = vmatprep.subr.bf16.mxu0 0
    %1502 = vmatpush1.bf16.msra.mxu0 0
    %1503 = vmatprep.subr.bf16.mxu0 0
    %1504 = vmatpush1.bf16.msra.mxu0 0
    %1505 = vmatprep.subr.bf16.mxu0 0
    %1506 = vmatpush1.bf16.msra.mxu0 0
    %1507 = vmatprep.subr.bf16.mxu0 0
    %1508 = vmatpush1.bf16.msra.mxu0 0
    %1509 = vmatprep.subr.bf16.mxu0 0
    %1510 = vmatpush1.bf16.msra.mxu0 0
    %1511 = vmatprep.subr.bf16.mxu0 0
    %1512 = vmatpush1.bf16.msra.mxu0 0
    %1513 = vmatprep.subr.bf16.mxu0 0
    %1514 = vmatpush1.bf16.msra.mxu0 0
    %1515 = vmatprep.subr.bf16.mxu0 0
    %1516 = vmatpush1.bf16.msra.mxu0 0
    %1517 = vmatprep.subr.bf16.mxu0 0
    %1518 = vmatpush1.bf16.msra.mxu0 0
    %1519 = vmatprep.subr.bf16.mxu0 0
    %1520 = vmatpush1.bf16.msra.mxu0 0
    %1521 = vmatprep.subr.bf16.mxu0 0
    %1522 = vmatpush1.bf16.msra.mxu0 0
    %1523 = vmatprep.subr.bf16.mxu0 0
    %1524 = vmatpush1.bf16.msra.mxu0 0
    %1525 = vmatprep.subr.bf16.mxu0 0
    %1526 = vmatpush1.bf16.msra.mxu0 0
    %1527 = vmatprep.mubr.bf16.mxu0 0
    %1528 = vmatmul.mubr.bf16.gmra.mrb[0].mxu0 %v1364
    %v1529 = vpop.f32.mrb[0].mxu0
    %v1530 = vadd.f32 %v1487, %v1529
    %v1531 = vpop.f32.mrb[0].mxu0
    %v1532 = vadd.f32 %v1489, %v1531
    %v1533 = vpop.f32.mrb[0].mxu0
    %v1534 = vadd.f32 %v1491, %v1533
    %v1535 = vpop.f32.mrb[0].mxu0
    %v1536 = vadd.f32 %v1493, %v1535
    %1537 = vdwg.mxu0
    %1538 = vmatprep.subr.bf16.mxu0 %v973
    %1539 = vmatpush1.bf16.msra.mxu0 %v972
    %1540 = vmatprep.subr.bf16.mxu0 %v977
    %1541 = vmatpush1.bf16.msra.mxu0 %v976
    %1542 = vmatprep.subr.bf16.mxu0 %v981
    %1543 = vmatpush1.bf16.msra.mxu0 %v980
    %1544 = vmatprep.subr.bf16.mxu0 %v985
    %1545 = vmatpush1.bf16.msra.mxu0 %v984
    %1546 = vmatprep.subr.bf16.mxu0 %v989
    %1547 = vmatpush1.bf16.msra.mxu0 %v988
    %1548 = vmatprep.subr.bf16.mxu0 %v993
    %1549 = vmatpush1.bf16.msra.mxu0 %v992
    %1550 = vmatprep.subr.bf16.mxu0 %v997
    %1551 = vmatpush1.bf16.msra.mxu0 %v996
    %1552 = vmatprep.subr.bf16.mxu0 %v1001
    %1553 = vmatpush1.bf16.msra.mxu0 %v1000
    %1554 = vmatprep.subr.bf16.mxu0 %v1005
    %1555 = vmatpush1.bf16.msra.mxu0 %v1004
    %1556 = vmatprep.subr.bf16.mxu0 %v1009
    %1557 = vmatpush1.bf16.msra.mxu0 %v1008
    %1558 = vmatprep.subr.bf16.mxu0 %v1013
    %1559 = vmatpush1.bf16.msra.mxu0 %v1012
    %1560 = vmatprep.subr.bf16.mxu0 %v1017
    %1561 = vmatpush1.bf16.msra.mxu0 %v1016
    %1562 = vmatprep.subr.bf16.mxu0 %v1021
    %1563 = vmatpush1.bf16.msra.mxu0 %v1020
    %1564 = vmatprep.subr.bf16.mxu0 %v1025
    %1565 = vmatpush1.bf16.msra.mxu0 %v1024
    %1566 = vmatprep.subr.bf16.mxu0 %v1029
    %1567 = vmatpush1.bf16.msra.mxu0 %v1028
    %1568 = vmatprep.subr.bf16.mxu0 %v1033
    %1569 = vmatpush1.bf16.msra.mxu0 %v1032
    %1570 = vmatprep.mubr.bf16.mxu0 %v370
    %1571 = vmatmul.mubr.bf16.gmra.mrb[0].mxu0 %v369
    %v1572 = vpop.f32.mrb[0].mxu0
    %v1573 = vadd.f32 %v342, %v1572
    %v1574 = vpop.f32.mrb[0].mxu0
    %v1575 = vadd.f32 %v346, %v1574
    %v1576 = vpop.f32.mrb[0].mxu0
    %v1577 = vadd.f32 %v342, %v1576
    %v1578 = vpop.f32.mrb[0].mxu0
    %v1579 = vadd.f32 %v346, %v1578
    %1580 = vdwg.mxu0
    %1581 = vmatprep.subr.bf16.mxu0 %v1037
    %1582 = vmatpush1.bf16.msra.mxu0 %v1036
    %1583 = vmatprep.subr.bf16.mxu0 %v1041
    %1584 = vmatpush1.bf16.msra.mxu0 %v1040
    %1585 = vmatprep.subr.bf16.mxu0 %v1045
    %1586 = vmatpush1.bf16.msra.mxu0 %v1044
    %1587 = vmatprep.subr.bf16.mxu0 %v1049
    %1588 = vmatpush1.bf16.msra.mxu0 %v1048
    %1589 = vmatprep.subr.bf16.mxu0 %v1053
    %1590 = vmatpush1.bf16.msra.mxu0 %v1052
    %1591 = vmatprep.subr.bf16.mxu0 %v1057
    %1592 = vmatpush1.bf16.msra.mxu0 %v1056
    %1593 = vmatprep.subr.bf16.mxu0 %v1061
    %1594 = vmatpush1.bf16.msra.mxu0 %v1060
    %1595 = vmatprep.subr.bf16.mxu0 %v1065
    %1596 = vmatpush1.bf16.msra.mxu0 %v1064
    %1597 = vmatprep.subr.bf16.mxu0 %v1069
    %1598 = vmatpush1.bf16.msra.mxu0 %v1068
    %1599 = vmatprep.subr.bf16.mxu0 %v1073
    %1600 = vmatpush1.bf16.msra.mxu0 %v1072
    %1601 = vmatprep.subr.bf16.mxu0 %v1077
    %1602 = vmatpush1.bf16.msra.mxu0 %v1076
    %1603 = vmatprep.subr.bf16.mxu0 %v1081
    %1604 = vmatpush1.bf16.msra.mxu0 %v1080
    %1605 = vmatprep.subr.bf16.mxu0 %v1085
    %1606 = vmatpush1.bf16.msra.mxu0 %v1084
    %1607 = vmatprep.subr.bf16.mxu0 %v1089
    %1608 = vmatpush1.bf16.msra.mxu0 %v1088
    %1609 = vmatprep.subr.bf16.mxu0 %v1093
    %1610 = vmatpush1.bf16.msra.mxu0 %v1092
    %1611 = vmatprep.subr.bf16.mxu0 %v1097
    %1612 = vmatpush1.bf16.msra.mxu0 %v1096
    %1613 = vmatprep.mubr.bf16.mxu0 %v372
    %1614 = vmatmul.mubr.bf16.gmra.mrb[0].mxu0 %v371
    %v1615 = vpop.f32.mrb[0].mxu0
    %v1616 = vadd.f32 %v1573, %v1615
    %v1617 = vpop.f32.mrb[0].mxu0
    %v1618 = vadd.f32 %v1575, %v1617
    %v1619 = vpop.f32.mrb[0].mxu0
    %v1620 = vadd.f32 %v1577, %v1619
    %v1621 = vpop.f32.mrb[0].mxu0
    %v1622 = vadd.f32 %v1579, %v1621
    %1623 = vdwg.mxu0
    %1624 = vmatprep.subr.bf16.mxu0 %v1101
    %1625 = vmatpush1.bf16.msra.mxu0 %v1100
    %1626 = vmatprep.subr.bf16.mxu0 %v1105
    %1627 = vmatpush1.bf16.msra.mxu0 %v1104
    %1628 = vmatprep.subr.bf16.mxu0 %v1109
    %1629 = vmatpush1.bf16.msra.mxu0 %v1108
    %1630 = vmatprep.subr.bf16.mxu0 %v1113
    %1631 = vmatpush1.bf16.msra.mxu0 %v1112
    %1632 = vmatprep.subr.bf16.mxu0 %v1117
    %1633 = vmatpush1.bf16.msra.mxu0 %v1116
    %1634 = vmatprep.subr.bf16.mxu0 %v1121
    %1635 = vmatpush1.bf16.msra.mxu0 %v1120
    %1636 = vmatprep.subr.bf16.mxu0 %v1125
    %1637 = vmatpush1.bf16.msra.mxu0 %v1124
    %1638 = vmatprep.subr.bf16.mxu0 %v1129
    %1639 = vmatpush1.bf16.msra.mxu0 %v1128
    %1640 = vmatprep.subr.bf16.mxu0 %v1133
    %1641 = vmatpush1.bf16.msra.mxu0 %v1132
    %1642 = vmatprep.subr.bf16.mxu0 %v1137
    %1643 = vmatpush1.bf16.msra.mxu0 %v1136
    %1644 = vmatprep.subr.bf16.mxu0 %v1141
    %1645 = vmatpush1.bf16.msra.mxu0 %v1140
    %1646 = vmatprep.subr.bf16.mxu0 %v1145
    %1647 = vmatpush1.bf16.msra.mxu0 %v1144
    %1648 = vmatprep.subr.bf16.mxu0 %v1149
    %1649 = vmatpush1.bf16.msra.mxu0 %v1148
    %1650 = vmatprep.subr.bf16.mxu0 %v1153
    %1651 = vmatpush1.bf16.msra.mxu0 %v1152
    %1652 = vmatprep.subr.bf16.mxu0 %v1157
    %1653 = vmatpush1.bf16.msra.mxu0 %v1156
    %1654 = vmatprep.subr.bf16.mxu0 %v1161
    %1655 = vmatpush1.bf16.msra.mxu0 %v1160
    %1656 = vmatprep.mubr.bf16.mxu0 %v374
    %1657 = vmatmul.mubr.bf16.gmra.mrb[0].mxu0 %v373
    %v1658 = vpop.f32.mrb[0].mxu0
    %v1659 = vadd.f32 %v1616, %v1658
    %v1660 = vpop.f32.mrb[0].mxu0
    %v1661 = vadd.f32 %v1618, %v1660
    %v1662 = vpop.f32.mrb[0].mxu0
    %v1663 = vadd.f32 %v1620, %v1662
    %v1664 = vpop.f32.mrb[0].mxu0
    %v1665 = vadd.f32 %v1622, %v1664
    %1666 = vdwg.mxu0
    %1667 = vmatprep.subr.bf16.mxu0 %v1165
    %1668 = vmatpush1.bf16.msra.mxu0 %v1164
    %1669 = vmatprep.subr.bf16.mxu0 0
    %1670 = vmatpush1.bf16.msra.mxu0 0
    %1671 = vmatprep.subr.bf16.mxu0 0
    %1672 = vmatpush1.bf16.msra.mxu0 0
    %1673 = vmatprep.subr.bf16.mxu0 0
    %1674 = vmatpush1.bf16.msra.mxu0 0
    %1675 = vmatprep.subr.bf16.mxu0 0
    %1676 = vmatpush1.bf16.msra.mxu0 0
    %1677 = vmatprep.subr.bf16.mxu0 0
    %1678 = vmatpush1.bf16.msra.mxu0 0
    %1679 = vmatprep.subr.bf16.mxu0 0
    %1680 = vmatpush1.bf16.msra.mxu0 0
    %1681 = vmatprep.subr.bf16.mxu0 0
    %1682 = vmatpush1.bf16.msra.mxu0 0
    %1683 = vmatprep.subr.bf16.mxu0 0
    %1684 = vmatpush1.bf16.msra.mxu0 0
    %1685 = vmatprep.subr.bf16.mxu0 0
    %1686 = vmatpush1.bf16.msra.mxu0 0
    %1687 = vmatprep.subr.bf16.mxu0 0
    %1688 = vmatpush1.bf16.msra.mxu0 0
    %1689 = vmatprep.subr.bf16.mxu0 0
    %1690 = vmatpush1.bf16.msra.mxu0 0
    %1691 = vmatprep.subr.bf16.mxu0 0
    %1692 = vmatpush1.bf16.msra.mxu0 0
    %1693 = vmatprep.subr.bf16.mxu0 0
    %1694 = vmatpush1.bf16.msra.mxu0 0
    %1695 = vmatprep.subr.bf16.mxu0 0
    %1696 = vmatpush1.bf16.msra.mxu0 0
    %1697 = vmatprep.subr.bf16.mxu0 0
    %1698 = vmatpush1.bf16.msra.mxu0 0
    %1699 = vmatprep.mubr.bf16.mxu0 0
    %1700 = vmatmul.mubr.bf16.gmra.mrb[0].mxu0 %v1364
    %v1701 = vpop.f32.mrb[0].mxu0
    %v1702 = vadd.f32 %v1659, %v1701
    %v1703 = vpop.f32.mrb[0].mxu0
    %v1704 = vadd.f32 %v1661, %v1703
    %v1705 = vpop.f32.mrb[0].mxu0
    %v1706 = vadd.f32 %v1663, %v1705
    %v1707 = vpop.f32.mrb[0].mxu0
    %v1708 = vadd.f32 %v1665, %v1707
    %1709 = vdwg.mxu0
    %v1710 = vmul.f32 %v1530, 0.5
    %v1711 = vmul.f32 %v1532, 0.5
    %v1712 = vmul.f32 %v1702, 0.5
    %v1713 = vmul.f32 %v1704, 0.5
    %v1714 = vmul.f32 %v1534, 0.5
    %v1715 = vmul.f32 %v1536, 0.5
    %v1716 = vmul.f32 %v1706, 0.5
    %v1717 = vmul.f32 %v1708, 0.5
    %v1718 = vtanh.pop %v1710
    %v1719 = vtanh.pop %v1711
    %v1720 = vtanh.pop %v1712
    %v1721 = vtanh.pop %v1713
    %v1722 = vtanh.pop %v1714
    %v1723 = vtanh.pop %v1715
    %v1724 = vtanh.pop %v1716
    %v1725 = vtanh.pop %v1717
    %v1726 = vmul.f32 %v1718, 0.5
    %v1727 = vmul.f32 %v1719, 0.5
    %v1728 = vmul.f32 %v1720, 0.5
    %v1729 = vmul.f32 %v1721, 0.5
    %v1730 = vmul.f32 %v1722, 0.5
    %v1731 = vmul.f32 %v1723, 0.5
    %v1732 = vmul.f32 %v1724, 0.5
    %v1733 = vmul.f32 %v1725, 0.5
    %v1734 = vadd.f32 %v1726, 0.5
    %v1735 = vadd.f32 %v1727, 0.5
    %v1736 = vadd.f32 %v1728, 0.5
    %v1737 = vadd.f32 %v1729, 0.5
    %v1738 = vadd.f32 %v1730, 0.5
    %v1739 = vadd.f32 %v1731, 0.5
    %v1740 = vadd.f32 %v1732, 0.5
    %v1741 = vadd.f32 %v1733, 0.5
    %v1742 = vld [vmem:[#allocation8] sm:$0xff]
    %v1743 = vld [vmem:[#allocation8 + $0x8] sm:$0xff]
    %v1744 = vld [vmem:[#allocation8 + $0x10] sm:$0xff]
    %v1745 = vld [vmem:[#allocation8 + $0x18] sm:$0xff]
    %v1746 = vld [vmem:[#allocation8 + $0x20] sm:$0xff]
    %v1747 = vld [vmem:[#allocation8 + $0x28] sm:$0xff]
    %v1748 = vld [vmem:[#allocation8 + $0x30] sm:$0xff]
    %v1749 = vld [vmem:[#allocation8 + $0x38] sm:$0xff]
    %v1750 = vld [vmem:[#allocation8 + $0x40] sm:$0xff]
    %v1751 = vld [vmem:[#allocation8 + $0x48] sm:$0xff]
    %v1752 = vld [vmem:[#allocation8 + $0x50] sm:$0xff]
    %v1753 = vld [vmem:[#allocation8 + $0x58] sm:$0xff]
    %v1754 = vld [vmem:[#allocation8 + $0x60] sm:$0xff]
    %v1755 = vld [vmem:[#allocation8 + $0x68] sm:$0xff]
    %v1756 = vld [vmem:[#allocation8 + $0x70] sm:$0xff]
    %v1757 = vld [vmem:[#allocation8 + $0x78] sm:$0xff]
    %v1758 = vld [vmem:[#allocation8 + $0x80] sm:$0xff]
    %v1759 = vld [vmem:[#allocation8 + $0x88] sm:$0xff]
    %v1760 = vld [vmem:[#allocation8 + $0x90] sm:$0xff]
    %v1761 = vld [vmem:[#allocation8 + $0x98] sm:$0xff]
    %v1762 = vld [vmem:[#allocation8 + $0xa0] sm:$0xff]
    %v1763 = vld [vmem:[#allocation8 + $0xa8] sm:$0xff]
    %v1764 = vld [vmem:[#allocation8 + $0xb0] sm:$0xff]
    %v1765 = vld [vmem:[#allocation8 + $0xb8] sm:$0xff]
    %v1766 = vld [vmem:[#allocation8 + $0xc0] sm:$0xff]
    %v1767 = vld [vmem:[#allocation8 + $0xc8] sm:$0xff]
    %v1768 = vld [vmem:[#allocation8 + $0xd0] sm:$0xff]
    %v1769 = vld [vmem:[#allocation8 + $0xd8] sm:$0xff]
    %v1770 = vld [vmem:[#allocation8 + $0xe0] sm:$0xff]
    %v1771 = vld [vmem:[#allocation8 + $0xe8] sm:$0xff]
    %v1772 = vld [vmem:[#allocation8 + $0xf0] sm:$0xff]
    %v1773 = vld [vmem:[#allocation8 + $0xf8] sm:$0xff]
    %v1774 = vld [vmem:[#allocation8 + $0x100] sm:$0xff]
    %v1775 = vld [vmem:[#allocation8 + $0x108] sm:$0xff]
    %v1776 = vld [vmem:[#allocation8 + $0x110] sm:$0xff]
    %v1777 = vld [vmem:[#allocation8 + $0x118] sm:$0xff]
    %v1778 = vld [vmem:[#allocation8 + $0x120] sm:$0xff]
    %v1779 = vld [vmem:[#allocation8 + $0x128] sm:$0xff]
    %v1780 = vld [vmem:[#allocation8 + $0x130] sm:$0xff]
    %v1781 = vld [vmem:[#allocation8 + $0x138] sm:$0xff]
    %v1782 = vld [vmem:[#allocation8 + $0x140] sm:$0xff]
    %v1783 = vld [vmem:[#allocation8 + $0x148] sm:$0xff]
    %v1784 = vld [vmem:[#allocation8 + $0x150] sm:$0xff]
    %v1785 = vld [vmem:[#allocation8 + $0x158] sm:$0xff]
    %v1786 = vld [vmem:[#allocation8 + $0x160] sm:$0xff]
    %v1787 = vld [vmem:[#allocation8 + $0x168] sm:$0xff]
    %v1788 = vld [vmem:[#allocation8 + $0x170] sm:$0xff]
    %v1789 = vld [vmem:[#allocation8 + $0x178] sm:$0xff]
    %v1790 = vld [vmem:[#allocation8 + $0x180] sm:$0xff]
    %v1791 = vld [vmem:[#allocation8 + $0x188] sm:$0xff]
    %v1792 = vld [vmem:[#allocation8 + $0x190] sm:$0xff]
    %v1793 = vld [vmem:[#allocation8 + $0x198] sm:$0xff]
    %v1794 = vld [vmem:[#allocation8 + $0x1a0] sm:$0xff]
    %v1795 = vld [vmem:[#allocation8 + $0x1a8] sm:$0xff]
    %v1796 = vld [vmem:[#allocation8 + $0x1b0] sm:$0xff]
    %v1797 = vld [vmem:[#allocation8 + $0x1b8] sm:$0xff]
    %v1798 = vld [vmem:[#allocation8 + $0x1c0] sm:$0xff]
    %v1799 = vld [vmem:[#allocation8 + $0x1c8] sm:$0xff]
    %v1800 = vld [vmem:[#allocation8 + $0x1d0] sm:$0xff]
    %v1801 = vld [vmem:[#allocation8 + $0x1d8] sm:$0xff]
    %v1802 = vld [vmem:[#allocation8 + $0x1e0] sm:$0xff]
    %v1803 = vld [vmem:[#allocation8 + $0x1e8] sm:$0xff]
    %v1804 = vld [vmem:[#allocation8 + $0x1f0] sm:$0xff]
    %v1805 = vld [vmem:[#allocation8 + $0x1f8] sm:$0xff]
    %v1806 = vld [vmem:[#allocation8 + $0x200] sm:$0xff]
    %v1807 = vld [vmem:[#allocation8 + $0x208] sm:$0xff]
    %v1808 = vld [vmem:[#allocation8 + $0x210] sm:$0xff]
    %v1809 = vld [vmem:[#allocation8 + $0x218] sm:$0xff]
    %v1810 = vld [vmem:[#allocation8 + $0x220] sm:$0xff]
    %v1811 = vld [vmem:[#allocation8 + $0x228] sm:$0xff]
    %v1812 = vld [vmem:[#allocation8 + $0x230] sm:$0xff]
    %v1813 = vld [vmem:[#allocation8 + $0x238] sm:$0xff]
    %v1814 = vld [vmem:[#allocation8 + $0x240] sm:$0xff]
    %v1815 = vld [vmem:[#allocation8 + $0x248] sm:$0xff]
    %v1816 = vld [vmem:[#allocation8 + $0x250] sm:$0xff]
    %v1817 = vld [vmem:[#allocation8 + $0x258] sm:$0xff]
    %v1818 = vld [vmem:[#allocation8 + $0x260] sm:$0xff]
    %v1819 = vld [vmem:[#allocation8 + $0x268] sm:$0xff]
    %v1820 = vld [vmem:[#allocation8 + $0x270] sm:$0xff]
    %v1821 = vld [vmem:[#allocation8 + $0x278] sm:$0xff]
    %v1822 = vld [vmem:[#allocation8 + $0x280] sm:$0xff]
    %v1823 = vld [vmem:[#allocation8 + $0x288] sm:$0xff]
    %v1824 = vld [vmem:[#allocation8 + $0x290] sm:$0xff]
    %v1825 = vld [vmem:[#allocation8 + $0x298] sm:$0xff]
    %v1826 = vld [vmem:[#allocation8 + $0x2a0] sm:$0xff]
    %v1827 = vld [vmem:[#allocation8 + $0x2a8] sm:$0xff]
    %v1828 = vld [vmem:[#allocation8 + $0x2b0] sm:$0xff]
    %v1829 = vld [vmem:[#allocation8 + $0x2b8] sm:$0xff]
    %v1830 = vld [vmem:[#allocation8 + $0x2c0] sm:$0xff]
    %v1831 = vld [vmem:[#allocation8 + $0x2c8] sm:$0xff]
    %v1832 = vld [vmem:[#allocation8 + $0x2d0] sm:$0xff]
    %v1833 = vld [vmem:[#allocation8 + $0x2d8] sm:$0xff]
    %v1834 = vld [vmem:[#allocation8 + $0x2e0] sm:$0xff]
    %v1835 = vld [vmem:[#allocation8 + $0x2e8] sm:$0xff]
    %v1836 = vld [vmem:[#allocation8 + $0x2f0] sm:$0xff]
    %v1837 = vld [vmem:[#allocation8 + $0x2f8] sm:$0xff]
    %v1838 = vld [vmem:[#allocation8 + $0x300] sm:$0xff]
    %v1839 = vld [vmem:[#allocation8 + $0x308] sm:$0xff]
    %v1840 = vld [vmem:[#allocation8 + $0x310] sm:$0xff]
    %v1841 = vld [vmem:[#allocation8 + $0x318] sm:$0xff]
    %v1842 = vld [vmem:[#allocation8 + $0x320] sm:$0xff]
    %v1843 = vld [vmem:[#allocation8 + $0x328] sm:$0xff]
    %v1844 = vld [vmem:[#allocation8 + $0x330] sm:$0xff]
    %v1845 = vld [vmem:[#allocation8 + $0x338] sm:$0xff]
    %v1846 = vld [vmem:[#allocation8 + $0x340] sm:$0xff]
    %v1847 = vld [vmem:[#allocation8 + $0x348] sm:$0xff]
    %v1848 = vld [vmem:[#allocation8 + $0x350] sm:$0xff]
    %v1849 = vld [vmem:[#allocation8 + $0x358] sm:$0xff]
    %v1850 = vld [vmem:[#allocation8 + $0x360] sm:$0xff]
    %v1851 = vld [vmem:[#allocation8 + $0x368] sm:$0xff]
    %v1852 = vld [vmem:[#allocation8 + $0x370] sm:$0xff]
    %v1853 = vld [vmem:[#allocation8 + $0x378] sm:$0xff]
    %v1854 = vld [vmem:[#allocation8 + $0x380] sm:$0xff]
    %v1855 = vld [vmem:[#allocation8 + $0x388] sm:$0xff]
    %v1856 = vld [vmem:[#allocation8 + $0x390] sm:$0xff]
    %v1857 = vld [vmem:[#allocation8 + $0x398] sm:$0xff]
    %v1858 = vld [vmem:[#allocation8 + $0x3a0] sm:$0xff]
    %v1859 = vld [vmem:[#allocation8 + $0x3a8] sm:$0xff]
    %v1860 = vld [vmem:[#allocation8 + $0x3b0] sm:$0xff]
    %v1861 = vld [vmem:[#allocation8 + $0x3b8] sm:$0xff]
    %v1862 = vld [vmem:[#allocation8 + $0x3c0] sm:$0xff]
    %v1863 = vld [vmem:[#allocation8 + $0x3c8] sm:$0xff]
    %v1864 = vld [vmem:[#allocation8 + $0x3d0] sm:$0xff]
    %v1865 = vld [vmem:[#allocation8 + $0x3d8] sm:$0xff]
    %v1866 = vld [vmem:[#allocation8 + $0x3e0] sm:$0xff]
    %v1867 = vld [vmem:[#allocation8 + $0x3e8] sm:$0xff]
    %v1868 = vld [vmem:[#allocation8 + $0x3f0] sm:$0xff]
    %v1869 = vld [vmem:[#allocation8 + $0x3f8] sm:$0xff]
    %v1870 = vpack.c.bf16 %v1738, %v1734
    %v1871 = vpack.c.bf16 %v1739, %v1735
    %v1872 = vpack.c.bf16 %v1740, %v1736
    %v1873 = vpack.c.bf16 %v1741, %v1737
    %v1874 = vlaneseq
    %v1875 = vshrl.u32 %v1874, 7
    %v1876 = vsub.s32 1, %v1875
    %v1877 = vrot.slane %v103, %v1876
    %v1878 = vlaneseq
    %v1879 = vshrl.u32 %v1878, 7
    %v1880 = vsub.s32 5, %v1879
    %v1881 = vrot.slane %v103, %v1880
    %v1882 = vlaneseq
    %v1883 = vshrl.u32 %v1882, 7
    %v1884 = vsub.s32 1, %v1883
    %v1885 = vrot.slane %v104, %v1884
    %v1886 = vlaneseq
    %v1887 = vshrl.u32 %v1886, 7
    %v1888 = vsub.s32 5, %v1887
    %v1889 = vrot.slane %v104, %v1888
    %v1894 = vlaneseq
    %v1895 = vshrl.u32 %v1894, 7
    %v1896 = vsub.s32 1, %v1895
    %v1897 = vrot.slane %v1877, %v1896
    %v1898 = vlaneseq
    %v1899 = vshrl.u32 %v1898, 7
    %v1900 = vsub.s32 1, %v1899
    %v1901 = vrot.slane %v1881, %v1900
    %v1902 = vlaneseq
    %v1903 = vshrl.u32 %v1902, 7
    %v1904 = vsub.s32 1, %v1903
    %v1905 = vrot.slane %v1885, %v1904
    %v1906 = vlaneseq
    %v1907 = vshrl.u32 %v1906, 7
    %v1908 = vsub.s32 1, %v1907
    %v1909 = vrot.slane %v1889, %v1908
    %v2038 = vunpack.c.l.b16 %v1742
    %v2039 = vunpack.c.h.b16 %v1742
    %v2040 = vunpack.c.l.b16 %v1743
    %v2041 = vunpack.c.h.b16 %v1743
    %v2042 = vunpack.c.l.b16 %v1744
    %v2043 = vunpack.c.h.b16 %v1744
    %v2044 = vunpack.c.l.b16 %v1745
    %v2045 = vunpack.c.h.b16 %v1745
    %v2046 = vunpack.c.l.b16 %v1746
    %v2047 = vunpack.c.h.b16 %v1746
    %v2048 = vunpack.c.l.b16 %v1747
    %v2049 = vunpack.c.h.b16 %v1747
    %v2050 = vunpack.c.l.b16 %v1748
    %v2051 = vunpack.c.h.b16 %v1748
    %v2052 = vunpack.c.l.b16 %v1749
    %v2053 = vunpack.c.h.b16 %v1749
    %v2054 = vunpack.c.l.b16 %v1750
    %v2055 = vunpack.c.h.b16 %v1750
    %v2056 = vunpack.c.l.b16 %v1751
    %v2057 = vunpack.c.h.b16 %v1751
    %v2058 = vunpack.c.l.b16 %v1752
    %v2059 = vunpack.c.h.b16 %v1752
    %v2060 = vunpack.c.l.b16 %v1753
    %v2061 = vunpack.c.h.b16 %v1753
    %v2062 = vunpack.c.l.b16 %v1754
    %v2063 = vunpack.c.h.b16 %v1754
    %v2064 = vunpack.c.l.b16 %v1755
    %v2065 = vunpack.c.h.b16 %v1755
    %v2066 = vunpack.c.l.b16 %v1756
    %v2067 = vunpack.c.h.b16 %v1756
    %v2068 = vunpack.c.l.b16 %v1757
    %v2069 = vunpack.c.h.b16 %v1757
    %v2070 = vunpack.c.l.b16 %v1758
    %v2071 = vunpack.c.h.b16 %v1758
    %v2072 = vunpack.c.l.b16 %v1759
    %v2073 = vunpack.c.h.b16 %v1759
    %v2074 = vunpack.c.l.b16 %v1760
    %v2075 = vunpack.c.h.b16 %v1760
    %v2076 = vunpack.c.l.b16 %v1761
    %v2077 = vunpack.c.h.b16 %v1761
    %v2078 = vunpack.c.l.b16 %v1762
    %v2079 = vunpack.c.h.b16 %v1762
    %v2080 = vunpack.c.l.b16 %v1763
    %v2081 = vunpack.c.h.b16 %v1763
    %v2082 = vunpack.c.l.b16 %v1764
    %v2083 = vunpack.c.h.b16 %v1764
    %v2084 = vunpack.c.l.b16 %v1765
    %v2085 = vunpack.c.h.b16 %v1765
    %v2086 = vunpack.c.l.b16 %v1766
    %v2087 = vunpack.c.h.b16 %v1766
    %v2088 = vunpack.c.l.b16 %v1767
    %v2089 = vunpack.c.h.b16 %v1767
    %v2090 = vunpack.c.l.b16 %v1768
    %v2091 = vunpack.c.h.b16 %v1768
    %v2092 = vunpack.c.l.b16 %v1769
    %v2093 = vunpack.c.h.b16 %v1769
    %v2094 = vunpack.c.l.b16 %v1770
    %v2095 = vunpack.c.h.b16 %v1770
    %v2096 = vunpack.c.l.b16 %v1771
    %v2097 = vunpack.c.h.b16 %v1771
    %v2098 = vunpack.c.l.b16 %v1772
    %v2099 = vunpack.c.h.b16 %v1772
    %v2100 = vunpack.c.l.b16 %v1773
    %v2101 = vunpack.c.h.b16 %v1773
    %v2102 = vunpack.c.l.b16 %v1774
    %v2103 = vunpack.c.h.b16 %v1774
    %v2104 = vunpack.c.l.b16 %v1775
    %v2105 = vunpack.c.h.b16 %v1775
    %v2106 = vunpack.c.l.b16 %v1776
    %v2107 = vunpack.c.h.b16 %v1776
    %v2108 = vunpack.c.l.b16 %v1777
    %v2109 = vunpack.c.h.b16 %v1777
    %v2110 = vunpack.c.l.b16 %v1778
    %v2111 = vunpack.c.h.b16 %v1778
    %v2112 = vunpack.c.l.b16 %v1779
    %v2113 = vunpack.c.h.b16 %v1779
    %v2114 = vunpack.c.l.b16 %v1780
    %v2115 = vunpack.c.h.b16 %v1780
    %v2116 = vunpack.c.l.b16 %v1781
    %v2117 = vunpack.c.h.b16 %v1781
    %v2118 = vunpack.c.l.b16 %v1782
    %v2119 = vunpack.c.h.b16 %v1782
    %v2120 = vunpack.c.l.b16 %v1783
    %v2121 = vunpack.c.h.b16 %v1783
    %v2122 = vunpack.c.l.b16 %v1784
    %v2123 = vunpack.c.h.b16 %v1784
    %v2124 = vunpack.c.l.b16 %v1785
    %v2125 = vunpack.c.h.b16 %v1785
    %v2126 = vunpack.c.l.b16 %v1786
    %v2127 = vunpack.c.h.b16 %v1786
    %v2128 = vunpack.c.l.b16 %v1787
    %v2129 = vunpack.c.h.b16 %v1787
    %v2130 = vunpack.c.l.b16 %v1788
    %v2131 = vunpack.c.h.b16 %v1788
    %v2132 = vunpack.c.l.b16 %v1789
    %v2133 = vunpack.c.h.b16 %v1789
    %v2134 = vunpack.c.l.b16 %v1790
    %v2135 = vunpack.c.h.b16 %v1790
    %v2136 = vunpack.c.l.b16 %v1791
    %v2137 = vunpack.c.h.b16 %v1791
    %v2138 = vunpack.c.l.b16 %v1792
    %v2139 = vunpack.c.h.b16 %v1792
    %v2140 = vunpack.c.l.b16 %v1793
    %v2141 = vunpack.c.h.b16 %v1793
    %v2142 = vunpack.c.l.b16 %v1794
    %v2143 = vunpack.c.h.b16 %v1794
    %v2144 = vunpack.c.l.b16 %v1795
    %v2145 = vunpack.c.h.b16 %v1795
    %v2146 = vunpack.c.l.b16 %v1796
    %v2147 = vunpack.c.h.b16 %v1796
    %v2148 = vunpack.c.l.b16 %v1797
    %v2149 = vunpack.c.h.b16 %v1797
    %v2150 = vunpack.c.l.b16 %v1798
    %v2151 = vunpack.c.h.b16 %v1798
    %v2152 = vunpack.c.l.b16 %v1799
    %v2153 = vunpack.c.h.b16 %v1799
    %v2154 = vunpack.c.l.b16 %v1800
    %v2155 = vunpack.c.h.b16 %v1800
    %v2156 = vunpack.c.l.b16 %v1801
    %v2157 = vunpack.c.h.b16 %v1801
    %v2158 = vunpack.c.l.b16 %v1802
    %v2159 = vunpack.c.h.b16 %v1802
    %v2160 = vunpack.c.l.b16 %v1803
    %v2161 = vunpack.c.h.b16 %v1803
    %v2162 = vunpack.c.l.b16 %v1804
    %v2163 = vunpack.c.h.b16 %v1804
    %v2164 = vunpack.c.l.b16 %v1805
    %v2165 = vunpack.c.h.b16 %v1805
    %v2166 = vunpack.c.l.b16 %v1806
    %v2167 = vunpack.c.h.b16 %v1806
    %v2168 = vunpack.c.l.b16 %v1807
    %v2169 = vunpack.c.h.b16 %v1807
    %v2170 = vunpack.c.l.b16 %v1808
    %v2171 = vunpack.c.h.b16 %v1808
    %v2172 = vunpack.c.l.b16 %v1809
    %v2173 = vunpack.c.h.b16 %v1809
    %v2174 = vunpack.c.l.b16 %v1810
    %v2175 = vunpack.c.h.b16 %v1810
    %v2176 = vunpack.c.l.b16 %v1811
    %v2177 = vunpack.c.h.b16 %v1811
    %v2178 = vunpack.c.l.b16 %v1812
    %v2179 = vunpack.c.h.b16 %v1812
    %v2180 = vunpack.c.l.b16 %v1813
    %v2181 = vunpack.c.h.b16 %v1813
    %v2182 = vunpack.c.l.b16 %v1814
    %v2183 = vunpack.c.h.b16 %v1814
    %v2184 = vunpack.c.l.b16 %v1815
    %v2185 = vunpack.c.h.b16 %v1815
    %v2186 = vunpack.c.l.b16 %v1816
    %v2187 = vunpack.c.h.b16 %v1816
    %v2188 = vunpack.c.l.b16 %v1817
    %v2189 = vunpack.c.h.b16 %v1817
    %v2190 = vunpack.c.l.b16 %v1818
    %v2191 = vunpack.c.h.b16 %v1818
    %v2192 = vunpack.c.l.b16 %v1819
    %v2193 = vunpack.c.h.b16 %v1819
    %v2194 = vunpack.c.l.b16 %v1820
    %v2195 = vunpack.c.h.b16 %v1820
    %v2196 = vunpack.c.l.b16 %v1821
    %v2197 = vunpack.c.h.b16 %v1821
    %v2198 = vunpack.c.l.b16 %v1822
    %v2199 = vunpack.c.h.b16 %v1822
    %v2200 = vunpack.c.l.b16 %v1823
    %v2201 = vunpack.c.h.b16 %v1823
    %v2202 = vunpack.c.l.b16 %v1824
    %v2203 = vunpack.c.h.b16 %v1824
    %v2204 = vunpack.c.l.b16 %v1825
    %v2205 = vunpack.c.h.b16 %v1825
    %v2206 = vunpack.c.l.b16 %v1826
    %v2207 = vunpack.c.h.b16 %v1826
    %v2208 = vunpack.c.l.b16 %v1827
    %v2209 = vunpack.c.h.b16 %v1827
    %v2210 = vunpack.c.l.b16 %v1828
    %v2211 = vunpack.c.h.b16 %v1828
    %v2212 = vunpack.c.l.b16 %v1829
    %v2213 = vunpack.c.h.b16 %v1829
    %v2214 = vunpack.c.l.b16 %v1830
    %v2215 = vunpack.c.h.b16 %v1830
    %v2216 = vunpack.c.l.b16 %v1831
    %v2217 = vunpack.c.h.b16 %v1831
    %v2218 = vunpack.c.l.b16 %v1832
    %v2219 = vunpack.c.h.b16 %v1832
    %v2220 = vunpack.c.l.b16 %v1833
    %v2221 = vunpack.c.h.b16 %v1833
    %v2222 = vunpack.c.l.b16 %v1834
    %v2223 = vunpack.c.h.b16 %v1834
    %v2224 = vunpack.c.l.b16 %v1835
    %v2225 = vunpack.c.h.b16 %v1835
    %v2226 = vunpack.c.l.b16 %v1836
    %v2227 = vunpack.c.h.b16 %v1836
    %v2228 = vunpack.c.l.b16 %v1837
    %v2229 = vunpack.c.h.b16 %v1837
    %v2230 = vunpack.c.l.b16 %v1838
    %v2231 = vunpack.c.h.b16 %v1838
    %v2232 = vunpack.c.l.b16 %v1839
    %v2233 = vunpack.c.h.b16 %v1839
    %v2234 = vunpack.c.l.b16 %v1840
    %v2235 = vunpack.c.h.b16 %v1840
    %v2236 = vunpack.c.l.b16 %v1841
    %v2237 = vunpack.c.h.b16 %v1841
    %v2238 = vunpack.c.l.b16 %v1842
    %v2239 = vunpack.c.h.b16 %v1842
    %v2240 = vunpack.c.l.b16 %v1843
    %v2241 = vunpack.c.h.b16 %v1843
    %v2242 = vunpack.c.l.b16 %v1844
    %v2243 = vunpack.c.h.b16 %v1844
    %v2244 = vunpack.c.l.b16 %v1845
    %v2245 = vunpack.c.h.b16 %v1845
    %v2246 = vunpack.c.l.b16 %v1846
    %v2247 = vunpack.c.h.b16 %v1846
    %v2248 = vunpack.c.l.b16 %v1847
    %v2249 = vunpack.c.h.b16 %v1847
    %v2250 = vunpack.c.l.b16 %v1848
    %v2251 = vunpack.c.h.b16 %v1848
    %v2252 = vunpack.c.l.b16 %v1849
    %v2253 = vunpack.c.h.b16 %v1849
    %v2254 = vunpack.c.l.b16 %v1850
    %v2255 = vunpack.c.h.b16 %v1850
    %v2256 = vunpack.c.l.b16 %v1851
    %v2257 = vunpack.c.h.b16 %v1851
    %v2258 = vunpack.c.l.b16 %v1852
    %v2259 = vunpack.c.h.b16 %v1852
    %v2260 = vunpack.c.l.b16 %v1853
    %v2261 = vunpack.c.h.b16 %v1853
    %v2262 = vunpack.c.l.b16 %v1854
    %v2263 = vunpack.c.h.b16 %v1854
    %v2264 = vunpack.c.l.b16 %v1855
    %v2265 = vunpack.c.h.b16 %v1855
    %v2266 = vunpack.c.l.b16 %v1856
    %v2267 = vunpack.c.h.b16 %v1856
    %v2268 = vunpack.c.l.b16 %v1857
    %v2269 = vunpack.c.h.b16 %v1857
    %v2270 = vunpack.c.l.b16 %v1858
    %v2271 = vunpack.c.h.b16 %v1858
    %v2272 = vunpack.c.l.b16 %v1859
    %v2273 = vunpack.c.h.b16 %v1859
    %v2274 = vunpack.c.l.b16 %v1860
    %v2275 = vunpack.c.h.b16 %v1860
    %v2276 = vunpack.c.l.b16 %v1861
    %v2277 = vunpack.c.h.b16 %v1861
    %v2278 = vunpack.c.l.b16 %v1862
    %v2279 = vunpack.c.h.b16 %v1862
    %v2280 = vunpack.c.l.b16 %v1863
    %v2281 = vunpack.c.h.b16 %v1863
    %v2282 = vunpack.c.l.b16 %v1864
    %v2283 = vunpack.c.h.b16 %v1864
    %v2284 = vunpack.c.l.b16 %v1865
    %v2285 = vunpack.c.h.b16 %v1865
    %v2286 = vunpack.c.l.b16 %v1866
    %v2287 = vunpack.c.h.b16 %v1866
    %v2288 = vunpack.c.l.b16 %v1867
    %v2289 = vunpack.c.h.b16 %v1867
    %v2290 = vunpack.c.l.b16 %v1868
    %v2291 = vunpack.c.h.b16 %v1868
    %v2292 = vunpack.c.l.b16 %v1869
    %v2293 = vunpack.c.h.b16 %v1869
    %v2294 = vpack.c.b16 %v2042, %v2038
    %v2295 = vpack.c.b16 %v2043, %v2039
    %v2296 = vpack.c.b16 %v2044, %v2040
    %v2297 = vpack.c.b16 %v2045, %v2041
    %v2298 = vpack.c.b16 %v2050, %v2046
    %v2299 = vpack.c.b16 %v2051, %v2047
    %v2300 = vpack.c.b16 %v2052, %v2048
    %v2301 = vpack.c.b16 %v2053, %v2049
    %v2302 = vpack.c.b16 %v2058, %v2054
    %v2303 = vpack.c.b16 %v2059, %v2055
    %v2304 = vpack.c.b16 %v2060, %v2056
    %v2305 = vpack.c.b16 %v2061, %v2057
    %v2306 = vpack.c.b16 %v2066, %v2062
    %v2307 = vpack.c.b16 %v2067, %v2063
    %v2308 = vpack.c.b16 %v2068, %v2064
    %v2309 = vpack.c.b16 %v2069, %v2065
    %v2310 = vpack.c.b16 %v2074, %v2070
    %v2311 = vpack.c.b16 %v2075, %v2071
    %v2312 = vpack.c.b16 %v2076, %v2072
    %v2313 = vpack.c.b16 %v2077, %v2073
    %v2314 = vpack.c.b16 %v2082, %v2078
    %v2315 = vpack.c.b16 %v2083, %v2079
    %v2316 = vpack.c.b16 %v2084, %v2080
    %v2317 = vpack.c.b16 %v2085, %v2081
    %v2318 = vpack.c.b16 %v2090, %v2086
    %v2319 = vpack.c.b16 %v2091, %v2087
    %v2320 = vpack.c.b16 %v2092, %v2088
    %v2321 = vpack.c.b16 %v2093, %v2089
    %v2322 = vpack.c.b16 %v2098, %v2094
    %v2323 = vpack.c.b16 %v2099, %v2095
    %v2324 = vpack.c.b16 %v2100, %v2096
    %v2325 = vpack.c.b16 %v2101, %v2097
    %v2326 = vpack.c.b16 %v2106, %v2102
    %v2327 = vpack.c.b16 %v2107, %v2103
    %v2328 = vpack.c.b16 %v2108, %v2104
    %v2329 = vpack.c.b16 %v2109, %v2105
    %v2330 = vpack.c.b16 %v2114, %v2110
    %v2331 = vpack.c.b16 %v2115, %v2111
    %v2332 = vpack.c.b16 %v2116, %v2112
    %v2333 = vpack.c.b16 %v2117, %v2113
    %v2334 = vpack.c.b16 %v2122, %v2118
    %v2335 = vpack.c.b16 %v2123, %v2119
    %v2336 = vpack.c.b16 %v2124, %v2120
    %v2337 = vpack.c.b16 %v2125, %v2121
    %v2338 = vpack.c.b16 %v2130, %v2126
    %v2339 = vpack.c.b16 %v2131, %v2127
    %v2340 = vpack.c.b16 %v2132, %v2128
    %v2341 = vpack.c.b16 %v2133, %v2129
    %v2342 = vpack.c.b16 %v2138, %v2134
    %v2343 = vpack.c.b16 %v2139, %v2135
    %v2344 = vpack.c.b16 %v2140, %v2136
    %v2345 = vpack.c.b16 %v2141, %v2137
    %v2346 = vpack.c.b16 %v2146, %v2142
    %v2347 = vpack.c.b16 %v2147, %v2143
    %v2348 = vpack.c.b16 %v2148, %v2144
    %v2349 = vpack.c.b16 %v2149, %v2145
    %v2350 = vpack.c.b16 %v2154, %v2150
    %v2351 = vpack.c.b16 %v2155, %v2151
    %v2352 = vpack.c.b16 %v2156, %v2152
    %v2353 = vpack.c.b16 %v2157, %v2153
    %v2354 = vpack.c.b16 %v2162, %v2158
    %v2355 = vpack.c.b16 %v2163, %v2159
    %v2356 = vpack.c.b16 %v2164, %v2160
    %v2357 = vpack.c.b16 %v2165, %v2161
    %v2358 = vpack.c.b16 %v2170, %v2166
    %v2359 = vpack.c.b16 %v2171, %v2167
    %v2360 = vpack.c.b16 %v2172, %v2168
    %v2361 = vpack.c.b16 %v2173, %v2169
    %v2362 = vpack.c.b16 %v2178, %v2174
    %v2363 = vpack.c.b16 %v2179, %v2175
    %v2364 = vpack.c.b16 %v2180, %v2176
    %v2365 = vpack.c.b16 %v2181, %v2177
    %v2366 = vpack.c.b16 %v2186, %v2182
    %v2367 = vpack.c.b16 %v2187, %v2183
    %v2368 = vpack.c.b16 %v2188, %v2184
    %v2369 = vpack.c.b16 %v2189, %v2185
    %v2370 = vpack.c.b16 %v2194, %v2190
    %v2371 = vpack.c.b16 %v2195, %v2191
    %v2372 = vpack.c.b16 %v2196, %v2192
    %v2373 = vpack.c.b16 %v2197, %v2193
    %v2374 = vpack.c.b16 %v2202, %v2198
    %v2375 = vpack.c.b16 %v2203, %v2199
    %v2376 = vpack.c.b16 %v2204, %v2200
    %v2377 = vpack.c.b16 %v2205, %v2201
    %v2378 = vpack.c.b16 %v2210, %v2206
    %v2379 = vpack.c.b16 %v2211, %v2207
    %v2380 = vpack.c.b16 %v2212, %v2208
    %v2381 = vpack.c.b16 %v2213, %v2209
    %v2382 = vpack.c.b16 %v2218, %v2214
    %v2383 = vpack.c.b16 %v2219, %v2215
    %v2384 = vpack.c.b16 %v2220, %v2216
    %v2385 = vpack.c.b16 %v2221, %v2217
    %v2386 = vpack.c.b16 %v2226, %v2222
    %v2387 = vpack.c.b16 %v2227, %v2223
    %v2388 = vpack.c.b16 %v2228, %v2224
    %v2389 = vpack.c.b16 %v2229, %v2225
    %v2390 = vpack.c.b16 %v2234, %v2230
    %v2391 = vpack.c.b16 %v2235, %v2231
    %v2392 = vpack.c.b16 %v2236, %v2232
    %v2393 = vpack.c.b16 %v2237, %v2233
    %v2394 = vpack.c.b16 %v2242, %v2238
    %v2395 = vpack.c.b16 %v2243, %v2239
    %v2396 = vpack.c.b16 %v2244, %v2240
    %v2397 = vpack.c.b16 %v2245, %v2241
    %v2398 = vpack.c.b16 %v2250, %v2246
    %v2399 = vpack.c.b16 %v2251, %v2247
    %v2400 = vpack.c.b16 %v2252, %v2248
    %v2401 = vpack.c.b16 %v2253, %v2249
    %v2402 = vpack.c.b16 %v2258, %v2254
    %v2403 = vpack.c.b16 %v2259, %v2255
    %v2404 = vpack.c.b16 %v2260, %v2256
    %v2405 = vpack.c.b16 %v2261, %v2257
    %v2406 = vpack.c.b16 %v2266, %v2262
    %v2407 = vpack.c.b16 %v2267, %v2263
    %v2408 = vpack.c.b16 %v2268, %v2264
    %v2409 = vpack.c.b16 %v2269, %v2265
    %v2410 = vpack.c.b16 %v2274, %v2270
    %v2411 = vpack.c.b16 %v2275, %v2271
    %v2412 = vpack.c.b16 %v2276, %v2272
    %v2413 = vpack.c.b16 %v2277, %v2273
    %v2414 = vpack.c.b16 %v2282, %v2278
    %v2415 = vpack.c.b16 %v2283, %v2279
    %v2416 = vpack.c.b16 %v2284, %v2280
    %v2417 = vpack.c.b16 %v2285, %v2281
    %v2418 = vpack.c.b16 %v2290, %v2286
    %v2419 = vpack.c.b16 %v2291, %v2287
    %v2420 = vpack.c.b16 %v2292, %v2288
    %v2421 = vpack.c.b16 %v2293, %v2289
    %2550 = vmatprep.subr.bf16.mxu0 %v2295
    %2551 = vmatpush1.bf16.msra.mxu0 %v2294
    %2552 = vmatprep.subr.bf16.mxu0 %v2299
    %2553 = vmatpush1.bf16.msra.mxu0 %v2298
    %2554 = vmatprep.subr.bf16.mxu0 %v2303
    %2555 = vmatpush1.bf16.msra.mxu0 %v2302
    %2556 = vmatprep.subr.bf16.mxu0 %v2307
    %2557 = vmatpush1.bf16.msra.mxu0 %v2306
    %2558 = vmatprep.subr.bf16.mxu0 %v2311
    %2559 = vmatpush1.bf16.msra.mxu0 %v2310
    %2560 = vmatprep.subr.bf16.mxu0 %v2315
    %2561 = vmatpush1.bf16.msra.mxu0 %v2314
    %2562 = vmatprep.subr.bf16.mxu0 %v2319
    %2563 = vmatpush1.bf16.msra.mxu0 %v2318
    %2564 = vmatprep.subr.bf16.mxu0 %v2323
    %2565 = vmatpush1.bf16.msra.mxu0 %v2322
    %2566 = vmatprep.subr.bf16.mxu0 %v2327
    %2567 = vmatpush1.bf16.msra.mxu0 %v2326
    %2568 = vmatprep.subr.bf16.mxu0 %v2331
    %2569 = vmatpush1.bf16.msra.mxu0 %v2330
    %2570 = vmatprep.subr.bf16.mxu0 %v2335
    %2571 = vmatpush1.bf16.msra.mxu0 %v2334
    %2572 = vmatprep.subr.bf16.mxu0 %v2339
    %2573 = vmatpush1.bf16.msra.mxu0 %v2338
    %2574 = vmatprep.subr.bf16.mxu0 %v2343
    %2575 = vmatpush1.bf16.msra.mxu0 %v2342
    %2576 = vmatprep.subr.bf16.mxu0 %v2347
    %2577 = vmatpush1.bf16.msra.mxu0 %v2346
    %2578 = vmatprep.subr.bf16.mxu0 %v2351
    %2579 = vmatpush1.bf16.msra.mxu0 %v2350
    %2580 = vmatprep.subr.bf16.mxu0 %v2355
    %2581 = vmatpush1.bf16.msra.mxu0 %v2354
    %2582 = vmatprep.mubr.bf16.mxu0 %v1871
    %2583 = vmatmul.mubr.bf16.gmra.mrb[0].mxu0 %v1870
    %v2584 = vpop.f32.mrb[0].mxu0
    %v2585 = vadd.f32 %v1897, %v2584
    %v2586 = vpop.f32.mrb[0].mxu0
    %v2587 = vadd.f32 %v1901, %v2586
    %v2588 = vpop.f32.mrb[0].mxu0
    %v2589 = vadd.f32 %v1897, %v2588
    %v2590 = vpop.f32.mrb[0].mxu0
    %v2591 = vadd.f32 %v1901, %v2590
    %2592 = vdwg.mxu0
    %2593 = vmatprep.subr.bf16.mxu0 %v2359
    %2594 = vmatpush1.bf16.msra.mxu0 %v2358
    %2595 = vmatprep.subr.bf16.mxu0 %v2363
    %2596 = vmatpush1.bf16.msra.mxu0 %v2362
    %2597 = vmatprep.subr.bf16.mxu0 %v2367
    %2598 = vmatpush1.bf16.msra.mxu0 %v2366
    %2599 = vmatprep.subr.bf16.mxu0 %v2371
    %2600 = vmatpush1.bf16.msra.mxu0 %v2370
    %2601 = vmatprep.subr.bf16.mxu0 %v2375
    %2602 = vmatpush1.bf16.msra.mxu0 %v2374
    %2603 = vmatprep.subr.bf16.mxu0 %v2379
    %2604 = vmatpush1.bf16.msra.mxu0 %v2378
    %2605 = vmatprep.subr.bf16.mxu0 %v2383
    %2606 = vmatpush1.bf16.msra.mxu0 %v2382
    %2607 = vmatprep.subr.bf16.mxu0 %v2387
    %2608 = vmatpush1.bf16.msra.mxu0 %v2386
    %2609 = vmatprep.subr.bf16.mxu0 %v2391
    %2610 = vmatpush1.bf16.msra.mxu0 %v2390
    %2611 = vmatprep.subr.bf16.mxu0 %v2395
    %2612 = vmatpush1.bf16.msra.mxu0 %v2394
    %2613 = vmatprep.subr.bf16.mxu0 %v2399
    %2614 = vmatpush1.bf16.msra.mxu0 %v2398
    %2615 = vmatprep.subr.bf16.mxu0 %v2403
    %2616 = vmatpush1.bf16.msra.mxu0 %v2402
    %2617 = vmatprep.subr.bf16.mxu0 %v2407
    %2618 = vmatpush1.bf16.msra.mxu0 %v2406
    %2619 = vmatprep.subr.bf16.mxu0 %v2411
    %2620 = vmatpush1.bf16.msra.mxu0 %v2410
    %2621 = vmatprep.subr.bf16.mxu0 %v2415
    %2622 = vmatpush1.bf16.msra.mxu0 %v2414
    %2623 = vmatprep.subr.bf16.mxu0 %v2419
    %2624 = vmatpush1.bf16.msra.mxu0 %v2418
    %2625 = vmatprep.mubr.bf16.mxu0 %v1873
    %2626 = vmatmul.mubr.bf16.gmra.mrb[0].mxu0 %v1872
    %v2627 = vpop.f32.mrb[0].mxu0
    %v2628 = vadd.f32 %v2585, %v2627
    %v2629 = vpop.f32.mrb[0].mxu0
    %v2630 = vadd.f32 %v2587, %v2629
    %v2631 = vpop.f32.mrb[0].mxu0
    %v2632 = vadd.f32 %v2589, %v2631
    %v2633 = vpop.f32.mrb[0].mxu0
    %v2634 = vadd.f32 %v2591, %v2633
    %2635 = vdwg.mxu0
    %2636 = vmatprep.subr.bf16.mxu0 %v2297
    %2637 = vmatpush1.bf16.msra.mxu0 %v2296
    %2638 = vmatprep.subr.bf16.mxu0 %v2301
    %2639 = vmatpush1.bf16.msra.mxu0 %v2300
    %2640 = vmatprep.subr.bf16.mxu0 %v2305
    %2641 = vmatpush1.bf16.msra.mxu0 %v2304
    %2642 = vmatprep.subr.bf16.mxu0 %v2309
    %2643 = vmatpush1.bf16.msra.mxu0 %v2308
    %2644 = vmatprep.subr.bf16.mxu0 %v2313
    %2645 = vmatpush1.bf16.msra.mxu0 %v2312
    %2646 = vmatprep.subr.bf16.mxu0 %v2317
    %2647 = vmatpush1.bf16.msra.mxu0 %v2316
    %2648 = vmatprep.subr.bf16.mxu0 %v2321
    %2649 = vmatpush1.bf16.msra.mxu0 %v2320
    %2650 = vmatprep.subr.bf16.mxu0 %v2325
    %2651 = vmatpush1.bf16.msra.mxu0 %v2324
    %2652 = vmatprep.subr.bf16.mxu0 %v2329
    %2653 = vmatpush1.bf16.msra.mxu0 %v2328
    %2654 = vmatprep.subr.bf16.mxu0 %v2333
    %2655 = vmatpush1.bf16.msra.mxu0 %v2332
    %2656 = vmatprep.subr.bf16.mxu0 %v2337
    %2657 = vmatpush1.bf16.msra.mxu0 %v2336
    %2658 = vmatprep.subr.bf16.mxu0 %v2341
    %2659 = vmatpush1.bf16.msra.mxu0 %v2340
    %2660 = vmatprep.subr.bf16.mxu0 %v2345
    %2661 = vmatpush1.bf16.msra.mxu0 %v2344
    %2662 = vmatprep.subr.bf16.mxu0 %v2349
    %2663 = vmatpush1.bf16.msra.mxu0 %v2348
    %2664 = vmatprep.subr.bf16.mxu0 %v2353
    %2665 = vmatpush1.bf16.msra.mxu0 %v2352
    %2666 = vmatprep.subr.bf16.mxu0 %v2357
    %2667 = vmatpush1.bf16.msra.mxu0 %v2356
    %2668 = vmatprep.mubr.bf16.mxu0 %v1871
    %2669 = vmatmul.mubr.bf16.gmra.mrb[0].mxu0 %v1870
    %v2670 = vpop.f32.mrb[0].mxu0
    %v2671 = vadd.f32 %v1905, %v2670
    %v2672 = vpop.f32.mrb[0].mxu0
    %v2673 = vadd.f32 %v1909, %v2672
    %v2674 = vpop.f32.mrb[0].mxu0
    %v2675 = vadd.f32 %v1905, %v2674
    %v2676 = vpop.f32.mrb[0].mxu0
    %v2677 = vadd.f32 %v1909, %v2676
    %2678 = vdwg.mxu0
    %2679 = vmatprep.subr.bf16.mxu0 %v2361
    %2680 = vmatpush1.bf16.msra.mxu0 %v2360
    %2681 = vmatprep.subr.bf16.mxu0 %v2365
    %2682 = vmatpush1.bf16.msra.mxu0 %v2364
    %2683 = vmatprep.subr.bf16.mxu0 %v2369
    %2684 = vmatpush1.bf16.msra.mxu0 %v2368
    %2685 = vmatprep.subr.bf16.mxu0 %v2373
    %2686 = vmatpush1.bf16.msra.mxu0 %v2372
    %2687 = vmatprep.subr.bf16.mxu0 %v2377
    %2688 = vmatpush1.bf16.msra.mxu0 %v2376
    %2689 = vmatprep.subr.bf16.mxu0 %v2381
    %2690 = vmatpush1.bf16.msra.mxu0 %v2380
    %2691 = vmatprep.subr.bf16.mxu0 %v2385
    %2692 = vmatpush1.bf16.msra.mxu0 %v2384
    %2693 = vmatprep.subr.bf16.mxu0 %v2389
    %2694 = vmatpush1.bf16.msra.mxu0 %v2388
    %2695 = vmatprep.subr.bf16.mxu0 %v2393
    %2696 = vmatpush1.bf16.msra.mxu0 %v2392
    %2697 = vmatprep.subr.bf16.mxu0 %v2397
    %2698 = vmatpush1.bf16.msra.mxu0 %v2396
    %2699 = vmatprep.subr.bf16.mxu0 %v2401
    %2700 = vmatpush1.bf16.msra.mxu0 %v2400
    %2701 = vmatprep.subr.bf16.mxu0 %v2405
    %2702 = vmatpush1.bf16.msra.mxu0 %v2404
    %2703 = vmatprep.subr.bf16.mxu0 %v2409
    %2704 = vmatpush1.bf16.msra.mxu0 %v2408
    %2705 = vmatprep.subr.bf16.mxu0 %v2413
    %2706 = vmatpush1.bf16.msra.mxu0 %v2412
    %2707 = vmatprep.subr.bf16.mxu0 %v2417
    %2708 = vmatpush1.bf16.msra.mxu0 %v2416
    %2709 = vmatprep.subr.bf16.mxu0 %v2421
    %2710 = vmatpush1.bf16.msra.mxu0 %v2420
    %2711 = vmatprep.mubr.bf16.mxu0 %v1873
    %2712 = vmatmul.mubr.bf16.gmra.mrb[0].mxu0 %v1872
    %v2713 = vpop.f32.mrb[0].mxu0
    %v2714 = vadd.f32 %v2671, %v2713
    %v2715 = vpop.f32.mrb[0].mxu0
    %v2716 = vadd.f32 %v2673, %v2715
    %v2717 = vpop.f32.mrb[0].mxu0
    %v2718 = vadd.f32 %v2675, %v2717
    %v2719 = vpop.f32.mrb[0].mxu0
    %v2720 = vadd.f32 %v2677, %v2719
    %2721 = vdwg.mxu0
    %v2722 = vmul.f32 %v2628, 0.5
    %v2723 = vmul.f32 %v2630, 0.5
    %v2724 = vmul.f32 %v2714, 0.5
    %v2725 = vmul.f32 %v2716, 0.5
    %v2726 = vmul.f32 %v2632, 0.5
    %v2727 = vmul.f32 %v2634, 0.5
    %v2728 = vmul.f32 %v2718, 0.5
    %v2729 = vmul.f32 %v2720, 0.5
    %v2730 = vtanh.pop %v2722
    %v2731 = vtanh.pop %v2723
    %v2732 = vtanh.pop %v2724
    %v2733 = vtanh.pop %v2725
    %v2734 = vtanh.pop %v2726
    %v2735 = vtanh.pop %v2727
    %v2736 = vtanh.pop %v2728
    %v2737 = vtanh.pop %v2729
    %v2738 = vmul.f32 %v2730, 0.5
    %v2739 = vmul.f32 %v2731, 0.5
    %v2740 = vmul.f32 %v2732, 0.5
    %v2741 = vmul.f32 %v2733, 0.5
    %v2742 = vmul.f32 %v2734, 0.5
    %v2743 = vmul.f32 %v2735, 0.5
    %v2744 = vmul.f32 %v2736, 0.5
    %v2745 = vmul.f32 %v2737, 0.5
    %v2746 = vadd.f32 %v2738, 0.5
    %v2747 = vadd.f32 %v2739, 0.5
    %v2748 = vadd.f32 %v2740, 0.5
    %v2749 = vadd.f32 %v2741, 0.5
    %v2750 = vadd.f32 %v2742, 0.5
    %v2751 = vadd.f32 %v2743, 0.5
    %v2752 = vadd.f32 %v2744, 0.5
    %v2753 = vadd.f32 %v2745, 0.5
    %s2754 = scalar_lea.vmem [#allocation8], 1024
    %v2755 = vld [vmem:[%s2754] sm:$0xff]
    %v2756 = vld [vmem:[%s2754 + $0x8] sm:$0xff]
    %v2757 = vld [vmem:[%s2754 + $0x10] sm:$0xff]
    %v2758 = vld [vmem:[%s2754 + $0x18] sm:$0xff]
    %v2759 = vld [vmem:[%s2754 + $0x20] sm:$0xff]
    %v2760 = vld [vmem:[%s2754 + $0x28] sm:$0xff]
    %v2761 = vld [vmem:[%s2754 + $0x30] sm:$0xff]
    %v2762 = vld [vmem:[%s2754 + $0x38] sm:$0xff]
    %v2763 = vld [vmem:[%s2754 + $0x40] sm:$0xff]
    %v2764 = vld [vmem:[%s2754 + $0x48] sm:$0xff]
    %v2765 = vld [vmem:[%s2754 + $0x50] sm:$0xff]
    %v2766 = vld [vmem:[%s2754 + $0x58] sm:$0xff]
    %v2767 = vld [vmem:[%s2754 + $0x60] sm:$0xff]
    %v2768 = vld [vmem:[%s2754 + $0x68] sm:$0xff]
    %v2769 = vld [vmem:[%s2754 + $0x70] sm:$0xff]
    %v2770 = vld [vmem:[%s2754 + $0x78] sm:$0xff]
    %v2771 = vld [vmem:[%s2754 + $0x80] sm:$0xff]
    %v2772 = vld [vmem:[%s2754 + $0x88] sm:$0xff]
    %v2773 = vld [vmem:[%s2754 + $0x90] sm:$0xff]
    %v2774 = vld [vmem:[%s2754 + $0x98] sm:$0xff]
    %v2775 = vld [vmem:[%s2754 + $0xa0] sm:$0xff]
    %v2776 = vld [vmem:[%s2754 + $0xa8] sm:$0xff]
    %v2777 = vld [vmem:[%s2754 + $0xb0] sm:$0xff]
    %v2778 = vld [vmem:[%s2754 + $0xb8] sm:$0xff]
    %v2779 = vld [vmem:[%s2754 + $0xc0] sm:$0xff]
    %v2780 = vld [vmem:[%s2754 + $0xc8] sm:$0xff]
    %v2781 = vld [vmem:[%s2754 + $0xd0] sm:$0xff]
    %v2782 = vld [vmem:[%s2754 + $0xd8] sm:$0xff]
    %v2783 = vld [vmem:[%s2754 + $0xe0] sm:$0xff]
    %v2784 = vld [vmem:[%s2754 + $0xe8] sm:$0xff]
    %v2785 = vld [vmem:[%s2754 + $0xf0] sm:$0xff]
    %v2786 = vld [vmem:[%s2754 + $0xf8] sm:$0xff]
    %v2787 = vld [vmem:[%s2754 + $0x100] sm:$0xff]
    %v2788 = vld [vmem:[%s2754 + $0x108] sm:$0xff]
    %v2789 = vld [vmem:[%s2754 + $0x110] sm:$0xff]
    %v2790 = vld [vmem:[%s2754 + $0x118] sm:$0xff]
    %v2791 = vld [vmem:[%s2754 + $0x120] sm:$0xff]
    %v2792 = vld [vmem:[%s2754 + $0x128] sm:$0xff]
    %v2793 = vld [vmem:[%s2754 + $0x130] sm:$0xff]
    %v2794 = vld [vmem:[%s2754 + $0x138] sm:$0xff]
    %v2795 = vld [vmem:[%s2754 + $0x140] sm:$0xff]
    %v2796 = vld [vmem:[%s2754 + $0x148] sm:$0xff]
    %v2797 = vld [vmem:[%s2754 + $0x150] sm:$0xff]
    %v2798 = vld [vmem:[%s2754 + $0x158] sm:$0xff]
    %v2799 = vld [vmem:[%s2754 + $0x160] sm:$0xff]
    %v2800 = vld [vmem:[%s2754 + $0x168] sm:$0xff]
    %v2801 = vld [vmem:[%s2754 + $0x170] sm:$0xff]
    %v2802 = vld [vmem:[%s2754 + $0x178] sm:$0xff]
    %v2803 = vld [vmem:[%s2754 + $0x180] sm:$0xff]
    %v2804 = vld [vmem:[%s2754 + $0x188] sm:$0xff]
    %v2805 = vld [vmem:[%s2754 + $0x190] sm:$0xff]
    %v2806 = vld [vmem:[%s2754 + $0x198] sm:$0xff]
    %v2807 = vld [vmem:[%s2754 + $0x1a0] sm:$0xff]
    %v2808 = vld [vmem:[%s2754 + $0x1a8] sm:$0xff]
    %v2809 = vld [vmem:[%s2754 + $0x1b0] sm:$0xff]
    %v2810 = vld [vmem:[%s2754 + $0x1b8] sm:$0xff]
    %v2811 = vld [vmem:[%s2754 + $0x1c0] sm:$0xff]
    %v2812 = vld [vmem:[%s2754 + $0x1c8] sm:$0xff]
    %v2813 = vld [vmem:[%s2754 + $0x1d0] sm:$0xff]
    %v2814 = vld [vmem:[%s2754 + $0x1d8] sm:$0xff]
    %v2815 = vld [vmem:[%s2754 + $0x1e0] sm:$0xff]
    %v2816 = vld [vmem:[%s2754 + $0x1e8] sm:$0xff]
    %v2817 = vld [vmem:[%s2754 + $0x1f0] sm:$0xff]
    %v2818 = vld [vmem:[%s2754 + $0x1f8] sm:$0xff]
    %v2819 = vld [vmem:[%s2754 + $0x200] sm:$0xff]
    %v2820 = vld [vmem:[%s2754 + $0x208] sm:$0xff]
    %v2821 = vld [vmem:[%s2754 + $0x210] sm:$0xff]
    %v2822 = vld [vmem:[%s2754 + $0x218] sm:$0xff]
    %v2823 = vld [vmem:[%s2754 + $0x220] sm:$0xff]
    %v2824 = vld [vmem:[%s2754 + $0x228] sm:$0xff]
    %v2825 = vld [vmem:[%s2754 + $0x230] sm:$0xff]
    %v2826 = vld [vmem:[%s2754 + $0x238] sm:$0xff]
    %v2827 = vld [vmem:[%s2754 + $0x240] sm:$0xff]
    %v2828 = vld [vmem:[%s2754 + $0x248] sm:$0xff]
    %v2829 = vld [vmem:[%s2754 + $0x250] sm:$0xff]
    %v2830 = vld [vmem:[%s2754 + $0x258] sm:$0xff]
    %v2831 = vld [vmem:[%s2754 + $0x260] sm:$0xff]
    %v2832 = vld [vmem:[%s2754 + $0x268] sm:$0xff]
    %v2833 = vld [vmem:[%s2754 + $0x270] sm:$0xff]
    %v2834 = vld [vmem:[%s2754 + $0x278] sm:$0xff]
    %v2835 = vld [vmem:[%s2754 + $0x280] sm:$0xff]
    %v2836 = vld [vmem:[%s2754 + $0x288] sm:$0xff]
    %v2837 = vld [vmem:[%s2754 + $0x290] sm:$0xff]
    %v2838 = vld [vmem:[%s2754 + $0x298] sm:$0xff]
    %v2839 = vld [vmem:[%s2754 + $0x2a0] sm:$0xff]
    %v2840 = vld [vmem:[%s2754 + $0x2a8] sm:$0xff]
    %v2841 = vld [vmem:[%s2754 + $0x2b0] sm:$0xff]
    %v2842 = vld [vmem:[%s2754 + $0x2b8] sm:$0xff]
    %v2843 = vld [vmem:[%s2754 + $0x2c0] sm:$0xff]
    %v2844 = vld [vmem:[%s2754 + $0x2c8] sm:$0xff]
    %v2845 = vld [vmem:[%s2754 + $0x2d0] sm:$0xff]
    %v2846 = vld [vmem:[%s2754 + $0x2d8] sm:$0xff]
    %v2847 = vld [vmem:[%s2754 + $0x2e0] sm:$0xff]
    %v2848 = vld [vmem:[%s2754 + $0x2e8] sm:$0xff]
    %v2849 = vld [vmem:[%s2754 + $0x2f0] sm:$0xff]
    %v2850 = vld [vmem:[%s2754 + $0x2f8] sm:$0xff]
    %v2851 = vld [vmem:[%s2754 + $0x300] sm:$0xff]
    %v2852 = vld [vmem:[%s2754 + $0x308] sm:$0xff]
    %v2853 = vld [vmem:[%s2754 + $0x310] sm:$0xff]
    %v2854 = vld [vmem:[%s2754 + $0x318] sm:$0xff]
    %v2855 = vld [vmem:[%s2754 + $0x320] sm:$0xff]
    %v2856 = vld [vmem:[%s2754 + $0x328] sm:$0xff]
    %v2857 = vld [vmem:[%s2754 + $0x330] sm:$0xff]
    %v2858 = vld [vmem:[%s2754 + $0x338] sm:$0xff]
    %v2859 = vld [vmem:[%s2754 + $0x340] sm:$0xff]
    %v2860 = vld [vmem:[%s2754 + $0x348] sm:$0xff]
    %v2861 = vld [vmem:[%s2754 + $0x350] sm:$0xff]
    %v2862 = vld [vmem:[%s2754 + $0x358] sm:$0xff]
    %v2863 = vld [vmem:[%s2754 + $0x360] sm:$0xff]
    %v2864 = vld [vmem:[%s2754 + $0x368] sm:$0xff]
    %v2865 = vld [vmem:[%s2754 + $0x370] sm:$0xff]
    %v2866 = vld [vmem:[%s2754 + $0x378] sm:$0xff]
    %v2867 = vld [vmem:[%s2754 + $0x380] sm:$0xff]
    %v2868 = vld [vmem:[%s2754 + $0x388] sm:$0xff]
    %v2869 = vld [vmem:[%s2754 + $0x390] sm:$0xff]
    %v2870 = vld [vmem:[%s2754 + $0x398] sm:$0xff]
    %v2871 = vld [vmem:[%s2754 + $0x3a0] sm:$0xff]
    %v2872 = vld [vmem:[%s2754 + $0x3a8] sm:$0xff]
    %v2873 = vld [vmem:[%s2754 + $0x3b0] sm:$0xff]
    %v2874 = vld [vmem:[%s2754 + $0x3b8] sm:$0xff]
    %v2875 = vld [vmem:[%s2754 + $0x3c0] sm:$0xff]
    %v2876 = vld [vmem:[%s2754 + $0x3c8] sm:$0xff]
    %v2877 = vld [vmem:[%s2754 + $0x3d0] sm:$0xff]
    %v2878 = vld [vmem:[%s2754 + $0x3d8] sm:$0xff]
    %v2879 = vld [vmem:[%s2754 + $0x3e0] sm:$0xff]
    %v2880 = vld [vmem:[%s2754 + $0x3e8] sm:$0xff]
    %v2881 = vld [vmem:[%s2754 + $0x3f0] sm:$0xff]
    %v2882 = vld [vmem:[%s2754 + $0x3f8] sm:$0xff]
    %v2883 = vpack.c.bf16 %v2750, %v2746
    %v2884 = vpack.c.bf16 %v2751, %v2747
    %v2885 = vpack.c.bf16 %v2752, %v2748
    %v2886 = vpack.c.bf16 %v2753, %v2749
    %v2887 = vlaneseq
    %v2888 = vshrl.u32 %v2887, 7
    %v2889 = vsub.s32 2, %v2888
    %v2890 = vrot.slane %v103, %v2889
    %v2891 = vlaneseq
    %v2892 = vshrl.u32 %v2891, 7
    %v2893 = vsub.s32 6, %v2892
    %v2894 = vrot.slane %v103, %v2893
    %v2895 = vlaneseq
    %v2896 = vshrl.u32 %v2895, 7
    %v2897 = vsub.s32 2, %v2896
    %v2898 = vrot.slane %v104, %v2897
    %v2899 = vlaneseq
    %v2900 = vshrl.u32 %v2899, 7
    %v2901 = vsub.s32 6, %v2900
    %v2902 = vrot.slane %v104, %v2901
    %v2907 = vlaneseq
    %v2908 = vshrl.u32 %v2907, 7
    %v2909 = vsub.s32 2, %v2908
    %v2910 = vrot.slane %v2890, %v2909
    %v2911 = vlaneseq
    %v2912 = vshrl.u32 %v2911, 7
    %v2913 = vsub.s32 2, %v2912
    %v2914 = vrot.slane %v2894, %v2913
    %v2915 = vlaneseq
    %v2916 = vshrl.u32 %v2915, 7
    %v2917 = vsub.s32 2, %v2916
    %v2918 = vrot.slane %v2898, %v2917
    %v2919 = vlaneseq
    %v2920 = vshrl.u32 %v2919, 7
    %v2921 = vsub.s32 2, %v2920
    %v2922 = vrot.slane %v2902, %v2921
    %v3051 = vunpack.c.l.b16 %v2755
    %v3052 = vunpack.c.h.b16 %v2755
    %v3053 = vunpack.c.l.b16 %v2756
    %v3054 = vunpack.c.h.b16 %v2756
    %v3055 = vunpack.c.l.b16 %v2757
    %v3056 = vunpack.c.h.b16 %v2757
    %v3057 = vunpack.c.l.b16 %v2758
    %v3058 = vunpack.c.h.b16 %v2758
    %v3059 = vunpack.c.l.b16 %v2759
    %v3060 = vunpack.c.h.b16 %v2759
    %v3061 = vunpack.c.l.b16 %v2760
    %v3062 = vunpack.c.h.b16 %v2760
    %v3063 = vunpack.c.l.b16 %v2761
    %v3064 = vunpack.c.h.b16 %v2761
    %v3065 = vunpack.c.l.b16 %v2762
    %v3066 = vunpack.c.h.b16 %v2762
    %v3067 = vunpack.c.l.b16 %v2763
    %v3068 = vunpack.c.h.b16 %v2763
    %v3069 = vunpack.c.l.b16 %v2764
    %v3070 = vunpack.c.h.b16 %v2764
    %v3071 = vunpack.c.l.b16 %v2765
    %v3072 = vunpack.c.h.b16 %v2765
    %v3073 = vunpack.c.l.b16 %v2766
    %v3074 = vunpack.c.h.b16 %v2766
    %v3075 = vunpack.c.l.b16 %v2767
    %v3076 = vunpack.c.h.b16 %v2767
    %v3077 = vunpack.c.l.b16 %v2768
    %v3078 = vunpack.c.h.b16 %v2768
    %v3079 = vunpack.c.l.b16 %v2769
    %v3080 = vunpack.c.h.b16 %v2769
    %v3081 = vunpack.c.l.b16 %v2770
    %v3082 = vunpack.c.h.b16 %v2770
    %v3083 = vunpack.c.l.b16 %v2771
    %v3084 = vunpack.c.h.b16 %v2771
    %v3085 = vunpack.c.l.b16 %v2772
    %v3086 = vunpack.c.h.b16 %v2772
    %v3087 = vunpack.c.l.b16 %v2773
    %v3088 = vunpack.c.h.b16 %v2773
    %v3089 = vunpack.c.l.b16 %v2774
    %v3090 = vunpack.c.h.b16 %v2774
    %v3091 = vunpack.c.l.b16 %v2775
    %v3092 = vunpack.c.h.b16 %v2775
    %v3093 = vunpack.c.l.b16 %v2776
    %v3094 = vunpack.c.h.b16 %v2776
    %v3095 = vunpack.c.l.b16 %v2777
    %v3096 = vunpack.c.h.b16 %v2777
    %v3097 = vunpack.c.l.b16 %v2778
    %v3098 = vunpack.c.h.b16 %v2778
    %v3099 = vunpack.c.l.b16 %v2779
    %v3100 = vunpack.c.h.b16 %v2779
    %v3101 = vunpack.c.l.b16 %v2780
    %v3102 = vunpack.c.h.b16 %v2780
    %v3103 = vunpack.c.l.b16 %v2781
    %v3104 = vunpack.c.h.b16 %v2781
    %v3105 = vunpack.c.l.b16 %v2782
    %v3106 = vunpack.c.h.b16 %v2782
    %v3107 = vunpack.c.l.b16 %v2783
    %v3108 = vunpack.c.h.b16 %v2783
    %v3109 = vunpack.c.l.b16 %v2784
    %v3110 = vunpack.c.h.b16 %v2784
    %v3111 = vunpack.c.l.b16 %v2785
    %v3112 = vunpack.c.h.b16 %v2785
    %v3113 = vunpack.c.l.b16 %v2786
    %v3114 = vunpack.c.h.b16 %v2786
    %v3115 = vunpack.c.l.b16 %v2787
    %v3116 = vunpack.c.h.b16 %v2787
    %v3117 = vunpack.c.l.b16 %v2788
    %v3118 = vunpack.c.h.b16 %v2788
    %v3119 = vunpack.c.l.b16 %v2789
    %v3120 = vunpack.c.h.b16 %v2789
    %v3121 = vunpack.c.l.b16 %v2790
    %v3122 = vunpack.c.h.b16 %v2790
    %v3123 = vunpack.c.l.b16 %v2791
    %v3124 = vunpack.c.h.b16 %v2791
    %v3125 = vunpack.c.l.b16 %v2792
    %v3126 = vunpack.c.h.b16 %v2792
    %v3127 = vunpack.c.l.b16 %v2793
    %v3128 = vunpack.c.h.b16 %v2793
    %v3129 = vunpack.c.l.b16 %v2794
    %v3130 = vunpack.c.h.b16 %v2794
    %v3131 = vunpack.c.l.b16 %v2795
    %v3132 = vunpack.c.h.b16 %v2795
    %v3133 = vunpack.c.l.b16 %v2796
    %v3134 = vunpack.c.h.b16 %v2796
    %v3135 = vunpack.c.l.b16 %v2797
    %v3136 = vunpack.c.h.b16 %v2797
    %v3137 = vunpack.c.l.b16 %v2798
    %v3138 = vunpack.c.h.b16 %v2798
    %v3139 = vunpack.c.l.b16 %v2799
    %v3140 = vunpack.c.h.b16 %v2799
    %v3141 = vunpack.c.l.b16 %v2800
    %v3142 = vunpack.c.h.b16 %v2800
    %v3143 = vunpack.c.l.b16 %v2801
    %v3144 = vunpack.c.h.b16 %v2801
    %v3145 = vunpack.c.l.b16 %v2802
    %v3146 = vunpack.c.h.b16 %v2802
    %v3147 = vunpack.c.l.b16 %v2803
    %v3148 = vunpack.c.h.b16 %v2803
    %v3149 = vunpack.c.l.b16 %v2804
    %v3150 = vunpack.c.h.b16 %v2804
    %v3151 = vunpack.c.l.b16 %v2805
    %v3152 = vunpack.c.h.b16 %v2805
    %v3153 = vunpack.c.l.b16 %v2806
    %v3154 = vunpack.c.h.b16 %v2806
    %v3155 = vunpack.c.l.b16 %v2807
    %v3156 = vunpack.c.h.b16 %v2807
    %v3157 = vunpack.c.l.b16 %v2808
    %v3158 = vunpack.c.h.b16 %v2808
    %v3159 = vunpack.c.l.b16 %v2809
    %v3160 = vunpack.c.h.b16 %v2809
    %v3161 = vunpack.c.l.b16 %v2810
    %v3162 = vunpack.c.h.b16 %v2810
    %v3163 = vunpack.c.l.b16 %v2811
    %v3164 = vunpack.c.h.b16 %v2811
    %v3165 = vunpack.c.l.b16 %v2812
    %v3166 = vunpack.c.h.b16 %v2812
    %v3167 = vunpack.c.l.b16 %v2813
    %v3168 = vunpack.c.h.b16 %v2813
    %v3169 = vunpack.c.l.b16 %v2814
    %v3170 = vunpack.c.h.b16 %v2814
    %v3171 = vunpack.c.l.b16 %v2815
    %v3172 = vunpack.c.h.b16 %v2815
    %v3173 = vunpack.c.l.b16 %v2816
    %v3174 = vunpack.c.h.b16 %v2816
    %v3175 = vunpack.c.l.b16 %v2817
    %v3176 = vunpack.c.h.b16 %v2817
    %v3177 = vunpack.c.l.b16 %v2818
    %v3178 = vunpack.c.h.b16 %v2818
    %v3179 = vunpack.c.l.b16 %v2819
    %v3180 = vunpack.c.h.b16 %v2819
    %v3181 = vunpack.c.l.b16 %v2820
    %v3182 = vunpack.c.h.b16 %v2820
    %v3183 = vunpack.c.l.b16 %v2821
    %v3184 = vunpack.c.h.b16 %v2821
    %v3185 = vunpack.c.l.b16 %v2822
    %v3186 = vunpack.c.h.b16 %v2822
    %v3187 = vunpack.c.l.b16 %v2823
    %v3188 = vunpack.c.h.b16 %v2823
    %v3189 = vunpack.c.l.b16 %v2824
    %v3190 = vunpack.c.h.b16 %v2824
    %v3191 = vunpack.c.l.b16 %v2825
    %v3192 = vunpack.c.h.b16 %v2825
    %v3193 = vunpack.c.l.b16 %v2826
    %v3194 = vunpack.c.h.b16 %v2826
    %v3195 = vunpack.c.l.b16 %v2827
    %v3196 = vunpack.c.h.b16 %v2827
    %v3197 = vunpack.c.l.b16 %v2828
    %v3198 = vunpack.c.h.b16 %v2828
    %v3199 = vunpack.c.l.b16 %v2829
    %v3200 = vunpack.c.h.b16 %v2829
    %v3201 = vunpack.c.l.b16 %v2830
    %v3202 = vunpack.c.h.b16 %v2830
    %v3203 = vunpack.c.l.b16 %v2831
    %v3204 = vunpack.c.h.b16 %v2831
    %v3205 = vunpack.c.l.b16 %v2832
    %v3206 = vunpack.c.h.b16 %v2832
    %v3207 = vunpack.c.l.b16 %v2833
    %v3208 = vunpack.c.h.b16 %v2833
    %v3209 = vunpack.c.l.b16 %v2834
    %v3210 = vunpack.c.h.b16 %v2834
    %v3211 = vunpack.c.l.b16 %v2835
    %v3212 = vunpack.c.h.b16 %v2835
    %v3213 = vunpack.c.l.b16 %v2836
    %v3214 = vunpack.c.h.b16 %v2836
    %v3215 = vunpack.c.l.b16 %v2837
    %v3216 = vunpack.c.h.b16 %v2837
    %v3217 = vunpack.c.l.b16 %v2838
    %v3218 = vunpack.c.h.b16 %v2838
    %v3219 = vunpack.c.l.b16 %v2839
    %v3220 = vunpack.c.h.b16 %v2839
    %v3221 = vunpack.c.l.b16 %v2840
    %v3222 = vunpack.c.h.b16 %v2840
    %v3223 = vunpack.c.l.b16 %v2841
    %v3224 = vunpack.c.h.b16 %v2841
    %v3225 = vunpack.c.l.b16 %v2842
    %v3226 = vunpack.c.h.b16 %v2842
    %v3227 = vunpack.c.l.b16 %v2843
    %v3228 = vunpack.c.h.b16 %v2843
    %v3229 = vunpack.c.l.b16 %v2844
    %v3230 = vunpack.c.h.b16 %v2844
    %v3231 = vunpack.c.l.b16 %v2845
    %v3232 = vunpack.c.h.b16 %v2845
    %v3233 = vunpack.c.l.b16 %v2846
    %v3234 = vunpack.c.h.b16 %v2846
    %v3235 = vunpack.c.l.b16 %v2847
    %v3236 = vunpack.c.h.b16 %v2847
    %v3237 = vunpack.c.l.b16 %v2848
    %v3238 = vunpack.c.h.b16 %v2848
    %v3239 = vunpack.c.l.b16 %v2849
    %v3240 = vunpack.c.h.b16 %v2849
    %v3241 = vunpack.c.l.b16 %v2850
    %v3242 = vunpack.c.h.b16 %v2850
    %v3243 = vunpack.c.l.b16 %v2851
    %v3244 = vunpack.c.h.b16 %v2851
    %v3245 = vunpack.c.l.b16 %v2852
    %v3246 = vunpack.c.h.b16 %v2852
    %v3247 = vunpack.c.l.b16 %v2853
    %v3248 = vunpack.c.h.b16 %v2853
    %v3249 = vunpack.c.l.b16 %v2854
    %v3250 = vunpack.c.h.b16 %v2854
    %v3251 = vunpack.c.l.b16 %v2855
    %v3252 = vunpack.c.h.b16 %v2855
    %v3253 = vunpack.c.l.b16 %v2856
    %v3254 = vunpack.c.h.b16 %v2856
    %v3255 = vunpack.c.l.b16 %v2857
    %v3256 = vunpack.c.h.b16 %v2857
    %v3257 = vunpack.c.l.b16 %v2858
    %v3258 = vunpack.c.h.b16 %v2858
    %v3259 = vunpack.c.l.b16 %v2859
    %v3260 = vunpack.c.h.b16 %v2859
    %v3261 = vunpack.c.l.b16 %v2860
    %v3262 = vunpack.c.h.b16 %v2860
    %v3263 = vunpack.c.l.b16 %v2861
    %v3264 = vunpack.c.h.b16 %v2861
    %v3265 = vunpack.c.l.b16 %v2862
    %v3266 = vunpack.c.h.b16 %v2862
    %v3267 = vunpack.c.l.b16 %v2863
    %v3268 = vunpack.c.h.b16 %v2863
    %v3269 = vunpack.c.l.b16 %v2864
    %v3270 = vunpack.c.h.b16 %v2864
    %v3271 = vunpack.c.l.b16 %v2865
    %v3272 = vunpack.c.h.b16 %v2865
    %v3273 = vunpack.c.l.b16 %v2866
    %v3274 = vunpack.c.h.b16 %v2866
    %v3275 = vunpack.c.l.b16 %v2867
    %v3276 = vunpack.c.h.b16 %v2867
    %v3277 = vunpack.c.l.b16 %v2868
    %v3278 = vunpack.c.h.b16 %v2868
    %v3279 = vunpack.c.l.b16 %v2869
    %v3280 = vunpack.c.h.b16 %v2869
    %v3281 = vunpack.c.l.b16 %v2870
    %v3282 = vunpack.c.h.b16 %v2870
    %v3283 = vunpack.c.l.b16 %v2871
    %v3284 = vunpack.c.h.b16 %v2871
    %v3285 = vunpack.c.l.b16 %v2872
    %v3286 = vunpack.c.h.b16 %v2872
    %v3287 = vunpack.c.l.b16 %v2873
    %v3288 = vunpack.c.h.b16 %v2873
    %v3289 = vunpack.c.l.b16 %v2874
    %v3290 = vunpack.c.h.b16 %v2874
    %v3291 = vunpack.c.l.b16 %v2875
    %v3292 = vunpack.c.h.b16 %v2875
    %v3293 = vunpack.c.l.b16 %v2876
    %v3294 = vunpack.c.h.b16 %v2876
    %v3295 = vunpack.c.l.b16 %v2877
    %v3296 = vunpack.c.h.b16 %v2877
    %v3297 = vunpack.c.l.b16 %v2878
    %v3298 = vunpack.c.h.b16 %v2878
    %v3299 = vunpack.c.l.b16 %v2879
    %v3300 = vunpack.c.h.b16 %v2879
    %v3301 = vunpack.c.l.b16 %v2880
    %v3302 = vunpack.c.h.b16 %v2880
    %v3303 = vunpack.c.l.b16 %v2881
    %v3304 = vunpack.c.h.b16 %v2881
    %v3305 = vunpack.c.l.b16 %v2882
    %v3306 = vunpack.c.h.b16 %v2882
    %v3307 = vpack.c.b16 %v3055, %v3051
    %v3308 = vpack.c.b16 %v3056, %v3052
    %v3309 = vpack.c.b16 %v3057, %v3053
    %v3310 = vpack.c.b16 %v3058, %v3054
    %v3311 = vpack.c.b16 %v3063, %v3059
    %v3312 = vpack.c.b16 %v3064, %v3060
    %v3313 = vpack.c.b16 %v3065, %v3061
    %v3314 = vpack.c.b16 %v3066, %v3062
    %v3315 = vpack.c.b16 %v3071, %v3067
    %v3316 = vpack.c.b16 %v3072, %v3068
    %v3317 = vpack.c.b16 %v3073, %v3069
    %v3318 = vpack.c.b16 %v3074, %v3070
    %v3319 = vpack.c.b16 %v3079, %v3075
    %v3320 = vpack.c.b16 %v3080, %v3076
    %v3321 = vpack.c.b16 %v3081, %v3077
    %v3322 = vpack.c.b16 %v3082, %v3078
    %v3323 = vpack.c.b16 %v3087, %v3083
    %v3324 = vpack.c.b16 %v3088, %v3084
    %v3325 = vpack.c.b16 %v3089, %v3085
    %v3326 = vpack.c.b16 %v3090, %v3086
    %v3327 = vpack.c.b16 %v3095, %v3091
    %v3328 = vpack.c.b16 %v3096, %v3092
    %v3329 = vpack.c.b16 %v3097, %v3093
    %v3330 = vpack.c.b16 %v3098, %v3094
    %v3331 = vpack.c.b16 %v3103, %v3099
    %v3332 = vpack.c.b16 %v3104, %v3100
    %v3333 = vpack.c.b16 %v3105, %v3101
    %v3334 = vpack.c.b16 %v3106, %v3102
    %v3335 = vpack.c.b16 %v3111, %v3107
    %v3336 = vpack.c.b16 %v3112, %v3108
    %v3337 = vpack.c.b16 %v3113, %v3109
    %v3338 = vpack.c.b16 %v3114, %v3110
    %v3339 = vpack.c.b16 %v3119, %v3115
    %v3340 = vpack.c.b16 %v3120, %v3116
    %v3341 = vpack.c.b16 %v3121, %v3117
    %v3342 = vpack.c.b16 %v3122, %v3118
    %v3343 = vpack.c.b16 %v3127, %v3123
    %v3344 = vpack.c.b16 %v3128, %v3124
    %v3345 = vpack.c.b16 %v3129, %v3125
    %v3346 = vpack.c.b16 %v3130, %v3126
    %v3347 = vpack.c.b16 %v3135, %v3131
    %v3348 = vpack.c.b16 %v3136, %v3132
    %v3349 = vpack.c.b16 %v3137, %v3133
    %v3350 = vpack.c.b16 %v3138, %v3134
    %v3351 = vpack.c.b16 %v3143, %v3139
    %v3352 = vpack.c.b16 %v3144, %v3140
    %v3353 = vpack.c.b16 %v3145, %v3141
    %v3354 = vpack.c.b16 %v3146, %v3142
    %v3355 = vpack.c.b16 %v3151, %v3147
    %v3356 = vpack.c.b16 %v3152, %v3148
    %v3357 = vpack.c.b16 %v3153, %v3149
    %v3358 = vpack.c.b16 %v3154, %v3150
    %v3359 = vpack.c.b16 %v3159, %v3155
    %v3360 = vpack.c.b16 %v3160, %v3156
    %v3361 = vpack.c.b16 %v3161, %v3157
    %v3362 = vpack.c.b16 %v3162, %v3158
    %v3363 = vpack.c.b16 %v3167, %v3163
    %v3364 = vpack.c.b16 %v3168, %v3164
    %v3365 = vpack.c.b16 %v3169, %v3165
    %v3366 = vpack.c.b16 %v3170, %v3166
    %v3367 = vpack.c.b16 %v3175, %v3171
    %v3368 = vpack.c.b16 %v3176, %v3172
    %v3369 = vpack.c.b16 %v3177, %v3173
    %v3370 = vpack.c.b16 %v3178, %v3174
    %v3371 = vpack.c.b16 %v3183, %v3179
    %v3372 = vpack.c.b16 %v3184, %v3180
    %v3373 = vpack.c.b16 %v3185, %v3181
    %v3374 = vpack.c.b16 %v3186, %v3182
    %v3375 = vpack.c.b16 %v3191, %v3187
    %v3376 = vpack.c.b16 %v3192, %v3188
    %v3377 = vpack.c.b16 %v3193, %v3189
    %v3378 = vpack.c.b16 %v3194, %v3190
    %v3379 = vpack.c.b16 %v3199, %v3195
    %v3380 = vpack.c.b16 %v3200, %v3196
    %v3381 = vpack.c.b16 %v3201, %v3197
    %v3382 = vpack.c.b16 %v3202, %v3198
    %v3383 = vpack.c.b16 %v3207, %v3203
    %v3384 = vpack.c.b16 %v3208, %v3204
    %v3385 = vpack.c.b16 %v3209, %v3205
    %v3386 = vpack.c.b16 %v3210, %v3206
    %v3387 = vpack.c.b16 %v3215, %v3211
    %v3388 = vpack.c.b16 %v3216, %v3212
    %v3389 = vpack.c.b16 %v3217, %v3213
    %v3390 = vpack.c.b16 %v3218, %v3214
    %v3391 = vpack.c.b16 %v3223, %v3219
    %v3392 = vpack.c.b16 %v3224, %v3220
    %v3393 = vpack.c.b16 %v3225, %v3221
    %v3394 = vpack.c.b16 %v3226, %v3222
    %v3395 = vpack.c.b16 %v3231, %v3227
    %v3396 = vpack.c.b16 %v3232, %v3228
    %v3397 = vpack.c.b16 %v3233, %v3229
    %v3398 = vpack.c.b16 %v3234, %v3230
    %v3399 = vpack.c.b16 %v3239, %v3235
    %v3400 = vpack.c.b16 %v3240, %v3236
    %v3401 = vpack.c.b16 %v3241, %v3237
    %v3402 = vpack.c.b16 %v3242, %v3238
    %v3403 = vpack.c.b16 %v3247, %v3243
    %v3404 = vpack.c.b16 %v3248, %v3244
    %v3405 = vpack.c.b16 %v3249, %v3245
    %v3406 = vpack.c.b16 %v3250, %v3246
    %v3407 = vpack.c.b16 %v3255, %v3251
    %v3408 = vpack.c.b16 %v3256, %v3252
    %v3409 = vpack.c.b16 %v3257, %v3253
    %v3410 = vpack.c.b16 %v3258, %v3254
    %v3411 = vpack.c.b16 %v3263, %v3259
    %v3412 = vpack.c.b16 %v3264, %v3260
    %v3413 = vpack.c.b16 %v3265, %v3261
    %v3414 = vpack.c.b16 %v3266, %v3262
    %v3415 = vpack.c.b16 %v3271, %v3267
    %v3416 = vpack.c.b16 %v3272, %v3268
    %v3417 = vpack.c.b16 %v3273, %v3269
    %v3418 = vpack.c.b16 %v3274, %v3270
    %v3419 = vpack.c.b16 %v3279, %v3275
    %v3420 = vpack.c.b16 %v3280, %v3276
    %v3421 = vpack.c.b16 %v3281, %v3277
    %v3422 = vpack.c.b16 %v3282, %v3278
    %v3423 = vpack.c.b16 %v3287, %v3283
    %v3424 = vpack.c.b16 %v3288, %v3284
    %v3425 = vpack.c.b16 %v3289, %v3285
    %v3426 = vpack.c.b16 %v3290, %v3286
    %v3427 = vpack.c.b16 %v3295, %v3291
    %v3428 = vpack.c.b16 %v3296, %v3292
    %v3429 = vpack.c.b16 %v3297, %v3293
    %v3430 = vpack.c.b16 %v3298, %v3294
    %v3431 = vpack.c.b16 %v3303, %v3299
    %v3432 = vpack.c.b16 %v3304, %v3300
    %v3433 = vpack.c.b16 %v3305, %v3301
    %v3434 = vpack.c.b16 %v3306, %v3302
    %3563 = vmatprep.subr.bf16.mxu0 %v3308
    %3564 = vmatpush1.bf16.msra.mxu0 %v3307
    %3565 = vmatprep.subr.bf16.mxu0 %v3312
    %3566 = vmatpush1.bf16.msra.mxu0 %v3311
    %3567 = vmatprep.subr.bf16.mxu0 %v3316
    %3568 = vmatpush1.bf16.msra.mxu0 %v3315
    %3569 = vmatprep.subr.bf16.mxu0 %v3320
    %3570 = vmatpush1.bf16.msra.mxu0 %v3319
    %3571 = vmatprep.subr.bf16.mxu0 %v3324
    %3572 = vmatpush1.bf16.msra.mxu0 %v3323
    %3573 = vmatprep.subr.bf16.mxu0 %v3328
    %3574 = vmatpush1.bf16.msra.mxu0 %v3327
    %3575 = vmatprep.subr.bf16.mxu0 %v3332
    %3576 = vmatpush1.bf16.msra.mxu0 %v3331
    %3577 = vmatprep.subr.bf16.mxu0 %v3336
    %3578 = vmatpush1.bf16.msra.mxu0 %v3335
    %3579 = vmatprep.subr.bf16.mxu0 %v3340
    %3580 = vmatpush1.bf16.msra.mxu0 %v3339
    %3581 = vmatprep.subr.bf16.mxu0 %v3344
    %3582 = vmatpush1.bf16.msra.mxu0 %v3343
    %3583 = vmatprep.subr.bf16.mxu0 %v3348
    %3584 = vmatpush1.bf16.msra.mxu0 %v3347
    %3585 = vmatprep.subr.bf16.mxu0 %v3352
    %3586 = vmatpush1.bf16.msra.mxu0 %v3351
    %3587 = vmatprep.subr.bf16.mxu0 %v3356
    %3588 = vmatpush1.bf16.msra.mxu0 %v3355
    %3589 = vmatprep.subr.bf16.mxu0 %v3360
    %3590 = vmatpush1.bf16.msra.mxu0 %v3359
    %3591 = vmatprep.subr.bf16.mxu0 %v3364
    %3592 = vmatpush1.bf16.msra.mxu0 %v3363
    %3593 = vmatprep.subr.bf16.mxu0 %v3368
    %3594 = vmatpush1.bf16.msra.mxu0 %v3367
    %3595 = vmatprep.mubr.bf16.mxu0 %v2884
    %3596 = vmatmul.mubr.bf16.gmra.mrb[0].mxu0 %v2883
    %v3597 = vpop.f32.mrb[0].mxu0
    %v3598 = vadd.f32 %v2910, %v3597
    %v3599 = vpop.f32.mrb[0].mxu0
    %v3600 = vadd.f32 %v2914, %v3599
    %v3601 = vpop.f32.mrb[0].mxu0
    %v3602 = vadd.f32 %v2910, %v3601
    %v3603 = vpop.f32.mrb[0].mxu0
    %v3604 = vadd.f32 %v2914, %v3603
    %3605 = vdwg.mxu0
    %3606 = vmatprep.subr.bf16.mxu0 %v3372
    %3607 = vmatpush1.bf16.msra.mxu0 %v3371
    %3608 = vmatprep.subr.bf16.mxu0 %v3376
    %3609 = vmatpush1.bf16.msra.mxu0 %v3375
    %3610 = vmatprep.subr.bf16.mxu0 %v3380
    %3611 = vmatpush1.bf16.msra.mxu0 %v3379
    %3612 = vmatprep.subr.bf16.mxu0 %v3384
    %3613 = vmatpush1.bf16.msra.mxu0 %v3383
    %3614 = vmatprep.subr.bf16.mxu0 %v3388
    %3615 = vmatpush1.bf16.msra.mxu0 %v3387
    %3616 = vmatprep.subr.bf16.mxu0 %v3392
    %3617 = vmatpush1.bf16.msra.mxu0 %v3391
    %3618 = vmatprep.subr.bf16.mxu0 %v3396
    %3619 = vmatpush1.bf16.msra.mxu0 %v3395
    %3620 = vmatprep.subr.bf16.mxu0 %v3400
    %3621 = vmatpush1.bf16.msra.mxu0 %v3399
    %3622 = vmatprep.subr.bf16.mxu0 %v3404
    %3623 = vmatpush1.bf16.msra.mxu0 %v3403
    %3624 = vmatprep.subr.bf16.mxu0 %v3408
    %3625 = vmatpush1.bf16.msra.mxu0 %v3407
    %3626 = vmatprep.subr.bf16.mxu0 %v3412
    %3627 = vmatpush1.bf16.msra.mxu0 %v3411
    %3628 = vmatprep.subr.bf16.mxu0 %v3416
    %3629 = vmatpush1.bf16.msra.mxu0 %v3415
    %3630 = vmatprep.subr.bf16.mxu0 %v3420
    %3631 = vmatpush1.bf16.msra.mxu0 %v3419
    %3632 = vmatprep.subr.bf16.mxu0 %v3424
    %3633 = vmatpush1.bf16.msra.mxu0 %v3423
    %3634 = vmatprep.subr.bf16.mxu0 %v3428
    %3635 = vmatpush1.bf16.msra.mxu0 %v3427
    %3636 = vmatprep.subr.bf16.mxu0 %v3432
    %3637 = vmatpush1.bf16.msra.mxu0 %v3431
    %3638 = vmatprep.mubr.bf16.mxu0 %v2886
    %3639 = vmatmul.mubr.bf16.gmra.mrb[0].mxu0 %v2885
    %v3640 = vpop.f32.mrb[0].mxu0
    %v3641 = vadd.f32 %v3598, %v3640
    %v3642 = vpop.f32.mrb[0].mxu0
    %v3643 = vadd.f32 %v3600, %v3642
    %v3644 = vpop.f32.mrb[0].mxu0
    %v3645 = vadd.f32 %v3602, %v3644
    %v3646 = vpop.f32.mrb[0].mxu0
    %v3647 = vadd.f32 %v3604, %v3646
    %3648 = vdwg.mxu0
    %3649 = vmatprep.subr.bf16.mxu0 %v3310
    %3650 = vmatpush1.bf16.msra.mxu0 %v3309
    %3651 = vmatprep.subr.bf16.mxu0 %v3314
    %3652 = vmatpush1.bf16.msra.mxu0 %v3313
    %3653 = vmatprep.subr.bf16.mxu0 %v3318
    %3654 = vmatpush1.bf16.msra.mxu0 %v3317
    %3655 = vmatprep.subr.bf16.mxu0 %v3322
    %3656 = vmatpush1.bf16.msra.mxu0 %v3321
    %3657 = vmatprep.subr.bf16.mxu0 %v3326
    %3658 = vmatpush1.bf16.msra.mxu0 %v3325
    %3659 = vmatprep.subr.bf16.mxu0 %v3330
    %3660 = vmatpush1.bf16.msra.mxu0 %v3329
    %3661 = vmatprep.subr.bf16.mxu0 %v3334
    %3662 = vmatpush1.bf16.msra.mxu0 %v3333
    %3663 = vmatprep.subr.bf16.mxu0 %v3338
    %3664 = vmatpush1.bf16.msra.mxu0 %v3337
    %3665 = vmatprep.subr.bf16.mxu0 %v3342
    %3666 = vmatpush1.bf16.msra.mxu0 %v3341
    %3667 = vmatprep.subr.bf16.mxu0 %v3346
    %3668 = vmatpush1.bf16.msra.mxu0 %v3345
    %3669 = vmatprep.subr.bf16.mxu0 %v3350
    %3670 = vmatpush1.bf16.msra.mxu0 %v3349
    %3671 = vmatprep.subr.bf16.mxu0 %v3354
    %3672 = vmatpush1.bf16.msra.mxu0 %v3353
    %3673 = vmatprep.subr.bf16.mxu0 %v3358
    %3674 = vmatpush1.bf16.msra.mxu0 %v3357
    %3675 = vmatprep.subr.bf16.mxu0 %v3362
    %3676 = vmatpush1.bf16.msra.mxu0 %v3361
    %3677 = vmatprep.subr.bf16.mxu0 %v3366
    %3678 = vmatpush1.bf16.msra.mxu0 %v3365
    %3679 = vmatprep.subr.bf16.mxu0 %v3370
    %3680 = vmatpush1.bf16.msra.mxu0 %v3369
    %3681 = vmatprep.mubr.bf16.mxu0 %v2884
    %3682 = vmatmul.mubr.bf16.gmra.mrb[0].mxu0 %v2883
    %v3683 = vpop.f32.mrb[0].mxu0
    %v3684 = vadd.f32 %v2918, %v3683
    %v3685 = vpop.f32.mrb[0].mxu0
    %v3686 = vadd.f32 %v2922, %v3685
    %v3687 = vpop.f32.mrb[0].mxu0
    %v3688 = vadd.f32 %v2918, %v3687
    %v3689 = vpop.f32.mrb[0].mxu0
    %v3690 = vadd.f32 %v2922, %v3689
    %3691 = vdwg.mxu0
    %3692 = vmatprep.subr.bf16.mxu0 %v3374
    %3693 = vmatpush1.bf16.msra.mxu0 %v3373
    %3694 = vmatprep.subr.bf16.mxu0 %v3378
    %3695 = vmatpush1.bf16.msra.mxu0 %v3377
    %3696 = vmatprep.subr.bf16.mxu0 %v3382
    %3697 = vmatpush1.bf16.msra.mxu0 %v3381
    %3698 = vmatprep.subr.bf16.mxu0 %v3386
    %3699 = vmatpush1.bf16.msra.mxu0 %v3385
    %3700 = vmatprep.subr.bf16.mxu0 %v3390
    %3701 = vmatpush1.bf16.msra.mxu0 %v3389
    %3702 = vmatprep.subr.bf16.mxu0 %v3394
    %3703 = vmatpush1.bf16.msra.mxu0 %v3393
    %3704 = vmatprep.subr.bf16.mxu0 %v3398
    %3705 = vmatpush1.bf16.msra.mxu0 %v3397
    %3706 = vmatprep.subr.bf16.mxu0 %v3402
    %3707 = vmatpush1.bf16.msra.mxu0 %v3401
    %3708 = vmatprep.subr.bf16.mxu0 %v3406
    %3709 = vmatpush1.bf16.msra.mxu0 %v3405
    %3710 = vmatprep.subr.bf16.mxu0 %v3410
    %3711 = vmatpush1.bf16.msra.mxu0 %v3409
    %3712 = vmatprep.subr.bf16.mxu0 %v3414
    %3713 = vmatpush1.bf16.msra.mxu0 %v3413
    %3714 = vmatprep.subr.bf16.mxu0 %v3418
    %3715 = vmatpush1.bf16.msra.mxu0 %v3417
    %3716 = vmatprep.subr.bf16.mxu0 %v3422
    %3717 = vmatpush1.bf16.msra.mxu0 %v3421
    %3718 = vmatprep.subr.bf16.mxu0 %v3426
    %3719 = vmatpush1.bf16.msra.mxu0 %v3425
    %3720 = vmatprep.subr.bf16.mxu0 %v3430
    %3721 = vmatpush1.bf16.msra.mxu0 %v3429
    %3722 = vmatprep.subr.bf16.mxu0 %v3434
    %3723 = vmatpush1.bf16.msra.mxu0 %v3433
    %3724 = vmatprep.mubr.bf16.mxu0 %v2886
    %3725 = vmatmul.mubr.bf16.gmra.mrb[0].mxu0 %v2885
    %v3726 = vpop.f32.mrb[0].mxu0
    %v3727 = vadd.f32 %v3684, %v3726
    %v3728 = vpop.f32.mrb[0].mxu0
    %v3729 = vadd.f32 %v3686, %v3728
    %v3730 = vpop.f32.mrb[0].mxu0
    %v3731 = vadd.f32 %v3688, %v3730
    %v3732 = vpop.f32.mrb[0].mxu0
    %v3733 = vadd.f32 %v3690, %v3732
    %3734 = vdwg.mxu0
    %v3735 = vmul.f32 %v3641, 0.5
    %v3736 = vmul.f32 %v3643, 0.5
    %v3737 = vmul.f32 %v3727, 0.5
    %v3738 = vmul.f32 %v3729, 0.5
    %v3739 = vmul.f32 %v3645, 0.5
    %v3740 = vmul.f32 %v3647, 0.5
    %v3741 = vmul.f32 %v3731, 0.5
    %v3742 = vmul.f32 %v3733, 0.5
    %v3743 = vtanh.pop %v3735
    %v3744 = vtanh.pop %v3736
    %v3745 = vtanh.pop %v3737
    %v3746 = vtanh.pop %v3738
    %v3747 = vtanh.pop %v3739
    %v3748 = vtanh.pop %v3740
    %v3749 = vtanh.pop %v3741
    %v3750 = vtanh.pop %v3742
    %v3751 = vmul.f32 %v3743, 0.5
    %v3752 = vmul.f32 %v3744, 0.5
    %v3753 = vmul.f32 %v3745, 0.5
    %v3754 = vmul.f32 %v3746, 0.5
    %v3755 = vmul.f32 %v3747, 0.5
    %v3756 = vmul.f32 %v3748, 0.5
    %v3757 = vmul.f32 %v3749, 0.5
    %v3758 = vmul.f32 %v3750, 0.5
    %v3759 = vadd.f32 %v3751, 0.5
    %v3760 = vadd.f32 %v3752, 0.5
    %v3761 = vadd.f32 %v3753, 0.5
    %v3762 = vadd.f32 %v3754, 0.5
    %v3763 = vadd.f32 %v3755, 0.5
    %v3764 = vadd.f32 %v3756, 0.5
    %v3765 = vadd.f32 %v3757, 0.5
    %v3766 = vadd.f32 %v3758, 0.5
    %s3767 = scalar_lea.vmem [#allocation8], 2048
    %v3768 = vld [vmem:[%s3767] sm:$0xff]
    %v3769 = vld [vmem:[%s3767 + $0x8] sm:$0xff]
    %v3770 = vld [vmem:[%s3767 + $0x10] sm:$0xff]
    %v3771 = vld [vmem:[%s3767 + $0x18] sm:$0xff]
    %v3772 = vld [vmem:[%s3767 + $0x20] sm:$0xff]
    %v3773 = vld [vmem:[%s3767 + $0x28] sm:$0xff]
    %v3774 = vld [vmem:[%s3767 + $0x30] sm:$0xff]
    %v3775 = vld [vmem:[%s3767 + $0x38] sm:$0xff]
    %v3776 = vld [vmem:[%s3767 + $0x40] sm:$0xff]
    %v3777 = vld [vmem:[%s3767 + $0x48] sm:$0xff]
    %v3778 = vld [vmem:[%s3767 + $0x50] sm:$0xff]
    %v3779 = vld [vmem:[%s3767 + $0x58] sm:$0xff]
    %v3780 = vld [vmem:[%s3767 + $0x60] sm:$0xff]
    %v3781 = vld [vmem:[%s3767 + $0x68] sm:$0xff]
    %v3782 = vld [vmem:[%s3767 + $0x70] sm:$0xff]
    %v3783 = vld [vmem:[%s3767 + $0x78] sm:$0xff]
    %v3784 = vld [vmem:[%s3767 + $0x80] sm:$0xff]
    %v3785 = vld [vmem:[%s3767 + $0x88] sm:$0xff]
    %v3786 = vld [vmem:[%s3767 + $0x90] sm:$0xff]
    %v3787 = vld [vmem:[%s3767 + $0x98] sm:$0xff]
    %v3788 = vld [vmem:[%s3767 + $0xa0] sm:$0xff]
    %v3789 = vld [vmem:[%s3767 + $0xa8] sm:$0xff]
    %v3790 = vld [vmem:[%s3767 + $0xb0] sm:$0xff]
    %v3791 = vld [vmem:[%s3767 + $0xb8] sm:$0xff]
    %v3792 = vld [vmem:[%s3767 + $0xc0] sm:$0xff]
    %v3793 = vld [vmem:[%s3767 + $0xc8] sm:$0xff]
    %v3794 = vld [vmem:[%s3767 + $0xd0] sm:$0xff]
    %v3795 = vld [vmem:[%s3767 + $0xd8] sm:$0xff]
    %v3796 = vld [vmem:[%s3767 + $0xe0] sm:$0xff]
    %v3797 = vld [vmem:[%s3767 + $0xe8] sm:$0xff]
    %v3798 = vld [vmem:[%s3767 + $0xf0] sm:$0xff]
    %v3799 = vld [vmem:[%s3767 + $0xf8] sm:$0xff]
    %v3800 = vld [vmem:[%s3767 + $0x100] sm:$0xff]
    %v3801 = vld [vmem:[%s3767 + $0x108] sm:$0xff]
    %v3802 = vld [vmem:[%s3767 + $0x110] sm:$0xff]
    %v3803 = vld [vmem:[%s3767 + $0x118] sm:$0xff]
    %v3804 = vld [vmem:[%s3767 + $0x120] sm:$0xff]
    %v3805 = vld [vmem:[%s3767 + $0x128] sm:$0xff]
    %v3806 = vld [vmem:[%s3767 + $0x130] sm:$0xff]
    %v3807 = vld [vmem:[%s3767 + $0x138] sm:$0xff]
    %v3808 = vld [vmem:[%s3767 + $0x140] sm:$0xff]
    %v3809 = vld [vmem:[%s3767 + $0x148] sm:$0xff]
    %v3810 = vld [vmem:[%s3767 + $0x150] sm:$0xff]
    %v3811 = vld [vmem:[%s3767 + $0x158] sm:$0xff]
    %v3812 = vld [vmem:[%s3767 + $0x160] sm:$0xff]
    %v3813 = vld [vmem:[%s3767 + $0x168] sm:$0xff]
    %v3814 = vld [vmem:[%s3767 + $0x170] sm:$0xff]
    %v3815 = vld [vmem:[%s3767 + $0x178] sm:$0xff]
    %v3816 = vld [vmem:[%s3767 + $0x180] sm:$0xff]
    %v3817 = vld [vmem:[%s3767 + $0x188] sm:$0xff]
    %v3818 = vld [vmem:[%s3767 + $0x190] sm:$0xff]
    %v3819 = vld [vmem:[%s3767 + $0x198] sm:$0xff]
    %v3820 = vld [vmem:[%s3767 + $0x1a0] sm:$0xff]
    %v3821 = vld [vmem:[%s3767 + $0x1a8] sm:$0xff]
    %v3822 = vld [vmem:[%s3767 + $0x1b0] sm:$0xff]
    %v3823 = vld [vmem:[%s3767 + $0x1b8] sm:$0xff]
    %v3824 = vld [vmem:[%s3767 + $0x1c0] sm:$0xff]
    %v3825 = vld [vmem:[%s3767 + $0x1c8] sm:$0xff]
    %v3826 = vld [vmem:[%s3767 + $0x1d0] sm:$0xff]
    %v3827 = vld [vmem:[%s3767 + $0x1d8] sm:$0xff]
    %v3828 = vld [vmem:[%s3767 + $0x1e0] sm:$0xff]
    %v3829 = vld [vmem:[%s3767 + $0x1e8] sm:$0xff]
    %v3830 = vld [vmem:[%s3767 + $0x1f0] sm:$0xff]
    %v3831 = vld [vmem:[%s3767 + $0x1f8] sm:$0xff]
    %v3832 = vld [vmem:[%s3767 + $0x200] sm:$0xff]
    %v3833 = vld [vmem:[%s3767 + $0x208] sm:$0xff]
    %v3834 = vld [vmem:[%s3767 + $0x210] sm:$0xff]
    %v3835 = vld [vmem:[%s3767 + $0x218] sm:$0xff]
    %v3836 = vld [vmem:[%s3767 + $0x220] sm:$0xff]
    %v3837 = vld [vmem:[%s3767 + $0x228] sm:$0xff]
    %v3838 = vld [vmem:[%s3767 + $0x230] sm:$0xff]
    %v3839 = vld [vmem:[%s3767 + $0x238] sm:$0xff]
    %v3840 = vld [vmem:[%s3767 + $0x240] sm:$0xff]
    %v3841 = vld [vmem:[%s3767 + $0x248] sm:$0xff]
    %v3842 = vld [vmem:[%s3767 + $0x250] sm:$0xff]
    %v3843 = vld [vmem:[%s3767 + $0x258] sm:$0xff]
    %v3844 = vld [vmem:[%s3767 + $0x260] sm:$0xff]
    %v3845 = vld [vmem:[%s3767 + $0x268] sm:$0xff]
    %v3846 = vld [vmem:[%s3767 + $0x270] sm:$0xff]
    %v3847 = vld [vmem:[%s3767 + $0x278] sm:$0xff]
    %v3848 = vld [vmem:[%s3767 + $0x280] sm:$0xff]
    %v3849 = vld [vmem:[%s3767 + $0x288] sm:$0xff]
    %v3850 = vld [vmem:[%s3767 + $0x290] sm:$0xff]
    %v3851 = vld [vmem:[%s3767 + $0x298] sm:$0xff]
    %v3852 = vld [vmem:[%s3767 + $0x2a0] sm:$0xff]
    %v3853 = vld [vmem:[%s3767 + $0x2a8] sm:$0xff]
    %v3854 = vld [vmem:[%s3767 + $0x2b0] sm:$0xff]
    %v3855 = vld [vmem:[%s3767 + $0x2b8] sm:$0xff]
    %v3856 = vld [vmem:[%s3767 + $0x2c0] sm:$0xff]
    %v3857 = vld [vmem:[%s3767 + $0x2c8] sm:$0xff]
    %v3858 = vld [vmem:[%s3767 + $0x2d0] sm:$0xff]
    %v3859 = vld [vmem:[%s3767 + $0x2d8] sm:$0xff]
    %v3860 = vld [vmem:[%s3767 + $0x2e0] sm:$0xff]
    %v3861 = vld [vmem:[%s3767 + $0x2e8] sm:$0xff]
    %v3862 = vld [vmem:[%s3767 + $0x2f0] sm:$0xff]
    %v3863 = vld [vmem:[%s3767 + $0x2f8] sm:$0xff]
    %v3864 = vld [vmem:[%s3767 + $0x300] sm:$0xff]
    %v3865 = vld [vmem:[%s3767 + $0x308] sm:$0xff]
    %v3866 = vld [vmem:[%s3767 + $0x310] sm:$0xff]
    %v3867 = vld [vmem:[%s3767 + $0x318] sm:$0xff]
    %v3868 = vld [vmem:[%s3767 + $0x320] sm:$0xff]
    %v3869 = vld [vmem:[%s3767 + $0x328] sm:$0xff]
    %v3870 = vld [vmem:[%s3767 + $0x330] sm:$0xff]
    %v3871 = vld [vmem:[%s3767 + $0x338] sm:$0xff]
    %v3872 = vld [vmem:[%s3767 + $0x340] sm:$0xff]
    %v3873 = vld [vmem:[%s3767 + $0x348] sm:$0xff]
    %v3874 = vld [vmem:[%s3767 + $0x350] sm:$0xff]
    %v3875 = vld [vmem:[%s3767 + $0x358] sm:$0xff]
    %v3876 = vld [vmem:[%s3767 + $0x360] sm:$0xff]
    %v3877 = vld [vmem:[%s3767 + $0x368] sm:$0xff]
    %v3878 = vld [vmem:[%s3767 + $0x370] sm:$0xff]
    %v3879 = vld [vmem:[%s3767 + $0x378] sm:$0xff]
    %v3880 = vld [vmem:[%s3767 + $0x380] sm:$0xff]
    %v3881 = vld [vmem:[%s3767 + $0x388] sm:$0xff]
    %v3882 = vld [vmem:[%s3767 + $0x390] sm:$0xff]
    %v3883 = vld [vmem:[%s3767 + $0x398] sm:$0xff]
    %v3884 = vld [vmem:[%s3767 + $0x3a0] sm:$0xff]
    %v3885 = vld [vmem:[%s3767 + $0x3a8] sm:$0xff]
    %v3886 = vld [vmem:[%s3767 + $0x3b0] sm:$0xff]
    %v3887 = vld [vmem:[%s3767 + $0x3b8] sm:$0xff]
    %v3888 = vld [vmem:[%s3767 + $0x3c0] sm:$0xff]
    %v3889 = vld [vmem:[%s3767 + $0x3c8] sm:$0xff]
    %v3890 = vld [vmem:[%s3767 + $0x3d0] sm:$0xff]
    %v3891 = vld [vmem:[%s3767 + $0x3d8] sm:$0xff]
    %v3892 = vld [vmem:[%s3767 + $0x3e0] sm:$0xff]
    %v3893 = vld [vmem:[%s3767 + $0x3e8] sm:$0xff]
    %v3894 = vld [vmem:[%s3767 + $0x3f0] sm:$0xff]
    %v3895 = vld [vmem:[%s3767 + $0x3f8] sm:$0xff]
    %v3896 = vpack.c.bf16 %v3763, %v3759
    %v3897 = vpack.c.bf16 %v3764, %v3760
    %v3898 = vpack.c.bf16 %v3765, %v3761
    %v3899 = vpack.c.bf16 %v3766, %v3762
    %v3900 = vlaneseq
    %v3901 = vshrl.u32 %v3900, 7
    %v3902 = vsub.s32 3, %v3901
    %v3903 = vrot.slane %v103, %v3902
    %v3904 = vlaneseq
    %v3905 = vshrl.u32 %v3904, 7
    %v3906 = vsub.s32 7, %v3905
    %v3907 = vrot.slane %v103, %v3906
    %v3908 = vlaneseq
    %v3909 = vshrl.u32 %v3908, 7
    %v3910 = vsub.s32 3, %v3909
    %v3911 = vrot.slane %v104, %v3910
    %v3912 = vlaneseq
    %v3913 = vshrl.u32 %v3912, 7
    %v3914 = vsub.s32 7, %v3913
    %v3915 = vrot.slane %v104, %v3914
    %v3920 = vlaneseq
    %v3921 = vshrl.u32 %v3920, 7
    %v3922 = vsub.s32 3, %v3921
    %v3923 = vrot.slane %v3903, %v3922
    %v3924 = vlaneseq
    %v3925 = vshrl.u32 %v3924, 7
    %v3926 = vsub.s32 3, %v3925
    %v3927 = vrot.slane %v3907, %v3926
    %v3928 = vlaneseq
    %v3929 = vshrl.u32 %v3928, 7
    %v3930 = vsub.s32 3, %v3929
    %v3931 = vrot.slane %v3911, %v3930
    %v3932 = vlaneseq
    %v3933 = vshrl.u32 %v3932, 7
    %v3934 = vsub.s32 3, %v3933
    %v3935 = vrot.slane %v3915, %v3934
    %v4064 = vunpack.c.l.b16 %v3768
    %v4065 = vunpack.c.h.b16 %v3768
    %v4066 = vunpack.c.l.b16 %v3769
    %v4067 = vunpack.c.h.b16 %v3769
    %v4068 = vunpack.c.l.b16 %v3770
    %v4069 = vunpack.c.h.b16 %v3770
    %v4070 = vunpack.c.l.b16 %v3771
    %v4071 = vunpack.c.h.b16 %v3771
    %v4072 = vunpack.c.l.b16 %v3772
    %v4073 = vunpack.c.h.b16 %v3772
    %v4074 = vunpack.c.l.b16 %v3773
    %v4075 = vunpack.c.h.b16 %v3773
    %v4076 = vunpack.c.l.b16 %v3774
    %v4077 = vunpack.c.h.b16 %v3774
    %v4078 = vunpack.c.l.b16 %v3775
    %v4079 = vunpack.c.h.b16 %v3775
    %v4080 = vunpack.c.l.b16 %v3776
    %v4081 = vunpack.c.h.b16 %v3776
    %v4082 = vunpack.c.l.b16 %v3777
    %v4083 = vunpack.c.h.b16 %v3777
    %v4084 = vunpack.c.l.b16 %v3778
    %v4085 = vunpack.c.h.b16 %v3778
    %v4086 = vunpack.c.l.b16 %v3779
    %v4087 = vunpack.c.h.b16 %v3779
    %v4088 = vunpack.c.l.b16 %v3780
    %v4089 = vunpack.c.h.b16 %v3780
    %v4090 = vunpack.c.l.b16 %v3781
    %v4091 = vunpack.c.h.b16 %v3781
    %v4092 = vunpack.c.l.b16 %v3782
    %v4093 = vunpack.c.h.b16 %v3782
    %v4094 = vunpack.c.l.b16 %v3783
    %v4095 = vunpack.c.h.b16 %v3783
    %v4096 = vunpack.c.l.b16 %v3784
    %v4097 = vunpack.c.h.b16 %v3784
    %v4098 = vunpack.c.l.b16 %v3785
    %v4099 = vunpack.c.h.b16 %v3785
    %v4100 = vunpack.c.l.b16 %v3786
    %v4101 = vunpack.c.h.b16 %v3786
    %v4102 = vunpack.c.l.b16 %v3787
    %v4103 = vunpack.c.h.b16 %v3787
    %v4104 = vunpack.c.l.b16 %v3788
    %v4105 = vunpack.c.h.b16 %v3788
    %v4106 = vunpack.c.l.b16 %v3789
    %v4107 = vunpack.c.h.b16 %v3789
    %v4108 = vunpack.c.l.b16 %v3790
    %v4109 = vunpack.c.h.b16 %v3790
    %v4110 = vunpack.c.l.b16 %v3791
    %v4111 = vunpack.c.h.b16 %v3791
    %v4112 = vunpack.c.l.b16 %v3792
    %v4113 = vunpack.c.h.b16 %v3792
    %v4114 = vunpack.c.l.b16 %v3793
    %v4115 = vunpack.c.h.b16 %v3793
    %v4116 = vunpack.c.l.b16 %v3794
    %v4117 = vunpack.c.h.b16 %v3794
    %v4118 = vunpack.c.l.b16 %v3795
    %v4119 = vunpack.c.h.b16 %v3795
    %v4120 = vunpack.c.l.b16 %v3796
    %v4121 = vunpack.c.h.b16 %v3796
    %v4122 = vunpack.c.l.b16 %v3797
    %v4123 = vunpack.c.h.b16 %v3797
    %v4124 = vunpack.c.l.b16 %v3798
    %v4125 = vunpack.c.h.b16 %v3798
    %v4126 = vunpack.c.l.b16 %v3799
    %v4127 = vunpack.c.h.b16 %v3799
    %v4128 = vunpack.c.l.b16 %v3800
    %v4129 = vunpack.c.h.b16 %v3800
    %v4130 = vunpack.c.l.b16 %v3801
    %v4131 = vunpack.c.h.b16 %v3801
    %v4132 = vunpack.c.l.b16 %v3802
    %v4133 = vunpack.c.h.b16 %v3802
    %v4134 = vunpack.c.l.b16 %v3803
    %v4135 = vunpack.c.h.b16 %v3803
    %v4136 = vunpack.c.l.b16 %v3804
    %v4137 = vunpack.c.h.b16 %v3804
    %v4138 = vunpack.c.l.b16 %v3805
    %v4139 = vunpack.c.h.b16 %v3805
    %v4140 = vunpack.c.l.b16 %v3806
    %v4141 = vunpack.c.h.b16 %v3806
    %v4142 = vunpack.c.l.b16 %v3807
    %v4143 = vunpack.c.h.b16 %v3807
    %v4144 = vunpack.c.l.b16 %v3808
    %v4145 = vunpack.c.h.b16 %v3808
    %v4146 = vunpack.c.l.b16 %v3809
    %v4147 = vunpack.c.h.b16 %v3809
    %v4148 = vunpack.c.l.b16 %v3810
    %v4149 = vunpack.c.h.b16 %v3810
    %v4150 = vunpack.c.l.b16 %v3811
    %v4151 = vunpack.c.h.b16 %v3811
    %v4152 = vunpack.c.l.b16 %v3812
    %v4153 = vunpack.c.h.b16 %v3812
    %v4154 = vunpack.c.l.b16 %v3813
    %v4155 = vunpack.c.h.b16 %v3813
    %v4156 = vunpack.c.l.b16 %v3814
    %v4157 = vunpack.c.h.b16 %v3814
    %v4158 = vunpack.c.l.b16 %v3815
    %v4159 = vunpack.c.h.b16 %v3815
    %v4160 = vunpack.c.l.b16 %v3816
    %v4161 = vunpack.c.h.b16 %v3816
    %v4162 = vunpack.c.l.b16 %v3817
    %v4163 = vunpack.c.h.b16 %v3817
    %v4164 = vunpack.c.l.b16 %v3818
    %v4165 = vunpack.c.h.b16 %v3818
    %v4166 = vunpack.c.l.b16 %v3819
    %v4167 = vunpack.c.h.b16 %v3819
    %v4168 = vunpack.c.l.b16 %v3820
    %v4169 = vunpack.c.h.b16 %v3820
    %v4170 = vunpack.c.l.b16 %v3821
    %v4171 = vunpack.c.h.b16 %v3821
    %v4172 = vunpack.c.l.b16 %v3822
    %v4173 = vunpack.c.h.b16 %v3822
    %v4174 = vunpack.c.l.b16 %v3823
    %v4175 = vunpack.c.h.b16 %v3823
    %v4176 = vunpack.c.l.b16 %v3824
    %v4177 = vunpack.c.h.b16 %v3824
    %v4178 = vunpack.c.l.b16 %v3825
    %v4179 = vunpack.c.h.b16 %v3825
    %v4180 = vunpack.c.l.b16 %v3826
    %v4181 = vunpack.c.h.b16 %v3826
    %v4182 = vunpack.c.l.b16 %v3827
    %v4183 = vunpack.c.h.b16 %v3827
    %v4184 = vunpack.c.l.b16 %v3828
    %v4185 = vunpack.c.h.b16 %v3828
    %v4186 = vunpack.c.l.b16 %v3829
    %v4187 = vunpack.c.h.b16 %v3829
    %v4188 = vunpack.c.l.b16 %v3830
    %v4189 = vunpack.c.h.b16 %v3830
    %v4190 = vunpack.c.l.b16 %v3831
    %v4191 = vunpack.c.h.b16 %v3831
    %v4192 = vunpack.c.l.b16 %v3832
    %v4193 = vunpack.c.h.b16 %v3832
    %v4194 = vunpack.c.l.b16 %v3833
    %v4195 = vunpack.c.h.b16 %v3833
    %v4196 = vunpack.c.l.b16 %v3834
    %v4197 = vunpack.c.h.b16 %v3834
    %v4198 = vunpack.c.l.b16 %v3835
    %v4199 = vunpack.c.h.b16 %v3835
    %v4200 = vunpack.c.l.b16 %v3836
    %v4201 = vunpack.c.h.b16 %v3836
    %v4202 = vunpack.c.l.b16 %v3837
    %v4203 = vunpack.c.h.b16 %v3837
    %v4204 = vunpack.c.l.b16 %v3838
    %v4205 = vunpack.c.h.b16 %v3838
    %v4206 = vunpack.c.l.b16 %v3839
    %v4207 = vunpack.c.h.b16 %v3839
    %v4208 = vunpack.c.l.b16 %v3840
    %v4209 = vunpack.c.h.b16 %v3840
    %v4210 = vunpack.c.l.b16 %v3841
    %v4211 = vunpack.c.h.b16 %v3841
    %v4212 = vunpack.c.l.b16 %v3842
    %v4213 = vunpack.c.h.b16 %v3842
    %v4214 = vunpack.c.l.b16 %v3843
    %v4215 = vunpack.c.h.b16 %v3843
    %v4216 = vunpack.c.l.b16 %v3844
    %v4217 = vunpack.c.h.b16 %v3844
    %v4218 = vunpack.c.l.b16 %v3845
    %v4219 = vunpack.c.h.b16 %v3845
    %v4220 = vunpack.c.l.b16 %v3846
    %v4221 = vunpack.c.h.b16 %v3846
    %v4222 = vunpack.c.l.b16 %v3847
    %v4223 = vunpack.c.h.b16 %v3847
    %v4224 = vunpack.c.l.b16 %v3848
    %v4225 = vunpack.c.h.b16 %v3848
    %v4226 = vunpack.c.l.b16 %v3849
    %v4227 = vunpack.c.h.b16 %v3849
    %v4228 = vunpack.c.l.b16 %v3850
    %v4229 = vunpack.c.h.b16 %v3850
    %v4230 = vunpack.c.l.b16 %v3851
    %v4231 = vunpack.c.h.b16 %v3851
    %v4232 = vunpack.c.l.b16 %v3852
    %v4233 = vunpack.c.h.b16 %v3852
    %v4234 = vunpack.c.l.b16 %v3853
    %v4235 = vunpack.c.h.b16 %v3853
    %v4236 = vunpack.c.l.b16 %v3854
    %v4237 = vunpack.c.h.b16 %v3854
    %v4238 = vunpack.c.l.b16 %v3855
    %v4239 = vunpack.c.h.b16 %v3855
    %v4240 = vunpack.c.l.b16 %v3856
    %v4241 = vunpack.c.h.b16 %v3856
    %v4242 = vunpack.c.l.b16 %v3857
    %v4243 = vunpack.c.h.b16 %v3857
    %v4244 = vunpack.c.l.b16 %v3858
    %v4245 = vunpack.c.h.b16 %v3858
    %v4246 = vunpack.c.l.b16 %v3859
    %v4247 = vunpack.c.h.b16 %v3859
    %v4248 = vunpack.c.l.b16 %v3860
    %v4249 = vunpack.c.h.b16 %v3860
    %v4250 = vunpack.c.l.b16 %v3861
    %v4251 = vunpack.c.h.b16 %v3861
    %v4252 = vunpack.c.l.b16 %v3862
    %v4253 = vunpack.c.h.b16 %v3862
    %v4254 = vunpack.c.l.b16 %v3863
    %v4255 = vunpack.c.h.b16 %v3863
    %v4256 = vunpack.c.l.b16 %v3864
    %v4257 = vunpack.c.h.b16 %v3864
    %v4258 = vunpack.c.l.b16 %v3865
    %v4259 = vunpack.c.h.b16 %v3865
    %v4260 = vunpack.c.l.b16 %v3866
    %v4261 = vunpack.c.h.b16 %v3866
    %v4262 = vunpack.c.l.b16 %v3867
    %v4263 = vunpack.c.h.b16 %v3867
    %v4264 = vunpack.c.l.b16 %v3868
    %v4265 = vunpack.c.h.b16 %v3868
    %v4266 = vunpack.c.l.b16 %v3869
    %v4267 = vunpack.c.h.b16 %v3869
    %v4268 = vunpack.c.l.b16 %v3870
    %v4269 = vunpack.c.h.b16 %v3870
    %v4270 = vunpack.c.l.b16 %v3871
    %v4271 = vunpack.c.h.b16 %v3871
    %v4272 = vunpack.c.l.b16 %v3872
    %v4273 = vunpack.c.h.b16 %v3872
    %v4274 = vunpack.c.l.b16 %v3873
    %v4275 = vunpack.c.h.b16 %v3873
    %v4276 = vunpack.c.l.b16 %v3874
    %v4277 = vunpack.c.h.b16 %v3874
    %v4278 = vunpack.c.l.b16 %v3875
    %v4279 = vunpack.c.h.b16 %v3875
    %v4280 = vunpack.c.l.b16 %v3876
    %v4281 = vunpack.c.h.b16 %v3876
    %v4282 = vunpack.c.l.b16 %v3877
    %v4283 = vunpack.c.h.b16 %v3877
    %v4284 = vunpack.c.l.b16 %v3878
    %v4285 = vunpack.c.h.b16 %v3878
    %v4286 = vunpack.c.l.b16 %v3879
    %v4287 = vunpack.c.h.b16 %v3879
    %v4288 = vunpack.c.l.b16 %v3880
    %v4289 = vunpack.c.h.b16 %v3880
    %v4290 = vunpack.c.l.b16 %v3881
    %v4291 = vunpack.c.h.b16 %v3881
    %v4292 = vunpack.c.l.b16 %v3882
    %v4293 = vunpack.c.h.b16 %v3882
    %v4294 = vunpack.c.l.b16 %v3883
    %v4295 = vunpack.c.h.b16 %v3883
    %v4296 = vunpack.c.l.b16 %v3884
    %v4297 = vunpack.c.h.b16 %v3884
    %v4298 = vunpack.c.l.b16 %v3885
    %v4299 = vunpack.c.h.b16 %v3885
    %v4300 = vunpack.c.l.b16 %v3886
    %v4301 = vunpack.c.h.b16 %v3886
    %v4302 = vunpack.c.l.b16 %v3887
    %v4303 = vunpack.c.h.b16 %v3887
    %v4304 = vunpack.c.l.b16 %v3888
    %v4305 = vunpack.c.h.b16 %v3888
    %v4306 = vunpack.c.l.b16 %v3889
    %v4307 = vunpack.c.h.b16 %v3889
    %v4308 = vunpack.c.l.b16 %v3890
    %v4309 = vunpack.c.h.b16 %v3890
    %v4310 = vunpack.c.l.b16 %v3891
    %v4311 = vunpack.c.h.b16 %v3891
    %v4312 = vunpack.c.l.b16 %v3892
    %v4313 = vunpack.c.h.b16 %v3892
    %v4314 = vunpack.c.l.b16 %v3893
    %v4315 = vunpack.c.h.b16 %v3893
    %v4316 = vunpack.c.l.b16 %v3894
    %v4317 = vunpack.c.h.b16 %v3894
    %v4318 = vunpack.c.l.b16 %v3895
    %v4319 = vunpack.c.h.b16 %v3895
    %v4320 = vpack.c.b16 %v4068, %v4064
    %v4321 = vpack.c.b16 %v4069, %v4065
    %v4322 = vpack.c.b16 %v4070, %v4066
    %v4323 = vpack.c.b16 %v4071, %v4067
    %v4324 = vpack.c.b16 %v4076, %v4072
    %v4325 = vpack.c.b16 %v4077, %v4073
    %v4326 = vpack.c.b16 %v4078, %v4074
    %v4327 = vpack.c.b16 %v4079, %v4075
    %v4328 = vpack.c.b16 %v4084, %v4080
    %v4329 = vpack.c.b16 %v4085, %v4081
    %v4330 = vpack.c.b16 %v4086, %v4082
    %v4331 = vpack.c.b16 %v4087, %v4083
    %v4332 = vpack.c.b16 %v4092, %v4088
    %v4333 = vpack.c.b16 %v4093, %v4089
    %v4334 = vpack.c.b16 %v4094, %v4090
    %v4335 = vpack.c.b16 %v4095, %v4091
    %v4336 = vpack.c.b16 %v4100, %v4096
    %v4337 = vpack.c.b16 %v4101, %v4097
    %v4338 = vpack.c.b16 %v4102, %v4098
    %v4339 = vpack.c.b16 %v4103, %v4099
    %v4340 = vpack.c.b16 %v4108, %v4104
    %v4341 = vpack.c.b16 %v4109, %v4105
    %v4342 = vpack.c.b16 %v4110, %v4106
    %v4343 = vpack.c.b16 %v4111, %v4107
    %v4344 = vpack.c.b16 %v4116, %v4112
    %v4345 = vpack.c.b16 %v4117, %v4113
    %v4346 = vpack.c.b16 %v4118, %v4114
    %v4347 = vpack.c.b16 %v4119, %v4115
    %v4348 = vpack.c.b16 %v4124, %v4120
    %v4349 = vpack.c.b16 %v4125, %v4121
    %v4350 = vpack.c.b16 %v4126, %v4122
    %v4351 = vpack.c.b16 %v4127, %v4123
    %v4352 = vpack.c.b16 %v4132, %v4128
    %v4353 = vpack.c.b16 %v4133, %v4129
    %v4354 = vpack.c.b16 %v4134, %v4130
    %v4355 = vpack.c.b16 %v4135, %v4131
    %v4356 = vpack.c.b16 %v4140, %v4136
    %v4357 = vpack.c.b16 %v4141, %v4137
    %v4358 = vpack.c.b16 %v4142, %v4138
    %v4359 = vpack.c.b16 %v4143, %v4139
    %v4360 = vpack.c.b16 %v4148, %v4144
    %v4361 = vpack.c.b16 %v4149, %v4145
    %v4362 = vpack.c.b16 %v4150, %v4146
    %v4363 = vpack.c.b16 %v4151, %v4147
    %v4364 = vpack.c.b16 %v4156, %v4152
    %v4365 = vpack.c.b16 %v4157, %v4153
    %v4366 = vpack.c.b16 %v4158, %v4154
    %v4367 = vpack.c.b16 %v4159, %v4155
    %v4368 = vpack.c.b16 %v4164, %v4160
    %v4369 = vpack.c.b16 %v4165, %v4161
    %v4370 = vpack.c.b16 %v4166, %v4162
    %v4371 = vpack.c.b16 %v4167, %v4163
    %v4372 = vpack.c.b16 %v4172, %v4168
    %v4373 = vpack.c.b16 %v4173, %v4169
    %v4374 = vpack.c.b16 %v4174, %v4170
    %v4375 = vpack.c.b16 %v4175, %v4171
    %v4376 = vpack.c.b16 %v4180, %v4176
    %v4377 = vpack.c.b16 %v4181, %v4177
    %v4378 = vpack.c.b16 %v4182, %v4178
    %v4379 = vpack.c.b16 %v4183, %v4179
    %v4380 = vpack.c.b16 %v4188, %v4184
    %v4381 = vpack.c.b16 %v4189, %v4185
    %v4382 = vpack.c.b16 %v4190, %v4186
    %v4383 = vpack.c.b16 %v4191, %v4187
    %v4384 = vpack.c.b16 %v4196, %v4192
    %v4385 = vpack.c.b16 %v4197, %v4193
    %v4386 = vpack.c.b16 %v4198, %v4194
    %v4387 = vpack.c.b16 %v4199, %v4195
    %v4388 = vpack.c.b16 %v4204, %v4200
    %v4389 = vpack.c.b16 %v4205, %v4201
    %v4390 = vpack.c.b16 %v4206, %v4202
    %v4391 = vpack.c.b16 %v4207, %v4203
    %v4392 = vpack.c.b16 %v4212, %v4208
    %v4393 = vpack.c.b16 %v4213, %v4209
    %v4394 = vpack.c.b16 %v4214, %v4210
    %v4395 = vpack.c.b16 %v4215, %v4211
    %v4396 = vpack.c.b16 %v4220, %v4216
    %v4397 = vpack.c.b16 %v4221, %v4217
    %v4398 = vpack.c.b16 %v4222, %v4218
    %v4399 = vpack.c.b16 %v4223, %v4219
    %v4400 = vpack.c.b16 %v4228, %v4224
    %v4401 = vpack.c.b16 %v4229, %v4225
    %v4402 = vpack.c.b16 %v4230, %v4226
    %v4403 = vpack.c.b16 %v4231, %v4227
    %v4404 = vpack.c.b16 %v4236, %v4232
    %v4405 = vpack.c.b16 %v4237, %v4233
    %v4406 = vpack.c.b16 %v4238, %v4234
    %v4407 = vpack.c.b16 %v4239, %v4235
    %v4408 = vpack.c.b16 %v4244, %v4240
    %v4409 = vpack.c.b16 %v4245, %v4241
    %v4410 = vpack.c.b16 %v4246, %v4242
    %v4411 = vpack.c.b16 %v4247, %v4243
    %v4412 = vpack.c.b16 %v4252, %v4248
    %v4413 = vpack.c.b16 %v4253, %v4249
    %v4414 = vpack.c.b16 %v4254, %v4250
    %v4415 = vpack.c.b16 %v4255, %v4251
    %v4416 = vpack.c.b16 %v4260, %v4256
    %v4417 = vpack.c.b16 %v4261, %v4257
    %v4418 = vpack.c.b16 %v4262, %v4258
    %v4419 = vpack.c.b16 %v4263, %v4259
    %v4420 = vpack.c.b16 %v4268, %v4264
    %v4421 = vpack.c.b16 %v4269, %v4265
    %v4422 = vpack.c.b16 %v4270, %v4266
    %v4423 = vpack.c.b16 %v4271, %v4267
    %v4424 = vpack.c.b16 %v4276, %v4272
    %v4425 = vpack.c.b16 %v4277, %v4273
    %v4426 = vpack.c.b16 %v4278, %v4274
    %v4427 = vpack.c.b16 %v4279, %v4275
    %v4428 = vpack.c.b16 %v4284, %v4280
    %v4429 = vpack.c.b16 %v4285, %v4281
    %v4430 = vpack.c.b16 %v4286, %v4282
    %v4431 = vpack.c.b16 %v4287, %v4283
    %v4432 = vpack.c.b16 %v4292, %v4288
    %v4433 = vpack.c.b16 %v4293, %v4289
    %v4434 = vpack.c.b16 %v4294, %v4290
    %v4435 = vpack.c.b16 %v4295, %v4291
    %v4436 = vpack.c.b16 %v4300, %v4296
    %v4437 = vpack.c.b16 %v4301, %v4297
    %v4438 = vpack.c.b16 %v4302, %v4298
    %v4439 = vpack.c.b16 %v4303, %v4299
    %v4440 = vpack.c.b16 %v4308, %v4304
    %v4441 = vpack.c.b16 %v4309, %v4305
    %v4442 = vpack.c.b16 %v4310, %v4306
    %v4443 = vpack.c.b16 %v4311, %v4307
    %v4444 = vpack.c.b16 %v4316, %v4312
    %v4445 = vpack.c.b16 %v4317, %v4313
    %v4446 = vpack.c.b16 %v4318, %v4314
    %v4447 = vpack.c.b16 %v4319, %v4315
    %4576 = vmatprep.subr.bf16.mxu0 %v4321
    %4577 = vmatpush1.bf16.msra.mxu0 %v4320
    %4578 = vmatprep.subr.bf16.mxu0 %v4325
    %4579 = vmatpush1.bf16.msra.mxu0 %v4324
    %4580 = vmatprep.subr.bf16.mxu0 %v4329
    %4581 = vmatpush1.bf16.msra.mxu0 %v4328
    %4582 = vmatprep.subr.bf16.mxu0 %v4333
    %4583 = vmatpush1.bf16.msra.mxu0 %v4332
    %4584 = vmatprep.subr.bf16.mxu0 %v4337
    %4585 = vmatpush1.bf16.msra.mxu0 %v4336
    %4586 = vmatprep.subr.bf16.mxu0 %v4341
    %4587 = vmatpush1.bf16.msra.mxu0 %v4340
    %4588 = vmatprep.subr.bf16.mxu0 %v4345
    %4589 = vmatpush1.bf16.msra.mxu0 %v4344
    %4590 = vmatprep.subr.bf16.mxu0 %v4349
    %4591 = vmatpush1.bf16.msra.mxu0 %v4348
    %4592 = vmatprep.subr.bf16.mxu0 %v4353
    %4593 = vmatpush1.bf16.msra.mxu0 %v4352
    %4594 = vmatprep.subr.bf16.mxu0 %v4357
    %4595 = vmatpush1.bf16.msra.mxu0 %v4356
    %4596 = vmatprep.subr.bf16.mxu0 %v4361
    %4597 = vmatpush1.bf16.msra.mxu0 %v4360
    %4598 = vmatprep.subr.bf16.mxu0 %v4365
    %4599 = vmatpush1.bf16.msra.mxu0 %v4364
    %4600 = vmatprep.subr.bf16.mxu0 %v4369
    %4601 = vmatpush1.bf16.msra.mxu0 %v4368
    %4602 = vmatprep.subr.bf16.mxu0 %v4373
    %4603 = vmatpush1.bf16.msra.mxu0 %v4372
    %4604 = vmatprep.subr.bf16.mxu0 %v4377
    %4605 = vmatpush1.bf16.msra.mxu0 %v4376
    %4606 = vmatprep.subr.bf16.mxu0 %v4381
    %4607 = vmatpush1.bf16.msra.mxu0 %v4380
    %4608 = vmatprep.mubr.bf16.mxu0 %v3897
    %4609 = vmatmul.mubr.bf16.gmra.mrb[0].mxu0 %v3896
    %v4610 = vpop.f32.mrb[0].mxu0
    %v4611 = vadd.f32 %v3923, %v4610
    %v4612 = vpop.f32.mrb[0].mxu0
    %v4613 = vadd.f32 %v3927, %v4612
    %v4614 = vpop.f32.mrb[0].mxu0
    %v4615 = vadd.f32 %v3923, %v4614
    %v4616 = vpop.f32.mrb[0].mxu0
    %v4617 = vadd.f32 %v3927, %v4616
    %4618 = vdwg.mxu0
    %4619 = vmatprep.subr.bf16.mxu0 %v4385
    %4620 = vmatpush1.bf16.msra.mxu0 %v4384
    %4621 = vmatprep.subr.bf16.mxu0 %v4389
    %4622 = vmatpush1.bf16.msra.mxu0 %v4388
    %4623 = vmatprep.subr.bf16.mxu0 %v4393
    %4624 = vmatpush1.bf16.msra.mxu0 %v4392
    %4625 = vmatprep.subr.bf16.mxu0 %v4397
    %4626 = vmatpush1.bf16.msra.mxu0 %v4396
    %4627 = vmatprep.subr.bf16.mxu0 %v4401
    %4628 = vmatpush1.bf16.msra.mxu0 %v4400
    %4629 = vmatprep.subr.bf16.mxu0 %v4405
    %4630 = vmatpush1.bf16.msra.mxu0 %v4404
    %4631 = vmatprep.subr.bf16.mxu0 %v4409
    %4632 = vmatpush1.bf16.msra.mxu0 %v4408
    %4633 = vmatprep.subr.bf16.mxu0 %v4413
    %4634 = vmatpush1.bf16.msra.mxu0 %v4412
    %4635 = vmatprep.subr.bf16.mxu0 %v4417
    %4636 = vmatpush1.bf16.msra.mxu0 %v4416
    %4637 = vmatprep.subr.bf16.mxu0 %v4421
    %4638 = vmatpush1.bf16.msra.mxu0 %v4420
    %4639 = vmatprep.subr.bf16.mxu0 %v4425
    %4640 = vmatpush1.bf16.msra.mxu0 %v4424
    %4641 = vmatprep.subr.bf16.mxu0 %v4429
    %4642 = vmatpush1.bf16.msra.mxu0 %v4428
    %4643 = vmatprep.subr.bf16.mxu0 %v4433
    %4644 = vmatpush1.bf16.msra.mxu0 %v4432
    %4645 = vmatprep.subr.bf16.mxu0 %v4437
    %4646 = vmatpush1.bf16.msra.mxu0 %v4436
    %4647 = vmatprep.subr.bf16.mxu0 %v4441
    %4648 = vmatpush1.bf16.msra.mxu0 %v4440
    %4649 = vmatprep.subr.bf16.mxu0 %v4445
    %4650 = vmatpush1.bf16.msra.mxu0 %v4444
    %4651 = vmatprep.mubr.bf16.mxu0 %v3899
    %4652 = vmatmul.mubr.bf16.gmra.mrb[0].mxu0 %v3898
    %v4653 = vpop.f32.mrb[0].mxu0
    %v4654 = vadd.f32 %v4611, %v4653
    %v4655 = vpop.f32.mrb[0].mxu0
    %v4656 = vadd.f32 %v4613, %v4655
    %v4657 = vpop.f32.mrb[0].mxu0
    %v4658 = vadd.f32 %v4615, %v4657
    %v4659 = vpop.f32.mrb[0].mxu0
    %v4660 = vadd.f32 %v4617, %v4659
    %4661 = vdwg.mxu0
    %4662 = vmatprep.subr.bf16.mxu0 %v4323
    %4663 = vmatpush1.bf16.msra.mxu0 %v4322
    %4664 = vmatprep.subr.bf16.mxu0 %v4327
    %4665 = vmatpush1.bf16.msra.mxu0 %v4326
    %4666 = vmatprep.subr.bf16.mxu0 %v4331
    %4667 = vmatpush1.bf16.msra.mxu0 %v4330
    %4668 = vmatprep.subr.bf16.mxu0 %v4335
    %4669 = vmatpush1.bf16.msra.mxu0 %v4334
    %4670 = vmatprep.subr.bf16.mxu0 %v4339
    %4671 = vmatpush1.bf16.msra.mxu0 %v4338
    %4672 = vmatprep.subr.bf16.mxu0 %v4343
    %4673 = vmatpush1.bf16.msra.mxu0 %v4342
    %4674 = vmatprep.subr.bf16.mxu0 %v4347
    %4675 = vmatpush1.bf16.msra.mxu0 %v4346
    %4676 = vmatprep.subr.bf16.mxu0 %v4351
    %4677 = vmatpush1.bf16.msra.mxu0 %v4350
    %4678 = vmatprep.subr.bf16.mxu0 %v4355
    %4679 = vmatpush1.bf16.msra.mxu0 %v4354
    %4680 = vmatprep.subr.bf16.mxu0 %v4359
    %4681 = vmatpush1.bf16.msra.mxu0 %v4358
    %4682 = vmatprep.subr.bf16.mxu0 %v4363
    %4683 = vmatpush1.bf16.msra.mxu0 %v4362
    %4684 = vmatprep.subr.bf16.mxu0 %v4367
    %4685 = vmatpush1.bf16.msra.mxu0 %v4366
    %4686 = vmatprep.subr.bf16.mxu0 %v4371
    %4687 = vmatpush1.bf16.msra.mxu0 %v4370
    %4688 = vmatprep.subr.bf16.mxu0 %v4375
    %4689 = vmatpush1.bf16.msra.mxu0 %v4374
    %4690 = vmatprep.subr.bf16.mxu0 %v4379
    %4691 = vmatpush1.bf16.msra.mxu0 %v4378
    %4692 = vmatprep.subr.bf16.mxu0 %v4383
    %4693 = vmatpush1.bf16.msra.mxu0 %v4382
    %4694 = vmatprep.mubr.bf16.mxu0 %v3897
    %4695 = vmatmul.mubr.bf16.gmra.mrb[0].mxu0 %v3896
    %v4696 = vpop.f32.mrb[0].mxu0
    %v4697 = vadd.f32 %v3931, %v4696
    %v4698 = vpop.f32.mrb[0].mxu0
    %v4699 = vadd.f32 %v3935, %v4698
    %v4700 = vpop.f32.mrb[0].mxu0
    %v4701 = vadd.f32 %v3931, %v4700
    %v4702 = vpop.f32.mrb[0].mxu0
    %v4703 = vadd.f32 %v3935, %v4702
    %4704 = vdwg.mxu0
    %4705 = vmatprep.subr.bf16.mxu0 %v4387
    %4706 = vmatpush1.bf16.msra.mxu0 %v4386
    %4707 = vmatprep.subr.bf16.mxu0 %v4391
    %4708 = vmatpush1.bf16.msra.mxu0 %v4390
    %4709 = vmatprep.subr.bf16.mxu0 %v4395
    %4710 = vmatpush1.bf16.msra.mxu0 %v4394
    %4711 = vmatprep.subr.bf16.mxu0 %v4399
    %4712 = vmatpush1.bf16.msra.mxu0 %v4398
    %4713 = vmatprep.subr.bf16.mxu0 %v4403
    %4714 = vmatpush1.bf16.msra.mxu0 %v4402
    %4715 = vmatprep.subr.bf16.mxu0 %v4407
    %4716 = vmatpush1.bf16.msra.mxu0 %v4406
    %4717 = vmatprep.subr.bf16.mxu0 %v4411
    %4718 = vmatpush1.bf16.msra.mxu0 %v4410
    %4719 = vmatprep.subr.bf16.mxu0 %v4415
    %4720 = vmatpush1.bf16.msra.mxu0 %v4414
    %4721 = vmatprep.subr.bf16.mxu0 %v4419
    %4722 = vmatpush1.bf16.msra.mxu0 %v4418
    %4723 = vmatprep.subr.bf16.mxu0 %v4423
    %4724 = vmatpush1.bf16.msra.mxu0 %v4422
    %4725 = vmatprep.subr.bf16.mxu0 %v4427
    %4726 = vmatpush1.bf16.msra.mxu0 %v4426
    %4727 = vmatprep.subr.bf16.mxu0 %v4431
    %4728 = vmatpush1.bf16.msra.mxu0 %v4430
    %4729 = vmatprep.subr.bf16.mxu0 %v4435
    %4730 = vmatpush1.bf16.msra.mxu0 %v4434
    %4731 = vmatprep.subr.bf16.mxu0 %v4439
    %4732 = vmatpush1.bf16.msra.mxu0 %v4438
    %4733 = vmatprep.subr.bf16.mxu0 %v4443
    %4734 = vmatpush1.bf16.msra.mxu0 %v4442
    %4735 = vmatprep.subr.bf16.mxu0 %v4447
    %4736 = vmatpush1.bf16.msra.mxu0 %v4446
    %4737 = vmatprep.mubr.bf16.mxu0 %v3899
    %4738 = vmatmul.mubr.bf16.gmra.mrb[0].mxu0 %v3898
    %v4739 = vpop.f32.mrb[0].mxu0
    %v4740 = vadd.f32 %v4697, %v4739
    %v4741 = vpop.f32.mrb[0].mxu0
    %v4742 = vadd.f32 %v4699, %v4741
    %v4743 = vpop.f32.mrb[0].mxu0
    %v4744 = vadd.f32 %v4701, %v4743
    %v4745 = vpop.f32.mrb[0].mxu0
    %v4746 = vadd.f32 %v4703, %v4745
    %4747 = vdwg.mxu0
    %v4748 = vmul.f32 %v4654, 0.5
    %v4749 = vmul.f32 %v4656, 0.5
    %v4750 = vmul.f32 %v4740, 0.5
    %v4751 = vmul.f32 %v4742, 0.5
    %v4752 = vmul.f32 %v4658, 0.5
    %v4753 = vmul.f32 %v4660, 0.5
    %v4754 = vmul.f32 %v4744, 0.5
    %v4755 = vmul.f32 %v4746, 0.5
    %v4756 = vtanh.pop %v4748
    %v4757 = vtanh.pop %v4749
    %v4758 = vtanh.pop %v4750
    %v4759 = vtanh.pop %v4751
    %v4760 = vtanh.pop %v4752
    %v4761 = vtanh.pop %v4753
    %v4762 = vtanh.pop %v4754
    %v4763 = vtanh.pop %v4755
    %v4764 = vmul.f32 %v4756, 0.5
    %v4765 = vmul.f32 %v4757, 0.5
    %v4766 = vmul.f32 %v4758, 0.5
    %v4767 = vmul.f32 %v4759, 0.5
    %v4768 = vmul.f32 %v4760, 0.5
    %v4769 = vmul.f32 %v4761, 0.5
    %v4770 = vmul.f32 %v4762, 0.5
    %v4771 = vmul.f32 %v4763, 0.5
    %v4772 = vadd.f32 %v4764, 0.5
    %v4773 = vadd.f32 %v4765, 0.5
    %v4774 = vadd.f32 %v4766, 0.5
    %v4775 = vadd.f32 %v4767, 0.5
    %v4776 = vadd.f32 %v4768, 0.5
    %v4777 = vadd.f32 %v4769, 0.5
    %v4778 = vadd.f32 %v4770, 0.5
    %v4779 = vadd.f32 %v4771, 0.5
    %v4780 = vld [vmem:[#allocation10] sm:$0xf]
    %v4781 = vld [vmem:[#allocation10 + $0x4] sm:$0xf]
    %v4782 = vld [vmem:[#allocation10 + $0x8] sm:$0xf]
    %v4783 = vld [vmem:[#allocation10 + $0xc] sm:$0xf]
    %v4784 = vld [vmem:[#allocation10 + $0x10] sm:$0xf]
    %v4785 = vld [vmem:[#allocation10 + $0x14] sm:$0xf]
    %v4786 = vld [vmem:[#allocation10 + $0x18] sm:$0xf]
    %v4787 = vld [vmem:[#allocation10 + $0x1c] sm:$0xf]
    %v4788 = vld [vmem:[#allocation10 + $0x20] sm:$0xf]
    %v4789 = vld [vmem:[#allocation10 + $0x24] sm:$0xf]
    %v4790 = vld [vmem:[#allocation10 + $0x28] sm:$0xf]
    %v4791 = vld [vmem:[#allocation10 + $0x2c] sm:$0xf]
    %v4792 = vld [vmem:[#allocation10 + $0x30] sm:$0xf]
    %v4793 = vld [vmem:[#allocation10 + $0x34] sm:$0xf]
    %v4794 = vld [vmem:[#allocation10 + $0x38] sm:$0xf]
    %v4795 = vld [vmem:[#allocation10 + $0x3c] sm:$0xf]
    %v4796 = vld [vmem:[#allocation10 + $0x40] sm:$0xf]
    %v4797 = vld [vmem:[#allocation10 + $0x44] sm:$0xf]
    %v4798 = vld [vmem:[#allocation10 + $0x48] sm:$0xf]
    %v4799 = vld [vmem:[#allocation10 + $0x4c] sm:$0xf]
    %v4800 = vld [vmem:[#allocation10 + $0x50] sm:$0xf]
    %v4801 = vld [vmem:[#allocation10 + $0x54] sm:$0xf]
    %v4802 = vld [vmem:[#allocation10 + $0x58] sm:$0xf]
    %v4803 = vld [vmem:[#allocation10 + $0x5c] sm:$0xf]
    %v4804 = vld [vmem:[#allocation10 + $0x60] sm:$0xf]
    %v4805 = vld [vmem:[#allocation10 + $0x64] sm:$0xf]
    %v4806 = vld [vmem:[#allocation10 + $0x68] sm:$0xf]
    %v4807 = vld [vmem:[#allocation10 + $0x6c] sm:$0xf]
    %v4808 = vld [vmem:[#allocation10 + $0x70] sm:$0xf]
    %v4809 = vld [vmem:[#allocation10 + $0x74] sm:$0xf]
    %v4810 = vld [vmem:[#allocation10 + $0x78] sm:$0xf]
    %v4811 = vld [vmem:[#allocation10 + $0x7c] sm:$0xf]
    %v4812 = vld [vmem:[#allocation10 + $0x80] sm:$0xf]
    %v4813 = vld [vmem:[#allocation10 + $0x84] sm:$0xf]
    %v4814 = vld [vmem:[#allocation10 + $0x88] sm:$0xf]
    %v4815 = vld [vmem:[#allocation10 + $0x8c] sm:$0xf]
    %v4816 = vld [vmem:[#allocation10 + $0x90] sm:$0xf]
    %v4817 = vld [vmem:[#allocation10 + $0x94] sm:$0xf]
    %v4818 = vld [vmem:[#allocation10 + $0x98] sm:$0xf]
    %v4819 = vld [vmem:[#allocation10 + $0x9c] sm:$0xf]
    %v4820 = vld [vmem:[#allocation10 + $0xa0] sm:$0xf]
    %v4821 = vld [vmem:[#allocation10 + $0xa4] sm:$0xf]
    %v4822 = vld [vmem:[#allocation10 + $0xa8] sm:$0xf]
    %v4823 = vld [vmem:[#allocation10 + $0xac] sm:$0xf]
    %v4824 = vld [vmem:[#allocation10 + $0xb0] sm:$0xf]
    %v4825 = vld [vmem:[#allocation10 + $0xb4] sm:$0xf]
    %v4826 = vld [vmem:[#allocation10 + $0xb8] sm:$0xf]
    %v4827 = vld [vmem:[#allocation10 + $0xbc] sm:$0xf]
    %v4828 = vld [vmem:[#allocation10 + $0xc0] sm:$0xf]
    %v4829 = vld [vmem:[#allocation10 + $0xc4] sm:$0xf]
    %v4830 = vld [vmem:[#allocation10 + $0xc8] sm:$0xf]
    %v4831 = vld [vmem:[#allocation10 + $0xcc] sm:$0xf]
    %v4832 = vld [vmem:[#allocation10 + $0xd0] sm:$0xf]
    %v4833 = vld [vmem:[#allocation10 + $0xd4] sm:$0xf]
    %v4834 = vld [vmem:[#allocation10 + $0xd8] sm:$0xf]
    %v4835 = vld [vmem:[#allocation10 + $0xdc] sm:$0xf]
    %v4836 = vld [vmem:[#allocation10 + $0xe0] sm:$0xf]
    %v4837 = vld [vmem:[#allocation10 + $0xe4] sm:$0xf]
    %v4838 = vld [vmem:[#allocation10 + $0xe8] sm:$0xf]
    %v4839 = vld [vmem:[#allocation10 + $0xec] sm:$0xf]
    %v4840 = vld [vmem:[#allocation10 + $0xf0] sm:$0xf]
    %v4841 = vld [vmem:[#allocation10 + $0xf4] sm:$0xf]
    %v4842 = vld [vmem:[#allocation10 + $0xf8] sm:$0xf]
    %v4843 = vld [vmem:[#allocation10 + $0xfc] sm:$0xf]
    %v4844 = vld [vmem:[#allocation11] sm:$0x1]
    %v4845 = vpack.c.bf16 %v4776, %v4772
    %v4846 = vpack.c.bf16 %v4777, %v4773
    %v4847 = vpack.c.bf16 %v4778, %v4774
    %v4848 = vpack.c.bf16 %v4779, %v4775
    %v4850 = vlaneseq
    %v4851 = vshrl.u32 %v4850, 7
    %v4852 = vsub.s32 0, %v4851
    %v4853 = vrot.slane %v4844, %v4852
    %v4919 = vunpack.c.l.b16 %v4780
    %v4920 = vunpack.c.l.b16 %v4781
    %v4921 = vunpack.c.l.b16 %v4782
    %v4922 = vunpack.c.l.b16 %v4783
    %v4923 = vunpack.c.l.b16 %v4784
    %v4924 = vunpack.c.l.b16 %v4785
    %v4925 = vunpack.c.l.b16 %v4786
    %v4926 = vunpack.c.l.b16 %v4787
    %v4927 = vunpack.c.l.b16 %v4788
    %v4928 = vunpack.c.l.b16 %v4789
    %v4929 = vunpack.c.l.b16 %v4790
    %v4930 = vunpack.c.l.b16 %v4791
    %v4931 = vunpack.c.l.b16 %v4792
    %v4932 = vunpack.c.l.b16 %v4793
    %v4933 = vunpack.c.l.b16 %v4794
    %v4934 = vunpack.c.l.b16 %v4795
    %v4935 = vunpack.c.l.b16 %v4796
    %v4936 = vunpack.c.l.b16 %v4797
    %v4937 = vunpack.c.l.b16 %v4798
    %v4938 = vunpack.c.l.b16 %v4799
    %v4939 = vunpack.c.l.b16 %v4800
    %v4940 = vunpack.c.l.b16 %v4801
    %v4941 = vunpack.c.l.b16 %v4802
    %v4942 = vunpack.c.l.b16 %v4803
    %v4943 = vunpack.c.l.b16 %v4804
    %v4944 = vunpack.c.l.b16 %v4805
    %v4945 = vunpack.c.l.b16 %v4806
    %v4946 = vunpack.c.l.b16 %v4807
    %v4947 = vunpack.c.l.b16 %v4808
    %v4948 = vunpack.c.l.b16 %v4809
    %v4949 = vunpack.c.l.b16 %v4810
    %v4950 = vunpack.c.l.b16 %v4811
    %v4951 = vunpack.c.l.b16 %v4812
    %v4952 = vunpack.c.l.b16 %v4813
    %v4953 = vunpack.c.l.b16 %v4814
    %v4954 = vunpack.c.l.b16 %v4815
    %v4955 = vunpack.c.l.b16 %v4816
    %v4956 = vunpack.c.l.b16 %v4817
    %v4957 = vunpack.c.l.b16 %v4818
    %v4958 = vunpack.c.l.b16 %v4819
    %v4959 = vunpack.c.l.b16 %v4820
    %v4960 = vunpack.c.l.b16 %v4821
    %v4961 = vunpack.c.l.b16 %v4822
    %v4962 = vunpack.c.l.b16 %v4823
    %v4963 = vunpack.c.l.b16 %v4824
    %v4964 = vunpack.c.l.b16 %v4825
    %v4965 = vunpack.c.l.b16 %v4826
    %v4966 = vunpack.c.l.b16 %v4827
    %v4967 = vunpack.c.l.b16 %v4828
    %v4968 = vunpack.c.l.b16 %v4829
    %v4969 = vunpack.c.l.b16 %v4830
    %v4970 = vunpack.c.l.b16 %v4831
    %v4971 = vunpack.c.l.b16 %v4832
    %v4972 = vunpack.c.l.b16 %v4833
    %v4973 = vunpack.c.l.b16 %v4834
    %v4974 = vunpack.c.l.b16 %v4835
    %v4975 = vunpack.c.l.b16 %v4836
    %v4976 = vunpack.c.l.b16 %v4837
    %v4977 = vunpack.c.l.b16 %v4838
    %v4978 = vunpack.c.l.b16 %v4839
    %v4979 = vunpack.c.l.b16 %v4840
    %v4980 = vunpack.c.l.b16 %v4841
    %v4981 = vunpack.c.l.b16 %v4842
    %v4982 = vunpack.c.l.b16 %v4843
    %v4983 = vpack.c.b16 %v4920, %v4919
    %v4984 = vpack.c.b16 %v4922, %v4921
    %v4985 = vpack.c.b16 %v4924, %v4923
    %v4986 = vpack.c.b16 %v4926, %v4925
    %v4987 = vpack.c.b16 %v4928, %v4927
    %v4988 = vpack.c.b16 %v4930, %v4929
    %v4989 = vpack.c.b16 %v4932, %v4931
    %v4990 = vpack.c.b16 %v4934, %v4933
    %v4991 = vpack.c.b16 %v4936, %v4935
    %v4992 = vpack.c.b16 %v4938, %v4937
    %v4993 = vpack.c.b16 %v4940, %v4939
    %v4994 = vpack.c.b16 %v4942, %v4941
    %v4995 = vpack.c.b16 %v4944, %v4943
    %v4996 = vpack.c.b16 %v4946, %v4945
    %v4997 = vpack.c.b16 %v4948, %v4947
    %v4998 = vpack.c.b16 %v4950, %v4949
    %v4999 = vpack.c.b16 %v4952, %v4951
    %v5000 = vpack.c.b16 %v4954, %v4953
    %v5001 = vpack.c.b16 %v4956, %v4955
    %v5002 = vpack.c.b16 %v4958, %v4957
    %v5003 = vpack.c.b16 %v4960, %v4959
    %v5004 = vpack.c.b16 %v4962, %v4961
    %v5005 = vpack.c.b16 %v4964, %v4963
    %v5006 = vpack.c.b16 %v4966, %v4965
    %v5007 = vpack.c.b16 %v4968, %v4967
    %v5008 = vpack.c.b16 %v4970, %v4969
    %v5009 = vpack.c.b16 %v4972, %v4971
    %v5010 = vpack.c.b16 %v4974, %v4973
    %v5011 = vpack.c.b16 %v4976, %v4975
    %v5012 = vpack.c.b16 %v4978, %v4977
    %v5013 = vpack.c.b16 %v4980, %v4979
    %v5014 = vpack.c.b16 %v4982, %v4981
    %5047 = vmatprep.subr.bf16.mxu0 0
    %5048 = vmatpush1.bf16.msra.mxu0 %v4983
    %5049 = vmatprep.subr.bf16.mxu0 0
    %5050 = vmatpush1.bf16.msra.mxu0 %v4984
    %5051 = vmatprep.subr.bf16.mxu0 0
    %5052 = vmatpush1.bf16.msra.mxu0 %v4985
    %5053 = vmatprep.subr.bf16.mxu0 0
    %5054 = vmatpush1.bf16.msra.mxu0 %v4986
    %5055 = vmatprep.subr.bf16.mxu0 0
    %5056 = vmatpush1.bf16.msra.mxu0 %v4987
    %5057 = vmatprep.subr.bf16.mxu0 0
    %5058 = vmatpush1.bf16.msra.mxu0 %v4988
    %5059 = vmatprep.subr.bf16.mxu0 0
    %5060 = vmatpush1.bf16.msra.mxu0 %v4989
    %5061 = vmatprep.subr.bf16.mxu0 0
    %5062 = vmatpush1.bf16.msra.mxu0 %v4990
    %5063 = vmatprep.subr.bf16.mxu0 0
    %5064 = vmatpush1.bf16.msra.mxu0 %v4991
    %5065 = vmatprep.subr.bf16.mxu0 0
    %5066 = vmatpush1.bf16.msra.mxu0 %v4992
    %5067 = vmatprep.subr.bf16.mxu0 0
    %5068 = vmatpush1.bf16.msra.mxu0 %v4993
    %5069 = vmatprep.subr.bf16.mxu0 0
    %5070 = vmatpush1.bf16.msra.mxu0 %v4994
    %5071 = vmatprep.subr.bf16.mxu0 0
    %5072 = vmatpush1.bf16.msra.mxu0 %v4995
    %5073 = vmatprep.subr.bf16.mxu0 0
    %5074 = vmatpush1.bf16.msra.mxu0 %v4996
    %5075 = vmatprep.subr.bf16.mxu0 0
    %5076 = vmatpush1.bf16.msra.mxu0 %v4997
    %5077 = vmatprep.subr.bf16.mxu0 0
    %5078 = vmatpush1.bf16.msra.mxu0 %v4998
    %5079 = vmatprep.mubr.bf16.mxu0 %v4846
    %5080 = vmatmul.mubr.bf16.gmra.mrb[0].mxu0 %v4845
    %v5081 = vpop.f32.mrb[0].mxu0
    %v5082 = vadd.f32 %v4853, %v5081
    %v5083 = vpop.f32.mrb[0].mxu0
    %v5084 = vpop.f32.mrb[0].mxu0
    %v5085 = vadd.f32 %v4853, %v5084
    %v5086 = vpop.f32.mrb[0].mxu0
    %5087 = vdwg.mxu0
    %5088 = vmatprep.subr.bf16.mxu0 0
    %5089 = vmatpush1.bf16.msra.mxu0 %v4999
    %5090 = vmatprep.subr.bf16.mxu0 0
    %5091 = vmatpush1.bf16.msra.mxu0 %v5000
    %5092 = vmatprep.subr.bf16.mxu0 0
    %5093 = vmatpush1.bf16.msra.mxu0 %v5001
    %5094 = vmatprep.subr.bf16.mxu0 0
    %5095 = vmatpush1.bf16.msra.mxu0 %v5002
    %5096 = vmatprep.subr.bf16.mxu0 0
    %5097 = vmatpush1.bf16.msra.mxu0 %v5003
    %5098 = vmatprep.subr.bf16.mxu0 0
    %5099 = vmatpush1.bf16.msra.mxu0 %v5004
    %5100 = vmatprep.subr.bf16.mxu0 0
    %5101 = vmatpush1.bf16.msra.mxu0 %v5005
    %5102 = vmatprep.subr.bf16.mxu0 0
    %5103 = vmatpush1.bf16.msra.mxu0 %v5006
    %5104 = vmatprep.subr.bf16.mxu0 0
    %5105 = vmatpush1.bf16.msra.mxu0 %v5007
    %5106 = vmatprep.subr.bf16.mxu0 0
    %5107 = vmatpush1.bf16.msra.mxu0 %v5008
    %5108 = vmatprep.subr.bf16.mxu0 0
    %5109 = vmatpush1.bf16.msra.mxu0 %v5009
    %5110 = vmatprep.subr.bf16.mxu0 0
    %5111 = vmatpush1.bf16.msra.mxu0 %v5010
    %5112 = vmatprep.subr.bf16.mxu0 0
    %5113 = vmatpush1.bf16.msra.mxu0 %v5011
    %5114 = vmatprep.subr.bf16.mxu0 0
    %5115 = vmatpush1.bf16.msra.mxu0 %v5012
    %5116 = vmatprep.subr.bf16.mxu0 0
    %5117 = vmatpush1.bf16.msra.mxu0 %v5013
    %5118 = vmatprep.subr.bf16.mxu0 0
    %5119 = vmatpush1.bf16.msra.mxu0 %v5014
    %5120 = vmatprep.mubr.bf16.mxu0 %v4848
    %5121 = vmatmul.mubr.bf16.gmra.mrb[0].mxu0 %v4847
    %v5122 = vpop.f32.mrb[0].mxu0
    %v5123 = vadd.f32 %v5082, %v5122
    %v5124 = vpop.f32.mrb[0].mxu0
    %v5125 = vpop.f32.mrb[0].mxu0
    %v5126 = vadd.f32 %v5085, %v5125
    %v5127 = vpop.f32.mrb[0].mxu0
    %5128 = vdwg.mxu0
    %v5129 = vlaneseq
    %v5130 = vand.u32 %v5129, 127
    %vm5131 = vcmp.lt.s32.totalorder %v5130, 10
    %v5132 = vsel %vm5131, %v5123, -1e+30
    %v5133 = vsel %vm5131, %v5126, -1e+30
    %5134 = vmax.xlane.f32.xlu0 %v5132
    %v5135 = vpop.xlane.xlu0 %5134
    %5136 = vmax.xlane.f32.xlu0 %v5133
    %v5137 = vpop.xlane.xlu0 %5136
    %v5138 = vsub.f32 %v5132, %v5135
    %v5139 = vsub.f32 %v5133, %v5137
    %v5140 = vmul.f32 %v5138, 1.442695
    %v5141 = vpow.pop %v5140
    %v5142 = vmul.f32 %v5139, 1.442695
    %v5143 = vpow.pop %v5142
    %5144 = vadd.xlane.f32.xlu0 %v5141
    %v5145 = vpop.xlane.xlu0 %5144
    %5146 = vadd.xlane.f32.xlu0 %v5143
    %v5147 = vpop.xlane.xlu0 %5146
    %v5148 = vrcp.pop %v5145
    %v5149 = vrcp.pop %v5147
    %v5150 = vmul.f32 %v5141, %v5148
    %v5151 = vmul.f32 %v5143, %v5149
    %v5152 = vpack.c.bf16 %v5151, %v5150
    %v5154 = vunpack.c.l.b16 %v5152
    %v5155 = vunpack.c.h.b16 %v5152
    %v5156 = vpack.c.b16 %v5154, %v5154
    %v5157 = vpack.c.b16 %v5155, %v5155
    %5160 = vst [vmem:[#allocation13] sm:$0xf] %v5156
    %5161 = vst [vmem:[#allocation13 + $0x4] sm:$0xf] %v5157
    // Predicated region
    $region50: #{tpu_custom_call.1} parent=1 // pred_check
      _
    $region51: #{tpu_custom_call.1} parent=1 // pred_check_branch
      %5163 = sbr.rel (0) target = $region53
    $region52: #{tpu_custom_call.1} parent=1 // pred_region
      %s5165 = ssub.s32 128, 128
      %5166 = vsyncadd [#allocation4], %s5165
      %s5167 = sshll.u32 [#allocation13], 4
      %s5168 = int_to_ptr.vmem [resolvable:$true] %s5167
      %5173 = dma.vmem_to_hbm [thread:$0]  %s5168, 128, %s6, [#allocation4], 64, 64, 4
    $region53: #{tpu_custom_call.1} parent=1 // pred_fallthru
      _
    // Predicated region
    $region54: #{tpu_custom_call.1} parent=1 // pred_check
      _
    $region55: #{tpu_custom_call.1} parent=1 // pred_check_branch
      %5175 = sbr.rel (0) target = $region57
    $region56: #{tpu_custom_call.1} parent=1 // pred_region
      %5176 = dma.done [#allocation4], 128
    $region57: #{tpu_custom_call.1} parent=1 // pred_fallthru
      _
    %5177 = vsyncpa [#allocation3], 1
    %5178 = vsyncpa [#allocation6], 1
    %5179 = vsyncpa [#allocation9], 1
    %5180 = vsyncpa [#allocation12], 1
    %5181 = vsyncpa [#allocation4], 1

// kernel: tpu_custom_call.1
$region0: #{tpu_custom_call.1}
  #allocation0 [shape = 'u32[]', space=smem, size = 0x4, offset = 0x4, fixed_abs, tag = 'smem constant byte address 0x4 - core index']
  #allocation1 [shape = 'u32[144,128]{1,0:T(1,128)}', space=vmem, size = 0x12000, scoped, tag = 'internal scratch']
  %s0 = inlined_call_operand.hbm [shape: bf16[16,784], index: 0, kind: input, shape index: {}]
  %s1 = inlined_call_operand.hbm [shape: bf16[784,512], index: 1, kind: input, shape index: {}]
  %s2 = inlined_call_operand.hbm [shape: f32[4,512], index: 2, kind: input, shape index: {}]
  %s3 = inlined_call_operand.hbm [shape: bf16[3,512,512], index: 3, kind: input, shape index: {}]
  %s4 = inlined_call_operand.hbm [shape: bf16[512,128], index: 4, kind: input, shape index: {}]
  %s5 = inlined_call_operand.hbm [shape: f32[1,128], index: 5, kind: input, shape index: {}]
  %s6 = inlined_call_operand.hbm [shape: bf16[16,128], index: 6, kind: output, shape index: {}]
  %s7 = sld [smem:[#allocation0]]
  $region58: #{tpu_custom_call.1} parent=0
    _
  %s9 = ssub.s32 1, %s7
  %s10 = scalar_select 0, %s9, %s7
  $region1: #{tpu_custom_call.1} parent=0
    #allocation2 [shape = 'u8[28672]{0}', space=vmem, size = 0x7000, scoped, tag = 'input window, operand 0, single buffered']
    #allocation3 [shape = 's32[1]{0}', space=sflag, size = 0x4, scoped, tag = 'scoped memory for tpu_custom_call.1']
    #allocation4 [shape = 's32[1]{0}', space=sflag, size = 0x4, scoped, tag = 'scoped memory for tpu_custom_call.1']
    #allocation5 [shape = 'u8[802816]{0}', space=vmem, size = 0xc4000, scoped, tag = 'input window, operand 1, single buffered']
    #allocation6 [shape = 's32[1]{0}', space=sflag, size = 0x4, scoped, tag = 'scoped memory for tpu_custom_call.1']
    #allocation7 [shape = 'u8[8192]{0}', space=vmem, size = 0x2000, scoped, tag = 'input window, operand 2, single buffered']
    #allocation8 [shape = 'u8[1572864]{0}', space=vmem, size = 0x180000, scoped, tag = 'input window, operand 3, single buffered']
    #allocation9 [shape = 's32[1]{0}', space=sflag, size = 0x4, scoped, tag = 'scoped memory for tpu_custom_call.1']
    #allocation10 [shape = 'u8[131072]{0}', space=vmem, size = 0x20000, scoped, tag = 'input window, operand 4, single buffered']
    #allocation11 [shape = 'u8[512]{0}', space=vmem, size = 0x400, scoped, tag = 'input window, operand 5, single buffered']
    #allocation12 [shape = 's32[1]{0}', space=sflag, size = 0x4, scoped, tag = 'scoped memory for tpu_custom_call.1']
    #allocation13 [shape = 'u8[4096]{0}', space=vmem, size = 0x1000, scoped, tag = 'output window, operand 0, single buffered']
    %11 = vsyncpa [#allocation3], 0
    %12 = vsyncpa [#allocation6], 0
    %13 = vsyncpa [#allocation9], 0
    %14 = vsyncpa [#allocation12], 0
    %15 = vsyncpa [#allocation4], 0
    // Predicated region
    $region2: #{tpu_custom_call.1} parent=1 // pred_check
      _
    $region3: #{tpu_custom_call.1} parent=1 // pred_check_branch
      %17 = sbr.rel (0) target = $region5
    $region4: #{tpu_custom_call.1} parent=1 // pred_region
      %s19 = ssub.s32 896, 896
      %20 = vsyncadd [#allocation3], %s19
      %s21 = sshll.u32 [#allocation2], 4
      %s22 = int_to_ptr.vmem [resolvable:$true] %s21
      %27 = dma.hbm_to_vmem [thread:$0]  %s0, 896, %s22, [#allocation3], 448, 448, 28
    $region5: #{tpu_custom_call.1} parent=1 // pred_fallthru
      _
    // Predicated region
    $region6: #{tpu_custom_call.1} parent=1 // pred_check
      _
    $region7: #{tpu_custom_call.1} parent=1 // pred_check_branch
      %29 = sbr.rel (0) target = $region9
    $region8: #{tpu_custom_call.1} parent=1 // pred_region
      %s31 = ssub.s32 25088, 25088
      %32 = vsyncadd [#allocation6], %s31
      %s33 = sshll.u32 [#allocation5], 4
      %s34 = int_to_ptr.vmem [resolvable:$true] %s33
      %39 = dma.hbm_to_vmem [thread:$0]  %s1, 25088, %s34, [#allocation6], 256, 256, 16
    $region9: #{tpu_custom_call.1} parent=1 // pred_fallthru
      _
    // Predicated region
    $region10: #{tpu_custom_call.1} parent=1 // pred_check
      _
    $region11: #{tpu_custom_call.1} parent=1 // pred_check_branch
      %41 = sbr.rel (0) target = $region13
    $region12: #{tpu_custom_call.1} parent=1 // pred_region
      %s43 = ssub.s32 256, 256
      %44 = vsyncadd [#allocation6], %s43
      %s46 = sshll.u32 [#allocation7], 4
      %s47 = int_to_ptr.vmem [resolvable:$true] %s46
      %49 = dma.hbm_to_vmem [thread:$0]  %s2, 256, %s47, [#allocation6]
    $region13: #{tpu_custom_call.1} parent=1 // pred_fallthru
      _
    // Predicated region
    $region14: #{tpu_custom_call.1} parent=1 // pred_check
      _
    $region15: #{tpu_custom_call.1} parent=1 // pred_check_branch
      %51 = sbr.rel (0) target = $region17
    $region16: #{tpu_custom_call.1} parent=1 // pred_region
      %s53 = ssub.s32 49152, 49152
      %54 = vsyncadd [#allocation9], %s53
      %s55 = sshll.u32 [#allocation8], 4
      %s56 = int_to_ptr.vmem [resolvable:$true] %s55
      %61 = dma.hbm_to_vmem [thread:$0]  %s3, 49152, %s56, [#allocation9], 256, 256, 16
    $region17: #{tpu_custom_call.1} parent=1 // pred_fallthru
      _
    // Predicated region
    $region18: #{tpu_custom_call.1} parent=1 // pred_check
      _
    $region19: #{tpu_custom_call.1} parent=1 // pred_check_branch
      %63 = sbr.rel (0) target = $region21
    $region20: #{tpu_custom_call.1} parent=1 // pred_region
      %s65 = ssub.s32 4096, 4096
      %66 = vsyncadd [#allocation9], %s65
      %s67 = sshll.u32 [#allocation10], 4
      %s68 = int_to_ptr.vmem [resolvable:$true] %s67
      %73 = dma.hbm_to_vmem [thread:$0]  %s4, 4096, %s68, [#allocation9], 64, 64, 4
    $region21: #{tpu_custom_call.1} parent=1 // pred_fallthru
      _
    // Predicated region
    $region22: #{tpu_custom_call.1} parent=1 // pred_check
      _
    $region23: #{tpu_custom_call.1} parent=1 // pred_check_branch
      %75 = sbr.rel (0) target = $region25
    $region24: #{tpu_custom_call.1} parent=1 // pred_region
      %s77 = ssub.s32 16, 16
      %78 = vsyncadd [#allocation12], %s77
      %s80 = sshll.u32 [#allocation11], 4
      %s81 = int_to_ptr.vmem [resolvable:$true] %s80
      %83 = dma.hbm_to_vmem [thread:$0]  %s5, 16, %s81, [#allocation12]
    $region25: #{tpu_custom_call.1} parent=1 // pred_fallthru
      _
    // Predicated region
    $region26: #{tpu_custom_call.1} parent=1 // pred_check
      _
    $region27: #{tpu_custom_call.1} parent=1 // pred_check_branch
      %85 = sbr.rel (0) target = $region29
    $region28: #{tpu_custom_call.1} parent=1 // pred_region
      %86 = dma.done [#allocation3], 896
    $region29: #{tpu_custom_call.1} parent=1 // pred_fallthru
      _
    // Predicated region
    $region30: #{tpu_custom_call.1} parent=1 // pred_check
      _
    $region31: #{tpu_custom_call.1} parent=1 // pred_check_branch
      %88 = sbr.rel (0) target = $region33
    $region32: #{tpu_custom_call.1} parent=1 // pred_region
      %89 = dma.done [#allocation6], 25088
    $region33: #{tpu_custom_call.1} parent=1 // pred_fallthru
      _
    // Predicated region
    $region34: #{tpu_custom_call.1} parent=1 // pred_check
      _
    $region35: #{tpu_custom_call.1} parent=1 // pred_check_branch
      %91 = sbr.rel (0) target = $region37
    $region36: #{tpu_custom_call.1} parent=1 // pred_region
      %92 = dma.done [#allocation6], 256
    $region37: #{tpu_custom_call.1} parent=1 // pred_fallthru
      _
    // Predicated region
    $region38: #{tpu_custom_call.1} parent=1 // pred_check
      _
    $region39: #{tpu_custom_call.1} parent=1 // pred_check_branch
      %94 = sbr.rel (0) target = $region41
    $region40: #{tpu_custom_call.1} parent=1 // pred_region
      %95 = dma.done [#allocation9], 49152
    $region41: #{tpu_custom_call.1} parent=1 // pred_fallthru
      _
    // Predicated region
    $region42: #{tpu_custom_call.1} parent=1 // pred_check
      _
    $region43: #{tpu_custom_call.1} parent=1 // pred_check_branch
      %97 = sbr.rel (0) target = $region45
    $region44: #{tpu_custom_call.1} parent=1 // pred_region
      %98 = dma.done [#allocation9], 4096
    $region45: #{tpu_custom_call.1} parent=1 // pred_fallthru
      _
    // Predicated region
    $region46: #{tpu_custom_call.1} parent=1 // pred_check
      _
    $region47: #{tpu_custom_call.1} parent=1 // pred_check_branch
      %100 = sbr.rel (0) target = $region49
    $region48: #{tpu_custom_call.1} parent=1 // pred_region
      %101 = dma.done [#allocation12], 16
    $region49: #{tpu_custom_call.1} parent=1 // pred_fallthru
      _
    %v103 = vld [vmem:[#allocation7] sm:$0xff]
    %v104 = vld [vmem:[#allocation7 + $0x8] sm:$0xff]
    %v105 = vld [vmem:[#allocation2] sm:$0xff]
    %v106 = vld [vmem:[#allocation2 + $0x8] sm:$0xff]
    %v107 = vld [vmem:[#allocation2 + $0x10] sm:$0xff]
    %v108 = vld [vmem:[#allocation2 + $0x18] sm:$0xf]
    %v109 = vld [vmem:[#allocation2 + $0x1c] sm:$0xff]
    %v110 = vld [vmem:[#allocation2 + $0x24] sm:$0xff]
    %v111 = vld [vmem:[#allocation2 + $0x2c] sm:$0xff]
    %v112 = vld [vmem:[#allocation2 + $0x34] sm:$0xf]
    %v113 = vld [vmem:[#allocation5] sm:$0xff]
    %v114 = vld [vmem:[#allocation5 + $0x8] sm:$0xff]
    %v115 = vld [vmem:[#allocation5 + $0x10] sm:$0xff]
    %v116 = vld [vmem:[#allocation5 + $0x18] sm:$0xff]
    %v117 = vld [vmem:[#allocation5 + $0x20] sm:$0xff]
    %v118 = vld [vmem:[#allocation5 + $0x28] sm:$0xff]
    %v119 = vld [vmem:[#allocation5 + $0x30] sm:$0xff]
    %v120 = vld [vmem:[#allocation5 + $0x38] sm:$0xff]
    %v121 = vld [vmem:[#allocation5 + $0x40] sm:$0xff]
    %v122 = vld [vmem:[#allocation5 + $0x48] sm:$0xff]
    %v123 = vld [vmem:[#allocation5 + $0x50] sm:$0xff]
    %v124 = vld [vmem:[#allocation5 + $0x58] sm:$0xff]
    %v125 = vld [vmem:[#allocation5 + $0x60] sm:$0xff]
    %v126 = vld [vmem:[#allocation5 + $0x68] sm:$0xff]
    %v127 = vld [vmem:[#allocation5 + $0x70] sm:$0xff]
    %v128 = vld [vmem:[#allocation5 + $0x78] sm:$0xff]
    %v129 = vld [vmem:[#allocation5 + $0x80] sm:$0xff]
    %v130 = vld [vmem:[#allocation5 + $0x88] sm:$0xff]
    %v131 = vld [vmem:[#allocation5 + $0x90] sm:$0xff]
    %v132 = vld [vmem:[#allocation5 + $0x98] sm:$0xff]
    %v133 = vld [vmem:[#allocation5 + $0xa0] sm:$0xff]
    %v134 = vld [vmem:[#allocation5 + $0xa8] sm:$0xff]
    %v135 = vld [vmem:[#allocation5 + $0xb0] sm:$0xff]
    %v136 = vld [vmem:[#allocation5 + $0xb8] sm:$0xff]
    %v137 = vld [vmem:[#allocation5 + $0xc0] sm:$0xff]
    %v138 = vld [vmem:[#allocation5 + $0xc8] sm:$0xff]
    %v139 = vld [vmem:[#allocation5 + $0xd0] sm:$0xff]
    %v140 = vld [vmem:[#allocation5 + $0xd8] sm:$0xff]
    %v141 = vld [vmem:[#allocation5 + $0xe0] sm:$0xff]
    %v142 = vld [vmem:[#allocation5 + $0xe8] sm:$0xff]
    %v143 = vld [vmem:[#allocation5 + $0xf0] sm:$0xff]
    %v144 = vld [vmem:[#allocation5 + $0xf8] sm:$0xff]
    %v145 = vld [vmem:[#allocation5 + $0x100] sm:$0xff]
    %v146 = vld [vmem:[#allocation5 + $0x108] sm:$0xff]
    %v147 = vld [vmem:[#allocation5 + $0x110] sm:$0xff]
    %v148 = vld [vmem:[#allocation5 + $0x118] sm:$0xff]
    %v149 = vld [vmem:[#allocation5 + $0x120] sm:$0xff]
    %v150 = vld [vmem:[#allocation5 + $0x128] sm:$0xff]
    %v151 = vld [vmem:[#allocation5 + $0x130] sm:$0xff]
    %v152 = vld [vmem:[#allocation5 + $0x138] sm:$0xff]
    %v153 = vld [vmem:[#allocation5 + $0x140] sm:$0xff]
    %v154 = vld [vmem:[#allocation5 + $0x148] sm:$0xff]
    %v155 = vld [vmem:[#allocation5 + $0x150] sm:$0xff]
    %v156 = vld [vmem:[#allocation5 + $0x158] sm:$0xff]
    %v157 = vld [vmem:[#allocation5 + $0x160] sm:$0xff]
    %v158 = vld [vmem:[#allocation5 + $0x168] sm:$0xff]
    %v159 = vld [vmem:[#allocation5 + $0x170] sm:$0xff]
    %v160 = vld [vmem:[#allocation5 + $0x178] sm:$0xff]
    %v161 = vld [vmem:[#allocation5 + $0x180] sm:$0xff]
    %v162 = vld [vmem:[#allocation5 + $0x188] sm:$0xff]
    %v163 = vld [vmem:[#allocation5 + $0x190] sm:$0xff]
    %v164 = vld [vmem:[#allocation5 + $0x198] sm:$0xff]
    %v165 = vld [vmem:[#allocation5 + $0x1a0] sm:$0xff]
    %v166 = vld [vmem:[#allocation5 + $0x1a8] sm:$0xff]
    %v167 = vld [vmem:[#allocation5 + $0x1b0] sm:$0xff]
    %v168 = vld [vmem:[#allocation5 + $0x1b8] sm:$0xff]
    %v169 = vld [vmem:[#allocation5 + $0x1c0] sm:$0xff]
    %v170 = vld [vmem:[#allocation5 + $0x1c8] sm:$0xff]
    %v171 = vld [vmem:[#allocation5 + $0x1d0] sm:$0xff]
    %v172 = vld [vmem:[#allocation5 + $0x1d8] sm:$0xff]
    %v173 = vld [vmem:[#allocation5 + $0x1e0] sm:$0xff]
    %v174 = vld [vmem:[#allocation5 + $0x1e8] sm:$0xff]
    %v175 = vld [vmem:[#allocation5 + $0x1f0] sm:$0xff]
    %v176 = vld [vmem:[#allocation5 + $0x1f8] sm:$0xff]
    %v177 = vld [vmem:[#allocation5 + $0x200] sm:$0xff]
    %v178 = vld [vmem:[#allocation5 + $0x208] sm:$0xff]
    %v179 = vld [vmem:[#allocation5 + $0x210] sm:$0xff]
    %v180 = vld [vmem:[#allocation5 + $0x218] sm:$0xff]
    %v181 = vld [vmem:[#allocation5 + $0x220] sm:$0xff]
    %v182 = vld [vmem:[#allocation5 + $0x228] sm:$0xff]
    %v183 = vld [vmem:[#allocation5 + $0x230] sm:$0xff]
    %v184 = vld [vmem:[#allocation5 + $0x238] sm:$0xff]
    %v185 = vld [vmem:[#allocation5 + $0x240] sm:$0xff]
    %v186 = vld [vmem:[#allocation5 + $0x248] sm:$0xff]
    %v187 = vld [vmem:[#allocation5 + $0x250] sm:$0xff]
    %v188 = vld [vmem:[#allocation5 + $0x258] sm:$0xff]
    %v189 = vld [vmem:[#allocation5 + $0x260] sm:$0xff]
    %v190 = vld [vmem:[#allocation5 + $0x268] sm:$0xff]
    %v191 = vld [vmem:[#allocation5 + $0x270] sm:$0xff]
    %v192 = vld [vmem:[#allocation5 + $0x278] sm:$0xff]
    %v193 = vld [vmem:[#allocation5 + $0x280] sm:$0xff]
    %v194 = vld [vmem:[#allocation5 + $0x288] sm:$0xff]
    %v195 = vld [vmem:[#allocation5 + $0x290] sm:$0xff]
    %v196 = vld [vmem:[#allocation5 + $0x298] sm:$0xff]
    %v197 = vld [vmem:[#allocation5 + $0x2a0] sm:$0xff]
    %v198 = vld [vmem:[#allocation5 + $0x2a8] sm:$0xff]
    %v199 = vld [vmem:[#allocation5 + $0x2b0] sm:$0xff]
    %v200 = vld [vmem:[#allocation5 + $0x2b8] sm:$0xff]
    %v201 = vld [vmem:[#allocation5 + $0x2c0] sm:$0xff]
    %v202 = vld [vmem:[#allocation5 + $0x2c8] sm:$0xff]
    %v203 = vld [vmem:[#allocation5 + $0x2d0] sm:$0xff]
    %v204 = vld [vmem:[#allocation5 + $0x2d8] sm:$0xff]
    %v205 = vld [vmem:[#allocation5 + $0x2e0] sm:$0xff]
    %v206 = vld [vmem:[#allocation5 + $0x2e8] sm:$0xff]
    %v207 = vld [vmem:[#allocation5 + $0x2f0] sm:$0xff]
    %v208 = vld [vmem:[#allocation5 + $0x2f8] sm:$0xff]
    %v209 = vld [vmem:[#allocation5 + $0x300] sm:$0xff]
    %v210 = vld [vmem:[#allocation5 + $0x308] sm:$0xff]
    %v211 = vld [vmem:[#allocation5 + $0x310] sm:$0xff]
    %v212 = vld [vmem:[#allocation5 + $0x318] sm:$0xff]
    %v213 = vld [vmem:[#allocation5 + $0x320] sm:$0xff]
    %v214 = vld [vmem:[#allocation5 + $0x328] sm:$0xff]
    %v215 = vld [vmem:[#allocation5 + $0x330] sm:$0xff]
    %v216 = vld [vmem:[#allocation5 + $0x338] sm:$0xff]
    %v217 = vld [vmem:[#allocation5 + $0x340] sm:$0xff]
    %v218 = vld [vmem:[#allocation5 + $0x348] sm:$0xff]
    %v219 = vld [vmem:[#allocation5 + $0x350] sm:$0xff]
    %v220 = vld [vmem:[#allocation5 + $0x358] sm:$0xff]
    %v221 = vld [vmem:[#allocation5 + $0x360] sm:$0xff]
    %v222 = vld [vmem:[#allocation5 + $0x368] sm:$0xff]
    %v223 = vld [vmem:[#allocation5 + $0x370] sm:$0xff]
    %v224 = vld [vmem:[#allocation5 + $0x378] sm:$0xff]
    %v225 = vld [vmem:[#allocation5 + $0x380] sm:$0xff]
    %v226 = vld [vmem:[#allocation5 + $0x388] sm:$0xff]
    %v227 = vld [vmem:[#allocation5 + $0x390] sm:$0xff]
    %v228 = vld [vmem:[#allocation5 + $0x398] sm:$0xff]
    %v229 = vld [vmem:[#allocation5 + $0x3a0] sm:$0xff]
    %v230 = vld [vmem:[#allocation5 + $0x3a8] sm:$0xff]
    %v231 = vld [vmem:[#allocation5 + $0x3b0] sm:$0xff]
    %v232 = vld [vmem:[#allocation5 + $0x3b8] sm:$0xff]
    %v233 = vld [vmem:[#allocation5 + $0x3c0] sm:$0xff]
    %v234 = vld [vmem:[#allocation5 + $0x3c8] sm:$0xff]
    %v235 = vld [vmem:[#allocation5 + $0x3d0] sm:$0xff]
    %v236 = vld [vmem:[#allocation5 + $0x3d8] sm:$0xff]
    %v237 = vld [vmem:[#allocation5 + $0x3e0] sm:$0xff]
    %v238 = vld [vmem:[#allocation5 + $0x3e8] sm:$0xff]
    %v239 = vld [vmem:[#allocation5 + $0x3f0] sm:$0xff]
    %v240 = vld [vmem:[#allocation5 + $0x3f8] sm:$0xff]
    %v241 = vld [vmem:[#allocation5 + $0x400] sm:$0xff]
    %v242 = vld [vmem:[#allocation5 + $0x408] sm:$0xff]
    %v243 = vld [vmem:[#allocation5 + $0x410] sm:$0xff]
    %v244 = vld [vmem:[#allocation5 + $0x418] sm:$0xff]
    %v245 = vld [vmem:[#allocation5 + $0x420] sm:$0xff]
    %v246 = vld [vmem:[#allocation5 + $0x428] sm:$0xff]
    %v247 = vld [vmem:[#allocation5 + $0x430] sm:$0xff]
    %v248 = vld [vmem:[#allocation5 + $0x438] sm:$0xff]
    %v249 = vld [vmem:[#allocation5 + $0x440] sm:$0xff]
    %v250 = vld [vmem:[#allocation5 + $0x448] sm:$0xff]
    %v251 = vld [vmem:[#allocation5 + $0x450] sm:$0xff]
    %v252 = vld [vmem:[#allocation5 + $0x458] sm:$0xff]
    %v253 = vld [vmem:[#allocation5 + $0x460] sm:$0xff]
    %v254 = vld [vmem:[#allocation5 + $0x468] sm:$0xff]
    %v255 = vld [vmem:[#allocation5 + $0x470] sm:$0xff]
    %v256 = vld [vmem:[#allocation5 + $0x478] sm:$0xff]
    %v257 = vld [vmem:[#allocation5 + $0x480] sm:$0xff]
    %v258 = vld [vmem:[#allocation5 + $0x488] sm:$0xff]
    %v259 = vld [vmem:[#allocation5 + $0x490] sm:$0xff]
    %v260 = vld [vmem:[#allocation5 + $0x498] sm:$0xff]
    %v261 = vld [vmem:[#allocation5 + $0x4a0] sm:$0xff]
    %v262 = vld [vmem:[#allocation5 + $0x4a8] sm:$0xff]
    %v263 = vld [vmem:[#allocation5 + $0x4b0] sm:$0xff]
    %v264 = vld [vmem:[#allocation5 + $0x4b8] sm:$0xff]
    %v265 = vld [vmem:[#allocation5 + $0x4c0] sm:$0xff]
    %v266 = vld [vmem:[#allocation5 + $0x4c8] sm:$0xff]
    %v267 = vld [vmem:[#allocation5 + $0x4d0] sm:$0xff]
    %v268 = vld [vmem:[#allocation5 + $0x4d8] sm:$0xff]
    %v269 = vld [vmem:[#allocation5 + $0x4e0] sm:$0xff]
    %v270 = vld [vmem:[#allocation5 + $0x4e8] sm:$0xff]
    %v271 = vld [vmem:[#allocation5 + $0x4f0] sm:$0xff]
    %v272 = vld [vmem:[#allocation5 + $0x4f8] sm:$0xff]
    %v273 = vld [vmem:[#allocation5 + $0x500] sm:$0xff]
    %v274 = vld [vmem:[#allocation5 + $0x508] sm:$0xff]
    %v275 = vld [vmem:[#allocation5 + $0x510] sm:$0xff]
    %v276 = vld [vmem:[#allocation5 + $0x518] sm:$0xff]
    %v277 = vld [vmem:[#allocation5 + $0x520] sm:$0xff]
    %v278 = vld [vmem:[#allocation5 + $0x528] sm:$0xff]
    %v279 = vld [vmem:[#allocation5 + $0x530] sm:$0xff]
    %v280 = vld [vmem:[#allocation5 + $0x538] sm:$0xff]
    %v281 = vld [vmem:[#allocation5 + $0x540] sm:$0xff]
    %v282 = vld [vmem:[#allocation5 + $0x548] sm:$0xff]
    %v283 = vld [vmem:[#allocation5 + $0x550] sm:$0xff]
    %v284 = vld [vmem:[#allocation5 + $0x558] sm:$0xff]
    %v285 = vld [vmem:[#allocation5 + $0x560] sm:$0xff]
    %v286 = vld [vmem:[#allocation5 + $0x568] sm:$0xff]
    %v287 = vld [vmem:[#allocation5 + $0x570] sm:$0xff]
    %v288 = vld [vmem:[#allocation5 + $0x578] sm:$0xff]
    %v289 = vld [vmem:[#allocation5 + $0x580] sm:$0xff]
    %v290 = vld [vmem:[#allocation5 + $0x588] sm:$0xff]
    %v291 = vld [vmem:[#allocation5 + $0x590] sm:$0xff]
    %v292 = vld [vmem:[#allocation5 + $0x598] sm:$0xff]
    %v293 = vld [vmem:[#allocation5 + $0x5a0] sm:$0xff]
    %v294 = vld [vmem:[#allocation5 + $0x5a8] sm:$0xff]
    %v295 = vld [vmem:[#allocation5 + $0x5b0] sm:$0xff]
    %v296 = vld [vmem:[#allocation5 + $0x5b8] sm:$0xff]
    %v297 = vld [vmem:[#allocation5 + $0x5c0] sm:$0xff]
    %v298 = vld [vmem:[#allocation5 + $0x5c8] sm:$0xff]
    %v299 = vld [vmem:[#allocation5 + $0x5d0] sm:$0xff]
    %v300 = vld [vmem:[#allocation5 + $0x5d8] sm:$0xff]
    %v301 = vld [vmem:[#allocation5 + $0x5e0] sm:$0xff]
    %v302 = vld [vmem:[#allocation5 + $0x5e8] sm:$0xff]
    %v303 = vld [vmem:[#allocation5 + $0x5f0] sm:$0xff]
    %v304 = vld [vmem:[#allocation5 + $0x5f8] sm:$0xff]
    %v305 = vld [vmem:[#allocation5 + $0x600] sm:$0xff]
    %v306 = vld [vmem:[#allocation5 + $0x608] sm:$0xff]
    %v307 = vld [vmem:[#allocation5 + $0x610] sm:$0xff]
    %v308 = vld [vmem:[#allocation5 + $0x618] sm:$0xff]
    %v311 = vlaneseq
    %v312 = vshrl.u32 %v311, 7
    %v313 = vsub.s32 0, %v312
    %v314 = vrot.slane %v103, %v313
    %v315 = vlaneseq
    %v316 = vshrl.u32 %v315, 7
    %v317 = vsub.s32 4, %v316
    %v318 = vrot.slane %v103, %v317
    %v319 = vlaneseq
    %v320 = vshrl.u32 %v319, 7
    %v321 = vsub.s32 0, %v320
    %v322 = vrot.slane %v104, %v321
    %v323 = vlaneseq
    %v324 = vshrl.u32 %v323, 7
    %v325 = vsub.s32 4, %v324
    %v326 = vrot.slane %v104, %v325
    %v331 = vlaneseq
    %v332 = vshrl.u32 %v331, 7
    %v333 = vsub.s32 0, %v332
    %v334 = vrot.slane %v314, %v333
    %v335 = vlaneseq
    %v336 = vshrl.u32 %v335, 7
    %v337 = vsub.s32 0, %v336
    %v338 = vrot.slane %v318, %v337
    %v339 = vlaneseq
    %v340 = vshrl.u32 %v339, 7
    %v341 = vsub.s32 0, %v340
    %v342 = vrot.slane %v322, %v341
    %v343 = vlaneseq
    %v344 = vshrl.u32 %v343, 7
    %v345 = vsub.s32 0, %v344
    %v346 = vrot.slane %v326, %v345
    %v355 = vunpack.c.l.b16 %v105
    %v356 = vunpack.c.h.b16 %v105
    %v357 = vunpack.c.l.b16 %v106
    %v358 = vunpack.c.h.b16 %v106
    %v359 = vunpack.c.l.b16 %v107
    %v360 = vunpack.c.h.b16 %v107
    %v361 = vunpack.c.l.b16 %v108
    %v362 = vunpack.c.l.b16 %v109
    %v363 = vunpack.c.h.b16 %v109
    %v364 = vunpack.c.l.b16 %v110
    %v365 = vunpack.c.h.b16 %v110
    %v366 = vunpack.c.l.b16 %v111
    %v367 = vunpack.c.h.b16 %v111
    %v368 = vunpack.c.l.b16 %v112
    %v369 = vpack.c.b16 %v362, %v355
    %v370 = vpack.c.b16 %v363, %v356
    %v371 = vpack.c.b16 %v364, %v357
    %v372 = vpack.c.b16 %v365, %v358
    %v373 = vpack.c.b16 %v366, %v359
    %v374 = vpack.c.b16 %v367, %v360
    %v375 = vpack.c.b16 %v368, %v361
    %v578 = vunpack.c.l.b16 %v113
    %v579 = vunpack.c.h.b16 %v113
    %v580 = vunpack.c.l.b16 %v114
    %v581 = vunpack.c.h.b16 %v114
    %v582 = vunpack.c.l.b16 %v115
    %v583 = vunpack.c.h.b16 %v115
    %v584 = vunpack.c.l.b16 %v116
    %v585 = vunpack.c.h.b16 %v116
    %v586 = vunpack.c.l.b16 %v117
    %v587 = vunpack.c.h.b16 %v117
    %v588 = vunpack.c.l.b16 %v118
    %v589 = vunpack.c.h.b16 %v118
    %v590 = vunpack.c.l.b16 %v119
    %v591 = vunpack.c.h.b16 %v119
    %v592 = vunpack.c.l.b16 %v120
    %v593 = vunpack.c.h.b16 %v120
    %v594 = vunpack.c.l.b16 %v121
    %v595 = vunpack.c.h.b16 %v121
    %v596 = vunpack.c.l.b16 %v122
    %v597 = vunpack.c.h.b16 %v122
    %v598 = vunpack.c.l.b16 %v123
    %v599 = vunpack.c.h.b16 %v123
    %v600 = vunpack.c.l.b16 %v124
    %v601 = vunpack.c.h.b16 %v124
    %v602 = vunpack.c.l.b16 %v125
    %v603 = vunpack.c.h.b16 %v125
    %v604 = vunpack.c.l.b16 %v126
    %v605 = vunpack.c.h.b16 %v126
    %v606 = vunpack.c.l.b16 %v127
    %v607 = vunpack.c.h.b16 %v127
    %v608 = vunpack.c.l.b16 %v128
    %v609 = vunpack.c.h.b16 %v128
    %v610 = vunpack.c.l.b16 %v129
    %v611 = vunpack.c.h.b16 %v129
    %v612 = vunpack.c.l.b16 %v130
    %v613 = vunpack.c.h.b16 %v130
    %v614 = vunpack.c.l.b16 %v131
    %v615 = vunpack.c.h.b16 %v131
    %v616 = vunpack.c.l.b16 %v132
    %v617 = vunpack.c.h.b16 %v132
    %v618 = vunpack.c.l.b16 %v133
    %v619 = vunpack.c.h.b16 %v133
    %v620 = vunpack.c.l.b16 %v134
    %v621 = vunpack.c.h.b16 %v134
    %v622 = vunpack.c.l.b16 %v135
    %v623 = vunpack.c.h.b16 %v135
    %v624 = vunpack.c.l.b16 %v136
    %v625 = vunpack.c.h.b16 %v136
    %v626 = vunpack.c.l.b16 %v137
    %v627 = vunpack.c.h.b16 %v137
    %v628 = vunpack.c.l.b16 %v138
    %v629 = vunpack.c.h.b16 %v138
    %v630 = vunpack.c.l.b16 %v139
    %v631 = vunpack.c.h.b16 %v139
    %v632 = vunpack.c.l.b16 %v140
    %v633 = vunpack.c.h.b16 %v140
    %v634 = vunpack.c.l.b16 %v141
    %v635 = vunpack.c.h.b16 %v141
    %v636 = vunpack.c.l.b16 %v142
    %v637 = vunpack.c.h.b16 %v142
    %v638 = vunpack.c.l.b16 %v143
    %v639 = vunpack.c.h.b16 %v143
    %v640 = vunpack.c.l.b16 %v144
    %v641 = vunpack.c.h.b16 %v144
    %v642 = vunpack.c.l.b16 %v145
    %v643 = vunpack.c.h.b16 %v145
    %v644 = vunpack.c.l.b16 %v146
    %v645 = vunpack.c.h.b16 %v146
    %v646 = vunpack.c.l.b16 %v147
    %v647 = vunpack.c.h.b16 %v147
    %v648 = vunpack.c.l.b16 %v148
    %v649 = vunpack.c.h.b16 %v148
    %v650 = vunpack.c.l.b16 %v149
    %v651 = vunpack.c.h.b16 %v149
    %v652 = vunpack.c.l.b16 %v150
    %v653 = vunpack.c.h.b16 %v150
    %v654 = vunpack.c.l.b16 %v151
    %v655 = vunpack.c.h.b16 %v151
    %v656 = vunpack.c.l.b16 %v152
    %v657 = vunpack.c.h.b16 %v152
    %v658 = vunpack.c.l.b16 %v153
    %v659 = vunpack.c.h.b16 %v153
    %v660 = vunpack.c.l.b16 %v154
    %v661 = vunpack.c.h.b16 %v154
    %v662 = vunpack.c.l.b16 %v155
    %v663 = vunpack.c.h.b16 %v155
    %v664 = vunpack.c.l.b16 %v156
    %v665 = vunpack.c.h.b16 %v156
    %v666 = vunpack.c.l.b16 %v157
    %v667 = vunpack.c.h.b16 %v157
    %v668 = vunpack.c.l.b16 %v158
    %v669 = vunpack.c.h.b16 %v158
    %v670 = vunpack.c.l.b16 %v159
    %v671 = vunpack.c.h.b16 %v159
    %v672 = vunpack.c.l.b16 %v160
    %v673 = vunpack.c.h.b16 %v160
    %v674 = vunpack.c.l.b16 %v161
    %v675 = vunpack.c.h.b16 %v161
    %v676 = vunpack.c.l.b16 %v162
    %v677 = vunpack.c.h.b16 %v162
    %v678 = vunpack.c.l.b16 %v163
    %v679 = vunpack.c.h.b16 %v163
    %v680 = vunpack.c.l.b16 %v164
    %v681 = vunpack.c.h.b16 %v164
    %v682 = vunpack.c.l.b16 %v165
    %v683 = vunpack.c.h.b16 %v165
    %v684 = vunpack.c.l.b16 %v166
    %v685 = vunpack.c.h.b16 %v166
    %v686 = vunpack.c.l.b16 %v167
    %v687 = vunpack.c.h.b16 %v167
    %v688 = vunpack.c.l.b16 %v168
    %v689 = vunpack.c.h.b16 %v168
    %v690 = vunpack.c.l.b16 %v169
    %v691 = vunpack.c.h.b16 %v169
    %v692 = vunpack.c.l.b16 %v170
    %v693 = vunpack.c.h.b16 %v170
    %v694 = vunpack.c.l.b16 %v171
    %v695 = vunpack.c.h.b16 %v171
    %v696 = vunpack.c.l.b16 %v172
    %v697 = vunpack.c.h.b16 %v172
    %v698 = vunpack.c.l.b16 %v173
    %v699 = vunpack.c.h.b16 %v173
    %v700 = vunpack.c.l.b16 %v174
    %v701 = vunpack.c.h.b16 %v174
    %v702 = vunpack.c.l.b16 %v175
    %v703 = vunpack.c.h.b16 %v175
    %v704 = vunpack.c.l.b16 %v176
    %v705 = vunpack.c.h.b16 %v176
    %v706 = vunpack.c.l.b16 %v177
    %v707 = vunpack.c.h.b16 %v177
    %v708 = vunpack.c.l.b16 %v178
    %v709 = vunpack.c.h.b16 %v178
    %v710 = vunpack.c.l.b16 %v179
    %v711 = vunpack.c.h.b16 %v179
    %v712 = vunpack.c.l.b16 %v180
    %v713 = vunpack.c.h.b16 %v180
    %v714 = vunpack.c.l.b16 %v181
    %v715 = vunpack.c.h.b16 %v181
    %v716 = vunpack.c.l.b16 %v182
    %v717 = vunpack.c.h.b16 %v182
    %v718 = vunpack.c.l.b16 %v183
    %v719 = vunpack.c.h.b16 %v183
    %v720 = vunpack.c.l.b16 %v184
    %v721 = vunpack.c.h.b16 %v184
    %v722 = vunpack.c.l.b16 %v185
    %v723 = vunpack.c.h.b16 %v185
    %v724 = vunpack.c.l.b16 %v186
    %v725 = vunpack.c.h.b16 %v186
    %v726 = vunpack.c.l.b16 %v187
    %v727 = vunpack.c.h.b16 %v187
    %v728 = vunpack.c.l.b16 %v188
    %v729 = vunpack.c.h.b16 %v188
    %v730 = vunpack.c.l.b16 %v189
    %v731 = vunpack.c.h.b16 %v189
    %v732 = vunpack.c.l.b16 %v190
    %v733 = vunpack.c.h.b16 %v190
    %v734 = vunpack.c.l.b16 %v191
    %v735 = vunpack.c.h.b16 %v191
    %v736 = vunpack.c.l.b16 %v192
    %v737 = vunpack.c.h.b16 %v192
    %v738 = vunpack.c.l.b16 %v193
    %v739 = vunpack.c.h.b16 %v193
    %v740 = vunpack.c.l.b16 %v194
    %v741 = vunpack.c.h.b16 %v194
    %v742 = vunpack.c.l.b16 %v195
    %v743 = vunpack.c.h.b16 %v195
    %v744 = vunpack.c.l.b16 %v196
    %v745 = vunpack.c.h.b16 %v196
    %v746 = vunpack.c.l.b16 %v197
    %v747 = vunpack.c.h.b16 %v197
    %v748 = vunpack.c.l.b16 %v198
    %v749 = vunpack.c.h.b16 %v198
    %v750 = vunpack.c.l.b16 %v199
    %v751 = vunpack.c.h.b16 %v199
    %v752 = vunpack.c.l.b16 %v200
    %v753 = vunpack.c.h.b16 %v200
    %v754 = vunpack.c.l.b16 %v201
    %v755 = vunpack.c.h.b16 %v201
    %v756 = vunpack.c.l.b16 %v202
    %v757 = vunpack.c.h.b16 %v202
    %v758 = vunpack.c.l.b16 %v203
    %v759 = vunpack.c.h.b16 %v203
    %v760 = vunpack.c.l.b16 %v204
    %v761 = vunpack.c.h.b16 %v204
    %v762 = vunpack.c.l.b16 %v205
    %v763 = vunpack.c.h.b16 %v205
    %v764 = vunpack.c.l.b16 %v206
    %v765 = vunpack.c.h.b16 %v206
    %v766 = vunpack.c.l.b16 %v207
    %v767 = vunpack.c.h.b16 %v207
    %v768 = vunpack.c.l.b16 %v208
    %v769 = vunpack.c.h.b16 %v208
    %v770 = vunpack.c.l.b16 %v209
    %v771 = vunpack.c.h.b16 %v209
    %v772 = vunpack.c.l.b16 %v210
    %v773 = vunpack.c.h.b16 %v210
    %v774 = vunpack.c.l.b16 %v211
    %v775 = vunpack.c.h.b16 %v211
    %v776 = vunpack.c.l.b16 %v212
    %v777 = vunpack.c.h.b16 %v212
    %v778 = vunpack.c.l.b16 %v213
    %v779 = vunpack.c.h.b16 %v213
    %v780 = vunpack.c.l.b16 %v214
    %v781 = vunpack.c.h.b16 %v214
    %v782 = vunpack.c.l.b16 %v215
    %v783 = vunpack.c.h.b16 %v215
    %v784 = vunpack.c.l.b16 %v216
    %v785 = vunpack.c.h.b16 %v216
    %v786 = vunpack.c.l.b16 %v217
    %v787 = vunpack.c.h.b16 %v217
    %v788 = vunpack.c.l.b16 %v218
    %v789 = vunpack.c.h.b16 %v218
    %v790 = vunpack.c.l.b16 %v219
    %v791 = vunpack.c.h.b16 %v219
    %v792 = vunpack.c.l.b16 %v220
    %v793 = vunpack.c.h.b16 %v220
    %v794 = vunpack.c.l.b16 %v221
    %v795 = vunpack.c.h.b16 %v221
    %v796 = vunpack.c.l.b16 %v222
    %v797 = vunpack.c.h.b16 %v222
    %v798 = vunpack.c.l.b16 %v223
    %v799 = vunpack.c.h.b16 %v223
    %v800 = vunpack.c.l.b16 %v224
    %v801 = vunpack.c.h.b16 %v224
    %v802 = vunpack.c.l.b16 %v225
    %v803 = vunpack.c.h.b16 %v225
    %v804 = vunpack.c.l.b16 %v226
    %v805 = vunpack.c.h.b16 %v226
    %v806 = vunpack.c.l.b16 %v227
    %v807 = vunpack.c.h.b16 %v227
    %v808 = vunpack.c.l.b16 %v228
    %v809 = vunpack.c.h.b16 %v228
    %v810 = vunpack.c.l.b16 %v229
    %v811 = vunpack.c.h.b16 %v229
    %v812 = vunpack.c.l.b16 %v230
    %v813 = vunpack.c.h.b16 %v230
    %v814 = vunpack.c.l.b16 %v231
    %v815 = vunpack.c.h.b16 %v231
    %v816 = vunpack.c.l.b16 %v232
    %v817 = vunpack.c.h.b16 %v232
    %v818 = vunpack.c.l.b16 %v233
    %v819 = vunpack.c.h.b16 %v233
    %v820 = vunpack.c.l.b16 %v234
    %v821 = vunpack.c.h.b16 %v234
    %v822 = vunpack.c.l.b16 %v235
    %v823 = vunpack.c.h.b16 %v235
    %v824 = vunpack.c.l.b16 %v236
    %v825 = vunpack.c.h.b16 %v236
    %v826 = vunpack.c.l.b16 %v237
    %v827 = vunpack.c.h.b16 %v237
    %v828 = vunpack.c.l.b16 %v238
    %v829 = vunpack.c.h.b16 %v238
    %v830 = vunpack.c.l.b16 %v239
    %v831 = vunpack.c.h.b16 %v239
    %v832 = vunpack.c.l.b16 %v240
    %v833 = vunpack.c.h.b16 %v240
    %v834 = vunpack.c.l.b16 %v241
    %v835 = vunpack.c.h.b16 %v241
    %v836 = vunpack.c.l.b16 %v242
    %v837 = vunpack.c.h.b16 %v242
    %v838 = vunpack.c.l.b16 %v243
    %v839 = vunpack.c.h.b16 %v243
    %v840 = vunpack.c.l.b16 %v244
    %v841 = vunpack.c.h.b16 %v244
    %v842 = vunpack.c.l.b16 %v245
    %v843 = vunpack.c.h.b16 %v245
    %v844 = vunpack.c.l.b16 %v246
    %v845 = vunpack.c.h.b16 %v246
    %v846 = vunpack.c.l.b16 %v247
    %v847 = vunpack.c.h.b16 %v247
    %v848 = vunpack.c.l.b16 %v248
    %v849 = vunpack.c.h.b16 %v248
    %v850 = vunpack.c.l.b16 %v249
    %v851 = vunpack.c.h.b16 %v249
    %v852 = vunpack.c.l.b16 %v250
    %v853 = vunpack.c.h.b16 %v250
    %v854 = vunpack.c.l.b16 %v251
    %v855 = vunpack.c.h.b16 %v251
    %v856 = vunpack.c.l.b16 %v252
    %v857 = vunpack.c.h.b16 %v252
    %v858 = vunpack.c.l.b16 %v253
    %v859 = vunpack.c.h.b16 %v253
    %v860 = vunpack.c.l.b16 %v254
    %v861 = vunpack.c.h.b16 %v254
    %v862 = vunpack.c.l.b16 %v255
    %v863 = vunpack.c.h.b16 %v255
    %v864 = vunpack.c.l.b16 %v256
    %v865 = vunpack.c.h.b16 %v256
    %v866 = vunpack.c.l.b16 %v257
    %v867 = vunpack.c.h.b16 %v257
    %v868 = vunpack.c.l.b16 %v258
    %v869 = vunpack.c.h.b16 %v258
    %v870 = vunpack.c.l.b16 %v259
    %v871 = vunpack.c.h.b16 %v259
    %v872 = vunpack.c.l.b16 %v260
    %v873 = vunpack.c.h.b16 %v260
    %v874 = vunpack.c.l.b16 %v261
    %v875 = vunpack.c.h.b16 %v261
    %v876 = vunpack.c.l.b16 %v262
    %v877 = vunpack.c.h.b16 %v262
    %v878 = vunpack.c.l.b16 %v263
    %v879 = vunpack.c.h.b16 %v263
    %v880 = vunpack.c.l.b16 %v264
    %v881 = vunpack.c.h.b16 %v264
    %v882 = vunpack.c.l.b16 %v265
    %v883 = vunpack.c.h.b16 %v265
    %v884 = vunpack.c.l.b16 %v266
    %v885 = vunpack.c.h.b16 %v266
    %v886 = vunpack.c.l.b16 %v267
    %v887 = vunpack.c.h.b16 %v267
    %v888 = vunpack.c.l.b16 %v268
    %v889 = vunpack.c.h.b16 %v268
    %v890 = vunpack.c.l.b16 %v269
    %v891 = vunpack.c.h.b16 %v269
    %v892 = vunpack.c.l.b16 %v270
    %v893 = vunpack.c.h.b16 %v270
    %v894 = vunpack.c.l.b16 %v271
    %v895 = vunpack.c.h.b16 %v271
    %v896 = vunpack.c.l.b16 %v272
    %v897 = vunpack.c.h.b16 %v272
    %v898 = vunpack.c.l.b16 %v273
    %v899 = vunpack.c.h.b16 %v273
    %v900 = vunpack.c.l.b16 %v274
    %v901 = vunpack.c.h.b16 %v274
    %v902 = vunpack.c.l.b16 %v275
    %v903 = vunpack.c.h.b16 %v275
    %v904 = vunpack.c.l.b16 %v276
    %v905 = vunpack.c.h.b16 %v276
    %v906 = vunpack.c.l.b16 %v277
    %v907 = vunpack.c.h.b16 %v277
    %v908 = vunpack.c.l.b16 %v278
    %v909 = vunpack.c.h.b16 %v278
    %v910 = vunpack.c.l.b16 %v279
    %v911 = vunpack.c.h.b16 %v279
    %v912 = vunpack.c.l.b16 %v280
    %v913 = vunpack.c.h.b16 %v280
    %v914 = vunpack.c.l.b16 %v281
    %v915 = vunpack.c.h.b16 %v281
    %v916 = vunpack.c.l.b16 %v282
    %v917 = vunpack.c.h.b16 %v282
    %v918 = vunpack.c.l.b16 %v283
    %v919 = vunpack.c.h.b16 %v283
    %v920 = vunpack.c.l.b16 %v284
    %v921 = vunpack.c.h.b16 %v284
    %v922 = vunpack.c.l.b16 %v285
    %v923 = vunpack.c.h.b16 %v285
    %v924 = vunpack.c.l.b16 %v286
    %v925 = vunpack.c.h.b16 %v286
    %v926 = vunpack.c.l.b16 %v287
    %v927 = vunpack.c.h.b16 %v287
    %v928 = vunpack.c.l.b16 %v288
    %v929 = vunpack.c.h.b16 %v288
    %v930 = vunpack.c.l.b16 %v289
    %v931 = vunpack.c.h.b16 %v289
    %v932 = vunpack.c.l.b16 %v290
    %v933 = vunpack.c.h.b16 %v290
    %v934 = vunpack.c.l.b16 %v291
    %v935 = vunpack.c.h.b16 %v291
    %v936 = vunpack.c.l.b16 %v292
    %v937 = vunpack.c.h.b16 %v292
    %v938 = vunpack.c.l.b16 %v293
    %v939 = vunpack.c.h.b16 %v293
    %v940 = vunpack.c.l.b16 %v294
    %v941 = vunpack.c.h.b16 %v294
    %v942 = vunpack.c.l.b16 %v295
    %v943 = vunpack.c.h.b16 %v295
    %v944 = vunpack.c.l.b16 %v296
    %v945 = vunpack.c.h.b16 %v296
    %v946 = vunpack.c.l.b16 %v297
    %v947 = vunpack.c.h.b16 %v297
    %v948 = vunpack.c.l.b16 %v298
    %v949 = vunpack.c.h.b16 %v298
    %v950 = vunpack.c.l.b16 %v299
    %v951 = vunpack.c.h.b16 %v299
    %v952 = vunpack.c.l.b16 %v300
    %v953 = vunpack.c.h.b16 %v300
    %v954 = vunpack.c.l.b16 %v301
    %v955 = vunpack.c.h.b16 %v301
    %v956 = vunpack.c.l.b16 %v302
    %v957 = vunpack.c.h.b16 %v302
    %v958 = vunpack.c.l.b16 %v303
    %v959 = vunpack.c.h.b16 %v303
    %v960 = vunpack.c.l.b16 %v304
    %v961 = vunpack.c.h.b16 %v304
    %v962 = vunpack.c.l.b16 %v305
    %v963 = vunpack.c.h.b16 %v305
    %v964 = vunpack.c.l.b16 %v306
    %v965 = vunpack.c.h.b16 %v306
    %v966 = vunpack.c.l.b16 %v307
    %v967 = vunpack.c.h.b16 %v307
    %v968 = vunpack.c.l.b16 %v308
    %v969 = vunpack.c.h.b16 %v308
    %v970 = vpack.c.b16 %v582, %v578
    %v971 = vpack.c.b16 %v583, %v579
    %v972 = vpack.c.b16 %v584, %v580
    %v973 = vpack.c.b16 %v585, %v581
    %v974 = vpack.c.b16 %v590, %v586
    %v975 = vpack.c.b16 %v591, %v587
    %v976 = vpack.c.b16 %v592, %v588
    %v977 = vpack.c.b16 %v593, %v589
    %v978 = vpack.c.b16 %v598, %v594
    %v979 = vpack.c.b16 %v599, %v595
    %v980 = vpack.c.b16 %v600, %v596
    %v981 = vpack.c.b16 %v601, %v597
    %v982 = vpack.c.b16 %v606, %v602
    %v983 = vpack.c.b16 %v607, %v603
    %v984 = vpack.c.b16 %v608, %v604
    %v985 = vpack.c.b16 %v609, %v605
    %v986 = vpack.c.b16 %v614, %v610
    %v987 = vpack.c.b16 %v615, %v611
    %v988 = vpack.c.b16 %v616, %v612
    %v989 = vpack.c.b16 %v617, %v613
    %v990 = vpack.c.b16 %v622, %v618
    %v991 = vpack.c.b16 %v623, %v619
    %v992 = vpack.c.b16 %v624, %v620
    %v993 = vpack.c.b16 %v625, %v621
    %v994 = vpack.c.b16 %v630, %v626
    %v995 = vpack.c.b16 %v631, %v627
    %v996 = vpack.c.b16 %v632, %v628
    %v997 = vpack.c.b16 %v633, %v629
    %v998 = vpack.c.b16 %v638, %v634
    %v999 = vpack.c.b16 %v639, %v635
    %v1000 = vpack.c.b16 %v640, %v636
    %v1001 = vpack.c.b16 %v641, %v637
    %v1002 = vpack.c.b16 %v646, %v642
    %v1003 = vpack.c.b16 %v647, %v643
    %v1004 = vpack.c.b16 %v648, %v644
    %v1005 = vpack.c.b16 %v649, %v645
    %v1006 = vpack.c.b16 %v654, %v650
    %v1007 = vpack.c.b16 %v655, %v651
    %v1008 = vpack.c.b16 %v656, %v652
    %v1009 = vpack.c.b16 %v657, %v653
    %v1010 = vpack.c.b16 %v662, %v658
    %v1011 = vpack.c.b16 %v663, %v659
    %v1012 = vpack.c.b16 %v664, %v660
    %v1013 = vpack.c.b16 %v665, %v661
    %v1014 = vpack.c.b16 %v670, %v666
    %v1015 = vpack.c.b16 %v671, %v667
    %v1016 = vpack.c.b16 %v672, %v668
    %v1017 = vpack.c.b16 %v673, %v669
    %v1018 = vpack.c.b16 %v678, %v674
    %v1019 = vpack.c.b16 %v679, %v675
    %v1020 = vpack.c.b16 %v680, %v676
    %v1021 = vpack.c.b16 %v681, %v677
    %v1022 = vpack.c.b16 %v686, %v682
    %v1023 = vpack.c.b16 %v687, %v683
    %v1024 = vpack.c.b16 %v688, %v684
    %v1025 = vpack.c.b16 %v689, %v685
    %v1026 = vpack.c.b16 %v694, %v690
    %v1027 = vpack.c.b16 %v695, %v691
    %v1028 = vpack.c.b16 %v696, %v692
    %v1029 = vpack.c.b16 %v697, %v693
    %v1030 = vpack.c.b16 %v702, %v698
    %v1031 = vpack.c.b16 %v703, %v699
    %v1032 = vpack.c.b16 %v704, %v700
    %v1033 = vpack.c.b16 %v705, %v701
    %v1034 = vpack.c.b16 %v710, %v706
    %v1035 = vpack.c.b16 %v711, %v707
    %v1036 = vpack.c.b16 %v712, %v708
    %v1037 = vpack.c.b16 %v713, %v709
    %v1038 = vpack.c.b16 %v718, %v714
    %v1039 = vpack.c.b16 %v719, %v715
    %v1040 = vpack.c.b16 %v720, %v716
    %v1041 = vpack.c.b16 %v721, %v717
    %v1042 = vpack.c.b16 %v726, %v722
    %v1043 = vpack.c.b16 %v727, %v723
    %v1044 = vpack.c.b16 %v728, %v724
    %v1045 = vpack.c.b16 %v729, %v725
    %v1046 = vpack.c.b16 %v734, %v730
    %v1047 = vpack.c.b16 %v735, %v731
    %v1048 = vpack.c.b16 %v736, %v732
    %v1049 = vpack.c.b16 %v737, %v733
    %v1050 = vpack.c.b16 %v742, %v738
    %v1051 = vpack.c.b16 %v743, %v739
    %v1052 = vpack.c.b16 %v744, %v740
    %v1053 = vpack.c.b16 %v745, %v741
    %v1054 = vpack.c.b16 %v750, %v746
    %v1055 = vpack.c.b16 %v751, %v747
    %v1056 = vpack.c.b16 %v752, %v748
    %v1057 = vpack.c.b16 %v753, %v749
    %v1058 = vpack.c.b16 %v758, %v754
    %v1059 = vpack.c.b16 %v759, %v755
    %v1060 = vpack.c.b16 %v760, %v756
    %v1061 = vpack.c.b16 %v761, %v757
    %v1062 = vpack.c.b16 %v766, %v762
    %v1063 = vpack.c.b16 %v767, %v763
    %v1064 = vpack.c.b16 %v768, %v764
    %v1065 = vpack.c.b16 %v769, %v765
    %v1066 = vpack.c.b16 %v774, %v770
    %v1067 = vpack.c.b16 %v775, %v771
    %v1068 = vpack.c.b16 %v776, %v772
    %v1069 = vpack.c.b16 %v777, %v773
    %v1070 = vpack.c.b16 %v782, %v778
    %v1071 = vpack.c.b16 %v783, %v779
    %v1072 = vpack.c.b16 %v784, %v780
    %v1073 = vpack.c.b16 %v785, %v781
    %v1074 = vpack.c.b16 %v790, %v786
    %v1075 = vpack.c.b16 %v791, %v787
    %v1076 = vpack.c.b16 %v792, %v788
    %v1077 = vpack.c.b16 %v793, %v789
    %v1078 = vpack.c.b16 %v798, %v794
    %v1079 = vpack.c.b16 %v799, %v795
    %v1080 = vpack.c.b16 %v800, %v796
    %v1081 = vpack.c.b16 %v801, %v797
    %v1082 = vpack.c.b16 %v806, %v802
    %v1083 = vpack.c.b16 %v807, %v803
    %v1084 = vpack.c.b16 %v808, %v804
    %v1085 = vpack.c.b16 %v809, %v805
    %v1086 = vpack.c.b16 %v814, %v810
    %v1087 = vpack.c.b16 %v815, %v811
    %v1088 = vpack.c.b16 %v816, %v812
    %v1089 = vpack.c.b16 %v817, %v813
    %v1090 = vpack.c.b16 %v822, %v818
    %v1091 = vpack.c.b16 %v823, %v819
    %v1092 = vpack.c.b16 %v824, %v820
    %v1093 = vpack.c.b16 %v825, %v821
    %v1094 = vpack.c.b16 %v830, %v826
    %v1095 = vpack.c.b16 %v831, %v827
    %v1096 = vpack.c.b16 %v832, %v828
    %v1097 = vpack.c.b16 %v833, %v829
    %v1098 = vpack.c.b16 %v838, %v834
    %v1099 = vpack.c.b16 %v839, %v835
    %v1100 = vpack.c.b16 %v840, %v836
    %v1101 = vpack.c.b16 %v841, %v837
    %v1102 = vpack.c.b16 %v846, %v842
    %v1103 = vpack.c.b16 %v847, %v843
    %v1104 = vpack.c.b16 %v848, %v844
    %v1105 = vpack.c.b16 %v849, %v845
    %v1106 = vpack.c.b16 %v854, %v850
    %v1107 = vpack.c.b16 %v855, %v851
    %v1108 = vpack.c.b16 %v856, %v852
    %v1109 = vpack.c.b16 %v857, %v853
    %v1110 = vpack.c.b16 %v862, %v858
    %v1111 = vpack.c.b16 %v863, %v859
    %v1112 = vpack.c.b16 %v864, %v860
    %v1113 = vpack.c.b16 %v865, %v861
    %v1114 = vpack.c.b16 %v870, %v866
    %v1115 = vpack.c.b16 %v871, %v867
    %v1116 = vpack.c.b16 %v872, %v868
    %v1117 = vpack.c.b16 %v873, %v869
    %v1118 = vpack.c.b16 %v878, %v874
    %v1119 = vpack.c.b16 %v879, %v875
    %v1120 = vpack.c.b16 %v880, %v876
    %v1121 = vpack.c.b16 %v881, %v877
    %v1122 = vpack.c.b16 %v886, %v882
    %v1123 = vpack.c.b16 %v887, %v883
    %v1124 = vpack.c.b16 %v888, %v884
    %v1125 = vpack.c.b16 %v889, %v885
    %v1126 = vpack.c.b16 %v894, %v890
    %v1127 = vpack.c.b16 %v895, %v891
    %v1128 = vpack.c.b16 %v896, %v892
    %v1129 = vpack.c.b16 %v897, %v893
    %v1130 = vpack.c.b16 %v902, %v898
    %v1131 = vpack.c.b16 %v903, %v899
    %v1132 = vpack.c.b16 %v904, %v900
    %v1133 = vpack.c.b16 %v905, %v901
    %v1134 = vpack.c.b16 %v910, %v906
    %v1135 = vpack.c.b16 %v911, %v907
    %v1136 = vpack.c.b16 %v912, %v908
    %v1137 = vpack.c.b16 %v913, %v909
    %v1138 = vpack.c.b16 %v918, %v914
    %v1139 = vpack.c.b16 %v919, %v915
    %v1140 = vpack.c.b16 %v920, %v916
    %v1141 = vpack.c.b16 %v921, %v917
    %v1142 = vpack.c.b16 %v926, %v922
    %v1143 = vpack.c.b16 %v927, %v923
    %v1144 = vpack.c.b16 %v928, %v924
    %v1145 = vpack.c.b16 %v929, %v925
    %v1146 = vpack.c.b16 %v934, %v930
    %v1147 = vpack.c.b16 %v935, %v931
    %v1148 = vpack.c.b16 %v936, %v932
    %v1149 = vpack.c.b16 %v937, %v933
    %v1150 = vpack.c.b16 %v942, %v938
    %v1151 = vpack.c.b16 %v943, %v939
    %v1152 = vpack.c.b16 %v944, %v940
    %v1153 = vpack.c.b16 %v945, %v941
    %v1154 = vpack.c.b16 %v950, %v946
    %v1155 = vpack.c.b16 %v951, %v947
    %v1156 = vpack.c.b16 %v952, %v948
    %v1157 = vpack.c.b16 %v953, %v949
    %v1158 = vpack.c.b16 %v958, %v954
    %v1159 = vpack.c.b16 %v959, %v955
    %v1160 = vpack.c.b16 %v960, %v956
    %v1161 = vpack.c.b16 %v961, %v957
    %v1162 = vpack.c.b16 %v966, %v962
    %v1163 = vpack.c.b16 %v967, %v963
    %v1164 = vpack.c.b16 %v968, %v964
    %v1165 = vpack.c.b16 %v969, %v965
    %vm1362 = vcmask 130048
    %v1364 = vsel %vm1362, %v375, 0
    %1366 = vmatprep.subr.bf16.mxu0 %v971
    %1367 = vmatpush1.bf16.msra.mxu0 %v970
    %1368 = vmatprep.subr.bf16.mxu0 %v975
    %1369 = vmatpush1.bf16.msra.mxu0 %v974
    %1370 = vmatprep.subr.bf16.mxu0 %v979
    %1371 = vmatpush1.bf16.msra.mxu0 %v978
    %1372 = vmatprep.subr.bf16.mxu0 %v983
    %1373 = vmatpush1.bf16.msra.mxu0 %v982
    %1374 = vmatprep.subr.bf16.mxu0 %v987
    %1375 = vmatpush1.bf16.msra.mxu0 %v986
    %1376 = vmatprep.subr.bf16.mxu0 %v991
    %1377 = vmatpush1.bf16.msra.mxu0 %v990
    %1378 = vmatprep.subr.bf16.mxu0 %v995
    %1379 = vmatpush1.bf16.msra.mxu0 %v994
    %1380 = vmatprep.subr.bf16.mxu0 %v999
    %1381 = vmatpush1.bf16.msra.mxu0 %v998
    %1382 = vmatprep.subr.bf16.mxu0 %v1003
    %1383 = vmatpush1.bf16.msra.mxu0 %v1002
    %1384 = vmatprep.subr.bf16.mxu0 %v1007
    %1385 = vmatpush1.bf16.msra.mxu0 %v1006
    %1386 = vmatprep.subr.bf16.mxu0 %v1011
    %1387 = vmatpush1.bf16.msra.mxu0 %v1010
    %1388 = vmatprep.subr.bf16.mxu0 %v1015
    %1389 = vmatpush1.bf16.msra.mxu0 %v1014
    %1390 = vmatprep.subr.bf16.mxu0 %v1019
    %1391 = vmatpush1.bf16.msra.mxu0 %v1018
    %1392 = vmatprep.subr.bf16.mxu0 %v1023
    %1393 = vmatpush1.bf16.msra.mxu0 %v1022
    %1394 = vmatprep.subr.bf16.mxu0 %v1027
    %1395 = vmatpush1.bf16.msra.mxu0 %v1026
    %1396 = vmatprep.subr.bf16.mxu0 %v1031
    %1397 = vmatpush1.bf16.msra.mxu0 %v1030
    %1398 = vmatprep.mubr.bf16.mxu0 %v370
    %1399 = vmatmul.mubr.bf16.gmra.mrb[0].mxu0 %v369
    %v1400 = vpop.f32.mrb[0].mxu0
    %v1401 = vadd.f32 %v334, %v1400
    %v1402 = vpop.f32.mrb[0].mxu0
    %v1403 = vadd.f32 %v338, %v1402
    %v1404 = vpop.f32.mrb[0].mxu0
    %v1405 = vadd.f32 %v334, %v1404
    %v1406 = vpop.f32.mrb[0].mxu0
    %v1407 = vadd.f32 %v338, %v1406
    %1408 = vdwg.mxu0
    %1409 = vmatprep.subr.bf16.mxu0 %v1035
    %1410 = vmatpush1.bf16.msra.mxu0 %v1034
    %1411 = vmatprep.subr.bf16.mxu0 %v1039
    %1412 = vmatpush1.bf16.msra.mxu0 %v1038
    %1413 = vmatprep.subr.bf16.mxu0 %v1043
    %1414 = vmatpush1.bf16.msra.mxu0 %v1042
    %1415 = vmatprep.subr.bf16.mxu0 %v1047
    %1416 = vmatpush1.bf16.msra.mxu0 %v1046
    %1417 = vmatprep.subr.bf16.mxu0 %v1051
    %1418 = vmatpush1.bf16.msra.mxu0 %v1050
    %1419 = vmatprep.subr.bf16.mxu0 %v1055
    %1420 = vmatpush1.bf16.msra.mxu0 %v1054
    %1421 = vmatprep.subr.bf16.mxu0 %v1059
    %1422 = vmatpush1.bf16.msra.mxu0 %v1058
    %1423 = vmatprep.subr.bf16.mxu0 %v1063
    %1424 = vmatpush1.bf16.msra.mxu0 %v1062
    %1425 = vmatprep.subr.bf16.mxu0 %v1067
    %1426 = vmatpush1.bf16.msra.mxu0 %v1066
    %1427 = vmatprep.subr.bf16.mxu0 %v1071
    %1428 = vmatpush1.bf16.msra.mxu0 %v1070
    %1429 = vmatprep.subr.bf16.mxu0 %v1075
    %1430 = vmatpush1.bf16.msra.mxu0 %v1074
    %1431 = vmatprep.subr.bf16.mxu0 %v1079
    %1432 = vmatpush1.bf16.msra.mxu0 %v1078
    %1433 = vmatprep.subr.bf16.mxu0 %v1083
    %1434 = vmatpush1.bf16.msra.mxu0 %v1082
    %1435 = vmatprep.subr.bf16.mxu0 %v1087
    %1436 = vmatpush1.bf16.msra.mxu0 %v1086
    %1437 = vmatprep.subr.bf16.mxu0 %v1091
    %1438 = vmatpush1.bf16.msra.mxu0 %v1090
    %1439 = vmatprep.subr.bf16.mxu0 %v1095
    %1440 = vmatpush1.bf16.msra.mxu0 %v1094
    %1441 = vmatprep.mubr.bf16.mxu0 %v372
    %1442 = vmatmul.mubr.bf16.gmra.mrb[0].mxu0 %v371
    %v1443 = vpop.f32.mrb[0].mxu0
    %v1444 = vadd.f32 %v1401, %v1443
    %v1445 = vpop.f32.mrb[0].mxu0
    %v1446 = vadd.f32 %v1403, %v1445
    %v1447 = vpop.f32.mrb[0].mxu0
    %v1448 = vadd.f32 %v1405, %v1447
    %v1449 = vpop.f32.mrb[0].mxu0
    %v1450 = vadd.f32 %v1407, %v1449
    %1451 = vdwg.mxu0
    %1452 = vmatprep.subr.bf16.mxu0 %v1099
    %1453 = vmatpush1.bf16.msra.mxu0 %v1098
    %1454 = vmatprep.subr.bf16.mxu0 %v1103
    %1455 = vmatpush1.bf16.msra.mxu0 %v1102
    %1456 = vmatprep.subr.bf16.mxu0 %v1107
    %1457 = vmatpush1.bf16.msra.mxu0 %v1106
    %1458 = vmatprep.subr.bf16.mxu0 %v1111
    %1459 = vmatpush1.bf16.msra.mxu0 %v1110
    %1460 = vmatprep.subr.bf16.mxu0 %v1115
    %1461 = vmatpush1.bf16.msra.mxu0 %v1114
    %1462 = vmatprep.subr.bf16.mxu0 %v1119
    %1463 = vmatpush1.bf16.msra.mxu0 %v1118
    %1464 = vmatprep.subr.bf16.mxu0 %v1123
    %1465 = vmatpush1.bf16.msra.mxu0 %v1122
    %1466 = vmatprep.subr.bf16.mxu0 %v1127
    %1467 = vmatpush1.bf16.msra.mxu0 %v1126
    %1468 = vmatprep.subr.bf16.mxu0 %v1131
    %1469 = vmatpush1.bf16.msra.mxu0 %v1130
    %1470 = vmatprep.subr.bf16.mxu0 %v1135
    %1471 = vmatpush1.bf16.msra.mxu0 %v1134
    %1472 = vmatprep.subr.bf16.mxu0 %v1139
    %1473 = vmatpush1.bf16.msra.mxu0 %v1138
    %1474 = vmatprep.subr.bf16.mxu0 %v1143
    %1475 = vmatpush1.bf16.msra.mxu0 %v1142
    %1476 = vmatprep.subr.bf16.mxu0 %v1147
    %1477 = vmatpush1.bf16.msra.mxu0 %v1146
    %1478 = vmatprep.subr.bf16.mxu0 %v1151
    %1479 = vmatpush1.bf16.msra.mxu0 %v1150
    %1480 = vmatprep.subr.bf16.mxu0 %v1155
    %1481 = vmatpush1.bf16.msra.mxu0 %v1154
    %1482 = vmatprep.subr.bf16.mxu0 %v1159
    %1483 = vmatpush1.bf16.msra.mxu0 %v1158
    %1484 = vmatprep.mubr.bf16.mxu0 %v374
    %1485 = vmatmul.mubr.bf16.gmra.mrb[0].mxu0 %v373
    %v1486 = vpop.f32.mrb[0].mxu0
    %v1487 = vadd.f32 %v1444, %v1486
    %v1488 = vpop.f32.mrb[0].mxu0
    %v1489 = vadd.f32 %v1446, %v1488
    %v1490 = vpop.f32.mrb[0].mxu0
    %v1491 = vadd.f32 %v1448, %v1490
    %v1492 = vpop.f32.mrb[0].mxu0
    %v1493 = vadd.f32 %v1450, %v1492
    %1494 = vdwg.mxu0
    %1495 = vmatprep.subr.bf16.mxu0 %v1163
    %1496 = vmatpush1.bf16.msra.mxu0 %v1162
    %1497 = vmatprep.subr.bf16.mxu0 0
    %1498 = vmatpush1.bf16.msra.mxu0 0
    %1499 = vmatprep.subr.bf16.mxu0 0
    %1500 = vmatpush1.bf16.msra.mxu0 0
    %1501 = vmatprep.subr.bf16.mxu0 0
    %1502 = vmatpush1.bf16.msra.mxu0 0
    %1503 = vmatprep.subr.bf16.mxu0 0
    %1504 = vmatpush1.bf16.msra.mxu0 0
    %1505 = vmatprep.subr.bf16.mxu0 0
    %1506 = vmatpush1.bf16.msra.mxu0 0
    %1507 = vmatprep.subr.bf16.mxu0 0
    %1508 = vmatpush1.bf16.msra.mxu0 0
    %1509 = vmatprep.subr.bf16.mxu0 0
    %1510 = vmatpush1.bf16.msra.mxu0 0
    %1511 = vmatprep.subr.bf16.mxu0 0
    %1512 = vmatpush1.bf16.msra.mxu0 0
    %1513 = vmatprep.subr.bf16.mxu0 0
    %1514 = vmatpush1.bf16.msra.mxu0 0
    %1515 = vmatprep.subr.bf16.mxu0 0
    %1516 = vmatpush1.bf16.msra.mxu0 0
    %1517 = vmatprep.subr.bf16.mxu0 0
    %1518 = vmatpush1.bf16.msra.mxu0 0
    %1519 = vmatprep.subr.bf16.mxu0 0
    %1520 = vmatpush1.bf16.msra.mxu0 0
    %1521 = vmatprep.subr.bf16.mxu0 0
    %1522 = vmatpush1.bf16.msra.mxu0 0
    %1523 = vmatprep.subr.bf16.mxu0 0
    %1524 = vmatpush1.bf16.msra.mxu0 0
    %1525 = vmatprep.subr.bf16.mxu0 0
    %1526 = vmatpush1.bf16.msra.mxu0 0
    %1527 = vmatprep.mubr.bf16.mxu0 0
    %1528 = vmatmul.mubr.bf16.gmra.mrb[0].mxu0 %v1364
    %v1529 = vpop.f32.mrb[0].mxu0
    %v1530 = vadd.f32 %v1487, %v1529
    %v1531 = vpop.f32.mrb[0].mxu0
    %v1532 = vadd.f32 %v1489, %v1531
    %v1533 = vpop.f32.mrb[0].mxu0
    %v1534 = vadd.f32 %v1491, %v1533
    %v1535 = vpop.f32.mrb[0].mxu0
    %v1536 = vadd.f32 %v1493, %v1535
    %1537 = vdwg.mxu0
    %1538 = vmatprep.subr.bf16.mxu0 %v973
    %1539 = vmatpush1.bf16.msra.mxu0 %v972
    %1540 = vmatprep.subr.bf16.mxu0 %v977
    %1541 = vmatpush1.bf16.msra.mxu0 %v976
    %1542 = vmatprep.subr.bf16.mxu0 %v981
    %1543 = vmatpush1.bf16.msra.mxu0 %v980
    %1544 = vmatprep.subr.bf16.mxu0 %v985
    %1545 = vmatpush1.bf16.msra.mxu0 %v984
    %1546 = vmatprep.subr.bf16.mxu0 %v989
    %1547 = vmatpush1.bf16.msra.mxu0 %v988
    %1548 = vmatprep.subr.bf16.mxu0 %v993
    %1549 = vmatpush1.bf16.msra.mxu0 %v992
    %1550 = vmatprep.subr.bf16.mxu0 %v997
    %1551 = vmatpush1.bf16.msra.mxu0 %v996
    %1552 = vmatprep.subr.bf16.mxu0 %v1001
    %1553 = vmatpush1.bf16.msra.mxu0 %v1000
    %1554 = vmatprep.subr.bf16.mxu0 %v1005
    %1555 = vmatpush1.bf16.msra.mxu0 %v1004
    %1556 = vmatprep.subr.bf16.mxu0 %v1009
    %1557 = vmatpush1.bf16.msra.mxu0 %v1008
    %1558 = vmatprep.subr.bf16.mxu0 %v1013
    %1559 = vmatpush1.bf16.msra.mxu0 %v1012
    %1560 = vmatprep.subr.bf16.mxu0 %v1017
    %1561 = vmatpush1.bf16.msra.mxu0 %v1016
    %1562 = vmatprep.subr.bf16.mxu0 %v1021
    %1563 = vmatpush1.bf16.msra.mxu0 %v1020
    %1564 = vmatprep.subr.bf16.mxu0 %v1025
    %1565 = vmatpush1.bf16.msra.mxu0 %v1024
    %1566 = vmatprep.subr.bf16.mxu0 %v1029
    %1567 = vmatpush1.bf16.msra.mxu0 %v1028
    %1568 = vmatprep.subr.bf16.mxu0 %v1033
    %1569 = vmatpush1.bf16.msra.mxu0 %v1032
    %1570 = vmatprep.mubr.bf16.mxu0 %v370
    %1571 = vmatmul.mubr.bf16.gmra.mrb[0].mxu0 %v369
    %v1572 = vpop.f32.mrb[0].mxu0
    %v1573 = vadd.f32 %v342, %v1572
    %v1574 = vpop.f32.mrb[0].mxu0
    %v1575 = vadd.f32 %v346, %v1574
    %v1576 = vpop.f32.mrb[0].mxu0
    %v1577 = vadd.f32 %v342, %v1576
    %v1578 = vpop.f32.mrb[0].mxu0
    %v1579 = vadd.f32 %v346, %v1578
    %1580 = vdwg.mxu0
    %1581 = vmatprep.subr.bf16.mxu0 %v1037
    %1582 = vmatpush1.bf16.msra.mxu0 %v1036
    %1583 = vmatprep.subr.bf16.mxu0 %v1041
    %1584 = vmatpush1.bf16.msra.mxu0 %v1040
    %1585 = vmatprep.subr.bf16.mxu0 %v1045
    %1586 = vmatpush1.bf16.msra.mxu0 %v1044
    %1587 = vmatprep.subr.bf16.mxu0 %v1049
    %1588 = vmatpush1.bf16.msra.mxu0 %v1048
    %1589 = vmatprep.subr.bf16.mxu0 %v1053
    %1590 = vmatpush1.bf16.msra.mxu0 %v1052
    %1591 = vmatprep.subr.bf16.mxu0 %v1057
    %1592 = vmatpush1.bf16.msra.mxu0 %v1056
    %1593 = vmatprep.subr.bf16.mxu0 %v1061
    %1594 = vmatpush1.bf16.msra.mxu0 %v1060
    %1595 = vmatprep.subr.bf16.mxu0 %v1065
    %1596 = vmatpush1.bf16.msra.mxu0 %v1064
    %1597 = vmatprep.subr.bf16.mxu0 %v1069
    %1598 = vmatpush1.bf16.msra.mxu0 %v1068
    %1599 = vmatprep.subr.bf16.mxu0 %v1073
    %1600 = vmatpush1.bf16.msra.mxu0 %v1072
    %1601 = vmatprep.subr.bf16.mxu0 %v1077
    %1602 = vmatpush1.bf16.msra.mxu0 %v1076
    %1603 = vmatprep.subr.bf16.mxu0 %v1081
    %1604 = vmatpush1.bf16.msra.mxu0 %v1080
    %1605 = vmatprep.subr.bf16.mxu0 %v1085
    %1606 = vmatpush1.bf16.msra.mxu0 %v1084
    %1607 = vmatprep.subr.bf16.mxu0 %v1089
    %1608 = vmatpush1.bf16.msra.mxu0 %v1088
    %1609 = vmatprep.subr.bf16.mxu0 %v1093
    %1610 = vmatpush1.bf16.msra.mxu0 %v1092
    %1611 = vmatprep.subr.bf16.mxu0 %v1097
    %1612 = vmatpush1.bf16.msra.mxu0 %v1096
    %1613 = vmatprep.mubr.bf16.mxu0 %v372
    %1614 = vmatmul.mubr.bf16.gmra.mrb[0].mxu0 %v371
    %v1615 = vpop.f32.mrb[0].mxu0
    %v1616 = vadd.f32 %v1573, %v1615
    %v1617 = vpop.f32.mrb[0].mxu0
    %v1618 = vadd.f32 %v1575, %v1617
    %v1619 = vpop.f32.mrb[0].mxu0
    %v1620 = vadd.f32 %v1577, %v1619
    %v1621 = vpop.f32.mrb[0].mxu0
    %v1622 = vadd.f32 %v1579, %v1621
    %1623 = vdwg.mxu0
    %1624 = vmatprep.subr.bf16.mxu0 %v1101
    %1625 = vmatpush1.bf16.msra.mxu0 %v1100
    %1626 = vmatprep.subr.bf16.mxu0 %v1105
    %1627 = vmatpush1.bf16.msra.mxu0 %v1104
    %1628 = vmatprep.subr.bf16.mxu0 %v1109
    %1629 = vmatpush1.bf16.msra.mxu0 %v1108
    %1630 = vmatprep.subr.bf16.mxu0 %v1113
    %1631 = vmatpush1.bf16.msra.mxu0 %v1112
    %1632 = vmatprep.subr.bf16.mxu0 %v1117
    %1633 = vmatpush1.bf16.msra.mxu0 %v1116
    %1634 = vmatprep.subr.bf16.mxu0 %v1121
    %1635 = vmatpush1.bf16.msra.mxu0 %v1120
    %1636 = vmatprep.subr.bf16.mxu0 %v1125
    %1637 = vmatpush1.bf16.msra.mxu0 %v1124
    %1638 = vmatprep.subr.bf16.mxu0 %v1129
    %1639 = vmatpush1.bf16.msra.mxu0 %v1128
    %1640 = vmatprep.subr.bf16.mxu0 %v1133
    %1641 = vmatpush1.bf16.msra.mxu0 %v1132
    %1642 = vmatprep.subr.bf16.mxu0 %v1137
    %1643 = vmatpush1.bf16.msra.mxu0 %v1136
    %1644 = vmatprep.subr.bf16.mxu0 %v1141
    %1645 = vmatpush1.bf16.msra.mxu0 %v1140
    %1646 = vmatprep.subr.bf16.mxu0 %v1145
    %1647 = vmatpush1.bf16.msra.mxu0 %v1144
    %1648 = vmatprep.subr.bf16.mxu0 %v1149
    %1649 = vmatpush1.bf16.msra.mxu0 %v1148
    %1650 = vmatprep.subr.bf16.mxu0 %v1153
    %1651 = vmatpush1.bf16.msra.mxu0 %v1152
    %1652 = vmatprep.subr.bf16.mxu0 %v1157
    %1653 = vmatpush1.bf16.msra.mxu0 %v1156
    %1654 = vmatprep.subr.bf16.mxu0 %v1161
    %1655 = vmatpush1.bf16.msra.mxu0 %v1160
    %1656 = vmatprep.mubr.bf16.mxu0 %v374
    %1657 = vmatmul.mubr.bf16.gmra.mrb[0].mxu0 %v373
    %v1658 = vpop.f32.mrb[0].mxu0
    %v1659 = vadd.f32 %v1616, %v1658
    %v1660 = vpop.f32.mrb[0].mxu0
    %v1661 = vadd.f32 %v1618, %v1660
    %v1662 = vpop.f32.mrb[0].mxu0
    %v1663 = vadd.f32 %v1620, %v1662
    %v1664 = vpop.f32.mrb[0].mxu0
    %v1665 = vadd.f32 %v1622, %v1664
    %1666 = vdwg.mxu0
    %1667 = vmatprep.subr.bf16.mxu0 %v1165
    %1668 = vmatpush1.bf16.msra.mxu0 %v1164
    %1669 = vmatprep.subr.bf16.mxu0 0
    %1670 = vmatpush1.bf16.msra.mxu0 0
    %1671 = vmatprep.subr.bf16.mxu0 0
    %1672 = vmatpush1.bf16.msra.mxu0 0
    %1673 = vmatprep.subr.bf16.mxu0 0
    %1674 = vmatpush1.bf16.msra.mxu0 0
    %1675 = vmatprep.subr.bf16.mxu0 0
    %1676 = vmatpush1.bf16.msra.mxu0 0
    %1677 = vmatprep.subr.bf16.mxu0 0
    %1678 = vmatpush1.bf16.msra.mxu0 0
    %1679 = vmatprep.subr.bf16.mxu0 0
    %1680 = vmatpush1.bf16.msra.mxu0 0
    %1681 = vmatprep.subr.bf16.mxu0 0
    %1682 = vmatpush1.bf16.msra.mxu0 0
    %1683 = vmatprep.subr.bf16.mxu0 0
    %1684 = vmatpush1.bf16.msra.mxu0 0
    %1685 = vmatprep.subr.bf16.mxu0 0
    %1686 = vmatpush1.bf16.msra.mxu0 0
    %1687 = vmatprep.subr.bf16.mxu0 0
    %1688 = vmatpush1.bf16.msra.mxu0 0
    %1689 = vmatprep.subr.bf16.mxu0 0
    %1690 = vmatpush1.bf16.msra.mxu0 0
    %1691 = vmatprep.subr.bf16.mxu0 0
    %1692 = vmatpush1.bf16.msra.mxu0 0
    %1693 = vmatprep.subr.bf16.mxu0 0
    %1694 = vmatpush1.bf16.msra.mxu0 0
    %1695 = vmatprep.subr.bf16.mxu0 0
    %1696 = vmatpush1.bf16.msra.mxu0 0
    %1697 = vmatprep.subr.bf16.mxu0 0
    %1698 = vmatpush1.bf16.msra.mxu0 0
    %1699 = vmatprep.mubr.bf16.mxu0 0
    %1700 = vmatmul.mubr.bf16.gmra.mrb[0].mxu0 %v1364
    %v1701 = vpop.f32.mrb[0].mxu0
    %v1702 = vadd.f32 %v1659, %v1701
    %v1703 = vpop.f32.mrb[0].mxu0
    %v1704 = vadd.f32 %v1661, %v1703
    %v1705 = vpop.f32.mrb[0].mxu0
    %v1706 = vadd.f32 %v1663, %v1705
    %v1707 = vpop.f32.mrb[0].mxu0
    %v1708 = vadd.f32 %v1665, %v1707
    %1709 = vdwg.mxu0
    %v1710 = vmul.f32 %v1530, 0.5
    %v1711 = vmul.f32 %v1532, 0.5
    %v1712 = vmul.f32 %v1702, 0.5
    %v1713 = vmul.f32 %v1704, 0.5
    %v1714 = vmul.f32 %v1534, 0.5
    %v1715 = vmul.f32 %v1536, 0.5
    %v1716 = vmul.f32 %v1706, 0.5
    %v1717 = vmul.f32 %v1708, 0.5
    %v1718 = vtanh.pop %v1710
    %v1719 = vtanh.pop %v1711
    %v1720 = vtanh.pop %v1712
    %v1721 = vtanh.pop %v1713
    %v1722 = vtanh.pop %v1714
    %v1723 = vtanh.pop %v1715
    %v1724 = vtanh.pop %v1716
    %v1725 = vtanh.pop %v1717
    %v1726 = vmul.f32 %v1718, 0.5
    %v1727 = vmul.f32 %v1719, 0.5
    %v1728 = vmul.f32 %v1720, 0.5
    %v1729 = vmul.f32 %v1721, 0.5
    %v1730 = vmul.f32 %v1722, 0.5
    %v1731 = vmul.f32 %v1723, 0.5
    %v1732 = vmul.f32 %v1724, 0.5
    %v1733 = vmul.f32 %v1725, 0.5
    %v1734 = vadd.f32 %v1726, 0.5
    %v1735 = vadd.f32 %v1727, 0.5
    %v1736 = vadd.f32 %v1728, 0.5
    %v1737 = vadd.f32 %v1729, 0.5
    %v1738 = vadd.f32 %v1730, 0.5
    %v1739 = vadd.f32 %v1731, 0.5
    %v1740 = vadd.f32 %v1732, 0.5
    %v1741 = vadd.f32 %v1733, 0.5
    %v1742 = vld [vmem:[#allocation8] sm:$0xff]
    %v1743 = vld [vmem:[#allocation8 + $0x8] sm:$0xff]
    %v1744 = vld [vmem:[#allocation8 + $0x10] sm:$0xff]
    %v1745 = vld [vmem:[#allocation8 + $0x18] sm:$0xff]
    %v1746 = vld [vmem:[#allocation8 + $0x20] sm:$0xff]
    %v1747 = vld [vmem:[#allocation8 + $0x28] sm:$0xff]
    %v1748 = vld [vmem:[#allocation8 + $0x30] sm:$0xff]
    %v1749 = vld [vmem:[#allocation8 + $0x38] sm:$0xff]
    %v1750 = vld [vmem:[#allocation8 + $0x40] sm:$0xff]
    %v1751 = vld [vmem:[#allocation8 + $0x48] sm:$0xff]
    %v1752 = vld [vmem:[#allocation8 + $0x50] sm:$0xff]
    %v1753 = vld [vmem:[#allocation8 + $0x58] sm:$0xff]
    %v1754 = vld [vmem:[#allocation8 + $0x60] sm:$0xff]
    %v1755 = vld [vmem:[#allocation8 + $0x68] sm:$0xff]
    %v1756 = vld [vmem:[#allocation8 + $0x70] sm:$0xff]
    %v1757 = vld [vmem:[#allocation8 + $0x78] sm:$0xff]
    %v1758 = vld [vmem:[#allocation8 + $0x80] sm:$0xff]
    %v1759 = vld [vmem:[#allocation8 + $0x88] sm:$0xff]
    %v1760 = vld [vmem:[#allocation8 + $0x90] sm:$0xff]
    %v1761 = vld [vmem:[#allocation8 + $0x98] sm:$0xff]
    %v1762 = vld [vmem:[#allocation8 + $0xa0] sm:$0xff]
    %v1763 = vld [vmem:[#allocation8 + $0xa8] sm:$0xff]
    %v1764 = vld [vmem:[#allocation8 + $0xb0] sm:$0xff]
    %v1765 = vld [vmem:[#allocation8 + $0xb8] sm:$0xff]
    %v1766 = vld [vmem:[#allocation8 + $0xc0] sm:$0xff]
    %v1767 = vld [vmem:[#allocation8 + $0xc8] sm:$0xff]
    %v1768 = vld [vmem:[#allocation8 + $0xd0] sm:$0xff]
    %v1769 = vld [vmem:[#allocation8 + $0xd8] sm:$0xff]
    %v1770 = vld [vmem:[#allocation8 + $0xe0] sm:$0xff]
    %v1771 = vld [vmem:[#allocation8 + $0xe8] sm:$0xff]
    %v1772 = vld [vmem:[#allocation8 + $0xf0] sm:$0xff]
    %v1773 = vld [vmem:[#allocation8 + $0xf8] sm:$0xff]
    %v1774 = vld [vmem:[#allocation8 + $0x100] sm:$0xff]
    %v1775 = vld [vmem:[#allocation8 + $0x108] sm:$0xff]
    %v1776 = vld [vmem:[#allocation8 + $0x110] sm:$0xff]
    %v1777 = vld [vmem:[#allocation8 + $0x118] sm:$0xff]
    %v1778 = vld [vmem:[#allocation8 + $0x120] sm:$0xff]
    %v1779 = vld [vmem:[#allocation8 + $0x128] sm:$0xff]
    %v1780 = vld [vmem:[#allocation8 + $0x130] sm:$0xff]
    %v1781 = vld [vmem:[#allocation8 + $0x138] sm:$0xff]
    %v1782 = vld [vmem:[#allocation8 + $0x140] sm:$0xff]
    %v1783 = vld [vmem:[#allocation8 + $0x148] sm:$0xff]
    %v1784 = vld [vmem:[#allocation8 + $0x150] sm:$0xff]
    %v1785 = vld [vmem:[#allocation8 + $0x158] sm:$0xff]
    %v1786 = vld [vmem:[#allocation8 + $0x160] sm:$0xff]
    %v1787 = vld [vmem:[#allocation8 + $0x168] sm:$0xff]
    %v1788 = vld [vmem:[#allocation8 + $0x170] sm:$0xff]
    %v1789 = vld [vmem:[#allocation8 + $0x178] sm:$0xff]
    %v1790 = vld [vmem:[#allocation8 + $0x180] sm:$0xff]
    %v1791 = vld [vmem:[#allocation8 + $0x188] sm:$0xff]
    %v1792 = vld [vmem:[#allocation8 + $0x190] sm:$0xff]
    %v1793 = vld [vmem:[#allocation8 + $0x198] sm:$0xff]
    %v1794 = vld [vmem:[#allocation8 + $0x1a0] sm:$0xff]
    %v1795 = vld [vmem:[#allocation8 + $0x1a8] sm:$0xff]
    %v1796 = vld [vmem:[#allocation8 + $0x1b0] sm:$0xff]
    %v1797 = vld [vmem:[#allocation8 + $0x1b8] sm:$0xff]
    %v1798 = vld [vmem:[#allocation8 + $0x1c0] sm:$0xff]
    %v1799 = vld [vmem:[#allocation8 + $0x1c8] sm:$0xff]
    %v1800 = vld [vmem:[#allocation8 + $0x1d0] sm:$0xff]
    %v1801 = vld [vmem:[#allocation8 + $0x1d8] sm:$0xff]
    %v1802 = vld [vmem:[#allocation8 + $0x1e0] sm:$0xff]
    %v1803 = vld [vmem:[#allocation8 + $0x1e8] sm:$0xff]
    %v1804 = vld [vmem:[#allocation8 + $0x1f0] sm:$0xff]
    %v1805 = vld [vmem:[#allocation8 + $0x1f8] sm:$0xff]
    %v1806 = vld [vmem:[#allocation8 + $0x200] sm:$0xff]
    %v1807 = vld [vmem:[#allocation8 + $0x208] sm:$0xff]
    %v1808 = vld [vmem:[#allocation8 + $0x210] sm:$0xff]
    %v1809 = vld [vmem:[#allocation8 + $0x218] sm:$0xff]
    %v1810 = vld [vmem:[#allocation8 + $0x220] sm:$0xff]
    %v1811 = vld [vmem:[#allocation8 + $0x228] sm:$0xff]
    %v1812 = vld [vmem:[#allocation8 + $0x230] sm:$0xff]
    %v1813 = vld [vmem:[#allocation8 + $0x238] sm:$0xff]
    %v1814 = vld [vmem:[#allocation8 + $0x240] sm:$0xff]
    %v1815 = vld [vmem:[#allocation8 + $0x248] sm:$0xff]
    %v1816 = vld [vmem:[#allocation8 + $0x250] sm:$0xff]
    %v1817 = vld [vmem:[#allocation8 + $0x258] sm:$0xff]
    %v1818 = vld [vmem:[#allocation8 + $0x260] sm:$0xff]
    %v1819 = vld [vmem:[#allocation8 + $0x268] sm:$0xff]
    %v1820 = vld [vmem:[#allocation8 + $0x270] sm:$0xff]
    %v1821 = vld [vmem:[#allocation8 + $0x278] sm:$0xff]
    %v1822 = vld [vmem:[#allocation8 + $0x280] sm:$0xff]
    %v1823 = vld [vmem:[#allocation8 + $0x288] sm:$0xff]
    %v1824 = vld [vmem:[#allocation8 + $0x290] sm:$0xff]
    %v1825 = vld [vmem:[#allocation8 + $0x298] sm:$0xff]
    %v1826 = vld [vmem:[#allocation8 + $0x2a0] sm:$0xff]
    %v1827 = vld [vmem:[#allocation8 + $0x2a8] sm:$0xff]
    %v1828 = vld [vmem:[#allocation8 + $0x2b0] sm:$0xff]
    %v1829 = vld [vmem:[#allocation8 + $0x2b8] sm:$0xff]
    %v1830 = vld [vmem:[#allocation8 + $0x2c0] sm:$0xff]
    %v1831 = vld [vmem:[#allocation8 + $0x2c8] sm:$0xff]
    %v1832 = vld [vmem:[#allocation8 + $0x2d0] sm:$0xff]
    %v1833 = vld [vmem:[#allocation8 + $0x2d8] sm:$0xff]
    %v1834 = vld [vmem:[#allocation8 + $0x2e0] sm:$0xff]
    %v1835 = vld [vmem:[#allocation8 + $0x2e8] sm:$0xff]
    %v1836 = vld [vmem:[#allocation8 + $0x2f0] sm:$0xff]
    %v1837 = vld [vmem:[#allocation8 + $0x2f8] sm:$0xff]
    %v1838 = vld [vmem:[#allocation8 + $0x300] sm:$0xff]
    %v1839 = vld [vmem:[#allocation8 + $0x308] sm:$0xff]
    %v1840 = vld [vmem:[#allocation8 + $0x310] sm:$0xff]
    %v1841 = vld [vmem:[#allocation8 + $0x318] sm:$0xff]
    %v1842 = vld [vmem:[#allocation8 + $0x320] sm:$0xff]
    %v1843 = vld [vmem:[#allocation8 + $0x328] sm:$0xff]
    %v1844 = vld [vmem:[#allocation8 + $0x330] sm:$0xff]
    %v1845 = vld [vmem:[#allocation8 + $0x338] sm:$0xff]
    %v1846 = vld [vmem:[#allocation8 + $0x340] sm:$0xff]
    %v1847 = vld [vmem:[#allocation8 + $0x348] sm:$0xff]
    %v1848 = vld [vmem:[#allocation8 + $0x350] sm:$0xff]
    %v1849 = vld [vmem:[#allocation8 + $0x358] sm:$0xff]
    %v1850 = vld [vmem:[#allocation8 + $0x360] sm:$0xff]
    %v1851 = vld [vmem:[#allocation8 + $0x368] sm:$0xff]
    %v1852 = vld [vmem:[#allocation8 + $0x370] sm:$0xff]
    %v1853 = vld [vmem:[#allocation8 + $0x378] sm:$0xff]
    %v1854 = vld [vmem:[#allocation8 + $0x380] sm:$0xff]
    %v1855 = vld [vmem:[#allocation8 + $0x388] sm:$0xff]
    %v1856 = vld [vmem:[#allocation8 + $0x390] sm:$0xff]
    %v1857 = vld [vmem:[#allocation8 + $0x398] sm:$0xff]
    %v1858 = vld [vmem:[#allocation8 + $0x3a0] sm:$0xff]
    %v1859 = vld [vmem:[#allocation8 + $0x3a8] sm:$0xff]
    %v1860 = vld [vmem:[#allocation8 + $0x3b0] sm:$0xff]
    %v1861 = vld [vmem:[#allocation8 + $0x3b8] sm:$0xff]
    %v1862 = vld [vmem:[#allocation8 + $0x3c0] sm:$0xff]
    %v1863 = vld [vmem:[#allocation8 + $0x3c8] sm:$0xff]
    %v1864 = vld [vmem:[#allocation8 + $0x3d0] sm:$0xff]
    %v1865 = vld [vmem:[#allocation8 + $0x3d8] sm:$0xff]
    %v1866 = vld [vmem:[#allocation8 + $0x3e0] sm:$0xff]
    %v1867 = vld [vmem:[#allocation8 + $0x3e8] sm:$0xff]
    %v1868 = vld [vmem:[#allocation8 + $0x3f0] sm:$0xff]
    %v1869 = vld [vmem:[#allocation8 + $0x3f8] sm:$0xff]
    %v1870 = vpack.c.bf16 %v1738, %v1734
    %v1871 = vpack.c.bf16 %v1739, %v1735
    %v1872 = vpack.c.bf16 %v1740, %v1736
    %v1873 = vpack.c.bf16 %v1741, %v1737
    %v1874 = vlaneseq
    %v1875 = vshrl.u32 %v1874, 7
    %v1876 = vsub.s32 1, %v1875
    %v1877 = vrot.slane %v103, %v1876
    %v1878 = vlaneseq
    %v1879 = vshrl.u32 %v1878, 7
    %v1880 = vsub.s32 5, %v1879
    %v1881 = vrot.slane %v103, %v1880
    %v1882 = vlaneseq
    %v1883 = vshrl.u32 %v1882, 7
    %v1884 = vsub.s32 1, %v1883
    %v1885 = vrot.slane %v104, %v1884
    %v1886 = vlaneseq
    %v1887 = vshrl.u32 %v1886, 7
    %v1888 = vsub.s32 5, %v1887
    %v1889 = vrot.slane %v104, %v1888
    %v1894 = vlaneseq
    %v1895 = vshrl.u32 %v1894, 7
    %v1896 = vsub.s32 1, %v1895
    %v1897 = vrot.slane %v1877, %v1896
    %v1898 = vlaneseq
    %v1899 = vshrl.u32 %v1898, 7
    %v1900 = vsub.s32 1, %v1899
    %v1901 = vrot.slane %v1881, %v1900
    %v1902 = vlaneseq
    %v1903 = vshrl.u32 %v1902, 7
    %v1904 = vsub.s32 1, %v1903
    %v1905 = vrot.slane %v1885, %v1904
    %v1906 = vlaneseq
    %v1907 = vshrl.u32 %v1906, 7
    %v1908 = vsub.s32 1, %v1907
    %v1909 = vrot.slane %v1889, %v1908
    %v2038 = vunpack.c.l.b16 %v1742
    %v2039 = vunpack.c.h.b16 %v1742
    %v2040 = vunpack.c.l.b16 %v1743
    %v2041 = vunpack.c.h.b16 %v1743
    %v2042 = vunpack.c.l.b16 %v1744
    %v2043 = vunpack.c.h.b16 %v1744
    %v2044 = vunpack.c.l.b16 %v1745
    %v2045 = vunpack.c.h.b16 %v1745
    %v2046 = vunpack.c.l.b16 %v1746
    %v2047 = vunpack.c.h.b16 %v1746
    %v2048 = vunpack.c.l.b16 %v1747
    %v2049 = vunpack.c.h.b16 %v1747
    %v2050 = vunpack.c.l.b16 %v1748
    %v2051 = vunpack.c.h.b16 %v1748
    %v2052 = vunpack.c.l.b16 %v1749
    %v2053 = vunpack.c.h.b16 %v1749
    %v2054 = vunpack.c.l.b16 %v1750
    %v2055 = vunpack.c.h.b16 %v1750
    %v2056 = vunpack.c.l.b16 %v1751
    %v2057 = vunpack.c.h.b16 %v1751
    %v2058 = vunpack.c.l.b16 %v1752
    %v2059 = vunpack.c.h.b16 %v1752
    %v2060 = vunpack.c.l.b16 %v1753
    %v2061 = vunpack.c.h.b16 %v1753
    %v2062 = vunpack.c.l.b16 %v1754
    %v2063 = vunpack.c.h.b16 %v1754
    %v2064 = vunpack.c.l.b16 %v1755
    %v2065 = vunpack.c.h.b16 %v1755
    %v2066 = vunpack.c.l.b16 %v1756
    %v2067 = vunpack.c.h.b16 %v1756
    %v2068 = vunpack.c.l.b16 %v1757
    %v2069 = vunpack.c.h.b16 %v1757
    %v2070 = vunpack.c.l.b16 %v1758
    %v2071 = vunpack.c.h.b16 %v1758
    %v2072 = vunpack.c.l.b16 %v1759
    %v2073 = vunpack.c.h.b16 %v1759
    %v2074 = vunpack.c.l.b16 %v1760
    %v2075 = vunpack.c.h.b16 %v1760
    %v2076 = vunpack.c.l.b16 %v1761
    %v2077 = vunpack.c.h.b16 %v1761
    %v2078 = vunpack.c.l.b16 %v1762
    %v2079 = vunpack.c.h.b16 %v1762
    %v2080 = vunpack.c.l.b16 %v1763
    %v2081 = vunpack.c.h.b16 %v1763
    %v2082 = vunpack.c.l.b16 %v1764
    %v2083 = vunpack.c.h.b16 %v1764
    %v2084 = vunpack.c.l.b16 %v1765
    %v2085 = vunpack.c.h.b16 %v1765
    %v2086 = vunpack.c.l.b16 %v1766
    %v2087 = vunpack.c.h.b16 %v1766
    %v2088 = vunpack.c.l.b16 %v1767
    %v2089 = vunpack.c.h.b16 %v1767
    %v2090 = vunpack.c.l.b16 %v1768
    %v2091 = vunpack.c.h.b16 %v1768
    %v2092 = vunpack.c.l.b16 %v1769
    %v2093 = vunpack.c.h.b16 %v1769
    %v2094 = vunpack.c.l.b16 %v1770
    %v2095 = vunpack.c.h.b16 %v1770
    %v2096 = vunpack.c.l.b16 %v1771
    %v2097 = vunpack.c.h.b16 %v1771
    %v2098 = vunpack.c.l.b16 %v1772
    %v2099 = vunpack.c.h.b16 %v1772
    %v2100 = vunpack.c.l.b16 %v1773
    %v2101 = vunpack.c.h.b16 %v1773
    %v2102 = vunpack.c.l.b16 %v1774
    %v2103 = vunpack.c.h.b16 %v1774
    %v2104 = vunpack.c.l.b16 %v1775
    %v2105 = vunpack.c.h.b16 %v1775
    %v2106 = vunpack.c.l.b16 %v1776
    %v2107 = vunpack.c.h.b16 %v1776
    %v2108 = vunpack.c.l.b16 %v1777
    %v2109 = vunpack.c.h.b16 %v1777
    %v2110 = vunpack.c.l.b16 %v1778
    %v2111 = vunpack.c.h.b16 %v1778
    %v2112 = vunpack.c.l.b16 %v1779
    %v2113 = vunpack.c.h.b16 %v1779
    %v2114 = vunpack.c.l.b16 %v1780
    %v2115 = vunpack.c.h.b16 %v1780
    %v2116 = vunpack.c.l.b16 %v1781
    %v2117 = vunpack.c.h.b16 %v1781
    %v2118 = vunpack.c.l.b16 %v1782
    %v2119 = vunpack.c.h.b16 %v1782
    %v2120 = vunpack.c.l.b16 %v1783
    %v2121 = vunpack.c.h.b16 %v1783
    %v2122 = vunpack.c.l.b16 %v1784
    %v2123 = vunpack.c.h.b16 %v1784
    %v2124 = vunpack.c.l.b16 %v1785
    %v2125 = vunpack.c.h.b16 %v1785
    %v2126 = vunpack.c.l.b16 %v1786
    %v2127 = vunpack.c.h.b16 %v1786
    %v2128 = vunpack.c.l.b16 %v1787
    %v2129 = vunpack.c.h.b16 %v1787
    %v2130 = vunpack.c.l.b16 %v1788
    %v2131 = vunpack.c.h.b16 %v1788
    %v2132 = vunpack.c.l.b16 %v1789
    %v2133 = vunpack.c.h.b16 %v1789
    %v2134 = vunpack.c.l.b16 %v1790
    %v2135 = vunpack.c.h.b16 %v1790
    %v2136 = vunpack.c.l.b16 %v1791
    %v2137 = vunpack.c.h.b16 %v1791
    %v2138 = vunpack.c.l.b16 %v1792
    %v2139 = vunpack.c.h.b16 %v1792
    %v2140 = vunpack.c.l.b16 %v1793
    %v2141 = vunpack.c.h.b16 %v1793
    %v2142 = vunpack.c.l.b16 %v1794
    %v2143 = vunpack.c.h.b16 %v1794
    %v2144 = vunpack.c.l.b16 %v1795
    %v2145 = vunpack.c.h.b16 %v1795
    %v2146 = vunpack.c.l.b16 %v1796
    %v2147 = vunpack.c.h.b16 %v1796
    %v2148 = vunpack.c.l.b16 %v1797
    %v2149 = vunpack.c.h.b16 %v1797
    %v2150 = vunpack.c.l.b16 %v1798
    %v2151 = vunpack.c.h.b16 %v1798
    %v2152 = vunpack.c.l.b16 %v1799
    %v2153 = vunpack.c.h.b16 %v1799
    %v2154 = vunpack.c.l.b16 %v1800
    %v2155 = vunpack.c.h.b16 %v1800
    %v2156 = vunpack.c.l.b16 %v1801
    %v2157 = vunpack.c.h.b16 %v1801
    %v2158 = vunpack.c.l.b16 %v1802
    %v2159 = vunpack.c.h.b16 %v1802
    %v2160 = vunpack.c.l.b16 %v1803
    %v2161 = vunpack.c.h.b16 %v1803
    %v2162 = vunpack.c.l.b16 %v1804
    %v2163 = vunpack.c.h.b16 %v1804
    %v2164 = vunpack.c.l.b16 %v1805
    %v2165 = vunpack.c.h.b16 %v1805
    %v2166 = vunpack.c.l.b16 %v1806
    %v2167 = vunpack.c.h.b16 %v1806
    %v2168 = vunpack.c.l.b16 %v1807
    %v2169 = vunpack.c.h.b16 %v1807
    %v2170 = vunpack.c.l.b16 %v1808
    %v2171 = vunpack.c.h.b16 %v1808
    %v2172 = vunpack.c.l.b16 %v1809
    %v2173 = vunpack.c.h.b16 %v1809
    %v2174 = vunpack.c.l.b16 %v1810
    %v2175 = vunpack.c.h.b16 %v1810
    %v2176 = vunpack.c.l.b16 %v1811
    %v2177 = vunpack.c.h.b16 %v1811
    %v2178 = vunpack.c.l.b16 %v1812
    %v2179 = vunpack.c.h.b16 %v1812
    %v2180 = vunpack.c.l.b16 %v1813
    %v2181 = vunpack.c.h.b16 %v1813
    %v2182 = vunpack.c.l.b16 %v1814
    %v2183 = vunpack.c.h.b16 %v1814
    %v2184 = vunpack.c.l.b16 %v1815
    %v2185 = vunpack.c.h.b16 %v1815
    %v2186 = vunpack.c.l.b16 %v1816
    %v2187 = vunpack.c.h.b16 %v1816
    %v2188 = vunpack.c.l.b16 %v1817
    %v2189 = vunpack.c.h.b16 %v1817
    %v2190 = vunpack.c.l.b16 %v1818
    %v2191 = vunpack.c.h.b16 %v1818
    %v2192 = vunpack.c.l.b16 %v1819
    %v2193 = vunpack.c.h.b16 %v1819
    %v2194 = vunpack.c.l.b16 %v1820
    %v2195 = vunpack.c.h.b16 %v1820
    %v2196 = vunpack.c.l.b16 %v1821
    %v2197 = vunpack.c.h.b16 %v1821
    %v2198 = vunpack.c.l.b16 %v1822
    %v2199 = vunpack.c.h.b16 %v1822
    %v2200 = vunpack.c.l.b16 %v1823
    %v2201 = vunpack.c.h.b16 %v1823
    %v2202 = vunpack.c.l.b16 %v1824
    %v2203 = vunpack.c.h.b16 %v1824
    %v2204 = vunpack.c.l.b16 %v1825
    %v2205 = vunpack.c.h.b16 %v1825
    %v2206 = vunpack.c.l.b16 %v1826
    %v2207 = vunpack.c.h.b16 %v1826
    %v2208 = vunpack.c.l.b16 %v1827
    %v2209 = vunpack.c.h.b16 %v1827
    %v2210 = vunpack.c.l.b16 %v1828
    %v2211 = vunpack.c.h.b16 %v1828
    %v2212 = vunpack.c.l.b16 %v1829
    %v2213 = vunpack.c.h.b16 %v1829
    %v2214 = vunpack.c.l.b16 %v1830
    %v2215 = vunpack.c.h.b16 %v1830
    %v2216 = vunpack.c.l.b16 %v1831
    %v2217 = vunpack.c.h.b16 %v1831
    %v2218 = vunpack.c.l.b16 %v1832
    %v2219 = vunpack.c.h.b16 %v1832
    %v2220 = vunpack.c.l.b16 %v1833
    %v2221 = vunpack.c.h.b16 %v1833
    %v2222 = vunpack.c.l.b16 %v1834
    %v2223 = vunpack.c.h.b16 %v1834
    %v2224 = vunpack.c.l.b16 %v1835
    %v2225 = vunpack.c.h.b16 %v1835
    %v2226 = vunpack.c.l.b16 %v1836
    %v2227 = vunpack.c.h.b16 %v1836
    %v2228 = vunpack.c.l.b16 %v1837
    %v2229 = vunpack.c.h.b16 %v1837
    %v2230 = vunpack.c.l.b16 %v1838
    %v2231 = vunpack.c.h.b16 %v1838
    %v2232 = vunpack.c.l.b16 %v1839
    %v2233 = vunpack.c.h.b16 %v1839
    %v2234 = vunpack.c.l.b16 %v1840
    %v2235 = vunpack.c.h.b16 %v1840
    %v2236 = vunpack.c.l.b16 %v1841
    %v2237 = vunpack.c.h.b16 %v1841
    %v2238 = vunpack.c.l.b16 %v1842
    %v2239 = vunpack.c.h.b16 %v1842
    %v2240 = vunpack.c.l.b16 %v1843
    %v2241 = vunpack.c.h.b16 %v1843
    %v2242 = vunpack.c.l.b16 %v1844
    %v2243 = vunpack.c.h.b16 %v1844
    %v2244 = vunpack.c.l.b16 %v1845
    %v2245 = vunpack.c.h.b16 %v1845
    %v2246 = vunpack.c.l.b16 %v1846
    %v2247 = vunpack.c.h.b16 %v1846
    %v2248 = vunpack.c.l.b16 %v1847
    %v2249 = vunpack.c.h.b16 %v1847
    %v2250 = vunpack.c.l.b16 %v1848
    %v2251 = vunpack.c.h.b16 %v1848
    %v2252 = vunpack.c.l.b16 %v1849
    %v2253 = vunpack.c.h.b16 %v1849
    %v2254 = vunpack.c.l.b16 %v1850
    %v2255 = vunpack.c.h.b16 %v1850
    %v2256 = vunpack.c.l.b16 %v1851
    %v2257 = vunpack.c.h.b16 %v1851
    %v2258 = vunpack.c.l.b16 %v1852
    %v2259 = vunpack.c.h.b16 %v1852
    %v2260 = vunpack.c.l.b16 %v1853
    %v2261 = vunpack.c.h.b16 %v1853
    %v2262 = vunpack.c.l.b16 %v1854
    %v2263 = vunpack.c.h.b16 %v1854
    %v2264 = vunpack.c.l.b16 %v1855
    %v2265 = vunpack.c.h.b16 %v1855
    %v2266 = vunpack.c.l.b16 %v1856
    %v2267 = vunpack.c.h.b16 %v1856
    %v2268 = vunpack.c.l.b16 %v1857
    %v2269 = vunpack.c.h.b16 %v1857
    %v2270 = vunpack.c.l.b16 %v1858
    %v2271 = vunpack.c.h.b16 %v1858
    %v2272 = vunpack.c.l.b16 %v1859
    %v2273 = vunpack.c.h.b16 %v1859
    %v2274 = vunpack.c.l.b16 %v1860
    %v2275 = vunpack.c.h.b16 %v1860
    %v2276 = vunpack.c.l.b16 %v1861
    %v2277 = vunpack.c.h.b16 %v1861
    %v2278 = vunpack.c.l.b16 %v1862
    %v2279 = vunpack.c.h.b16 %v1862
    %v2280 = vunpack.c.l.b16 %v1863
    %v2281 = vunpack.c.h.b16 %v1863
    %v2282 = vunpack.c.l.b16 %v1864
    %v2283 = vunpack.c.h.b16 %v1864
    %v2284 = vunpack.c.l.b16 %v1865
    %v2285 = vunpack.c.h.b16 %v1865
    %v2286 = vunpack.c.l.b16 %v1866
    %v2287 = vunpack.c.h.b16 %v1866
    %v2288 = vunpack.c.l.b16 %v1867
    %v2289 = vunpack.c.h.b16 %v1867
    %v2290 = vunpack.c.l.b16 %v1868
    %v2291 = vunpack.c.h.b16 %v1868
    %v2292 = vunpack.c.l.b16 %v1869
    %v2293 = vunpack.c.h.b16 %v1869
    %v2294 = vpack.c.b16 %v2042, %v2038
    %v2295 = vpack.c.b16 %v2043, %v2039
    %v2296 = vpack.c.b16 %v2044, %v2040
    %v2297 = vpack.c.b16 %v2045, %v2041
    %v2298 = vpack.c.b16 %v2050, %v2046
    %v2299 = vpack.c.b16 %v2051, %v2047
    %v2300 = vpack.c.b16 %v2052, %v2048
    %v2301 = vpack.c.b16 %v2053, %v2049
    %v2302 = vpack.c.b16 %v2058, %v2054
    %v2303 = vpack.c.b16 %v2059, %v2055
    %v2304 = vpack.c.b16 %v2060, %v2056
    %v2305 = vpack.c.b16 %v2061, %v2057
    %v2306 = vpack.c.b16 %v2066, %v2062
    %v2307 = vpack.c.b16 %v2067, %v2063
    %v2308 = vpack.c.b16 %v2068, %v2064
    %v2309 = vpack.c.b16 %v2069, %v2065
    %v2310 = vpack.c.b16 %v2074, %v2070
    %v2311 = vpack.c.b16 %v2075, %v2071
    %v2312 = vpack.c.b16 %v2076, %v2072
    %v2313 = vpack.c.b16 %v2077, %v2073
    %v2314 = vpack.c.b16 %v2082, %v2078
    %v2315 = vpack.c.b16 %v2083, %v2079
    %v2316 = vpack.c.b16 %v2084, %v2080
    %v2317 = vpack.c.b16 %v2085, %v2081
    %v2318 = vpack.c.b16 %v2090, %v2086
    %v2319 = vpack.c.b16 %v2091, %v2087
    %v2320 = vpack.c.b16 %v2092, %v2088
    %v2321 = vpack.c.b16 %v2093, %v2089
    %v2322 = vpack.c.b16 %v2098, %v2094
    %v2323 = vpack.c.b16 %v2099, %v2095
    %v2324 = vpack.c.b16 %v2100, %v2096
    %v2325 = vpack.c.b16 %v2101, %v2097
    %v2326 = vpack.c.b16 %v2106, %v2102
    %v2327 = vpack.c.b16 %v2107, %v2103
    %v2328 = vpack.c.b16 %v2108, %v2104
    %v2329 = vpack.c.b16 %v2109, %v2105
    %v2330 = vpack.c.b16 %v2114, %v2110
    %v2331 = vpack.c.b16 %v2115, %v2111
    %v2332 = vpack.c.b16 %v2116, %v2112
    %v2333 = vpack.c.b16 %v2117, %v2113
    %v2334 = vpack.c.b16 %v2122, %v2118
    %v2335 = vpack.c.b16 %v2123, %v2119
    %v2336 = vpack.c.b16 %v2124, %v2120
    %v2337 = vpack.c.b16 %v2125, %v2121
    %v2338 = vpack.c.b16 %v2130, %v2126
    %v2339 = vpack.c.b16 %v2131, %v2127
    %v2340 = vpack.c.b16 %v2132, %v2128
    %v2341 = vpack.c.b16 %v2133, %v2129
    %v2342 = vpack.c.b16 %v2138, %v2134
    %v2343 = vpack.c.b16 %v2139, %v2135
    %v2344 = vpack.c.b16 %v2140, %v2136
    %v2345 = vpack.c.b16 %v2141, %v2137
    %v2346 = vpack.c.b16 %v2146, %v2142
    %v2347 = vpack.c.b16 %v2147, %v2143
    %v2348 = vpack.c.b16 %v2148, %v2144
    %v2349 = vpack.c.b16 %v2149, %v2145
    %v2350 = vpack.c.b16 %v2154, %v2150
    %v2351 = vpack.c.b16 %v2155, %v2151
    %v2352 = vpack.c.b16 %v2156, %v2152
    %v2353 = vpack.c.b16 %v2157, %v2153
    %v2354 = vpack.c.b16 %v2162, %v2158
    %v2355 = vpack.c.b16 %v2163, %v2159
    %v2356 = vpack.c.b16 %v2164, %v2160
    %v2357 = vpack.c.b16 %v2165, %v2161
    %v2358 = vpack.c.b16 %v2170, %v2166
    %v2359 = vpack.c.b16 %v2171, %v2167
    %v2360 = vpack.c.b16 %v2172, %v2168
    %v2361 = vpack.c.b16 %v2173, %v2169
    %v2362 = vpack.c.b16 %v2178, %v2174
    %v2363 = vpack.c.b16 %v2179, %v2175
    %v2364 = vpack.c.b16 %v2180, %v2176
    %v2365 = vpack.c.b16 %v2181, %v2177
    %v2366 = vpack.c.b16 %v2186, %v2182
    %v2367 = vpack.c.b16 %v2187, %v2183
    %v2368 = vpack.c.b16 %v2188, %v2184
    %v2369 = vpack.c.b16 %v2189, %v2185
    %v2370 = vpack.c.b16 %v2194, %v2190
    %v2371 = vpack.c.b16 %v2195, %v2191
    %v2372 = vpack.c.b16 %v2196, %v2192
    %v2373 = vpack.c.b16 %v2197, %v2193
    %v2374 = vpack.c.b16 %v2202, %v2198
    %v2375 = vpack.c.b16 %v2203, %v2199
    %v2376 = vpack.c.b16 %v2204, %v2200
    %v2377 = vpack.c.b16 %v2205, %v2201
    %v2378 = vpack.c.b16 %v2210, %v2206
    %v2379 = vpack.c.b16 %v2211, %v2207
    %v2380 = vpack.c.b16 %v2212, %v2208
    %v2381 = vpack.c.b16 %v2213, %v2209
    %v2382 = vpack.c.b16 %v2218, %v2214
    %v2383 = vpack.c.b16 %v2219, %v2215
    %v2384 = vpack.c.b16 %v2220, %v2216
    %v2385 = vpack.c.b16 %v2221, %v2217
    %v2386 = vpack.c.b16 %v2226, %v2222
    %v2387 = vpack.c.b16 %v2227, %v2223
    %v2388 = vpack.c.b16 %v2228, %v2224
    %v2389 = vpack.c.b16 %v2229, %v2225
    %v2390 = vpack.c.b16 %v2234, %v2230
    %v2391 = vpack.c.b16 %v2235, %v2231
    %v2392 = vpack.c.b16 %v2236, %v2232
    %v2393 = vpack.c.b16 %v2237, %v2233
    %v2394 = vpack.c.b16 %v2242, %v2238
    %v2395 = vpack.c.b16 %v2243, %v2239
    %v2396 = vpack.c.b16 %v2244, %v2240
    %v2397 = vpack.c.b16 %v2245, %v2241
    %v2398 = vpack.c.b16 %v2250, %v2246
    %v2399 = vpack.c.b16 %v2251, %v2247
    %v2400 = vpack.c.b16 %v2252, %v2248
    %v2401 = vpack.c.b16 %v2253, %v2249
    %v2402 = vpack.c.b16 %v2258, %v2254
    %v2403 = vpack.c.b16 %v2259, %v2255
    %v2404 = vpack.c.b16 %v2260, %v2256
    %v2405 = vpack.c.b16 %v2261, %v2257
    %v2406 = vpack.c.b16 %v2266, %v2262
    %v2407 = vpack.c.b16 %v2267, %v2263
    %v2408 = vpack.c.b16 %v2268, %v2264
    %v2409 = vpack.c.b16 %v2269, %v2265
    %v2410 = vpack.c.b16 %v2274, %v2270
    %v2411 = vpack.c.b16 %v2275, %v2271
    %v2412 = vpack.c.b16 %v2276, %v2272
    %v2413 = vpack.c.b16 %v2277, %v2273
    %v2414 = vpack.c.b16 %v2282, %v2278
    %v2415 = vpack.c.b16 %v2283, %v2279
    %v2416 = vpack.c.b16 %v2284, %v2280
    %v2417 = vpack.c.b16 %v2285, %v2281
    %v2418 = vpack.c.b16 %v2290, %v2286
    %v2419 = vpack.c.b16 %v2291, %v2287
    %v2420 = vpack.c.b16 %v2292, %v2288
    %v2421 = vpack.c.b16 %v2293, %v2289
    %2550 = vmatprep.subr.bf16.mxu0 %v2295
    %2551 = vmatpush1.bf16.msra.mxu0 %v2294
    %2552 = vmatprep.subr.bf16.mxu0 %v2299
    %2553 = vmatpush1.bf16.msra.mxu0 %v2298
    %2554 = vmatprep.subr.bf16.mxu0 %v2303
    %2555 = vmatpush1.bf16.msra.mxu0 %v2302
    %2556 = vmatprep.subr.bf16.mxu0 %v2307
    %2557 = vmatpush1.bf16.msra.mxu0 %v2306
    %2558 = vmatprep.subr.bf16.mxu0 %v2311
    %2559 = vmatpush1.bf16.msra.mxu0 %v2310
    %2560 = vmatprep.subr.bf16.mxu0 %v2315
    %2561 = vmatpush1.bf16.msra.mxu0 %v2314
    %2562 = vmatprep.subr.bf16.mxu0 %v2319
    %2563 = vmatpush1.bf16.msra.mxu0 %v2318
    %2564 = vmatprep.subr.bf16.mxu0 %v2323
    %2565 = vmatpush1.bf16.msra.mxu0 %v2322
    %2566 = vmatprep.subr.bf16.mxu0 %v2327
    %2567 = vmatpush1.bf16.msra.mxu0 %v2326
    %2568 = vmatprep.subr.bf16.mxu0 %v2331
    %2569 = vmatpush1.bf16.msra.mxu0 %v2330
    %2570 = vmatprep.subr.bf16.mxu0 %v2335
    %2571 = vmatpush1.bf16.msra.mxu0 %v2334
    %2572 = vmatprep.subr.bf16.mxu0 %v2339
    %2573 = vmatpush1.bf16.msra.mxu0 %v2338
    %2574 = vmatprep.subr.bf16.mxu0 %v2343
    %2575 = vmatpush1.bf16.msra.mxu0 %v2342
    %2576 = vmatprep.subr.bf16.mxu0 %v2347
    %2577 = vmatpush1.bf16.msra.mxu0 %v2346
    %2578 = vmatprep.subr.bf16.mxu0 %v2351
    %2579 = vmatpush1.bf16.msra.mxu0 %v2350
    %2580 = vmatprep.subr.bf16.mxu0 %v2355
    %2581 = vmatpush1.bf16.msra.mxu0 %v2354
    %2582 = vmatprep.mubr.bf16.mxu0 %v1871
    %2583 = vmatmul.mubr.bf16.gmra.mrb[0].mxu0 %v1870
    %v2584 = vpop.f32.mrb[0].mxu0
    %v2585 = vadd.f32 %v1897, %v2584
    %v2586 = vpop.f32.mrb[0].mxu0
    %v2587 = vadd.f32 %v1901, %v2586
    %v2588 = vpop.f32.mrb[0].mxu0
    %v2589 = vadd.f32 %v1897, %v2588
    %v2590 = vpop.f32.mrb[0].mxu0
    %v2591 = vadd.f32 %v1901, %v2590
    %2592 = vdwg.mxu0
    %2593 = vmatprep.subr.bf16.mxu0 %v2359
    %2594 = vmatpush1.bf16.msra.mxu0 %v2358
    %2595 = vmatprep.subr.bf16.mxu0 %v2363
    %2596 = vmatpush1.bf16.msra.mxu0 %v2362
    %2597 = vmatprep.subr.bf16.mxu0 %v2367
    %2598 = vmatpush1.bf16.msra.mxu0 %v2366
    %2599 = vmatprep.subr.bf16.mxu0 %v2371
    %2600 = vmatpush1.bf16.msra.mxu0 %v2370
    %2601 = vmatprep.subr.bf16.mxu0 %v2375
    %2602 = vmatpush1.bf16.msra.mxu0 %v2374
    %2603 = vmatprep.subr.bf16.mxu0 %v2379
    %2604 = vmatpush1.bf16.msra.mxu0 %v2378
    %2605 = vmatprep.subr.bf16.mxu0 %v2383
    %2606 = vmatpush1.bf16.msra.mxu0 %v2382
    %2607 = vmatprep.subr.bf16.mxu0 %v2387
    %2608 = vmatpush1.bf16.msra.mxu0 %v2386
    %2609 = vmatprep.subr.bf16.mxu0 %v2391
    %2610 = vmatpush1.bf16.msra.mxu0 %v2390
    %2611 = vmatprep.subr.bf16.mxu0 %v2395
    %2612 = vmatpush1.bf16.msra.mxu0 %v2394
    %2613 = vmatprep.subr.bf16.mxu0 %v2399
    %2614 = vmatpush1.bf16.msra.mxu0 %v2398
    %2615 = vmatprep.subr.bf16.mxu0 %v2403
    %2616 = vmatpush1.bf16.msra.mxu0 %v2402
    %2617 = vmatprep.subr.bf16.mxu0 %v2407
    %2618 = vmatpush1.bf16.msra.mxu0 %v2406
    %2619 = vmatprep.subr.bf16.mxu0 %v2411
    %2620 = vmatpush1.bf16.msra.mxu0 %v2410
    %2621 = vmatprep.subr.bf16.mxu0 %v2415
    %2622 = vmatpush1.bf16.msra.mxu0 %v2414
    %2623 = vmatprep.subr.bf16.mxu0 %v2419
    %2624 = vmatpush1.bf16.msra.mxu0 %v2418
    %2625 = vmatprep.mubr.bf16.mxu0 %v1873
    %2626 = vmatmul.mubr.bf16.gmra.mrb[0].mxu0 %v1872
    %v2627 = vpop.f32.mrb[0].mxu0
    %v2628 = vadd.f32 %v2585, %v2627
    %v2629 = vpop.f32.mrb[0].mxu0
    %v2630 = vadd.f32 %v2587, %v2629
    %v2631 = vpop.f32.mrb[0].mxu0
    %v2632 = vadd.f32 %v2589, %v2631
    %v2633 = vpop.f32.mrb[0].mxu0
    %v2634 = vadd.f32 %v2591, %v2633
    %2635 = vdwg.mxu0
    %2636 = vmatprep.subr.bf16.mxu0 %v2297
    %2637 = vmatpush1.bf16.msra.mxu0 %v2296
    %2638 = vmatprep.subr.bf16.mxu0 %v2301
    %2639 = vmatpush1.bf16.msra.mxu0 %v2300
    %2640 = vmatprep.subr.bf16.mxu0 %v2305
    %2641 = vmatpush1.bf16.msra.mxu0 %v2304
    %2642 = vmatprep.subr.bf16.mxu0 %v2309
    %2643 = vmatpush1.bf16.msra.mxu0 %v2308
    %2644 = vmatprep.subr.bf16.mxu0 %v2313
    %2645 = vmatpush1.bf16.msra.mxu0 %v2312
    %2646 = vmatprep.subr.bf16.mxu0 %v2317
    %2647 = vmatpush1.bf16.msra.mxu0 %v2316
    %2648 = vmatprep.subr.bf16.mxu0 %v2321
    %2649 = vmatpush1.bf16.msra.mxu0 %v2320
    %2650 = vmatprep.subr.bf16.mxu0 %v2325
    %2651 = vmatpush1.bf16.msra.mxu0 %v2324
    %2652 = vmatprep.subr.bf16.mxu0 %v2329
    %2653 = vmatpush1.bf16.msra.mxu0 %v2328
    %2654 = vmatprep.subr.bf16.mxu0 %v2333
    %2655 = vmatpush1.bf16.msra.mxu0 %v2332
    %2656 = vmatprep.subr.bf16.mxu0 %v2337
    %2657 = vmatpush1.bf16.msra.mxu0 %v2336
    %2658 = vmatprep.subr.bf16.mxu0 %v2341
    %2659 = vmatpush1.bf16.msra.mxu0 %v2340
    %2660 = vmatprep.subr.bf16.mxu0 %v2345
    %2661 = vmatpush1.bf16.msra.mxu0 %v2344
    %2662 = vmatprep.subr.bf16.mxu0 %v2349
    %2663 = vmatpush1.bf16.msra.mxu0 %v2348
    %2664 = vmatprep.subr.bf16.mxu0 %v2353
    %2665 = vmatpush1.bf16.msra.mxu0 %v2352
    %2666 = vmatprep.subr.bf16.mxu0 %v2357
    %2667 = vmatpush1.bf16.msra.mxu0 %v2356
    %2668 = vmatprep.mubr.bf16.mxu0 %v1871
    %2669 = vmatmul.mubr.bf16.gmra.mrb[0].mxu0 %v1870
    %v2670 = vpop.f32.mrb[0].mxu0
    %v2671 = vadd.f32 %v1905, %v2670
    %v2672 = vpop.f32.mrb[0].mxu0
    %v2673 = vadd.f32 %v1909, %v2672
    %v2674 = vpop.f32.mrb[0].mxu0
    %v2675 = vadd.f32 %v1905, %v2674
    %v2676 = vpop.f32.mrb[0].mxu0
    %v2677 = vadd.f32 %v1909, %v2676
    %2678 = vdwg.mxu0
    %2679 = vmatprep.subr.bf16.mxu0 %v2361
    %2680 = vmatpush1.bf16.msra.mxu0 %v2360
    %2681 = vmatprep.subr.bf16.mxu0 %v2365
    %2682 = vmatpush1.bf16.msra.mxu0 %v2364
    %2683 = vmatprep.subr.bf16.mxu0 %v2369
    %2684 = vmatpush1.bf16.msra.mxu0 %v2368
    %2685 = vmatprep.subr.bf16.mxu0 %v2373
    %2686 = vmatpush1.bf16.msra.mxu0 %v2372
    %2687 = vmatprep.subr.bf16.mxu0 %v2377
    %2688 = vmatpush1.bf16.msra.mxu0 %v2376
    %2689 = vmatprep.subr.bf16.mxu0 %v2381
    %2690 = vmatpush1.bf16.msra.mxu0 %v2380
    %2691 = vmatprep.subr.bf16.mxu0 %v2385
    %2692 = vmatpush1.bf16.msra.mxu0 %v2384
    %2693 = vmatprep.subr.bf16.mxu0 %v2389
    %2694 = vmatpush1.bf16.msra.mxu0 %v2388
    %2695 = vmatprep.subr.bf16.mxu0 %v2393
    %2696 = vmatpush1.bf16.msra.mxu0 %v2392
    %2697 = vmatprep.subr.bf16.mxu0 %v2397
    %2698 = vmatpush1.bf16.msra.mxu0 %v2396
    %2699 = vmatprep.subr.bf16.mxu0 %v2401
    %2700 = vmatpush1.bf16.msra.mxu0 %v2400
    %2701 = vmatprep.subr.bf16.mxu0 %v2405
    %2702 = vmatpush1.bf16.msra.mxu0 %v2404
    %2703 = vmatprep.subr.bf16.mxu0 %v2409
    %2704 = vmatpush1.bf16.msra.mxu0 %v2408
    %2705 = vmatprep.subr.bf16.mxu0 %v2413
    %2706 = vmatpush1.bf16.msra.mxu0 %v2412
    %2707 = vmatprep.subr.bf16.mxu0 %v2417
    %2708 = vmatpush1.bf16.msra.mxu0 %v2416
    %2709 = vmatprep.subr.bf16.mxu0 %v2421
    %2710 = vmatpush1.bf16.msra.mxu0 %v2420
    %2711 = vmatprep.mubr.bf16.mxu0 %v1873
    %2712 = vmatmul.mubr.bf16.gmra.mrb[0].mxu0 %v1872
    %v2713 = vpop.f32.mrb[0].mxu0
    %v2714 = vadd.f32 %v2671, %v2713
    %v2715 = vpop.f32.mrb[0].mxu0
    %v2716 = vadd.f32 %v2673, %v2715
    %v2717 = vpop.f32.mrb[0].mxu0
    %v2718 = vadd.f32 %v2675, %v2717
    %v2719 = vpop.f32.mrb[0].mxu0
    %v2720 = vadd.f32 %v2677, %v2719
    %2721 = vdwg.mxu0
    %v2722 = vmul.f32 %v2628, 0.5
    %v2723 = vmul.f32 %v2630, 0.5
    %v2724 = vmul.f32 %v2714, 0.5
    %v2725 = vmul.f32 %v2716, 0.5
    %v2726 = vmul.f32 %v2632, 0.5
    %v2727 = vmul.f32 %v2634, 0.5
    %v2728 = vmul.f32 %v2718, 0.5
    %v2729 = vmul.f32 %v2720, 0.5
    %v2730 = vtanh.pop %v2722
    %v2731 = vtanh.pop %v2723
    %v2732 = vtanh.pop %v2724
    %v2733 = vtanh.pop %v2725
    %v2734 = vtanh.pop %v2726
    %v2735 = vtanh.pop %v2727
    %v2736 = vtanh.pop %v2728
    %v2737 = vtanh.pop %v2729
    %v2738 = vmul.f32 %v2730, 0.5
    %v2739 = vmul.f32 %v2731, 0.5
    %v2740 = vmul.f32 %v2732, 0.5
    %v2741 = vmul.f32 %v2733, 0.5
    %v2742 = vmul.f32 %v2734, 0.5
    %v2743 = vmul.f32 %v2735, 0.5
    %v2744 = vmul.f32 %v2736, 0.5
    %v2745 = vmul.f32 %v2737, 0.5
    %v2746 = vadd.f32 %v2738, 0.5
    %v2747 = vadd.f32 %v2739, 0.5
    %v2748 = vadd.f32 %v2740, 0.5
    %v2749 = vadd.f32 %v2741, 0.5
    %v2750 = vadd.f32 %v2742, 0.5
    %v2751 = vadd.f32 %v2743, 0.5
    %v2752 = vadd.f32 %v2744, 0.5
    %v2753 = vadd.f32 %v2745, 0.5
    %s2754 = scalar_lea.vmem [#allocation8], 1024
    %v2755 = vld [vmem:[%s2754] sm:$0xff]
    %v2756 = vld [vmem:[%s2754 + $0x8] sm:$0xff]
    %v2757 = vld [vmem:[%s2754 + $0x10] sm:$0xff]
    %v2758 = vld [vmem:[%s2754 + $0x18] sm:$0xff]
    %v2759 = vld [vmem:[%s2754 + $0x20] sm:$0xff]
    %v2760 = vld [vmem:[%s2754 + $0x28] sm:$0xff]
    %v2761 = vld [vmem:[%s2754 + $0x30] sm:$0xff]
    %v2762 = vld [vmem:[%s2754 + $0x38] sm:$0xff]
    %v2763 = vld [vmem:[%s2754 + $0x40] sm:$0xff]
    %v2764 = vld [vmem:[%s2754 + $0x48] sm:$0xff]
    %v2765 = vld [vmem:[%s2754 + $0x50] sm:$0xff]
    %v2766 = vld [vmem:[%s2754 + $0x58] sm:$0xff]
    %v2767 = vld [vmem:[%s2754 + $0x60] sm:$0xff]
    %v2768 = vld [vmem:[%s2754 + $0x68] sm:$0xff]
    %v2769 = vld [vmem:[%s2754 + $0x70] sm:$0xff]
    %v2770 = vld [vmem:[%s2754 + $0x78] sm:$0xff]
    %v2771 = vld [vmem:[%s2754 + $0x80] sm:$0xff]
    %v2772 = vld [vmem:[%s2754 + $0x88] sm:$0xff]
    %v2773 = vld [vmem:[%s2754 + $0x90] sm:$0xff]
    %v2774 = vld [vmem:[%s2754 + $0x98] sm:$0xff]
    %v2775 = vld [vmem:[%s2754 + $0xa0] sm:$0xff]
    %v2776 = vld [vmem:[%s2754 + $0xa8] sm:$0xff]
    %v2777 = vld [vmem:[%s2754 + $0xb0] sm:$0xff]
    %v2778 = vld [vmem:[%s2754 + $0xb8] sm:$0xff]
    %v2779 = vld [vmem:[%s2754 + $0xc0] sm:$0xff]
    %v2780 = vld [vmem:[%s2754 + $0xc8] sm:$0xff]
    %v2781 = vld [vmem:[%s2754 + $0xd0] sm:$0xff]
    %v2782 = vld [vmem:[%s2754 + $0xd8] sm:$0xff]
    %v2783 = vld [vmem:[%s2754 + $0xe0] sm:$0xff]
    %v2784 = vld [vmem:[%s2754 + $0xe8] sm:$0xff]
    %v2785 = vld [vmem:[%s2754 + $0xf0] sm:$0xff]
    %v2786 = vld [vmem:[%s2754 + $0xf8] sm:$0xff]
    %v2787 = vld [vmem:[%s2754 + $0x100] sm:$0xff]
    %v2788 = vld [vmem:[%s2754 + $0x108] sm:$0xff]
    %v2789 = vld [vmem:[%s2754 + $0x110] sm:$0xff]
    %v2790 = vld [vmem:[%s2754 + $0x118] sm:$0xff]
    %v2791 = vld [vmem:[%s2754 + $0x120] sm:$0xff]
    %v2792 = vld [vmem:[%s2754 + $0x128] sm:$0xff]
    %v2793 = vld [vmem:[%s2754 + $0x130] sm:$0xff]
    %v2794 = vld [vmem:[%s2754 + $0x138] sm:$0xff]
    %v2795 = vld [vmem:[%s2754 + $0x140] sm:$0xff]
    %v2796 = vld [vmem:[%s2754 + $0x148] sm:$0xff]
    %v2797 = vld [vmem:[%s2754 + $0x150] sm:$0xff]
    %v2798 = vld [vmem:[%s2754 + $0x158] sm:$0xff]
    %v2799 = vld [vmem:[%s2754 + $0x160] sm:$0xff]
    %v2800 = vld [vmem:[%s2754 + $0x168] sm:$0xff]
    %v2801 = vld [vmem:[%s2754 + $0x170] sm:$0xff]
    %v2802 = vld [vmem:[%s2754 + $0x178] sm:$0xff]
    %v2803 = vld [vmem:[%s2754 + $0x180] sm:$0xff]
    %v2804 = vld [vmem:[%s2754 + $0x188] sm:$0xff]
    %v2805 = vld [vmem:[%s2754 + $0x190] sm:$0xff]
    %v2806 = vld [vmem:[%s2754 + $0x198] sm:$0xff]
    %v2807 = vld [vmem:[%s2754 + $0x1a0] sm:$0xff]
    %v2808 = vld [vmem:[%s2754 + $0x1a8] sm:$0xff]
    %v2809 = vld [vmem:[%s2754 + $0x1b0] sm:$0xff]
    %v2810 = vld [vmem:[%s2754 + $0x1b8] sm:$0xff]
    %v2811 = vld [vmem:[%s2754 + $0x1c0] sm:$0xff]
    %v2812 = vld [vmem:[%s2754 + $0x1c8] sm:$0xff]
    %v2813 = vld [vmem:[%s2754 + $0x1d0] sm:$0xff]
    %v2814 = vld [vmem:[%s2754 + $0x1d8] sm:$0xff]
    %v2815 = vld [vmem:[%s2754 + $0x1e0] sm:$0xff]
    %v2816 = vld [vmem:[%s2754 + $0x1e8] sm:$0xff]
    %v2817 = vld [vmem:[%s2754 + $0x1f0] sm:$0xff]
    %v2818 = vld [vmem:[%s2754 + $0x1f8] sm:$0xff]
    %v2819 = vld [vmem:[%s2754 + $0x200] sm:$0xff]
    %v2820 = vld [vmem:[%s2754 + $0x208] sm:$0xff]
    %v2821 = vld [vmem:[%s2754 + $0x210] sm:$0xff]
    %v2822 = vld [vmem:[%s2754 + $0x218] sm:$0xff]
    %v2823 = vld [vmem:[%s2754 + $0x220] sm:$0xff]
    %v2824 = vld [vmem:[%s2754 + $0x228] sm:$0xff]
    %v2825 = vld [vmem:[%s2754 + $0x230] sm:$0xff]
    %v2826 = vld [vmem:[%s2754 + $0x238] sm:$0xff]
    %v2827 = vld [vmem:[%s2754 + $0x240] sm:$0xff]
    %v2828 = vld [vmem:[%s2754 + $0x248] sm:$0xff]
    %v2829 = vld [vmem:[%s2754 + $0x250] sm:$0xff]
    %v2830 = vld [vmem:[%s2754 + $0x258] sm:$0xff]
    %v2831 = vld [vmem:[%s2754 + $0x260] sm:$0xff]
    %v2832 = vld [vmem:[%s2754 + $0x268] sm:$0xff]
    %v2833 = vld [vmem:[%s2754 + $0x270] sm:$0xff]
    %v2834 = vld [vmem:[%s2754 + $0x278] sm:$0xff]
    %v2835 = vld [vmem:[%s2754 + $0x280] sm:$0xff]
    %v2836 = vld [vmem:[%s2754 + $0x288] sm:$0xff]
    %v2837 = vld [vmem:[%s2754 + $0x290] sm:$0xff]
    %v2838 = vld [vmem:[%s2754 + $0x298] sm:$0xff]
    %v2839 = vld [vmem:[%s2754 + $0x2a0] sm:$0xff]
    %v2840 = vld [vmem:[%s2754 + $0x2a8] sm:$0xff]
    %v2841 = vld [vmem:[%s2754 + $0x2b0] sm:$0xff]
    %v2842 = vld [vmem:[%s2754 + $0x2b8] sm:$0xff]
    %v2843 = vld [vmem:[%s2754 + $0x2c0] sm:$0xff]
    %v2844 = vld [vmem:[%s2754 + $0x2c8] sm:$0xff]
    %v2845 = vld [vmem:[%s2754 + $0x2d0] sm:$0xff]
    %v2846 = vld [vmem:[%s2754 + $0x2d8] sm:$0xff]
    %v2847 = vld [vmem:[%s2754 + $0x2e0] sm:$0xff]
    %v2848 = vld [vmem:[%s2754 + $0x2e8] sm:$0xff]
    %v2849 = vld [vmem:[%s2754 + $0x2f0] sm:$0xff]
    %v2850 = vld [vmem:[%s2754 + $0x2f8] sm:$0xff]
    %v2851 = vld [vmem:[%s2754 + $0x300] sm:$0xff]
    %v2852 = vld [vmem:[%s2754 + $0x308] sm:$0xff]
    %v2853 = vld [vmem:[%s2754 + $0x310] sm:$0xff]
    %v2854 = vld [vmem:[%s2754 + $0x318] sm:$0xff]
    %v2855 = vld [vmem:[%s2754 + $0x320] sm:$0xff]
    %v2856 = vld [vmem:[%s2754 + $0x328] sm:$0xff]
    %v2857 = vld [vmem:[%s2754 + $0x330] sm:$0xff]
    %v2858 = vld [vmem:[%s2754 + $0x338] sm:$0xff]
    %v2859 = vld [vmem:[%s2754 + $0x340] sm:$0xff]
    %v2860 = vld [vmem:[%s2754 + $0x348] sm:$0xff]
    %v2861 = vld [vmem:[%s2754 + $0x350] sm:$0xff]
    %v2862 = vld [vmem:[%s2754 + $0x358] sm:$0xff]
    %v2863 = vld [vmem:[%s2754 + $0x360] sm:$0xff]
    %v2864 = vld [vmem:[%s2754 + $0x368] sm:$0xff]
    %v2865 = vld [vmem:[%s2754 + $0x370] sm:$0xff]
    %v2866 = vld [vmem:[%s2754 + $0x378] sm:$0xff]
    %v2867 = vld [vmem:[%s2754 + $0x380] sm:$0xff]
    %v2868 = vld [vmem:[%s2754 + $0x388] sm:$0xff]
    %v2869 = vld [vmem:[%s2754 + $0x390] sm:$0xff]
    %v2870 = vld [vmem:[%s2754 + $0x398] sm:$0xff]
    %v2871 = vld [vmem:[%s2754 + $0x3a0] sm:$0xff]
    %v2872 = vld [vmem:[%s2754 + $0x3a8] sm:$0xff]
    %v2873 = vld [vmem:[%s2754 + $0x3b0] sm:$0xff]
    %v2874 = vld [vmem:[%s2754 + $0x3b8] sm:$0xff]
    %v2875 = vld [vmem:[%s2754 + $0x3c0] sm:$0xff]
    %v2876 = vld [vmem:[%s2754 + $0x3c8] sm:$0xff]
    %v2877 = vld [vmem:[%s2754 + $0x3d0] sm:$0xff]
    %v2878 = vld [vmem:[%s2754 + $0x3d8] sm:$0xff]
    %v2879 = vld [vmem:[%s2754 + $0x3e0] sm:$0xff]
    %v2880 = vld [vmem:[%s2754 + $0x3e8] sm:$0xff]
    %v2881 = vld [vmem:[%s2754 + $0x3f0] sm:$0xff]
    %v2882 = vld [vmem:[%s2754 + $0x3f8] sm:$0xff]
    %v2883 = vpack.c.bf16 %v2750, %v2746
    %v2884 = vpack.c.bf16 %v2751, %v2747
    %v2885 = vpack.c.bf16 %v2752, %v2748
    %v2886 = vpack.c.bf16 %v2753, %v2749
    %v2887 = vlaneseq
    %v2888 = vshrl.u32 %v2887, 7
    %v2889 = vsub.s32 2, %v2888
    %v2890 = vrot.slane %v103, %v2889
    %v2891 = vlaneseq
    %v2892 = vshrl.u32 %v2891, 7
    %v2893 = vsub.s32 6, %v2892
    %v2894 = vrot.slane %v103, %v2893
    %v2895 = vlaneseq
    %v2896 = vshrl.u32 %v2895, 7
    %v2897 = vsub.s32 2, %v2896
    %v2898 = vrot.slane %v104, %v2897
    %v2899 = vlaneseq
    %v2900 = vshrl.u32 %v2899, 7
    %v2901 = vsub.s32 6, %v2900
    %v2902 = vrot.slane %v104, %v2901
    %v2907 = vlaneseq
    %v2908 = vshrl.u32 %v2907, 7
    %v2909 = vsub.s32 2, %v2908
    %v2910 = vrot.slane %v2890, %v2909
    %v2911 = vlaneseq
    %v2912 = vshrl.u32 %v2911, 7
    %v2913 = vsub.s32 2, %v2912
    %v2914 = vrot.slane %v2894, %v2913
    %v2915 = vlaneseq
    %v2916 = vshrl.u32 %v2915, 7
    %v2917 = vsub.s32 2, %v2916
    %v2918 = vrot.slane %v2898, %v2917
    %v2919 = vlaneseq
    %v2920 = vshrl.u32 %v2919, 7
    %v2921 = vsub.s32 2, %v2920
    %v2922 = vrot.slane %v2902, %v2921
    %v3051 = vunpack.c.l.b16 %v2755
    %v3052 = vunpack.c.h.b16 %v2755
    %v3053 = vunpack.c.l.b16 %v2756
    %v3054 = vunpack.c.h.b16 %v2756
    %v3055 = vunpack.c.l.b16 %v2757
    %v3056 = vunpack.c.h.b16 %v2757
    %v3057 = vunpack.c.l.b16 %v2758
    %v3058 = vunpack.c.h.b16 %v2758
    %v3059 = vunpack.c.l.b16 %v2759
    %v3060 = vunpack.c.h.b16 %v2759
    %v3061 = vunpack.c.l.b16 %v2760
    %v3062 = vunpack.c.h.b16 %v2760
    %v3063 = vunpack.c.l.b16 %v2761
    %v3064 = vunpack.c.h.b16 %v2761
    %v3065 = vunpack.c.l.b16 %v2762
    %v3066 = vunpack.c.h.b16 %v2762
    %v3067 = vunpack.c.l.b16 %v2763
    %v3068 = vunpack.c.h.b16 %v2763
    %v3069 = vunpack.c.l.b16 %v2764
    %v3070 = vunpack.c.h.b16 %v2764
    %v3071 = vunpack.c.l.b16 %v2765
    %v3072 = vunpack.c.h.b16 %v2765
    %v3073 = vunpack.c.l.b16 %v2766
    %v3074 = vunpack.c.h.b16 %v2766
    %v3075 = vunpack.c.l.b16 %v2767
    %v3076 = vunpack.c.h.b16 %v2767
    %v3077 = vunpack.c.l.b16 %v2768
    %v3078 = vunpack.c.h.b16 %v2768
    %v3079 = vunpack.c.l.b16 %v2769
    %v3080 = vunpack.c.h.b16 %v2769
    %v3081 = vunpack.c.l.b16 %v2770
    %v3082 = vunpack.c.h.b16 %v2770
    %v3083 = vunpack.c.l.b16 %v2771
    %v3084 = vunpack.c.h.b16 %v2771
    %v3085 = vunpack.c.l.b16 %v2772
    %v3086 = vunpack.c.h.b16 %v2772
    %v3087 = vunpack.c.l.b16 %v2773
    %v3088 = vunpack.c.h.b16 %v2773
    %v3089 = vunpack.c.l.b16 %v2774
    %v3090 = vunpack.c.h.b16 %v2774
    %v3091 = vunpack.c.l.b16 %v2775
    %v3092 = vunpack.c.h.b16 %v2775
    %v3093 = vunpack.c.l.b16 %v2776
    %v3094 = vunpack.c.h.b16 %v2776
    %v3095 = vunpack.c.l.b16 %v2777
    %v3096 = vunpack.c.h.b16 %v2777
    %v3097 = vunpack.c.l.b16 %v2778
    %v3098 = vunpack.c.h.b16 %v2778
    %v3099 = vunpack.c.l.b16 %v2779
    %v3100 = vunpack.c.h.b16 %v2779
    %v3101 = vunpack.c.l.b16 %v2780
    %v3102 = vunpack.c.h.b16 %v2780
    %v3103 = vunpack.c.l.b16 %v2781
    %v3104 = vunpack.c.h.b16 %v2781
    %v3105 = vunpack.c.l.b16 %v2782
    %v3106 = vunpack.c.h.b16 %v2782
    %v3107 = vunpack.c.l.b16 %v2783
    %v3108 = vunpack.c.h.b16 %v2783
    %v3109 = vunpack.c.l.b16 %v2784
    %v3110 = vunpack.c.h.b16 %v2784
    %v3111 = vunpack.c.l.b16 %v2785
    %v3112 = vunpack.c.h.b16 %v2785
    %v3113 = vunpack.c.l.b16 %v2786
    %v3114 = vunpack.c.h.b16 %v2786
    %v3115 = vunpack.c.l.b16 %v2787
    %v3116 = vunpack.c.h.b16 %v2787
    %v3117 = vunpack.c.l.b16 %v2788
    %v3118 = vunpack.c.h.b16 %v2788
    %v3119 = vunpack.c.l.b16 %v2789
    %v3120 = vunpack.c.h.b16 %v2789
    %v3121 = vunpack.c.l.b16 %v2790
    %v3122 = vunpack.c.h.b16 %v2790
    %v3123 = vunpack.c.l.b16 %v2791
    %v3124 = vunpack.c.h.b16 %v2791
    %v3125 = vunpack.c.l.b16 %v2792
    %v3126 = vunpack.c.h.b16 %v2792
    %v3127 = vunpack.c.l.b16 %v2793
    %v3128 = vunpack.c.h.b16 %v2793
    %v3129 = vunpack.c.l.b16 %v2794
    %v3130 = vunpack.c.h.b16 %v2794
    %v3131 = vunpack.c.l.b16 %v2795
    %v3132 = vunpack.c.h.b16 %v2795
    %v3133 = vunpack.c.l.b16 %v2796
    %v3134 = vunpack.c.h.b16 %v2796
    %v3135 = vunpack.c.l.b16 %v2797
    %v3136 = vunpack.c.h.b16 %v2797
    %v3137 = vunpack.c.l.b16 %v2798
    %v3138 = vunpack.c.h.b16 %v2798
    %v3139 = vunpack.c.l.b16 %v2799
    %v3140 = vunpack.c.h.b16 %v2799
    %v3141 = vunpack.c.l.b16 %v2800
    %v3142 = vunpack.c.h.b16 %v2800
    %v3143 = vunpack.c.l.b16 %v2801
    %v3144 = vunpack.c.h.b16 %v2801
    %v3145 = vunpack.c.l.b16 %v2802
    %v3146 = vunpack.c.h.b16 %v2802
    %v3147 = vunpack.c.l.b16 %v2803
    %v3148 = vunpack.c.h.b16 %v2803
    %v3149 = vunpack.c.l.b16 %v2804
    %v3150 = vunpack.c.h.b16 %v2804
    %v3151 = vunpack.c.l.b16 %v2805
    %v3152 = vunpack.c.h.b16 %v2805
    %v3153 = vunpack.c.l.b16 %v2806
    %v3154 = vunpack.c.h.b16 %v2806
    %v3155 = vunpack.c.l.b16 %v2807
    %v3156 = vunpack.c.h.b16 %v2807
    %v3157 = vunpack.c.l.b16 %v2808
    %v3158 = vunpack.c.h.b16 %v2808
    %v3159 = vunpack.c.l.b16 %v2809
    %v3160 = vunpack.c.h.b16 %v2809
    %v3161 = vunpack.c.l.b16 %v2810
    %v3162 = vunpack.c.h.b16 %v2810
    %v3163 = vunpack.c.l.b16 %v2811
    %v3164 = vunpack.c.h.b16 %v2811
    %v3165 = vunpack.c.l.b16 %v2812
    %v3166 = vunpack.c.h.b16 %v2812
    %v3167 = vunpack.c.l.b16 %v2813
    %v3168 = vunpack.c.h.b16 %v2813
    %v3169 = vunpack.c.l.b16 %v2814
    %v3170 = vunpack.c.h.b16 %v2814
    %v3171 = vunpack.c.l.b16 %v2815
    %v3172 = vunpack.c.h.b16 %v2815
    %v3173 = vunpack.c.l.b16 %v2816
    %v3174 = vunpack.c.h.b16 %v2816
    %v3175 = vunpack.c.l.b16 %v2817
    %v3176 = vunpack.c.h.b16 %v2817
    %v3177 = vunpack.c.l.b16 %v2818
    %v3178 = vunpack.c.h.b16 %v2818
    %v3179 = vunpack.c.l.b16 %v2819
    %v3180 = vunpack.c.h.b16 %v2819
    %v3181 = vunpack.c.l.b16 %v2820
    %v3182 = vunpack.c.h.b16 %v2820
    %v3183 = vunpack.c.l.b16 %v2821
    %v3184 = vunpack.c.h.b16 %v2821
    %v3185 = vunpack.c.l.b16 %v2822
    %v3186 = vunpack.c.h.b16 %v2822
    %v3187 = vunpack.c.l.b16 %v2823
    %v3188 = vunpack.c.h.b16 %v2823
    %v3189 = vunpack.c.l.b16 %v2824
    %v3190 = vunpack.c.h.b16 %v2824
    %v3191 = vunpack.c.l.b16 %v2825
    %v3192 = vunpack.c.h.b16 %v2825
    %v3193 = vunpack.c.l.b16 %v2826
    %v3194 = vunpack.c.h.b16 %v2826
    %v3195 = vunpack.c.l.b16 %v2827
    %v3196 = vunpack.c.h.b16 %v2827
    %v3197 = vunpack.c.l.b16 %v2828
    %v3198 = vunpack.c.h.b16 %v2828
    %v3199 = vunpack.c.l.b16 %v2829
    %v3200 = vunpack.c.h.b16 %v2829
    %v3201 = vunpack.c.l.b16 %v2830
    %v3202 = vunpack.c.h.b16 %v2830
    %v3203 = vunpack.c.l.b16 %v2831
    %v3204 = vunpack.c.h.b16 %v2831
    %v3205 = vunpack.c.l.b16 %v2832
    %v3206 = vunpack.c.h.b16 %v2832
    %v3207 = vunpack.c.l.b16 %v2833
    %v3208 = vunpack.c.h.b16 %v2833
    %v3209 = vunpack.c.l.b16 %v2834
    %v3210 = vunpack.c.h.b16 %v2834
    %v3211 = vunpack.c.l.b16 %v2835
    %v3212 = vunpack.c.h.b16 %v2835
    %v3213 = vunpack.c.l.b16 %v2836
    %v3214 = vunpack.c.h.b16 %v2836
    %v3215 = vunpack.c.l.b16 %v2837
    %v3216 = vunpack.c.h.b16 %v2837
    %v3217 = vunpack.c.l.b16 %v2838
    %v3218 = vunpack.c.h.b16 %v2838
    %v3219 = vunpack.c.l.b16 %v2839
    %v3220 = vunpack.c.h.b16 %v2839
    %v3221 = vunpack.c.l.b16 %v2840
    %v3222 = vunpack.c.h.b16 %v2840
    %v3223 = vunpack.c.l.b16 %v2841
    %v3224 = vunpack.c.h.b16 %v2841
    %v3225 = vunpack.c.l.b16 %v2842
    %v3226 = vunpack.c.h.b16 %v2842
    %v3227 = vunpack.c.l.b16 %v2843
    %v3228 = vunpack.c.h.b16 %v2843
    %v3229 = vunpack.c.l.b16 %v2844
    %v3230 = vunpack.c.h.b16 %v2844
    %v3231 = vunpack.c.l.b16 %v2845
    %v3232 = vunpack.c.h.b16 %v2845
    %v3233 = vunpack.c.l.b16 %v2846
    %v3234 = vunpack.c.h.b16 %v2846
    %v3235 = vunpack.c.l.b16 %v2847
    %v3236 = vunpack.c.h.b16 %v2847
    %v3237 = vunpack.c.l.b16 %v2848
    %v3238 = vunpack.c.h.b16 %v2848
    %v3239 = vunpack.c.l.b16 %v2849
    %v3240 = vunpack.c.h.b16 %v2849
    %v3241 = vunpack.c.l.b16 %v2850
    %v3242 = vunpack.c.h.b16 %v2850
    %v3243 = vunpack.c.l.b16 %v2851
    %v3244 = vunpack.c.h.b16 %v2851
    %v3245 = vunpack.c.l.b16 %v2852
    %v3246 = vunpack.c.h.b16 %v2852
    %v3247 = vunpack.c.l.b16 %v2853
    %v3248 = vunpack.c.h.b16 %v2853
    %v3249 = vunpack.c.l.b16 %v2854
    %v3250 = vunpack.c.h.b16 %v2854
    %v3251 = vunpack.c.l.b16 %v2855
    %v3252 = vunpack.c.h.b16 %v2855
    %v3253 = vunpack.c.l.b16 %v2856
    %v3254 = vunpack.c.h.b16 %v2856
    %v3255 = vunpack.c.l.b16 %v2857
    %v3256 = vunpack.c.h.b16 %v2857
    %v3257 = vunpack.c.l.b16 %v2858
    %v3258 = vunpack.c.h.b16 %v2858
    %v3259 = vunpack.c.l.b16 %v2859
    %v3260 = vunpack.c.h.b16 %v2859
    %v3261 = vunpack.c.l.b16 %v2860
    %v3262 = vunpack.c.h.b16 %v2860
    %v3263 = vunpack.c.l.b16 %v2861
    %v3264 = vunpack.c.h.b16 %v2861
    %v3265 = vunpack.c.l.b16 %v2862
    %v3266 = vunpack.c.h.b16 %v2862
    %v3267 = vunpack.c.l.b16 %v2863
    %v3268 = vunpack.c.h.b16 %v2863
    %v3269 = vunpack.c.l.b16 %v2864
    %v3270 = vunpack.c.h.b16 %v2864
    %v3271 = vunpack.c.l.b16 %v2865
    %v3272 = vunpack.c.h.b16 %v2865
    %v3273 = vunpack.c.l.b16 %v2866
    %v3274 = vunpack.c.h.b16 %v2866
    %v3275 = vunpack.c.l.b16 %v2867
    %v3276 = vunpack.c.h.b16 %v2867
    %v3277 = vunpack.c.l.b16 %v2868
    %v3278 = vunpack.c.h.b16 %v2868
    %v3279 = vunpack.c.l.b16 %v2869
    %v3280 = vunpack.c.h.b16 %v2869
    %v3281 = vunpack.c.l.b16 %v2870
    %v3282 = vunpack.c.h.b16 %v2870
    %v3283 = vunpack.c.l.b16 %v2871
    %v3284 = vunpack.c.h.b16 %v2871
    %v3285 = vunpack.c.l.b16 %v2872
    %v3286 = vunpack.c.h.b16 %v2872
    %v3287 = vunpack.c.l.b16 %v2873
    %v3288 = vunpack.c.h.b16 %v2873
    %v3289 = vunpack.c.l.b16 %v2874
    %v3290 = vunpack.c.h.b16 %v2874
    %v3291 = vunpack.c.l.b16 %v2875
    %v3292 = vunpack.c.h.b16 %v2875
    %v3293 = vunpack.c.l.b16 %v2876
    %v3294 = vunpack.c.h.b16 %v2876
    %v3295 = vunpack.c.l.b16 %v2877
    %v3296 = vunpack.c.h.b16 %v2877
    %v3297 = vunpack.c.l.b16 %v2878
    %v3298 = vunpack.c.h.b16 %v2878
    %v3299 = vunpack.c.l.b16 %v2879
    %v3300 = vunpack.c.h.b16 %v2879
    %v3301 = vunpack.c.l.b16 %v2880
    %v3302 = vunpack.c.h.b16 %v2880
    %v3303 = vunpack.c.l.b16 %v2881
    %v3304 = vunpack.c.h.b16 %v2881
    %v3305 = vunpack.c.l.b16 %v2882
    %v3306 = vunpack.c.h.b16 %v2882
    %v3307 = vpack.c.b16 %v3055, %v3051
    %v3308 = vpack.c.b16 %v3056, %v3052
    %v3309 = vpack.c.b16 %v3057, %v3053
    %v3310 = vpack.c.b16 %v3058, %v3054
    %v3311 = vpack.c.b16 %v3063, %v3059
    %v3312 = vpack.c.b16 %v3064, %v3060
    %v3313 = vpack.c.b16 %v3065, %v3061
    %v3314 = vpack.c.b16 %v3066, %v3062
    %v3315 = vpack.c.b16 %v3071, %v3067
    %v3316 = vpack.c.b16 %v3072, %v3068
    %v3317 = vpack.c.b16 %v3073, %v3069
    %v3318 = vpack.c.b16 %v3074, %v3070
    %v3319 = vpack.c.b16 %v3079, %v3075
    %v3320 = vpack.c.b16 %v3080, %v3076
    %v3321 = vpack.c.b16 %v3081, %v3077
    %v3322 = vpack.c.b16 %v3082, %v3078
    %v3323 = vpack.c.b16 %v3087, %v3083
    %v3324 = vpack.c.b16 %v3088, %v3084
    %v3325 = vpack.c.b16 %v3089, %v3085
    %v3326 = vpack.c.b16 %v3090, %v3086
    %v3327 = vpack.c.b16 %v3095, %v3091
    %v3328 = vpack.c.b16 %v3096, %v3092
    %v3329 = vpack.c.b16 %v3097, %v3093
    %v3330 = vpack.c.b16 %v3098, %v3094
    %v3331 = vpack.c.b16 %v3103, %v3099
    %v3332 = vpack.c.b16 %v3104, %v3100
    %v3333 = vpack.c.b16 %v3105, %v3101
    %v3334 = vpack.c.b16 %v3106, %v3102
    %v3335 = vpack.c.b16 %v3111, %v3107
    %v3336 = vpack.c.b16 %v3112, %v3108
    %v3337 = vpack.c.b16 %v3113, %v3109
    %v3338 = vpack.c.b16 %v3114, %v3110
    %v3339 = vpack.c.b16 %v3119, %v3115
    %v3340 = vpack.c.b16 %v3120, %v3116
    %v3341 = vpack.c.b16 %v3121, %v3117
    %v3342 = vpack.c.b16 %v3122, %v3118
    %v3343 = vpack.c.b16 %v3127, %v3123
    %v3344 = vpack.c.b16 %v3128, %v3124
    %v3345 = vpack.c.b16 %v3129, %v3125
    %v3346 = vpack.c.b16 %v3130, %v3126
    %v3347 = vpack.c.b16 %v3135, %v3131
    %v3348 = vpack.c.b16 %v3136, %v3132
    %v3349 = vpack.c.b16 %v3137, %v3133
    %v3350 = vpack.c.b16 %v3138, %v3134
    %v3351 = vpack.c.b16 %v3143, %v3139
    %v3352 = vpack.c.b16 %v3144, %v3140
    %v3353 = vpack.c.b16 %v3145, %v3141
    %v3354 = vpack.c.b16 %v3146, %v3142
    %v3355 = vpack.c.b16 %v3151, %v3147
    %v3356 = vpack.c.b16 %v3152, %v3148
    %v3357 = vpack.c.b16 %v3153, %v3149
    %v3358 = vpack.c.b16 %v3154, %v3150
    %v3359 = vpack.c.b16 %v3159, %v3155
    %v3360 = vpack.c.b16 %v3160, %v3156
    %v3361 = vpack.c.b16 %v3161, %v3157
    %v3362 = vpack.c.b16 %v3162, %v3158
    %v3363 = vpack.c.b16 %v3167, %v3163
    %v3364 = vpack.c.b16 %v3168, %v3164
    %v3365 = vpack.c.b16 %v3169, %v3165
    %v3366 = vpack.c.b16 %v3170, %v3166
    %v3367 = vpack.c.b16 %v3175, %v3171
    %v3368 = vpack.c.b16 %v3176, %v3172
    %v3369 = vpack.c.b16 %v3177, %v3173
    %v3370 = vpack.c.b16 %v3178, %v3174
    %v3371 = vpack.c.b16 %v3183, %v3179
    %v3372 = vpack.c.b16 %v3184, %v3180
    %v3373 = vpack.c.b16 %v3185, %v3181
    %v3374 = vpack.c.b16 %v3186, %v3182
    %v3375 = vpack.c.b16 %v3191, %v3187
    %v3376 = vpack.c.b16 %v3192, %v3188
    %v3377 = vpack.c.b16 %v3193, %v3189
    %v3378 = vpack.c.b16 %v3194, %v3190
    %v3379 = vpack.c.b16 %v3199, %v3195
    %v3380 = vpack.c.b16 %v3200, %v3196
    %v3381 = vpack.c.b16 %v3201, %v3197
    %v3382 = vpack.c.b16 %v3202, %v3198
    %v3383 = vpack.c.b16 %v3207, %v3203
    %v3384 = vpack.c.b16 %v3208, %v3204
    %v3385 = vpack.c.b16 %v3209, %v3205
    %v3386 = vpack.c.b16 %v3210, %v3206
    %v3387 = vpack.c.b16 %v3215, %v3211
    %v3388 = vpack.c.b16 %v3216, %v3212
    %v3389 = vpack.c.b16 %v3217, %v3213
    %v3390 = vpack.c.b16 %v3218, %v3214
    %v3391 = vpack.c.b16 %v3223, %v3219
    %v3392 = vpack.c.b16 %v3224, %v3220
    %v3393 = vpack.c.b16 %v3225, %v3221
    %v3394 = vpack.c.b16 %v3226, %v3222
    %v3395 = vpack.c.b16 %v3231, %v3227
    %v3396 = vpack.c.b16 %v3232, %v3228
    %v3397 = vpack.c.b16 %v3233, %v3229
    %v3398 = vpack.c.b16 %v3234, %v3230
    %v3399 = vpack.c.b16 %v3239, %v3235
    %v3400 = vpack.c.b16 %v3240, %v3236
    %v3401 = vpack.c.b16 %v3241, %v3237
    %v3402 = vpack.c.b16 %v3242, %v3238
    %v3403 = vpack.c.b16 %v3247, %v3243
    %v3404 = vpack.c.b16 %v3248, %v3244
    %v3405 = vpack.c.b16 %v3249, %v3245
    %v3406 = vpack.c.b16 %v3250, %v3246
    %v3407 = vpack.c.b16 %v3255, %v3251
    %v3408 = vpack.c.b16 %v3256, %v3252
    %v3409 = vpack.c.b16 %v3257, %v3253
    %v3410 = vpack.c.b16 %v3258, %v3254
    %v3411 = vpack.c.b16 %v3263, %v3259
    %v3412 = vpack.c.b16 %v3264, %v3260
    %v3413 = vpack.c.b16 %v3265, %v3261
    %v3414 = vpack.c.b16 %v3266, %v3262
    %v3415 = vpack.c.b16 %v3271, %v3267
    %v3416 = vpack.c.b16 %v3272, %v3268
    %v3417 = vpack.c.b16 %v3273, %v3269
    %v3418 = vpack.c.b16 %v3274, %v3270
    %v3419 = vpack.c.b16 %v3279, %v3275
    %v3420 = vpack.c.b16 %v3280, %v3276
    %v3421 = vpack.c.b16 %v3281, %v3277
    %v3422 = vpack.c.b16 %v3282, %v3278
    %v3423 = vpack.c.b16 %v3287, %v3283
    %v3424 = vpack.c.b16 %v3288, %v3284
    %v3425 = vpack.c.b16 %v3289, %v3285
    %v3426 = vpack.c.b16 %v3290, %v3286
    %v3427 = vpack.c.b16 %v3295, %v3291
    %v3428 = vpack.c.b16 %v3296, %v3292
    %v3429 = vpack.c.b16 %v3297, %v3293
    %v3430 = vpack.c.b16 %v3298, %v3294
    %v3431 = vpack.c.b16 %v3303, %v3299
    %v3432 = vpack.c.b16 %v3304, %v3300
    %v3433 = vpack.c.b16 %v3305, %v3301
    %v3434 = vpack.c.b16 %v3306, %v3302
    %3563 = vmatprep.subr.bf16.mxu0 %v3308
    %3564 = vmatpush1.bf16.msra.mxu0 %v3307
    %3565 = vmatprep.subr.bf16.mxu0 %v3312
    %3566 = vmatpush1.bf16.msra.mxu0 %v3311
    %3567 = vmatprep.subr.bf16.mxu0 %v3316
    %3568 = vmatpush1.bf16.msra.mxu0 %v3315
    %3569 = vmatprep.subr.bf16.mxu0 %v3320
    %3570 = vmatpush1.bf16.msra.mxu0 %v3319
    %3571 = vmatprep.subr.bf16.mxu0 %v3324
    %3572 = vmatpush1.bf16.msra.mxu0 %v3323
    %3573 = vmatprep.subr.bf16.mxu0 %v3328
    %3574 = vmatpush1.bf16.msra.mxu0 %v3327
    %3575 = vmatprep.subr.bf16.mxu0 %v3332
    %3576 = vmatpush1.bf16.msra.mxu0 %v3331
    %3577 = vmatprep.subr.bf16.mxu0 %v3336
    %3578 = vmatpush1.bf16.msra.mxu0 %v3335
    %3579 = vmatprep.subr.bf16.mxu0 %v3340
    %3580 = vmatpush1.bf16.msra.mxu0 %v3339
    %3581 = vmatprep.subr.bf16.mxu0 %v3344
    %3582 = vmatpush1.bf16.msra.mxu0 %v3343
    %3583 = vmatprep.subr.bf16.mxu0 %v3348
    %3584 = vmatpush1.bf16.msra.mxu0 %v3347
    %3585 = vmatprep.subr.bf16.mxu0 %v3352
    %3586 = vmatpush1.bf16.msra.mxu0 %v3351
    %3587 = vmatprep.subr.bf16.mxu0 %v3356
    %3588 = vmatpush1.bf16.msra.mxu0 %v3355
    %3589 = vmatprep.subr.bf16.mxu0 %v3360
    %3590 = vmatpush1.bf16.msra.mxu0 %v3359
    %3591 = vmatprep.subr.bf16.mxu0 %v3364
    %3592 = vmatpush1.bf16.msra.mxu0 %v3363
    %3593 = vmatprep.subr.bf16.mxu0 %v3368
    %3594 = vmatpush1.bf16.msra.mxu0 %v3367
    %3595 = vmatprep.mubr.bf16.mxu0 %v2884
    %3596 = vmatmul.mubr.bf16.gmra.mrb[0].mxu0 %v2883
    %v3597 = vpop.f32.mrb[0].mxu0
    %v3598 = vadd.f32 %v2910, %v3597
    %v3599 = vpop.f32.mrb[0].mxu0
    %v3600 = vadd.f32 %v2914, %v3599
    %v3601 = vpop.f32.mrb[0].mxu0
    %v3602 = vadd.f32 %v2910, %v3601
    %v3603 = vpop.f32.mrb[0].mxu0
    %v3604 = vadd.f32 %v2914, %v3603
    %3605 = vdwg.mxu0
    %3606 = vmatprep.subr.bf16.mxu0 %v3372
    %3607 = vmatpush1.bf16.msra.mxu0 %v3371
    %3608 = vmatprep.subr.bf16.mxu0 %v3376
    %3609 = vmatpush1.bf16.msra.mxu0 %v3375
    %3610 = vmatprep.subr.bf16.mxu0 %v3380
    %3611 = vmatpush1.bf16.msra.mxu0 %v3379
    %3612 = vmatprep.subr.bf16.mxu0 %v3384
    %3613 = vmatpush1.bf16.msra.mxu0 %v3383
    %3614 = vmatprep.subr.bf16.mxu0 %v3388
    %3615 = vmatpush1.bf16.msra.mxu0 %v3387
    %3616 = vmatprep.subr.bf16.mxu0 %v3392
    %3617 = vmatpush1.bf16.msra.mxu0 %v3391
    %3618 = vmatprep.subr.bf16.mxu0 %v3396
    %3619 = vmatpush1.bf16.msra.mxu0 %v3395
    %3620 = vmatprep.subr.bf16.mxu0 %v3400
    %3621 = vmatpush1.bf16.msra.mxu0 %v3399
    %3622 = vmatprep.subr.bf16.mxu0 %v3404
    %3623 = vmatpush1.bf16.msra.mxu0 %v3403
    %3624 = vmatprep.subr.bf16.mxu0 %v3408
    %3625 = vmatpush1.bf16.msra.mxu0 %v3407
    %3626 = vmatprep.subr.bf16.mxu0 %v3412
    %3627 = vmatpush1.bf16.msra.mxu0 %v3411
    %3628 = vmatprep.subr.bf16.mxu0 %v3416
    %3629 = vmatpush1.bf16.msra.mxu0 %v3415
    %3630 = vmatprep.subr.bf16.mxu0 %v3420
    %3631 = vmatpush1.bf16.msra.mxu0 %v3419
    %3632 = vmatprep.subr.bf16.mxu0 %v3424
    %3633 = vmatpush1.bf16.msra.mxu0 %v3423
    %3634 = vmatprep.subr.bf16.mxu0 %v3428
    %3635 = vmatpush1.bf16.msra.mxu0 %v3427
    %3636 = vmatprep.subr.bf16.mxu0 %v3432
    %3637 = vmatpush1.bf16.msra.mxu0 %v3431
    %3638 = vmatprep.mubr.bf16.mxu0 %v2886
    %3639 = vmatmul.mubr.bf16.gmra.mrb[0].mxu0 %v2885
    %v3640 = vpop.f32.mrb[0].mxu0
    %v3641 = vadd.f32 %v3598, %v3640
    %v3642 = vpop.f32.mrb[0].mxu0
    %v3643 = vadd.f32 %v3600, %v3642
    %v3644 = vpop.f32.mrb[0].mxu0
    %v3645 = vadd.f32 %v3602, %v3644
    %v3646 = vpop.f32.mrb[0].mxu0
    %v3647 = vadd.f32 %v3604, %v3646
    %3648 = vdwg.mxu0
    %3649 = vmatprep.subr.bf16.mxu0 %v3310
    %3650 = vmatpush1.bf16.msra.mxu0 %v3309
    %3651 = vmatprep.subr.bf16.mxu0 %v3314
    %3652 = vmatpush1.bf16.msra.mxu0 %v3313
    %3653 = vmatprep.subr.bf16.mxu0 %v3318
    %3654 = vmatpush1.bf16.msra.mxu0 %v3317
    %3655 = vmatprep.subr.bf16.mxu0 %v3322
    %3656 = vmatpush1.bf16.msra.mxu0 %v3321
    %3657 = vmatprep.subr.bf16.mxu0 %v3326
    %3658 = vmatpush1.bf16.msra.mxu0 %v3325
    %3659 = vmatprep.subr.bf16.mxu0 %v3330
    %3660 = vmatpush1.bf16.msra.mxu0 %v3329
    %3661 = vmatprep.subr.bf16.mxu0 %v3334
    %3662 = vmatpush1.bf16.msra.mxu0 %v3333
    %3663 = vmatprep.subr.bf16.mxu0 %v3338
    %3664 = vmatpush1.bf16.msra.mxu0 %v3337
    %3665 = vmatprep.subr.bf16.mxu0 %v3342
    %3666 = vmatpush1.bf16.msra.mxu0 %v3341
    %3667 = vmatprep.subr.bf16.mxu0 %v3346
    %3668 = vmatpush1.bf16.msra.mxu0 %v3345
    %3669 = vmatprep.subr.bf16.mxu0 %v3350
    %3670 = vmatpush1.bf16.msra.mxu0 %v3349
    %3671 = vmatprep.subr.bf16.mxu0 %v3354
    %3672 = vmatpush1.bf16.msra.mxu0 %v3353
    %3673 = vmatprep.subr.bf16.mxu0 %v3358
    %3674 = vmatpush1.bf16.msra.mxu0 %v3357
    %3675 = vmatprep.subr.bf16.mxu0 %v3362
    %3676 = vmatpush1.bf16.msra.mxu0 %v3361
    %3677 = vmatprep.subr.bf16.mxu0 %v3366
    %3678 = vmatpush1.bf16.msra.mxu0 %v3365
    %3679 = vmatprep.subr.bf16.mxu0 %v3370
    %3680 = vmatpush1.bf16.msra.mxu0 %v3369
    %3681 = vmatprep.mubr.bf16.mxu0 %v2884
    %3682 = vmatmul.mubr.bf16.gmra.mrb[0].mxu0 %v2883
    %v3683 = vpop.f32.mrb[0].mxu0
    %v3684 = vadd.f32 %v2918, %v3683
    %v3685 = vpop.f32.mrb[0].mxu0
    %v3686 = vadd.f32 %v2922, %v3685
    %v3687 = vpop.f32.mrb[0].mxu0
    %v3688 = vadd.f32 %v2918, %v3687
    %v3689 = vpop.f32.mrb[0].mxu0
    %v3690 = vadd.f32 %v2922, %v3689
    %3691 = vdwg.mxu0
    %3692 = vmatprep.subr.bf16.mxu0 %v3374
    %3693 = vmatpush1.bf16.msra.mxu0 %v3373
    %3694 = vmatprep.subr.bf16.mxu0 %v3378
    %3695 = vmatpush1.bf16.msra.mxu0 %v3377
    %3696 = vmatprep.subr.bf16.mxu0 %v3382
    %3697 = vmatpush1.bf16.msra.mxu0 %v3381
    %3698 = vmatprep.subr.bf16.mxu0 %v3386
    %3699 = vmatpush1.bf16.msra.mxu0 %v3385
    %3700 = vmatprep.subr.bf16.mxu0 %v3390
    %3701 = vmatpush1.bf16.msra.mxu0 %v3389
    %3702 = vmatprep.subr.bf16.mxu0 %v3394
    %3703 = vmatpush1.bf16.msra.mxu0 %v3393
    %3704 = vmatprep.subr.bf16.mxu0 %v3398
    %3705 = vmatpush1.bf16.msra.mxu0 %v3397
    %3706 = vmatprep.subr.bf16.mxu0 %v3402
    %3707 = vmatpush1.bf16.msra.mxu0 %v3401
    %3708 = vmatprep.subr.bf16.mxu0 %v3406
    %3709 = vmatpush1.bf16.msra.mxu0 %v3405
    %3710 = vmatprep.subr.bf16.mxu0 %v3410
    %3711 = vmatpush1.bf16.msra.mxu0 %v3409
    %3712 = vmatprep.subr.bf16.mxu0 %v3414
    %3713 = vmatpush1.bf16.msra.mxu0 %v3413
    %3714 = vmatprep.subr.bf16.mxu0 %v3418
    %3715 = vmatpush1.bf16.msra.mxu0 %v3417
    %3716 = vmatprep.subr.bf16.mxu0 %v3422
    %3717 = vmatpush1.bf16.msra.mxu0 %v3421
    %3718 = vmatprep.subr.bf16.mxu0 %v3426
    %3719 = vmatpush1.bf16.msra.mxu0 %v3425
    %3720 = vmatprep.subr.bf16.mxu0 %v3430
    %3721 = vmatpush1.bf16.msra.mxu0 %v3429
    %3722 = vmatprep.subr.bf16.mxu0 %v3434
    %3723 = vmatpush1.bf16.msra.mxu0 %v3433
    %3724 = vmatprep.mubr.bf16.mxu0 %v2886
    %3725 = vmatmul.mubr.bf16.gmra.mrb[0].mxu0 %v2885
    %v3726 = vpop.f32.mrb[0].mxu0
    %v3727 = vadd.f32 %v3684, %v3726
    %v3728 = vpop.f32.mrb[0].mxu0
    %v3729 = vadd.f32 %v3686, %v3728
    %v3730 = vpop.f32.mrb[0].mxu0
    %v3731 = vadd.f32 %v3688, %v3730
    %v3732 = vpop.f32.mrb[0].mxu0
    %v3733 = vadd.f32 %v3690, %v3732
    %3734 = vdwg.mxu0
    %v3735 = vmul.f32 %v3641, 0.5
    %v3736 = vmul.f32 %v3643, 0.5
    %v3737 = vmul.f32 %v3727, 0.5
    %v3738 = vmul.f32 %v3729, 0.5
    %v3739 = vmul.f32 %v3645, 0.5
    %v3740 = vmul.f32 %v3647, 0.5
    %v3741 = vmul.f32 %v3731, 0.5
    %v3742 = vmul.f32 %v3733, 0.5
    %v3743 = vtanh.pop %v3735
    %v3744 = vtanh.pop %v3736
    %v3745 = vtanh.pop %v3737
    %v3746 = vtanh.pop %v3738
    %v3747 = vtanh.pop %v3739
    %v3748 = vtanh.pop %v3740
    %v3749 = vtanh.pop %v3741
    %v3750 = vtanh.pop %v3742
    %v3751 = vmul.f32 %v3743, 0.5
    %v3752 = vmul.f32 %v3744, 0.5
    %v3753 = vmul.f32 %v3745, 0.5
    %v3754 = vmul.f32 %v3746, 0.5
    %v3755 = vmul.f32 %v3747, 0.5
    %v3756 = vmul.f32 %v3748, 0.5
    %v3757 = vmul.f32 %v3749, 0.5
    %v3758 = vmul.f32 %v3750, 0.5
    %v3759 = vadd.f32 %v3751, 0.5
    %v3760 = vadd.f32 %v3752, 0.5
    %v3761 = vadd.f32 %v3753, 0.5
    %v3762 = vadd.f32 %v3754, 0.5
    %v3763 = vadd.f32 %v3755, 0.5
    %v3764 = vadd.f32 %v3756, 0.5
    %v3765 = vadd.f32 %v3757, 0.5
    %v3766 = vadd.f32 %v3758, 0.5
    %s3767 = scalar_lea.vmem [#allocation8], 2048
    %v3768 = vld [vmem:[%s3767] sm:$0xff]
    %v3769 = vld [vmem:[%s3767 + $0x8] sm:$0xff]
    %v3770 = vld [vmem:[%s3767 + $0x10] sm:$0xff]
    %v3771 = vld [vmem:[%s3767 + $0x18] sm:$0xff]
    %v3772 = vld [vmem:[%s3767 + $0x20] sm:$0xff]
    %v3773 = vld [vmem:[%s3767 + $0x28] sm:$0xff]
    %v3774 = vld [vmem:[%s3767 + $0x30] sm:$0xff]
    %v3775 = vld [vmem:[%s3767 + $0x38] sm:$0xff]
    %v3776 = vld [vmem:[%s3767 + $0x40] sm:$0xff]
    %v3777 = vld [vmem:[%s3767 + $0x48] sm:$0xff]
    %v3778 = vld [vmem:[%s3767 + $0x50] sm:$0xff]
    %v3779 = vld [vmem:[%s3767 + $0x58] sm:$0xff]
    %v3780 = vld [vmem:[%s3767 + $0x60] sm:$0xff]
    %v3781 = vld [vmem:[%s3767 + $0x68] sm:$0xff]
    %v3782 = vld [vmem:[%s3767 + $0x70] sm:$0xff]
    %v3783 = vld [vmem:[%s3767 + $0x78] sm:$0xff]
    %v3784 = vld [vmem:[%s3767 + $0x80] sm:$0xff]
    %v3785 = vld [vmem:[%s3767 + $0x88] sm:$0xff]
    %v3786 = vld [vmem:[%s3767 + $0x90] sm:$0xff]
    %v3787 = vld [vmem:[%s3767 + $0x98] sm:$0xff]
    %v3788 = vld [vmem:[%s3767 + $0xa0] sm:$0xff]
    %v3789 = vld [vmem:[%s3767 + $0xa8] sm:$0xff]
    %v3790 = vld [vmem:[%s3767 + $0xb0] sm:$0xff]
    %v3791 = vld [vmem:[%s3767 + $0xb8] sm:$0xff]
    %v3792 = vld [vmem:[%s3767 + $0xc0] sm:$0xff]
    %v3793 = vld [vmem:[%s3767 + $0xc8] sm:$0xff]
    %v3794 = vld [vmem:[%s3767 + $0xd0] sm:$0xff]
    %v3795 = vld [vmem:[%s3767 + $0xd8] sm:$0xff]
    %v3796 = vld [vmem:[%s3767 + $0xe0] sm:$0xff]
    %v3797 = vld [vmem:[%s3767 + $0xe8] sm:$0xff]
    %v3798 = vld [vmem:[%s3767 + $0xf0] sm:$0xff]
    %v3799 = vld [vmem:[%s3767 + $0xf8] sm:$0xff]
    %v3800 = vld [vmem:[%s3767 + $0x100] sm:$0xff]
    %v3801 = vld [vmem:[%s3767 + $0x108] sm:$0xff]
    %v3802 = vld [vmem:[%s3767 + $0x110] sm:$0xff]
    %v3803 = vld [vmem:[%s3767 + $0x118] sm:$0xff]
    %v3804 = vld [vmem:[%s3767 + $0x120] sm:$0xff]
    %v3805 = vld [vmem:[%s3767 + $0x128] sm:$0xff]
    %v3806 = vld [vmem:[%s3767 + $0x130] sm:$0xff]
    %v3807 = vld [vmem:[%s3767 + $0x138] sm:$0xff]
    %v3808 = vld [vmem:[%s3767 + $0x140] sm:$0xff]
    %v3809 = vld [vmem:[%s3767 + $0x148] sm:$0xff]
    %v3810 = vld [vmem:[%s3767 + $0x150] sm:$0xff]
    %v3811 = vld [vmem:[%s3767 + $0x158] sm:$0xff]
    %v3812 = vld [vmem:[%s3767 + $0x160] sm:$0xff]
    %v3813 = vld [vmem:[%s3767 + $0x168] sm:$0xff]
    %v3814 = vld [vmem:[%s3767 + $0x170] sm:$0xff]
    %v3815 = vld [vmem:[%s3767 + $0x178] sm:$0xff]
    %v3816 = vld [vmem:[%s3767 + $0x180] sm:$0xff]
    %v3817 = vld [vmem:[%s3767 + $0x188] sm:$0xff]
    %v3818 = vld [vmem:[%s3767 + $0x190] sm:$0xff]
    %v3819 = vld [vmem:[%s3767 + $0x198] sm:$0xff]
    %v3820 = vld [vmem:[%s3767 + $0x1a0] sm:$0xff]
    %v3821 = vld [vmem:[%s3767 + $0x1a8] sm:$0xff]
    %v3822 = vld [vmem:[%s3767 + $0x1b0] sm:$0xff]
    %v3823 = vld [vmem:[%s3767 + $0x1b8] sm:$0xff]
    %v3824 = vld [vmem:[%s3767 + $0x1c0] sm:$0xff]
    %v3825 = vld [vmem:[%s3767 + $0x1c8] sm:$0xff]
    %v3826 = vld [vmem:[%s3767 + $0x1d0] sm:$0xff]
    %v3827 = vld [vmem:[%s3767 + $0x1d8] sm:$0xff]
    %v3828 = vld [vmem:[%s3767 + $0x1e0] sm:$0xff]
    %v3829 = vld [vmem:[%s3767 + $0x1e8] sm:$0xff]
    %v3830 = vld [vmem:[%s3767 + $0x1f0] sm:$0xff]
    %v3831 = vld [vmem:[%s3767 + $0x1f8] sm:$0xff]
    %v3832 = vld [vmem:[%s3767 + $0x200] sm:$0xff]
    %v3833 = vld [vmem:[%s3767 + $0x208] sm:$0xff]
    %v3834 = vld [vmem:[%s3767 + $0x210] sm:$0xff]
    %v3835 = vld [vmem:[%s3767 + $0x218] sm:$0xff]
    %v3836 = vld [vmem:[%s3767 + $0x220] sm:$0xff]
    %v3837 = vld [vmem:[%s3767 + $0x228] sm:$0xff]
    %v3838 = vld [vmem:[%s3767 + $0x230] sm:$0xff]
    %v3839 = vld [vmem:[%s3767 + $0x238] sm:$0xff]
    %v3840 = vld [vmem:[%s3767 + $0x240] sm:$0xff]
    %v3841 = vld [vmem:[%s3767 + $0x248] sm:$0xff]
    %v3842 = vld [vmem:[%s3767 + $0x250] sm:$0xff]
    %v3843 = vld [vmem:[%s3767 + $0x258] sm:$0xff]
    %v3844 = vld [vmem:[%s3767 + $0x260] sm:$0xff]
    %v3845 = vld [vmem:[%s3767 + $0x268] sm:$0xff]
    %v3846 = vld [vmem:[%s3767 + $0x270] sm:$0xff]
    %v3847 = vld [vmem:[%s3767 + $0x278] sm:$0xff]
    %v3848 = vld [vmem:[%s3767 + $0x280] sm:$0xff]
    %v3849 = vld [vmem:[%s3767 + $0x288] sm:$0xff]
    %v3850 = vld [vmem:[%s3767 + $0x290] sm:$0xff]
    %v3851 = vld [vmem:[%s3767 + $0x298] sm:$0xff]
    %v3852 = vld [vmem:[%s3767 + $0x2a0] sm:$0xff]
    %v3853 = vld [vmem:[%s3767 + $0x2a8] sm:$0xff]
    %v3854 = vld [vmem:[%s3767 + $0x2b0] sm:$0xff]
    %v3855 = vld [vmem:[%s3767 + $0x2b8] sm:$0xff]
    %v3856 = vld [vmem:[%s3767 + $0x2c0] sm:$0xff]
    %v3857 = vld [vmem:[%s3767 + $0x2c8] sm:$0xff]
    %v3858 = vld [vmem:[%s3767 + $0x2d0] sm:$0xff]
    %v3859 = vld [vmem:[%s3767 + $0x2d8] sm:$0xff]
    %v3860 = vld [vmem:[%s3767 + $0x2e0] sm:$0xff]
    %v3861 = vld [vmem:[%s3767 + $0x2e8] sm:$0xff]
    %v3862 = vld [vmem:[%s3767 + $0x2f0] sm:$0xff]
    %v3863 = vld [vmem:[%s3767 + $0x2f8] sm:$0xff]
    %v3864 = vld [vmem:[%s3767 + $0x300] sm:$0xff]
    %v3865 = vld [vmem:[%s3767 + $0x308] sm:$0xff]
    %v3866 = vld [vmem:[%s3767 + $0x310] sm:$0xff]
    %v3867 = vld [vmem:[%s3767 + $0x318] sm:$0xff]
    %v3868 = vld [vmem:[%s3767 + $0x320] sm:$0xff]
    %v3869 = vld [vmem:[%s3767 + $0x328] sm:$0xff]
    %v3870 = vld [vmem:[%s3767 + $0x330] sm:$0xff]
    %v3871 = vld [vmem:[%s3767 + $0x338] sm:$0xff]
    %v3872 = vld [vmem:[%s3767 + $0x340] sm:$0xff]
    %v3873 = vld [vmem:[%s3767 + $0x348] sm:$0xff]
    %v3874 = vld [vmem:[%s3767 + $0x350] sm:$0xff]
    %v3875 = vld [vmem:[%s3767 + $0x358] sm:$0xff]
    %v3876 = vld [vmem:[%s3767 + $0x360] sm:$0xff]
    %v3877 = vld [vmem:[%s3767 + $0x368] sm:$0xff]
    %v3878 = vld [vmem:[%s3767 + $0x370] sm:$0xff]
    %v3879 = vld [vmem:[%s3767 + $0x378] sm:$0xff]
    %v3880 = vld [vmem:[%s3767 + $0x380] sm:$0xff]
    %v3881 = vld [vmem:[%s3767 + $0x388] sm:$0xff]
    %v3882 = vld [vmem:[%s3767 + $0x390] sm:$0xff]
    %v3883 = vld [vmem:[%s3767 + $0x398] sm:$0xff]
    %v3884 = vld [vmem:[%s3767 + $0x3a0] sm:$0xff]
    %v3885 = vld [vmem:[%s3767 + $0x3a8] sm:$0xff]
    %v3886 = vld [vmem:[%s3767 + $0x3b0] sm:$0xff]
    %v3887 = vld [vmem:[%s3767 + $0x3b8] sm:$0xff]
    %v3888 = vld [vmem:[%s3767 + $0x3c0] sm:$0xff]
    %v3889 = vld [vmem:[%s3767 + $0x3c8] sm:$0xff]
    %v3890 = vld [vmem:[%s3767 + $0x3d0] sm:$0xff]
    %v3891 = vld [vmem:[%s3767 + $0x3d8] sm:$0xff]
    %v3892 = vld [vmem:[%s3767 + $0x3e0] sm:$0xff]
    %v3893 = vld [vmem:[%s3767 + $0x3e8] sm:$0xff]
    %v3894 = vld [vmem:[%s3767 + $0x3f0] sm:$0xff]
    %v3895 = vld [vmem:[%s3767 + $0x3f8] sm:$0xff]
    %v3896 = vpack.c.bf16 %v3763, %v3759
    %v3897 = vpack.c.bf16 %v3764, %v3760
    %v3898 = vpack.c.bf16 %v3765, %v3761
    %v3899 = vpack.c.bf16 %v3766, %v3762
    %v3900 = vlaneseq
    %v3901 = vshrl.u32 %v3900, 7
    %v3902 = vsub.s32 3, %v3901
    %v3903 = vrot.slane %v103, %v3902
    %v3904 = vlaneseq
    %v3905 = vshrl.u32 %v3904, 7
    %v3906 = vsub.s32 7, %v3905
    %v3907 = vrot.slane %v103, %v3906
    %v3908 = vlaneseq
    %v3909 = vshrl.u32 %v3908, 7
    %v3910 = vsub.s32 3, %v3909
    %v3911 = vrot.slane %v104, %v3910
    %v3912 = vlaneseq
    %v3913 = vshrl.u32 %v3912, 7
    %v3914 = vsub.s32 7, %v3913
    %v3915 = vrot.slane %v104, %v3914
    %v3920 = vlaneseq
    %v3921 = vshrl.u32 %v3920, 7
    %v3922 = vsub.s32 3, %v3921
    %v3923 = vrot.slane %v3903, %v3922
    %v3924 = vlaneseq
    %v3925 = vshrl.u32 %v3924, 7
    %v3926 = vsub.s32 3, %v3925
    %v3927 = vrot.slane %v3907, %v3926
    %v3928 = vlaneseq
    %v3929 = vshrl.u32 %v3928, 7
    %v3930 = vsub.s32 3, %v3929
    %v3931 = vrot.slane %v3911, %v3930
    %v3932 = vlaneseq
    %v3933 = vshrl.u32 %v3932, 7
    %v3934 = vsub.s32 3, %v3933
    %v3935 = vrot.slane %v3915, %v3934
    %v4064 = vunpack.c.l.b16 %v3768
    %v4065 = vunpack.c.h.b16 %v3768
    %v4066 = vunpack.c.l.b16 %v3769
    %v4067 = vunpack.c.h.b16 %v3769
    %v4068 = vunpack.c.l.b16 %v3770
    %v4069 = vunpack.c.h.b16 %v3770
    %v4070 = vunpack.c.l.b16 %v3771
    %v4071 = vunpack.c.h.b16 %v3771
    %v4072 = vunpack.c.l.b16 %v3772
    %v4073 = vunpack.c.h.b16 %v3772
    %v4074 = vunpack.c.l.b16 %v3773
    %v4075 = vunpack.c.h.b16 %v3773
    %v4076 = vunpack.c.l.b16 %v3774
    %v4077 = vunpack.c.h.b16 %v3774
    %v4078 = vunpack.c.l.b16 %v3775
    %v4079 = vunpack.c.h.b16 %v3775
    %v4080 = vunpack.c.l.b16 %v3776
    %v4081 = vunpack.c.h.b16 %v3776
    %v4082 = vunpack.c.l.b16 %v3777
    %v4083 = vunpack.c.h.b16 %v3777
    %v4084 = vunpack.c.l.b16 %v3778
    %v4085 = vunpack.c.h.b16 %v3778
    %v4086 = vunpack.c.l.b16 %v3779
    %v4087 = vunpack.c.h.b16 %v3779
    %v4088 = vunpack.c.l.b16 %v3780
    %v4089 = vunpack.c.h.b16 %v3780
    %v4090 = vunpack.c.l.b16 %v3781
    %v4091 = vunpack.c.h.b16 %v3781
    %v4092 = vunpack.c.l.b16 %v3782
    %v4093 = vunpack.c.h.b16 %v3782
    %v4094 = vunpack.c.l.b16 %v3783
    %v4095 = vunpack.c.h.b16 %v3783
    %v4096 = vunpack.c.l.b16 %v3784
    %v4097 = vunpack.c.h.b16 %v3784
    %v4098 = vunpack.c.l.b16 %v3785
    %v4099 = vunpack.c.h.b16 %v3785
    %v4100 = vunpack.c.l.b16 %v3786
    %v4101 = vunpack.c.h.b16 %v3786
    %v4102 = vunpack.c.l.b16 %v3787
    %v4103 = vunpack.c.h.b16 %v3787
    %v4104 = vunpack.c.l.b16 %v3788
    %v4105 = vunpack.c.h.b16 %v3788
    %v4106 = vunpack.c.l.b16 %v3789
    %v4107 = vunpack.c.h.b16 %v3789
    %v4108 = vunpack.c.l.b16 %v3790
    %v4109 = vunpack.c.h.b16 %v3790
    %v4110 = vunpack.c.l.b16 %v3791
    %v4111 = vunpack.c.h.b16 %v3791
    %v4112 = vunpack.c.l.b16 %v3792
    %v4113 = vunpack.c.h.b16 %v3792
    %v4114 = vunpack.c.l.b16 %v3793
    %v4115 = vunpack.c.h.b16 %v3793
    %v4116 = vunpack.c.l.b16 %v3794
    %v4117 = vunpack.c.h.b16 %v3794
    %v4118 = vunpack.c.l.b16 %v3795
    %v4119 = vunpack.c.h.b16 %v3795
    %v4120 = vunpack.c.l.b16 %v3796
    %v4121 = vunpack.c.h.b16 %v3796
    %v4122 = vunpack.c.l.b16 %v3797
    %v4123 = vunpack.c.h.b16 %v3797
    %v4124 = vunpack.c.l.b16 %v3798
    %v4125 = vunpack.c.h.b16 %v3798
    %v4126 = vunpack.c.l.b16 %v3799
    %v4127 = vunpack.c.h.b16 %v3799
    %v4128 = vunpack.c.l.b16 %v3800
    %v4129 = vunpack.c.h.b16 %v3800
    %v4130 = vunpack.c.l.b16 %v3801
    %v4131 = vunpack.c.h.b16 %v3801
    %v4132 = vunpack.c.l.b16 %v3802
    %v4133 = vunpack.c.h.b16 %v3802
    %v4134 = vunpack.c.l.b16 %v3803
    %v4135 = vunpack.c.h.b16 %v3803
    %v4136 = vunpack.c.l.b16 %v3804
    %v4137 = vunpack.c.h.b16 %v3804
    %v4138 = vunpack.c.l.b16 %v3805
    %v4139 = vunpack.c.h.b16 %v3805
    %v4140 = vunpack.c.l.b16 %v3806
    %v4141 = vunpack.c.h.b16 %v3806
    %v4142 = vunpack.c.l.b16 %v3807
    %v4143 = vunpack.c.h.b16 %v3807
    %v4144 = vunpack.c.l.b16 %v3808
    %v4145 = vunpack.c.h.b16 %v3808
    %v4146 = vunpack.c.l.b16 %v3809
    %v4147 = vunpack.c.h.b16 %v3809
    %v4148 = vunpack.c.l.b16 %v3810
    %v4149 = vunpack.c.h.b16 %v3810
    %v4150 = vunpack.c.l.b16 %v3811
    %v4151 = vunpack.c.h.b16 %v3811
    %v4152 = vunpack.c.l.b16 %v3812
    %v4153 = vunpack.c.h.b16 %v3812
    %v4154 = vunpack.c.l.b16 %v3813
    %v4155 = vunpack.c.h.b16 %v3813
    %v4156 = vunpack.c.l.b16 %v3814
    %v4157 = vunpack.c.h.b16 %v3814
    %v4158 = vunpack.c.l.b16 %v3815
    %v4159 = vunpack.c.h.b16 %v3815
    %v4160 = vunpack.c.l.b16 %v3816
    %v4161 = vunpack.c.h.b16 %v3816
    %v4162 = vunpack.c.l.b16 %v3817
    %v4163 = vunpack.c.h.b16 %v3817
    %v4164 = vunpack.c.l.b16 %v3818
    %v4165 = vunpack.c.h.b16 %v3818
    %v4166 = vunpack.c.l.b16 %v3819
    %v4167 = vunpack.c.h.b16 %v3819
    %v4168 = vunpack.c.l.b16 %v3820
    %v4169 = vunpack.c.h.b16 %v3820
    %v4170 = vunpack.c.l.b16 %v3821
    %v4171 = vunpack.c.h.b16 %v3821
    %v4172 = vunpack.c.l.b16 %v3822
    %v4173 = vunpack.c.h.b16 %v3822
    %v4174 = vunpack.c.l.b16 %v3823
    %v4175 = vunpack.c.h.b16 %v3823
    %v4176 = vunpack.c.l.b16 %v3824
    %v4177 = vunpack.c.h.b16 %v3824
    %v4178 = vunpack.c.l.b16 %v3825
    %v4179 = vunpack.c.h.b16 %v3825
    %v4180 = vunpack.c.l.b16 %v3826
    %v4181 = vunpack.c.h.b16 %v3826
    %v4182 = vunpack.c.l.b16 %v3827
    %v4183 = vunpack.c.h.b16 %v3827
    %v4184 = vunpack.c.l.b16 %v3828
    %v4185 = vunpack.c.h.b16 %v3828
    %v4186 = vunpack.c.l.b16 %v3829
    %v4187 = vunpack.c.h.b16 %v3829
    %v4188 = vunpack.c.l.b16 %v3830
    %v4189 = vunpack.c.h.b16 %v3830
    %v4190 = vunpack.c.l.b16 %v3831
    %v4191 = vunpack.c.h.b16 %v3831
    %v4192 = vunpack.c.l.b16 %v3832
    %v4193 = vunpack.c.h.b16 %v3832
    %v4194 = vunpack.c.l.b16 %v3833
    %v4195 = vunpack.c.h.b16 %v3833
    %v4196 = vunpack.c.l.b16 %v3834
    %v4197 = vunpack.c.h.b16 %v3834
    %v4198 = vunpack.c.l.b16 %v3835
    %v4199 = vunpack.c.h.b16 %v3835
    %v4200 = vunpack.c.l.b16 %v3836
    %v4201 = vunpack.c.h.b16 %v3836
    %v4202 = vunpack.c.l.b16 %v3837
    %v4203 = vunpack.c.h.b16 %v3837
    %v4204 = vunpack.c.l.b16 %v3838
    %v4205 = vunpack.c.h.b16 %v3838
    %v4206 = vunpack.c.l.b16 %v3839
    %v4207 = vunpack.c.h.b16 %v3839
    %v4208 = vunpack.c.l.b16 %v3840
    %v4209 = vunpack.c.h.b16 %v3840
    %v4210 = vunpack.c.l.b16 %v3841
    %v4211 = vunpack.c.h.b16 %v3841
    %v4212 = vunpack.c.l.b16 %v3842
    %v4213 = vunpack.c.h.b16 %v3842
    %v4214 = vunpack.c.l.b16 %v3843
    %v4215 = vunpack.c.h.b16 %v3843
    %v4216 = vunpack.c.l.b16 %v3844
    %v4217 = vunpack.c.h.b16 %v3844
    %v4218 = vunpack.c.l.b16 %v3845
    %v4219 = vunpack.c.h.b16 %v3845
    %v4220 = vunpack.c.l.b16 %v3846
    %v4221 = vunpack.c.h.b16 %v3846
    %v4222 = vunpack.c.l.b16 %v3847
    %v4223 = vunpack.c.h.b16 %v3847
    %v4224 = vunpack.c.l.b16 %v3848
    %v4225 = vunpack.c.h.b16 %v3848
    %v4226 = vunpack.c.l.b16 %v3849
    %v4227 = vunpack.c.h.b16 %v3849
    %v4228 = vunpack.c.l.b16 %v3850
    %v4229 = vunpack.c.h.b16 %v3850
    %v4230 = vunpack.c.l.b16 %v3851
    %v4231 = vunpack.c.h.b16 %v3851
    %v4232 = vunpack.c.l.b16 %v3852
    %v4233 = vunpack.c.h.b16 %v3852
    %v4234 = vunpack.c.l.b16 %v3853
    %v4235 = vunpack.c.h.b16 %v3853
    %v4236 = vunpack.c.l.b16 %v3854
    %v4237 = vunpack.c.h.b16 %v3854
    %v4238 = vunpack.c.l.b16 %v3855
    %v4239 = vunpack.c.h.b16 %v3855
    %v4240 = vunpack.c.l.b16 %v3856
    %v4241 = vunpack.c.h.b16 %v3856
    %v4242 = vunpack.c.l.b16 %v3857
    %v4243 = vunpack.c.h.b16 %v3857
    %v4244 = vunpack.c.l.b16 %v3858
    %v4245 = vunpack.c.h.b16 %v3858
    %v4246 = vunpack.c.l.b16 %v3859
    %v4247 = vunpack.c.h.b16 %v3859
    %v4248 = vunpack.c.l.b16 %v3860
    %v4249 = vunpack.c.h.b16 %v3860
    %v4250 = vunpack.c.l.b16 %v3861
    %v4251 = vunpack.c.h.b16 %v3861
    %v4252 = vunpack.c.l.b16 %v3862
    %v4253 = vunpack.c.h.b16 %v3862
    %v4254 = vunpack.c.l.b16 %v3863
    %v4255 = vunpack.c.h.b16 %v3863
    %v4256 = vunpack.c.l.b16 %v3864
    %v4257 = vunpack.c.h.b16 %v3864
    %v4258 = vunpack.c.l.b16 %v3865
    %v4259 = vunpack.c.h.b16 %v3865
    %v4260 = vunpack.c.l.b16 %v3866
    %v4261 = vunpack.c.h.b16 %v3866
    %v4262 = vunpack.c.l.b16 %v3867
    %v4263 = vunpack.c.h.b16 %v3867
    %v4264 = vunpack.c.l.b16 %v3868
    %v4265 = vunpack.c.h.b16 %v3868
    %v4266 = vunpack.c.l.b16 %v3869
    %v4267 = vunpack.c.h.b16 %v3869
    %v4268 = vunpack.c.l.b16 %v3870
    %v4269 = vunpack.c.h.b16 %v3870
    %v4270 = vunpack.c.l.b16 %v3871
    %v4271 = vunpack.c.h.b16 %v3871
    %v4272 = vunpack.c.l.b16 %v3872
    %v4273 = vunpack.c.h.b16 %v3872
    %v4274 = vunpack.c.l.b16 %v3873
    %v4275 = vunpack.c.h.b16 %v3873
    %v4276 = vunpack.c.l.b16 %v3874
    %v4277 = vunpack.c.h.b16 %v3874
    %v4278 = vunpack.c.l.b16 %v3875
    %v4279 = vunpack.c.h.b16 %v3875
    %v4280 = vunpack.c.l.b16 %v3876
    %v4281 = vunpack.c.h.b16 %v3876
    %v4282 = vunpack.c.l.b16 %v3877
    %v4283 = vunpack.c.h.b16 %v3877
    %v4284 = vunpack.c.l.b16 %v3878
    %v4285 = vunpack.c.h.b16 %v3878
    %v4286 = vunpack.c.l.b16 %v3879
    %v4287 = vunpack.c.h.b16 %v3879
    %v4288 = vunpack.c.l.b16 %v3880
    %v4289 = vunpack.c.h.b16 %v3880
    %v4290 = vunpack.c.l.b16 %v3881
    %v4291 = vunpack.c.h.b16 %v3881
    %v4292 = vunpack.c.l.b16 %v3882
    %v4293 = vunpack.c.h.b16 %v3882
    %v4294 = vunpack.c.l.b16 %v3883
    %v4295 = vunpack.c.h.b16 %v3883
    %v4296 = vunpack.c.l.b16 %v3884
    %v4297 = vunpack.c.h.b16 %v3884
    %v4298 = vunpack.c.l.b16 %v3885
    %v4299 = vunpack.c.h.b16 %v3885
    %v4300 = vunpack.c.l.b16 %v3886
    %v4301 = vunpack.c.h.b16 %v3886
    %v4302 = vunpack.c.l.b16 %v3887
    %v4303 = vunpack.c.h.b16 %v3887
    %v4304 = vunpack.c.l.b16 %v3888
    %v4305 = vunpack.c.h.b16 %v3888
    %v4306 = vunpack.c.l.b16 %v3889
    %v4307 = vunpack.c.h.b16 %v3889
    %v4308 = vunpack.c.l.b16 %v3890
    %v4309 = vunpack.c.h.b16 %v3890
    %v4310 = vunpack.c.l.b16 %v3891
    %v4311 = vunpack.c.h.b16 %v3891
    %v4312 = vunpack.c.l.b16 %v3892
    %v4313 = vunpack.c.h.b16 %v3892
    %v4314 = vunpack.c.l.b16 %v3893
    %v4315 = vunpack.c.h.b16 %v3893
    %v4316 = vunpack.c.l.b16 %v3894
    %v4317 = vunpack.c.h.b16 %v3894
    %v4318 = vunpack.c.l.b16 %v3895
    %v4319 = vunpack.c.h.b16 %v3895
    %v4320 = vpack.c.b16 %v4068, %v4064
    %v4321 = vpack.c.b16 %v4069, %v4065
    %v4322 = vpack.c.b16 %v4070, %v4066
    %v4323 = vpack.c.b16 %v4071, %v4067
    %v4324 = vpack.c.b16 %v4076, %v4072
    %v4325 = vpack.c.b16 %v4077, %v4073
    %v4326 = vpack.c.b16 %v4078, %v4074
    %v4327 = vpack.c.b16 %v4079, %v4075
    %v4328 = vpack.c.b16 %v4084, %v4080
    %v4329 = vpack.c.b16 %v4085, %v4081
    %v4330 = vpack.c.b16 %v4086, %v4082
    %v4331 = vpack.c.b16 %v4087, %v4083
    %v4332 = vpack.c.b16 %v4092, %v4088
    %v4333 = vpack.c.b16 %v4093, %v4089
    %v4334 = vpack.c.b16 %v4094, %v4090
    %v4335 = vpack.c.b16 %v4095, %v4091
    %v4336 = vpack.c.b16 %v4100, %v4096
    %v4337 = vpack.c.b16 %v4101, %v4097
    %v4338 = vpack.c.b16 %v4102, %v4098
    %v4339 = vpack.c.b16 %v4103, %v4099
    %v4340 = vpack.c.b16 %v4108, %v4104
    %v4341 = vpack.c.b16 %v4109, %v4105
    %v4342 = vpack.c.b16 %v4110, %v4106
    %v4343 = vpack.c.b16 %v4111, %v4107
    %v4344 = vpack.c.b16 %v4116, %v4112
    %v4345 = vpack.c.b16 %v4117, %v4113
    %v4346 = vpack.c.b16 %v4118, %v4114
    %v4347 = vpack.c.b16 %v4119, %v4115
    %v4348 = vpack.c.b16 %v4124, %v4120
    %v4349 = vpack.c.b16 %v4125, %v4121
    %v4350 = vpack.c.b16 %v4126, %v4122
    %v4351 = vpack.c.b16 %v4127, %v4123
    %v4352 = vpack.c.b16 %v4132, %v4128
    %v4353 = vpack.c.b16 %v4133, %v4129
    %v4354 = vpack.c.b16 %v4134, %v4130
    %v4355 = vpack.c.b16 %v4135, %v4131
    %v4356 = vpack.c.b16 %v4140, %v4136
    %v4357 = vpack.c.b16 %v4141, %v4137
    %v4358 = vpack.c.b16 %v4142, %v4138
    %v4359 = vpack.c.b16 %v4143, %v4139
    %v4360 = vpack.c.b16 %v4148, %v4144
    %v4361 = vpack.c.b16 %v4149, %v4145
    %v4362 = vpack.c.b16 %v4150, %v4146
    %v4363 = vpack.c.b16 %v4151, %v4147
    %v4364 = vpack.c.b16 %v4156, %v4152
    %v4365 = vpack.c.b16 %v4157, %v4153
    %v4366 = vpack.c.b16 %v4158, %v4154
    %v4367 = vpack.c.b16 %v4159, %v4155
    %v4368 = vpack.c.b16 %v4164, %v4160
    %v4369 = vpack.c.b16 %v4165, %v4161
    %v4370 = vpack.c.b16 %v4166, %v4162
    %v4371 = vpack.c.b16 %v4167, %v4163
    %v4372 = vpack.c.b16 %v4172, %v4168
    %v4373 = vpack.c.b16 %v4173, %v4169
    %v4374 = vpack.c.b16 %v4174, %v4170
    %v4375 = vpack.c.b16 %v4175, %v4171
    %v4376 = vpack.c.b16 %v4180, %v4176
    %v4377 = vpack.c.b16 %v4181, %v4177
    %v4378 = vpack.c.b16 %v4182, %v4178
    %v4379 = vpack.c.b16 %v4183, %v4179
    %v4380 = vpack.c.b16 %v4188, %v4184
    %v4381 = vpack.c.b16 %v4189, %v4185
    %v4382 = vpack.c.b16 %v4190, %v4186
    %v4383 = vpack.c.b16 %v4191, %v4187
    %v4384 = vpack.c.b16 %v4196, %v4192
    %v4385 = vpack.c.b16 %v4197, %v4193
    %v4386 = vpack.c.b16 %v4198, %v4194
    %v4387 = vpack.c.b16 %v4199, %v4195
    %v4388 = vpack.c.b16 %v4204, %v4200
    %v4389 = vpack.c.b16 %v4205, %v4201
    %v4390 = vpack.c.b16 %v4206, %v4202
    %v4391 = vpack.c.b16 %v4207, %v4203
    %v4392 = vpack.c.b16 %v4212, %v4208
    %v4393 = vpack.c.b16 %v4213, %v4209
    %v4394 = vpack.c.b16 %v4214, %v4210
    %v4395 = vpack.c.b16 %v4215, %v4211
    %v4396 = vpack.c.b16 %v4220, %v4216
    %v4397 = vpack.c.b16 %v4221, %v4217
    %v4398 = vpack.c.b16 %v4222, %v4218
    %v4399 = vpack.c.b16 %v4223, %v4219
    %v4400 = vpack.c.b16 %v4228, %v4224
    %v4401 = vpack.c.b16 %v4229, %v4225
    %v4402 = vpack.c.b16 %v4230, %v4226
    %v4403 = vpack.c.b16 %v4231, %v4227
    %v4404 = vpack.c.b16 %v4236, %v4232
    %v4405 = vpack.c.b16 %v4237, %v4233
    %v4406 = vpack.c.b16 %v4238, %v4234
    %v4407 = vpack.c.b16 %v4239, %v4235
    %v4408 = vpack.c.b16 %v4244, %v4240
    %v4409 = vpack.c.b16 %v4245, %v4241
    %v4410 = vpack.c.b16 %v4246, %v4242
    %v4411 = vpack.c.b16 %v4247, %v4243
    %v4412 = vpack.c.b16 %v4252, %v4248
    %v4413 = vpack.c.b16 %v4253, %v4249
    %v4414 = vpack.c.b16 %v4254, %v4250
    %v4415 = vpack.c.b16 %v4255, %v4251
    %v4416 = vpack.c.b16 %v4260, %v4256
    %v4417 = vpack.c.b16 %v4261, %v4257
    %v4418 = vpack.c.b16 %v4262, %v4258
    %v4419 = vpack.c.b16 %v4263, %v4259
    %v4420 = vpack.c.b16 %v4268, %v4264
    %v4421 = vpack.c.b16 %v4269, %v4265
    %v4422 = vpack.c.b16 %v4270, %v4266
    %v4423 = vpack.c.b16 %v4271, %v4267
    %v4424 = vpack.c.b16 %v4276, %v4272
    %v4425 = vpack.c.b16 %v4277, %v4273
    %v4426 = vpack.c.b16 %v4278, %v4274
    %v4427 = vpack.c.b16 %v4279, %v4275
    %v4428 = vpack.c.b16 %v4284, %v4280
    %v4429 = vpack.c.b16 %v4285, %v4281
    %v4430 = vpack.c.b16 %v4286, %v4282
    %v4431 = vpack.c.b16 %v4287, %v4283
    %v4432 = vpack.c.b16 %v4292, %v4288
    %v4433 = vpack.c.b16 %v4293, %v4289
    %v4434 = vpack.c.b16 %v4294, %v4290
    %v4435 = vpack.c.b16 %v4295, %v4291
    %v4436 = vpack.c.b16 %v4300, %v4296
    %v4437 = vpack.c.b16 %v4301, %v4297
    %v4438 = vpack.c.b16 %v4302, %v4298
    %v4439 = vpack.c.b16 %v4303, %v4299
    %v4440 = vpack.c.b16 %v4308, %v4304
    %v4441 = vpack.c.b16 %v4309, %v4305
    %v4442 = vpack.c.b16 %v4310, %v4306
    %v4443 = vpack.c.b16 %v4311, %v4307
    %v4444 = vpack.c.b16 %v4316, %v4312
    %v4445 = vpack.c.b16 %v4317, %v4313
    %v4446 = vpack.c.b16 %v4318, %v4314
    %v4447 = vpack.c.b16 %v4319, %v4315
    %4576 = vmatprep.subr.bf16.mxu0 %v4321
    %4577 = vmatpush1.bf16.msra.mxu0 %v4320
    %4578 = vmatprep.subr.bf16.mxu0 %v4325
    %4579 = vmatpush1.bf16.msra.mxu0 %v4324
    %4580 = vmatprep.subr.bf16.mxu0 %v4329
    %4581 = vmatpush1.bf16.msra.mxu0 %v4328
    %4582 = vmatprep.subr.bf16.mxu0 %v4333
    %4583 = vmatpush1.bf16.msra.mxu0 %v4332
    %4584 = vmatprep.subr.bf16.mxu0 %v4337
    %4585 = vmatpush1.bf16.msra.mxu0 %v4336
    %4586 = vmatprep.subr.bf16.mxu0 %v4341
    %4587 = vmatpush1.bf16.msra.mxu0 %v4340
    %4588 = vmatprep.subr.bf16.mxu0 %v4345
    %4589 = vmatpush1.bf16.msra.mxu0 %v4344
    %4590 = vmatprep.subr.bf16.mxu0 %v4349
    %4591 = vmatpush1.bf16.msra.mxu0 %v4348
    %4592 = vmatprep.subr.bf16.mxu0 %v4353
    %4593 = vmatpush1.bf16.msra.mxu0 %v4352
    %4594 = vmatprep.subr.bf16.mxu0 %v4357
    %4595 = vmatpush1.bf16.msra.mxu0 %v4356
    %4596 = vmatprep.subr.bf16.mxu0 %v4361
    %4597 = vmatpush1.bf16.msra.mxu0 %v4360
    %4598 = vmatprep.subr.bf16.mxu0 %v4365
    %4599 = vmatpush1.bf16.msra.mxu0 %v4364
    %4600 = vmatprep.subr.bf16.mxu0 %v4369
    %4601 = vmatpush1.bf16.msra.mxu0 %v4368
    %4602 = vmatprep.subr.bf16.mxu0 %v4373
    %4603 = vmatpush1.bf16.msra.mxu0 %v4372
    %4604 = vmatprep.subr.bf16.mxu0 %v4377
    %4605 = vmatpush1.bf16.msra.mxu0 %v4376
    %4606 = vmatprep.subr.bf16.mxu0 %v4381
    %4607 = vmatpush1.bf16.msra.mxu0 %v4380
    %4608 = vmatprep.mubr.bf16.mxu0 %v3897
    %4609 = vmatmul.mubr.bf16.gmra.mrb[0].mxu0 %v3896
    %v4610 = vpop.f32.mrb[0].mxu0
    %v4611 = vadd.f32 %v3923, %v4610
    %v4612 = vpop.f32.mrb[0].mxu0
    %v4613 = vadd.f32 %v3927, %v4612
    %v4614 = vpop.f32.mrb[0].mxu0
    %v4615 = vadd.f32 %v3923, %v4614
    %v4616 = vpop.f32.mrb[0].mxu0
    %v4617 = vadd.f32 %v3927, %v4616
    %4618 = vdwg.mxu0
    %4619 = vmatprep.subr.bf16.mxu0 %v4385
    %4620 = vmatpush1.bf16.msra.mxu0 %v4384
    %4621 = vmatprep.subr.bf16.mxu0 %v4389
    %4622 = vmatpush1.bf16.msra.mxu0 %v4388
    %4623 = vmatprep.subr.bf16.mxu0 %v4393
    %4624 = vmatpush1.bf16.msra.mxu0 %v4392
    %4625 = vmatprep.subr.bf16.mxu0 %v4397
    %4626 = vmatpush1.bf16.msra.mxu0 %v4396
    %4627 = vmatprep.subr.bf16.mxu0 %v4401
    %4628 = vmatpush1.bf16.msra.mxu0 %v4400
    %4629 = vmatprep.subr.bf16.mxu0 %v4405
    %4630 = vmatpush1.bf16.msra.mxu0 %v4404
    %4631 = vmatprep.subr.bf16.mxu0 %v4409
    %4632 = vmatpush1.bf16.msra.mxu0 %v4408
    %4633 = vmatprep.subr.bf16.mxu0 %v4413
    %4634 = vmatpush1.bf16.msra.mxu0 %v4412
    %4635 = vmatprep.subr.bf16.mxu0 %v4417
    %4636 = vmatpush1.bf16.msra.mxu0 %v4416
    %4637 = vmatprep.subr.bf16.mxu0 %v4421
    %4638 = vmatpush1.bf16.msra.mxu0 %v4420
    %4639 = vmatprep.subr.bf16.mxu0 %v4425
    %4640 = vmatpush1.bf16.msra.mxu0 %v4424
    %4641 = vmatprep.subr.bf16.mxu0 %v4429
    %4642 = vmatpush1.bf16.msra.mxu0 %v4428
    %4643 = vmatprep.subr.bf16.mxu0 %v4433
    %4644 = vmatpush1.bf16.msra.mxu0 %v4432
    %4645 = vmatprep.subr.bf16.mxu0 %v4437
    %4646 = vmatpush1.bf16.msra.mxu0 %v4436
    %4647 = vmatprep.subr.bf16.mxu0 %v4441
    %4648 = vmatpush1.bf16.msra.mxu0 %v4440
    %4649 = vmatprep.subr.bf16.mxu0 %v4445
    %4650 = vmatpush1.bf16.msra.mxu0 %v4444
    %4651 = vmatprep.mubr.bf16.mxu0 %v3899
    %4652 = vmatmul.mubr.bf16.gmra.mrb[0].mxu0 %v3898
    %v4653 = vpop.f32.mrb[0].mxu0
    %v4654 = vadd.f32 %v4611, %v4653
    %v4655 = vpop.f32.mrb[0].mxu0
    %v4656 = vadd.f32 %v4613, %v4655
    %v4657 = vpop.f32.mrb[0].mxu0
    %v4658 = vadd.f32 %v4615, %v4657
    %v4659 = vpop.f32.mrb[0].mxu0
    %v4660 = vadd.f32 %v4617, %v4659
    %4661 = vdwg.mxu0
    %4662 = vmatprep.subr.bf16.mxu0 %v4323
    %4663 = vmatpush1.bf16.msra.mxu0 %v4322
    %4664 = vmatprep.subr.bf16.mxu0 %v4327
    %4665 = vmatpush1.bf16.msra.mxu0 %v4326
    %4666 = vmatprep.subr.bf16.mxu0 %v4331
    %4667 = vmatpush1.bf16.msra.mxu0 %v4330
    %4668 = vmatprep.subr.bf16.mxu0 %v4335
    %4669 = vmatpush1.bf16.msra.mxu0 %v4334
    %4670 = vmatprep.subr.bf16.mxu0 %v4339
    %4671 = vmatpush1.bf16.msra.mxu0 %v4338
    %4672 = vmatprep.subr.bf16.mxu0 %v4343
    %4673 = vmatpush1.bf16.msra.mxu0 %v4342
    %4674 = vmatprep.subr.bf16.mxu0 %v4347
    %4675 = vmatpush1.bf16.msra.mxu0 %v4346
    %4676 = vmatprep.subr.bf16.mxu0 %v4351
    %4677 = vmatpush1.bf16.msra.mxu0 %v4350
    %4678 = vmatprep.subr.bf16.mxu0 %v4355
    %4679 = vmatpush1.bf16.msra.mxu0 %v4354
    %4680 = vmatprep.subr.bf16.mxu0 %v4359
    %4681 = vmatpush1.bf16.msra.mxu0 %v4358
    %4682 = vmatprep.subr.bf16.mxu0 %v4363
    %4683 = vmatpush1.bf16.msra.mxu0 %v4362
    %4684 = vmatprep.subr.bf16.mxu0 %v4367
    %4685 = vmatpush1.bf16.msra.mxu0 %v4366
    %4686 = vmatprep.subr.bf16.mxu0 %v4371
    %4687 = vmatpush1.bf16.msra.mxu0 %v4370
    %4688 = vmatprep.subr.bf16.mxu0 %v4375
    %4689 = vmatpush1.bf16.msra.mxu0 %v4374
    %4690 = vmatprep.subr.bf16.mxu0 %v4379
    %4691 = vmatpush1.bf16.msra.mxu0 %v4378
    %4692 = vmatprep.subr.bf16.mxu0 %v4383
    %4693 = vmatpush1.bf16.msra.mxu0 %v4382
    %4694 = vmatprep.mubr.bf16.mxu0 %v3897
    %4695 = vmatmul.mubr.bf16.gmra.mrb[0].mxu0 %v3896
    %v4696 = vpop.f32.mrb[0].mxu0
    %v4697 = vadd.f32 %v3931, %v4696
    %v4698 = vpop.f32.mrb[0].mxu0
    %v4699 = vadd.f32 %v3935, %v4698
    %v4700 = vpop.f32.mrb[0].mxu0
    %v4701 = vadd.f32 %v3931, %v4700
    %v4702 = vpop.f32.mrb[0].mxu0
    %v4703 = vadd.f32 %v3935, %v4702
    %4704 = vdwg.mxu0
    %4705 = vmatprep.subr.bf16.mxu0 %v4387
    %4706 = vmatpush1.bf16.msra.mxu0 %v4386
    %4707 = vmatprep.subr.bf16.mxu0 %v4391
    %4708 = vmatpush1.bf16.msra.mxu0 %v4390
    %4709 = vmatprep.subr.bf16.mxu0 %v4395
    %4710 = vmatpush1.bf16.msra.mxu0 %v4394
    %4711 = vmatprep.subr.bf16.mxu0 %v4399
    %4712 = vmatpush1.bf16.msra.mxu0 %v4398
    %4713 = vmatprep.subr.bf16.mxu0 %v4403
    %4714 = vmatpush1.bf16.msra.mxu0 %v4402
    %4715 = vmatprep.subr.bf16.mxu0 %v4407
    %4716 = vmatpush1.bf16.msra.mxu0 %v4406
    %4717 = vmatprep.subr.bf16.mxu0 %v4411
    %4718 = vmatpush1.bf16.msra.mxu0 %v4410
    %4719 = vmatprep.subr.bf16.mxu0 %v4415
    %4720 = vmatpush1.bf16.msra.mxu0 %v4414
    %4721 = vmatprep.subr.bf16.mxu0 %v4419
    %4722 = vmatpush1.bf16.msra.mxu0 %v4418
    %4723 = vmatprep.subr.bf16.mxu0 %v4423
    %4724 = vmatpush1.bf16.msra.mxu0 %v4422
    %4725 = vmatprep.subr.bf16.mxu0 %v4427
    %4726 = vmatpush1.bf16.msra.mxu0 %v4426
    %4727 = vmatprep.subr.bf16.mxu0 %v4431
    %4728 = vmatpush1.bf16.msra.mxu0 %v4430
    %4729 = vmatprep.subr.bf16.mxu0 %v4435
    %4730 = vmatpush1.bf16.msra.mxu0 %v4434
    %4731 = vmatprep.subr.bf16.mxu0 %v4439
    %4732 = vmatpush1.bf16.msra.mxu0 %v4438
    %4733 = vmatprep.subr.bf16.mxu0 %v4443
    %4734 = vmatpush1.bf16.msra.mxu0 %v4442
    %4735 = vmatprep.subr.bf16.mxu0 %v4447
    %4736 = vmatpush1.bf16.msra.mxu0 %v4446
    %4737 = vmatprep.mubr.bf16.mxu0 %v3899
    %4738 = vmatmul.mubr.bf16.gmra.mrb[0].mxu0 %v3898
    %v4739 = vpop.f32.mrb[0].mxu0
    %v4740 = vadd.f32 %v4697, %v4739
    %v4741 = vpop.f32.mrb[0].mxu0
    %v4742 = vadd.f32 %v4699, %v4741
    %v4743 = vpop.f32.mrb[0].mxu0
    %v4744 = vadd.f32 %v4701, %v4743
    %v4745 = vpop.f32.mrb[0].mxu0
    %v4746 = vadd.f32 %v4703, %v4745
    %4747 = vdwg.mxu0
    %v4748 = vmul.f32 %v4654, 0.5
    %v4749 = vmul.f32 %v4656, 0.5
    %v4750 = vmul.f32 %v4740, 0.5
    %v4751 = vmul.f32 %v4742, 0.5
    %v4752 = vmul.f32 %v4658, 0.5
    %v4753 = vmul.f32 %v4660, 0.5
    %v4754 = vmul.f32 %v4744, 0.5
    %v4755 = vmul.f32 %v4746, 0.5
    %v4756 = vtanh.pop %v4748
    %v4757 = vtanh.pop %v4749
    %v4758 = vtanh.pop %v4750
    %v4759 = vtanh.pop %v4751
    %v4760 = vtanh.pop %v4752
    %v4761 = vtanh.pop %v4753
    %v4762 = vtanh.pop %v4754
    %v4763 = vtanh.pop %v4755
    %v4764 = vmul.f32 %v4756, 0.5
    %v4765 = vmul.f32 %v4757, 0.5
    %v4766 = vmul.f32 %v4758, 0.5
    %v4767 = vmul.f32 %v4759, 0.5
    %v4768 = vmul.f32 %v4760, 0.5
    %v4769 = vmul.f32 %v4761, 0.5
    %v4770 = vmul.f32 %v4762, 0.5
    %v4771 = vmul.f32 %v4763, 0.5
    %v4772 = vadd.f32 %v4764, 0.5
    %v4773 = vadd.f32 %v4765, 0.5
    %v4774 = vadd.f32 %v4766, 0.5
    %v4775 = vadd.f32 %v4767, 0.5
    %v4776 = vadd.f32 %v4768, 0.5
    %v4777 = vadd.f32 %v4769, 0.5
    %v4778 = vadd.f32 %v4770, 0.5
    %v4779 = vadd.f32 %v4771, 0.5
    %v4780 = vld [vmem:[#allocation10] sm:$0xf]
    %v4781 = vld [vmem:[#allocation10 + $0x4] sm:$0xf]
    %v4782 = vld [vmem:[#allocation10 + $0x8] sm:$0xf]
    %v4783 = vld [vmem:[#allocation10 + $0xc] sm:$0xf]
    %v4784 = vld [vmem:[#allocation10 + $0x10] sm:$0xf]
    %v4785 = vld [vmem:[#allocation10 + $0x14] sm:$0xf]
    %v4786 = vld [vmem:[#allocation10 + $0x18] sm:$0xf]
    %v4787 = vld [vmem:[#allocation10 + $0x1c] sm:$0xf]
    %v4788 = vld [vmem:[#allocation10 + $0x20] sm:$0xf]
    %v4789 = vld [vmem:[#allocation10 + $0x24] sm:$0xf]
    %v4790 = vld [vmem:[#allocation10 + $0x28] sm:$0xf]
    %v4791 = vld [vmem:[#allocation10 + $0x2c] sm:$0xf]
    %v4792 = vld [vmem:[#allocation10 + $0x30] sm:$0xf]
    %v4793 = vld [vmem:[#allocation10 + $0x34] sm:$0xf]
    %v4794 = vld [vmem:[#allocation10 + $0x38] sm:$0xf]
    %v4795 = vld [vmem:[#allocation10 + $0x3c] sm:$0xf]
    %v4796 = vld [vmem:[#allocation10 + $0x40] sm:$0xf]
    %v4797 = vld [vmem:[#allocation10 + $0x44] sm:$0xf]
    %v4798 = vld [vmem:[#allocation10 + $0x48] sm:$0xf]
    %v4799 = vld [vmem:[#allocation10 + $0x4c] sm:$0xf]
    %v4800 = vld [vmem:[#allocation10 + $0x50] sm:$0xf]
    %v4801 = vld [vmem:[#allocation10 + $0x54] sm:$0xf]
    %v4802 = vld [vmem:[#allocation10 + $0x58] sm:$0xf]
    %v4803 = vld [vmem:[#allocation10 + $0x5c] sm:$0xf]
    %v4804 = vld [vmem:[#allocation10 + $0x60] sm:$0xf]
    %v4805 = vld [vmem:[#allocation10 + $0x64] sm:$0xf]
    %v4806 = vld [vmem:[#allocation10 + $0x68] sm:$0xf]
    %v4807 = vld [vmem:[#allocation10 + $0x6c] sm:$0xf]
    %v4808 = vld [vmem:[#allocation10 + $0x70] sm:$0xf]
    %v4809 = vld [vmem:[#allocation10 + $0x74] sm:$0xf]
    %v4810 = vld [vmem:[#allocation10 + $0x78] sm:$0xf]
    %v4811 = vld [vmem:[#allocation10 + $0x7c] sm:$0xf]
    %v4812 = vld [vmem:[#allocation10 + $0x80] sm:$0xf]
    %v4813 = vld [vmem:[#allocation10 + $0x84] sm:$0xf]
    %v4814 = vld [vmem:[#allocation10 + $0x88] sm:$0xf]
    %v4815 = vld [vmem:[#allocation10 + $0x8c] sm:$0xf]
    %v4816 = vld [vmem:[#allocation10 + $0x90] sm:$0xf]
    %v4817 = vld [vmem:[#allocation10 + $0x94] sm:$0xf]
    %v4818 = vld [vmem:[#allocation10 + $0x98] sm:$0xf]
    %v4819 = vld [vmem:[#allocation10 + $0x9c] sm:$0xf]
    %v4820 = vld [vmem:[#allocation10 + $0xa0] sm:$0xf]
    %v4821 = vld [vmem:[#allocation10 + $0xa4] sm:$0xf]
    %v4822 = vld [vmem:[#allocation10 + $0xa8] sm:$0xf]
    %v4823 = vld [vmem:[#allocation10 + $0xac] sm:$0xf]
    %v4824 = vld [vmem:[#allocation10 + $0xb0] sm:$0xf]
    %v4825 = vld [vmem:[#allocation10 + $0xb4] sm:$0xf]
    %v4826 = vld [vmem:[#allocation10 + $0xb8] sm:$0xf]
    %v4827 = vld [vmem:[#allocation10 + $0xbc] sm:$0xf]
    %v4828 = vld [vmem:[#allocation10 + $0xc0] sm:$0xf]
    %v4829 = vld [vmem:[#allocation10 + $0xc4] sm:$0xf]
    %v4830 = vld [vmem:[#allocation10 + $0xc8] sm:$0xf]
    %v4831 = vld [vmem:[#allocation10 + $0xcc] sm:$0xf]
    %v4832 = vld [vmem:[#allocation10 + $0xd0] sm:$0xf]
    %v4833 = vld [vmem:[#allocation10 + $0xd4] sm:$0xf]
    %v4834 = vld [vmem:[#allocation10 + $0xd8] sm:$0xf]
    %v4835 = vld [vmem:[#allocation10 + $0xdc] sm:$0xf]
    %v4836 = vld [vmem:[#allocation10 + $0xe0] sm:$0xf]
    %v4837 = vld [vmem:[#allocation10 + $0xe4] sm:$0xf]
    %v4838 = vld [vmem:[#allocation10 + $0xe8] sm:$0xf]
    %v4839 = vld [vmem:[#allocation10 + $0xec] sm:$0xf]
    %v4840 = vld [vmem:[#allocation10 + $0xf0] sm:$0xf]
    %v4841 = vld [vmem:[#allocation10 + $0xf4] sm:$0xf]
    %v4842 = vld [vmem:[#allocation10 + $0xf8] sm:$0xf]
    %v4843 = vld [vmem:[#allocation10 + $0xfc] sm:$0xf]
    %v4844 = vld [vmem:[#allocation11] sm:$0x1]
    %v4845 = vpack.c.bf16 %v4776, %v4772
    %v4846 = vpack.c.bf16 %v4777, %v4773
    %v4847 = vpack.c.bf16 %v4778, %v4774
    %v4848 = vpack.c.bf16 %v4779, %v4775
    %v4850 = vlaneseq
    %v4851 = vshrl.u32 %v4850, 7
    %v4852 = vsub.s32 0, %v4851
    %v4853 = vrot.slane %v4844, %v4852
    %v4919 = vunpack.c.l.b16 %v4780
    %v4920 = vunpack.c.l.b16 %v4781
    %v4921 = vunpack.c.l.b16 %v4782
    %v4922 = vunpack.c.l.b16 %v4783
    %v4923 = vunpack.c.l.b16 %v4784
    %v4924 = vunpack.c.l.b16 %v4785
    %v4925 = vunpack.c.l.b16 %v4786
    %v4926 = vunpack.c.l.b16 %v4787
    %v4927 = vunpack.c.l.b16 %v4788
    %v4928 = vunpack.c.l.b16 %v4789
    %v4929 = vunpack.c.l.b16 %v4790
    %v4930 = vunpack.c.l.b16 %v4791
    %v4931 = vunpack.c.l.b16 %v4792
    %v4932 = vunpack.c.l.b16 %v4793
    %v4933 = vunpack.c.l.b16 %v4794
    %v4934 = vunpack.c.l.b16 %v4795
    %v4935 = vunpack.c.l.b16 %v4796
    %v4936 = vunpack.c.l.b16 %v4797
    %v4937 = vunpack.c.l.b16 %v4798
    %v4938 = vunpack.c.l.b16 %v4799
    %v4939 = vunpack.c.l.b16 %v4800
    %v4940 = vunpack.c.l.b16 %v4801
    %v4941 = vunpack.c.l.b16 %v4802
    %v4942 = vunpack.c.l.b16 %v4803
    %v4943 = vunpack.c.l.b16 %v4804
    %v4944 = vunpack.c.l.b16 %v4805
    %v4945 = vunpack.c.l.b16 %v4806
    %v4946 = vunpack.c.l.b16 %v4807
    %v4947 = vunpack.c.l.b16 %v4808
    %v4948 = vunpack.c.l.b16 %v4809
    %v4949 = vunpack.c.l.b16 %v4810
    %v4950 = vunpack.c.l.b16 %v4811
    %v4951 = vunpack.c.l.b16 %v4812
    %v4952 = vunpack.c.l.b16 %v4813
    %v4953 = vunpack.c.l.b16 %v4814
    %v4954 = vunpack.c.l.b16 %v4815
    %v4955 = vunpack.c.l.b16 %v4816
    %v4956 = vunpack.c.l.b16 %v4817
    %v4957 = vunpack.c.l.b16 %v4818
    %v4958 = vunpack.c.l.b16 %v4819
    %v4959 = vunpack.c.l.b16 %v4820
    %v4960 = vunpack.c.l.b16 %v4821
    %v4961 = vunpack.c.l.b16 %v4822
    %v4962 = vunpack.c.l.b16 %v4823
    %v4963 = vunpack.c.l.b16 %v4824
    %v4964 = vunpack.c.l.b16 %v4825
    %v4965 = vunpack.c.l.b16 %v4826
    %v4966 = vunpack.c.l.b16 %v4827
    %v4967 = vunpack.c.l.b16 %v4828
    %v4968 = vunpack.c.l.b16 %v4829
    %v4969 = vunpack.c.l.b16 %v4830
    %v4970 = vunpack.c.l.b16 %v4831
    %v4971 = vunpack.c.l.b16 %v4832
    %v4972 = vunpack.c.l.b16 %v4833
    %v4973 = vunpack.c.l.b16 %v4834
    %v4974 = vunpack.c.l.b16 %v4835
    %v4975 = vunpack.c.l.b16 %v4836
    %v4976 = vunpack.c.l.b16 %v4837
    %v4977 = vunpack.c.l.b16 %v4838
    %v4978 = vunpack.c.l.b16 %v4839
    %v4979 = vunpack.c.l.b16 %v4840
    %v4980 = vunpack.c.l.b16 %v4841
    %v4981 = vunpack.c.l.b16 %v4842
    %v4982 = vunpack.c.l.b16 %v4843
    %v4983 = vpack.c.b16 %v4920, %v4919
    %v4984 = vpack.c.b16 %v4922, %v4921
    %v4985 = vpack.c.b16 %v4924, %v4923
    %v4986 = vpack.c.b16 %v4926, %v4925
    %v4987 = vpack.c.b16 %v4928, %v4927
    %v4988 = vpack.c.b16 %v4930, %v4929
    %v4989 = vpack.c.b16 %v4932, %v4931
    %v4990 = vpack.c.b16 %v4934, %v4933
    %v4991 = vpack.c.b16 %v4936, %v4935
    %v4992 = vpack.c.b16 %v4938, %v4937
    %v4993 = vpack.c.b16 %v4940, %v4939
    %v4994 = vpack.c.b16 %v4942, %v4941
    %v4995 = vpack.c.b16 %v4944, %v4943
    %v4996 = vpack.c.b16 %v4946, %v4945
    %v4997 = vpack.c.b16 %v4948, %v4947
    %v4998 = vpack.c.b16 %v4950, %v4949
    %v4999 = vpack.c.b16 %v4952, %v4951
    %v5000 = vpack.c.b16 %v4954, %v4953
    %v5001 = vpack.c.b16 %v4956, %v4955
    %v5002 = vpack.c.b16 %v4958, %v4957
    %v5003 = vpack.c.b16 %v4960, %v4959
    %v5004 = vpack.c.b16 %v4962, %v4961
    %v5005 = vpack.c.b16 %v4964, %v4963
    %v5006 = vpack.c.b16 %v4966, %v4965
    %v5007 = vpack.c.b16 %v4968, %v4967
    %v5008 = vpack.c.b16 %v4970, %v4969
    %v5009 = vpack.c.b16 %v4972, %v4971
    %v5010 = vpack.c.b16 %v4974, %v4973
    %v5011 = vpack.c.b16 %v4976, %v4975
    %v5012 = vpack.c.b16 %v4978, %v4977
    %v5013 = vpack.c.b16 %v4980, %v4979
    %v5014 = vpack.c.b16 %v4982, %v4981
    %5047 = vmatprep.subr.bf16.mxu0 0
    %5048 = vmatpush1.bf16.msra.mxu0 %v4983
    %5049 = vmatprep.subr.bf16.mxu0 0
    %5050 = vmatpush1.bf16.msra.mxu0 %v4984
    %5051 = vmatprep.subr.bf16.mxu0 0
    %5052 = vmatpush1.bf16.msra.mxu0 %v4985
    %5053 = vmatprep.subr.bf16.mxu0 0
    %5054 = vmatpush1.bf16.msra.mxu0 %v4986
    %5055 = vmatprep.subr.bf16.mxu0 0
    %5056 = vmatpush1.bf16.msra.mxu0 %v4987
    %5057 = vmatprep.subr.bf16.mxu0 0
    %5058 = vmatpush1.bf16.msra.mxu0 %v4988
    %5059 = vmatprep.subr.bf16.mxu0 0
    %5060 = vmatpush1.bf16.msra.mxu0 %v4989
    %5061 = vmatprep.subr.bf16.mxu0 0
    %5062 = vmatpush1.bf16.msra.mxu0 %v4990
    %5063 = vmatprep.subr.bf16.mxu0 0
    %5064 = vmatpush1.bf16.msra.mxu0 %v4991
    %5065 = vmatprep.subr.bf16.mxu0 0
    %5066 = vmatpush1.bf16.msra.mxu0 %v4992
    %5067 = vmatprep.subr.bf16.mxu0 0
    %5068 = vmatpush1.bf16.msra.mxu0 %v4993
    %5069 = vmatprep.subr.bf16.mxu0 0
    %5070 = vmatpush1.bf16.msra.mxu0 %v4994
    %5071 = vmatprep.subr.bf16.mxu0 0
    %5072 = vmatpush1.bf16.msra.mxu0 %v4995
    %5073 = vmatprep.subr.bf16.mxu0 0
    %5074 = vmatpush1.bf16.msra.mxu0 %v4996
    %5075 = vmatprep.subr.bf16.mxu0 0
    %5076 = vmatpush1.bf16.msra.mxu0 %v4997
    %5077 = vmatprep.subr.bf16.mxu0 0
    %5078 = vmatpush1.bf16.msra.mxu0 %v4998
    %5079 = vmatprep.mubr.bf16.mxu0 %v4846
    %5080 = vmatmul.mubr.bf16.gmra.mrb[0].mxu0 %v4845
    %v5081 = vpop.f32.mrb[0].mxu0
    %v5082 = vadd.f32 %v4853, %v5081
    %v5083 = vpop.f32.mrb[0].mxu0
    %v5084 = vpop.f32.mrb[0].mxu0
    %v5085 = vadd.f32 %v4853, %v5084
    %v5086 = vpop.f32.mrb[0].mxu0
    %5087 = vdwg.mxu0
    %5088 = vmatprep.subr.bf16.mxu0 0
    %5089 = vmatpush1.bf16.msra.mxu0 %v4999
    %5090 = vmatprep.subr.bf16.mxu0 0
    %5091 = vmatpush1.bf16.msra.mxu0 %v5000
    %5092 = vmatprep.subr.bf16.mxu0 0
    %5093 = vmatpush1.bf16.msra.mxu0 %v5001
    %5094 = vmatprep.subr.bf16.mxu0 0
    %5095 = vmatpush1.bf16.msra.mxu0 %v5002
    %5096 = vmatprep.subr.bf16.mxu0 0
    %5097 = vmatpush1.bf16.msra.mxu0 %v5003
    %5098 = vmatprep.subr.bf16.mxu0 0
    %5099 = vmatpush1.bf16.msra.mxu0 %v5004
    %5100 = vmatprep.subr.bf16.mxu0 0
    %5101 = vmatpush1.bf16.msra.mxu0 %v5005
    %5102 = vmatprep.subr.bf16.mxu0 0
    %5103 = vmatpush1.bf16.msra.mxu0 %v5006
    %5104 = vmatprep.subr.bf16.mxu0 0
    %5105 = vmatpush1.bf16.msra.mxu0 %v5007
    %5106 = vmatprep.subr.bf16.mxu0 0
    %5107 = vmatpush1.bf16.msra.mxu0 %v5008
    %5108 = vmatprep.subr.bf16.mxu0 0
    %5109 = vmatpush1.bf16.msra.mxu0 %v5009
    %5110 = vmatprep.subr.bf16.mxu0 0
    %5111 = vmatpush1.bf16.msra.mxu0 %v5010
    %5112 = vmatprep.subr.bf16.mxu0 0
    %5113 = vmatpush1.bf16.msra.mxu0 %v5011
    %5114 = vmatprep.subr.bf16.mxu0 0
    %5115 = vmatpush1.bf16.msra.mxu0 %v5012
    %5116 = vmatprep.subr.bf16.mxu0 0
    %5117 = vmatpush1.bf16.msra.mxu0 %v5013
    %5118 = vmatprep.subr.bf16.mxu0 0
    %5119 = vmatpush1.bf16.msra.mxu0 %v5014
    %5120 = vmatprep.mubr.bf16.mxu0 %v4848
    %5121 = vmatmul.mubr.bf16.gmra.mrb[0].mxu0 %v4847
    %v5122 = vpop.f32.mrb[0].mxu0
    %v5123 = vadd.f32 %v5082, %v5122
    %v5124 = vpop.f32.mrb[0].mxu0
    %v5125 = vpop.f32.mrb[0].mxu0
    %v5126 = vadd.f32 %v5085, %v5125
    %v5127 = vpop.f32.mrb[0].mxu0
    %5128 = vdwg.mxu0
    %v5129 = vlaneseq
    %v5130 = vand.u32 %v5129, 127
    %vm5131 = vcmp.lt.s32.totalorder %v5130, 10
    %v5132 = vsel %vm5131, %v5123, -1e+30
    %v5133 = vsel %vm5131, %v5126, -1e+30
    %5134 = vmax.xlane.f32.xlu0 %v5132
    %v5135 = vpop.xlane.xlu0 %5134
    %5136 = vmax.xlane.f32.xlu0 %v5133
    %v5137 = vpop.xlane.xlu0 %5136
    %v5138 = vsub.f32 %v5132, %v5135
    %v5139 = vsub.f32 %v5133, %v5137
    %v5140 = vmul.f32 %v5138, 1.442695
    %v5141 = vpow.pop %v5140
    %v5142 = vmul.f32 %v5139, 1.442695
    %v5143 = vpow.pop %v5142
    %5144 = vadd.xlane.f32.xlu0 %v5141
    %v5145 = vpop.xlane.xlu0 %5144
    %5146 = vadd.xlane.f32.xlu0 %v5143
    %v5147 = vpop.xlane.xlu0 %5146
    %v5148 = vrcp.pop %v5145
    %v5149 = vrcp.pop %v5147
    %v5150 = vmul.f32 %v5141, %v5148
    %v5151 = vmul.f32 %v5143, %v5149
    %v5152 = vpack.c.bf16 %v5151, %v5150
    %v5154 = vunpack.c.l.b16 %v5152
    %v5155 = vunpack.c.h.b16 %v5152
    %v5156 = vpack.c.b16 %v5154, %v5154
    %v5157 = vpack.c.b16 %v5155, %v5155
    %5160 = vst [vmem:[#allocation13] sm:$0xf] %v5156
    %5161 = vst [vmem:[#allocation13 + $0x4] sm:$0xf] %v5157
    // Predicated region
    $region50: #{tpu_custom_call.1} parent=1 // pred_check
      _
    $region51: #{tpu_custom_call.1} parent=1 // pred_check_branch
      %5163 = sbr.rel (0) target = $region53
    $region52: #{tpu_custom_call.1} parent=1 // pred_region
      %s5165 = ssub.s32 128, 128
      %5166 = vsyncadd [#allocation4], %s5165
      %s5167 = sshll.u32 [#allocation13], 4
      %s5168 = int_to_ptr.vmem [resolvable:$true] %s5167
      %5173 = dma.vmem_to_hbm [thread:$0]  %s5168, 128, %s6, [#allocation4], 64, 64, 4
    $region53: #{tpu_custom_call.1} parent=1 // pred_fallthru
      _
    // Predicated region
    $region54: #{tpu_custom_call.1} parent=1 // pred_check
      _
    $region55: #{tpu_custom_call.1} parent=1 // pred_check_branch
      %5175 = sbr.rel (0) target = $region57
    $region56: #{tpu_custom_call.1} parent=1 // pred_region
      %5176 = dma.done [#allocation4], 128
    $region57: #{tpu_custom_call.1} parent=1 // pred_fallthru
      _
    %5177 = vsyncpa [#allocation3], 1
    %5178 = vsyncpa [#allocation6], 1
    %5179 = vsyncpa [#allocation9], 1
    %5180 = vsyncpa [#allocation12], 1
    %5181 = vsyncpa [#allocation4], 1

</llo_original>
